<compile_context>
chip_gen: v5e
topology: v5e:2x2
jax: 0.10.0
libtpu: 0.0.40
codegen_flags: <defaults>
</compile_context>

<pallas_src>
import functools

import jax
import jax.numpy as jnp
from jax.experimental import pallas as pl
from jax.experimental.pallas import tpu as pltpu

PRELU_ALPHA = 0.25      # nn.PReLU() default (num_parameters=1, init=0.25)
IN_EPS = 1e-5           # nn.InstanceNorm2d default eps (affine=False)


# ---------------------------------------------------------------------------
# Capability / device probing (per-generation sizing, optional features)
# ---------------------------------------------------------------------------
@functools.lru_cache(maxsize=None)
def _buffered_weight_ok():
    """Probe pl.Buffered(1) single-buffering for grid-invariant weight blocks."""
    def k(x_ref, w_ref, o_ref):
        o_ref[...] = x_ref[...] + w_ref[...]
    try:
        x = jnp.ones((2, 8, 128), jnp.float32)
        wgt = jnp.ones((8, 128), jnp.float32)
        out = pl.pallas_call(
            k,
            out_shape=jax.ShapeDtypeStruct((2, 8, 128), jnp.float32),
            grid=(2,),
            in_specs=[pl.BlockSpec((1, 8, 128), lambda i: (i, 0, 0)),
                      pl.BlockSpec((8, 128), lambda i: (0, 0),
                                   pipeline_mode=pl.Buffered(1))],
            out_specs=pl.BlockSpec((1, 8, 128), lambda i: (i, 0, 0)),
        )(x, wgt)
        jax.block_until_ready(out)
        return bool(jnp.all(out == 2.0))
    except Exception:
        return False


@functools.lru_cache(maxsize=None)
def _lane_merge_store_ok(bp, rows, wo, cout):
    """Probe the (band_pix, C) -> (rows, W*C) lane-merging reshape used for
    lane-dense output stores; fall back to the plain layout if unsupported."""
    def k(x_ref, o_ref):
        o_ref[...] = x_ref[...].reshape(rows, wo * cout)
    try:
        vals = (jnp.arange(bp * cout, dtype=jnp.float32) % 128.0
                ).astype(jnp.bfloat16).reshape(bp, cout)
        out = pl.pallas_call(
            k, out_shape=jax.ShapeDtypeStruct((rows, wo * cout), jnp.bfloat16),
        )(vals)
        want = vals.reshape(rows, wo * cout)
        return bool(jnp.array_equal(out.astype(jnp.float32),
                                    want.astype(jnp.float32)))
    except Exception:
        return False


def _tpu_vmem_capacity_bytes():
    try:
        return int(pltpu.get_tpu_info().vmem_capacity_bytes)
    except Exception:
        return 64 * 1024 * 1024          # conservative (v7x-sized) fallback


@functools.lru_cache(maxsize=None)
def _device_caps():
    cap = _tpu_vmem_capacity_bytes()
    return dict(
        # ~48 MiB on v7x (64 MiB VMEM), ~96 MiB on v5e/v6e (128 MiB VMEM).
        vmem_limit_bytes=int(cap * 3 // 4),
        # Per-band im2col budget: bigger bands where VMEM allows it.
        patch_budget_bytes=(4 if cap >= 96 * 1024 * 1024 else 2) * 1024 * 1024,
        buffered_weights=_buffered_weight_ok(),
    )


def _largest_divisor_leq(n, k):
    k = max(1, min(n, k))
    for d in range(k, 0, -1):
        if n % d == 0:
            return d
    return 1


# ---------------------------------------------------------------------------
# Fused per-layer kernel
#   stage 1: spectral_norm(conv3x3, stride 1|2, reflect pad) + InstanceNorm
#   stage 2: ResidualBlock conv1 + IN + PReLU
#   stage 3: ResidualBlock conv2 + IN, + residual(t), PReLU
# One grid step == one image.  Each conv is band-tiled along output rows:
# one big-K MXU matmul per band into a per-image f32 accumulator, with
# single-pass per-channel sum/sum-sq for InstanceNorm and a fused finalize.
# ---------------------------------------------------------------------------
def _fused_layer_kernel(x_ref, w1_ref, w2_ref, w3_ref, out_ref,
                        pad_ref, acc_ref, t_ref, sum_ref, sq_ref, *,
                        stride, ho, wo, cin, cout, band_rows, n_bands,
                        lane_dense, alpha):
    br = band_rows
    bp = br * wo
    pix = ho * wo
    wq = wo + 2

    # -- helpers --------------------------------------------------------
    def fill_border():
        # Reflect-1 border of pad_ref (interior [1:ho+1, 1:wo+1, :] is valid):
        # padded row 0 == padded row 2, padded row ho+1 == padded row ho-1, etc.
        pad_ref[0, pl.ds(1, wo), :] = pad_ref[2, pl.ds(1, wo), :]
        pad_ref[ho + 1, pl.ds(1, wo), :] = pad_ref[ho - 1, pl.ds(1, wo), :]
        pad_ref[:, 0, :] = pad_ref[:, 2, :]
        pad_ref[:, wq - 1, :] = pad_ref[:, wq - 3, :]

    def pad_tap(r0, kh, kw, c):          # stride-1 tap from the padded scratch
        return pad_ref[pl.ds(r0 + kh, br), pl.ds(kw, wo), pl.ds(0, c)]

    def phase_tap(r0, kh, kw, c):        # stride-2 tap from phase-split input
        p = (kh % 2) * 2 + (kw % 2)
        return x_ref[p, pl.ds(r0 + kh // 2, br), pl.ds(kw // 2, wo),
                     pl.ds(0, c)]

    def store_rows_to_pad(r0, yb):
        # yb: (band_pix, cout) -> pad interior rows, row by row (avoids an
        # unsupported sublane-splitting reshape).
        for r in range(br):
            pad_ref[r0 + 1 + r, pl.ds(1, wo), :] = yb[r * wo:(r + 1) * wo]

    def conv_stage(read_tap, w_ref, c_in, store_band, use_prelu, add_residual):
        sum_ref[...] = jnp.zeros_like(sum_ref)
        sq_ref[...] = jnp.zeros_like(sq_ref)

        def band_matmul(i, carry):
            r0 = i * br
            o0 = i * bp
            taps = [read_tap(r0, kh, kw, c_in)
                    for kh in range(3) for kw in range(3)]
            # im2col exists only in VMEM and only for this band.
            patches = jnp.concatenate(taps, axis=-1).reshape(bp, 9 * c_in)
            res = jnp.dot(patches, w_ref[...],
                          preferred_element_type=jnp.float32)
            acc_ref[pl.ds(o0, bp)] = res
            sum_ref[...] += jnp.sum(res, axis=0, keepdims=True)
            sq_ref[...] += jnp.sum(res * res, axis=0, keepdims=True)
            return carry

        jax.lax.fori_loop(0, n_bands, band_matmul, 0)

        # InstanceNorm statistics (single pass, f32): var = E[x^2] - E[x]^2.
        inv_pix = 1.0 / pix
        mean = sum_ref[...] * inv_pix                     # (1, cout)
        var = sq_ref[...] * inv_pix - mean * mean
        inv_std = jax.lax.rsqrt(var + IN_EPS)

        def band_finalize(i, carry):
            r0 = i * br
            o0 = i * bp
            y = (acc_ref[pl.ds(o0, bp)] - mean) * inv_std
            if add_residual:
                y = y + t_ref[pl.ds(o0, bp)].astype(jnp.float32)
            if use_prelu:
                y = jnp.where(y > 0, y, alpha * y)
            store_band(r0, o0, y.astype(jnp.bfloat16))
            return carry

        jax.lax.fori_loop(0, n_bands, band_finalize, 0)

    # -- per-conv output destinations ------------------------------------
    def store_stem(r0, o0, yb):          # t (residual source) + conv2 input
        t_ref[pl.ds(o0, bp)] = yb
        store_rows_to_pad(r0, yb)

    def store_mid(r0, o0, yb):           # conv3 input (pad interior only)
        store_rows_to_pad(r0, yb)

    if lane_dense:
        def store_out(r0, o0, yb):       # lane-dense (rows, Wo*Cout) store
            out_ref[0, pl.ds(r0, br), :] = yb.reshape(br, wo * cout)
    else:
        def store_out(r0, o0, yb):
            out_ref[0, pl.ds(o0, bp), :] = yb

    # -- stage 1: spectral_norm(conv) -> InstanceNorm ---------------------
    if stride == 1:
        # In-kernel reflect pad of the raw input (no padded HBM copy).
        pad_ref[pl.ds(1, ho), pl.ds(1, wo), pl.ds(0, cin)] = x_ref[0]
        fill_border()
        stem_tap = pad_tap
    else:
        stem_tap = phase_tap
    conv_stage(stem_tap, w1_ref, cin, store_stem,
               use_prelu=False, add_residual=False)
    fill_border()

    # -- stage 2: ResidualBlock conv1 + IN + PReLU ------------------------
    conv_stage(pad_tap, w2_ref, cout, store_mid,
               use_prelu=True, add_residual=False)
    fill_border()

    # -- stage 3: ResidualBlock conv2 + IN, + residual t, PReLU ------------
    conv_stage(pad_tap, w3_ref, cout, store_out,
               use_prelu=True, add_residual=True)


# ---------------------------------------------------------------------------
# XLA-side prep for stride-2 stems only (reduced resolution).
# TODO(synk): move this into the kernel (strided pl.ds loads) to drop the
# remaining padded-copy HBM round trip for the stride-2 layers.
# ---------------------------------------------------------------------------
def _phase_split_stride2(x_nhwc):
    n, h, w, c = x_nhwc.shape
    ho, wo = (h + 1) // 2, (w + 1) // 2
    xp = jnp.pad(x_nhwc, ((0, 0), (1, 1), (1, 1), (0, 0)), mode="reflect")
    th, tw = 2 * (ho + 1), 2 * (wo + 1)
    xp = jnp.pad(xp, ((0, 0), (0, th - xp.shape[1]),
                      (0, tw - xp.shape[2]), (0, 0)), mode="edge")
    ph = jnp.stack([xp[:, a::2, b::2, :] for a in (0, 1) for b in (0, 1)],
                   axis=1)                                # (n, 4, ho+1, wo+1, c)
    return ph.reshape(n * 4, ho + 1, wo + 1, c), ho, wo


def fused_layer(x_nhwc, p, *, stride):
    """One FeatureGenerator layer (stem conv+IN, then ResidualBlock) as a
    single fused Pallas kernel.  Returns (N, Ho, Wo, Cout) bf16."""
    caps = _device_caps()
    n, h, w, cin = x_nhwc.shape
    cout = p["w1"].shape[-1]
    assert p["w1"].shape[0] == 9 * cin

    if stride == 1:
        assert cin <= cout
        ho, wo = h, w
        x_in = x_nhwc.astype(jnp.bfloat16)
        x_spec = pl.BlockSpec((1, h, w, cin), lambda i: (i, 0, 0, 0))
    else:
        x_in, ho, wo = _phase_split_stride2(x_nhwc.astype(jnp.bfloat16))
        x_spec = pl.BlockSpec((4, ho + 1, wo + 1, cin), lambda i: (i, 0, 0, 0))
    assert ho >= 2 and wo >= 2, "reflect pad needs spatial extent >= 2"
    pix = ho * wo

    # Band size: cap the per-band im2col block to the per-generation budget.
    kmax = 9 * max(cin, cout)
    rows_budget = max(1, caps["patch_budget_bytes"] // (wo * kmax * 2))
    band_rows = _largest_divisor_leq(ho, rows_budget)
    n_bands = ho // band_rows
    bp = band_rows * wo

    # Lane-dense output (avoids masked vst on lane-sparse Cout) when possible.
    lane_dense = (cout % 128 != 0 and (wo * cout) % 128 == 0
                  and _lane_merge_store_ok(bp, band_rows, wo, cout))
    if lane_dense:
        out_shape = jax.ShapeDtypeStruct((n, ho, wo * cout), jnp.bfloat16)
        out_spec = pl.BlockSpec((1, ho, wo * cout), lambda i: (i, 0, 0))
    else:
        out_shape = jax.ShapeDtypeStruct((n, pix, cout), jnp.bfloat16)
        out_spec = pl.BlockSpec((1, pix, cout), lambda i: (i, 0, 0))

    def w_spec(shape):
        if caps["buffered_weights"]:
            return pl.BlockSpec(shape, lambda i: (0, 0),
                                pipeline_mode=pl.Buffered(1))
        return pl.BlockSpec(shape, lambda i: (0, 0))

    kernel = functools.partial(
        _fused_layer_kernel, stride=stride, ho=ho, wo=wo, cin=cin, cout=cout,
        band_rows=band_rows, n_bands=n_bands, lane_dense=lane_dense,
        alpha=PRELU_ALPHA)

    out = pl.pallas_call(
        kernel,
        out_shape=out_shape,
        grid=(n,),
        in_specs=[x_spec, w_spec(p["w1"].shape), w_spec(p["w2"].shape),
                  w_spec(p["w3"].shape)],
        out_specs=out_spec,
        scratch_shapes=[
            pltpu.VMEM((ho + 2, wo + 2, cout), jnp.bfloat16),  # reflect-pad buf
            pltpu.VMEM((pix, cout), jnp.float32),              # conv accumulator
            pltpu.VMEM((pix, cout), jnp.bfloat16),             # t (residual)
            pltpu.VMEM((1, cout), jnp.float32),                # per-channel sum
            pltpu.VMEM((1, cout), jnp.float32),                # per-channel sumsq
        ],
        compiler_params=pltpu.CompilerParams(
            dimension_semantics=("parallel",),
            vmem_limit_bytes=caps["vmem_limit_bytes"]),
    )(x_in, p["w1"], p["w2"], p["w3"])

    return out.reshape(n, ho, wo, cout)       # free (contiguous) reshape


# ---------------------------------------------------------------------------
# Parameter setup (deterministic, synthetic)
# ---------------------------------------------------------------------------
def _spectral_normalize(w, iters=30):
    """Divide conv weight (9, Cin, Cout) by its top singular value
    (power iteration) -- spectral_norm eval-time semantics."""
    m = w.reshape(-1, w.shape[-1]).astype(jnp.float32)
    v = jnp.ones((m.shape[1],), jnp.float32) / jnp.sqrt(m.shape[1])
    u = jnp.ones((m.shape[0],), jnp.float32) / jnp.sqrt(m.shape[0])
    for _ in range(iters):
        u = m @ v
        u = u / (jnp.linalg.norm(u) + 1e-12)
        v = m.T @ u
        v = v / (jnp.linalg.norm(v) + 1e-12)
    sigma = u @ (m @ v)
    return w / sigma


def _conv_weight(key, cin, cout, scale=0.05):
    # (9, Cin, Cout) == W[kh*3+kw, cin, cout].  Conv bias omitted on purpose:
    # InstanceNorm2d(affine=False) subtracts the per-channel spatial mean, so
    # a pre-IN per-channel bias cancels exactly.
    return jax.random.normal(key, (9, cin, cout), jnp.float32) * scale


def init_params(key, ic, nf=64, max_multi=4):
    chans = [nf, nf * min(2, max_multi), nf * min(4, max_multi),
             nf * min(8, max_multi)]
    params, cin = [], ic
    keys = jax.random.split(key, 3 * len(chans))
    fold = lambda w: w.reshape(-1, w.shape[-1]).astype(jnp.bfloat16)  # (9Cin,Cout)
    k = 0
    for cout in chans:
        w1 = _spectral_normalize(_conv_weight(keys[k], cin, cout)); k += 1
        w2 = _conv_weight(keys[k], cout, cout); k += 1
        w3 = _conv_weight(keys[k], cout, cout); k += 1
        params.append(dict(w1=fold(w1), w2=fold(w2), w3=fold(w3)))
        cin = cout
    return params


# ---------------------------------------------------------------------------
# FeatureGenerator forward
# ---------------------------------------------------------------------------
def feature_generator(x_nchw, params):
    """[x4, x3, x2, x1] in NCHW float32 (matches FeatureGenerator.forward)."""
    h = jnp.transpose(x_nchw, (0, 2, 3, 1)).astype(jnp.float32)   # NCHW -> NHWC
    feats = []
    for p, s in zip(params, (1, 2, 2, 2)):
        h = fused_layer(h, p, stride=s)
        feats.append(h)
    x1, x2, x3, x4 = feats
    to_nchw = lambda a: jnp.transpose(a, (0, 3, 1, 2)).astype(jnp.float32)
    return [to_nchw(x4), to_nchw(x3), to_nchw(x2), to_nchw(x1)]


# ---------------------------------------------------------------------------
# Pure-JAX f32 reference (numerical tripwire)
# ---------------------------------------------------------------------------
def _ref_prelu(x):
    return jnp.where(x > 0, x, PRELU_ALPHA * x)


def _ref_conv(x, w_folded, stride):
    cin, cout = x.shape[-1], w_folded.shape[-1]
    wk = w_folded.astype(jnp.float32).reshape(3, 3, cin, cout)     # HWIO
    xp = jnp.pad(x, ((0, 0), (1, 1), (1, 1), (0, 0)), mode="reflect")
    return jax.lax.conv_general_dilated(
        xp, wk, window_strides=(stride, stride), padding="VALID",
        dimension_numbers=("NHWC", "HWIO", "NHWC"),
        precision=jax.lax.Precision.HIGHEST)


def _ref_instance_norm(y):
    m = jnp.mean(y, axis=(1, 2), keepdims=True)
    v = jnp.var(y, axis=(1, 2), keepdims=True)
    return (y - m) * jax.lax.rsqrt(v + IN_EPS)


def feature_generator_ref(x_nchw, params):
    h = jnp.transpose(x_nchw, (0, 2, 3, 1)).astype(jnp.float32)
    feats = []
    for p, s in zip(params, (1, 2, 2, 2)):
        t = _ref_instance_norm(_ref_conv(h, p["w1"], s))
        u = _ref_prelu(_ref_instance_norm(_ref_conv(t, p["w2"], 1)))
        h = _ref_prelu(t + _ref_instance_norm(_ref_conv(u, p["w3"], 1)))
        feats.append(h)
    x1, x2, x3, x4 = feats
    to_nchw = lambda a: jnp.transpose(a, (0, 3, 1, 2)).astype(jnp.float32)
    return [to_nchw(x4), to_nchw(x3), to_nchw(x2), to_nchw(x1)]


if __name__ == "__main__":
    key = jax.random.PRNGKey(0)
    N, ic, H, W = 2, 4, 16, 16
    nf = 8                                            # small synthetic width
    x = jax.random.normal(key, (N, ic, H, W), jnp.float32)
    params = init_params(jax.random.PRNGKey(1), ic, nf=nf, max_multi=4)

    outs = feature_generator(x, params)
    for o in outs:
        jax.block_until_ready(o)

    expected = [(N, 4 * nf, 2, 2), (N, 4 * nf, 4, 4),
                (N, 2 * nf, 8, 8), (N, nf, 16, 16)]
    assert [tuple(o.shape) for o in outs] == expected, \
        [tuple(o.shape) for o in outs]
    assert all(bool(jnp.all(jnp.isfinite(o))) for o in outs)

    # Numerical tripwire vs a pure-JAX f32 reference on the two
    # highest-resolution outputs (x1, x2).  The 2x2 / 4x4 outputs are skipped:
    # InstanceNorm over 4-16 pixels makes bf16-vs-f32 comparison
    # ill-conditioned without saying anything about the kernel.
    refs = feature_generator_ref(x, params)
    for got, want in zip(outs[2:], refs[2:]):         # [x2, x1]
        err = float(jnp.max(jnp.abs(got - want)))
        assert err < 0.5, f"kernel/reference mismatch: max abs err = {err}"

    print("KERNEL_OK")
</pallas_src>

<mosaic_0001>
module attributes {stable_mosaic.version = 11 : i64} {
  func.func @k(%arg0: i32, %arg1: memref<1x8x128xf32, #tpu.memory_space<vmem>>, %arg2: memref<8x128xf32, #tpu.memory_space<vmem>>, %arg3: memref<1x8x128xf32, #tpu.memory_space<vmem>>) attributes {dimension_semantics = [#tpu.dimension_semantics<arbitrary>], iteration_bounds = array<i64: 2>, scalar_prefetch = 0 : i64, scratch_operands = 0 : i64, tpu.core_type = #tpu.core_type<tc>, window_params = [{transform_indices = @transform_0, window_bounds = array<i64: 1, 8, 128>}, {pipeline_mode = #tpu.pipeline_mode<synchronous>, transform_indices = @transform_1, window_bounds = array<i64: 8, 128>}, {transform_indices = @transform_2, window_bounds = array<i64: 1, 8, 128>}]} {
    %c0 = arith.constant 0 : index
    %c0_0 = arith.constant 0 : index
    %c0_1 = arith.constant 0 : index
    %0 = vector.load %arg1[%c0, %c0_0, %c0_1] : memref<1x8x128xf32, #tpu.memory_space<vmem>>, vector<1x8x128xf32>
    %c0_2 = arith.constant 0 : index
    %c0_3 = arith.constant 0 : index
    %1 = vector.load %arg2[%c0_2, %c0_3] : memref<8x128xf32, #tpu.memory_space<vmem>>, vector<8x128xf32>
    %2 = vector.shape_cast %1 : vector<8x128xf32> to vector<1x8x128xf32>
    %3 = arith.addf %0, %2 : vector<1x8x128xf32>
    %c0_4 = arith.constant 0 : index
    %c0_5 = arith.constant 0 : index
    %c0_6 = arith.constant 0 : index
    %4 = vector.load %arg3[%c0_4, %c0_5, %c0_6] : memref<1x8x128xf32, #tpu.memory_space<vmem>>, vector<1x8x128xf32>
    tpu.vector_store %arg3[%c0_4, %c0_5, %c0_6], %3 {strides = array<i32>} : memref<1x8x128xf32, #tpu.memory_space<vmem>>, vector<1x8x128xf32>,
    return
  }
  func.func @transform_0(%arg0: i32) -> (i32, i32, i32) {
    %c0_i32 = arith.constant 0 : i32
    %c0_i32_0 = arith.constant 0 : i32
    %c0_i32_1 = arith.constant 0 : i32
    return %arg0, %c0_i32, %c0_i32_0 : i32, i32, i32
  }
  func.func @transform_1(%arg0: i32) -> (i32, i32) {
    %c0_i32 = arith.constant 0 : i32
    %c0_i32_0 = arith.constant 0 : i32
    %c0_i32_1 = arith.constant 0 : i32
    return %c0_i32, %c0_i32_0 : i32, i32
  }
  func.func @transform_2(%arg0: i32) -> (i32, i32, i32) {
    %c0_i32 = arith.constant 0 : i32
    %c0_i32_0 = arith.constant 0 : i32
    %c0_i32_1 = arith.constant 0 : i32
    return %arg0, %c0_i32, %c0_i32_0 : i32, i32, i32
  }
}

module attributes {stable_mosaic.version = 11 : i64} {
  func.func @k(%arg0: memref<256x8xbf16, #tpu.memory_space<vmem>>, %arg1: memref<16x128xbf16, #tpu.memory_space<vmem>>) attributes {dimension_semantics = [], scalar_prefetch = 0 : i64, scratch_operands = 0 : i64, tpu.core_type = #tpu.core_type<tc>} {
    %c0 = arith.constant 0 : index
    %c0_0 = arith.constant 0 : index
    %0 = vector.load %arg0[%c0, %c0_0] : memref<256x8xbf16, #tpu.memory_space<vmem>>, vector<256x8xbf16>
    %1 = vector.shape_cast %0 : vector<256x8xbf16> to vector<16x128xbf16>
    %c0_1 = arith.constant 0 : index
    %c0_2 = arith.constant 0 : index
    %2 = vector.load %arg1[%c0_1, %c0_2] : memref<16x128xbf16, #tpu.memory_space<vmem>>, vector<16x128xbf16>
    tpu.vector_store %arg1[%c0_1, %c0_2], %1 {strides = array<i32>} : memref<16x128xbf16, #tpu.memory_space<vmem>>, vector<16x128xbf16>,
    return
  }
}

module attributes {stable_mosaic.version = 11 : i64} {
  func.func @_fused_layer_kernel(%arg0: i32, %arg1: memref<1x16x16x4xbf16, #tpu.memory_space<vmem>>, %arg2: memref<36x8xbf16, #tpu.memory_space<vmem>>, %arg3: memref<72x8xbf16, #tpu.memory_space<vmem>>, %arg4: memref<72x8xbf16, #tpu.memory_space<vmem>>, %arg5: memref<1x256x8xbf16, #tpu.memory_space<vmem>>, %arg6: memref<18x18x8xbf16, #tpu.memory_space<vmem>>, %arg7: memref<256x8xf32, #tpu.memory_space<vmem>>, %arg8: memref<256x8xbf16, #tpu.memory_space<vmem>>, %arg9: memref<1x8xf32, #tpu.memory_space<vmem>>, %arg10: memref<1x8xf32, #tpu.memory_space<vmem>>) attributes {dimension_semantics = [#tpu.dimension_semantics<parallel>], iteration_bounds = array<i64: 2>, scalar_prefetch = 0 : i64, scratch_operands = 5 : i64, tpu.core_type = #tpu.core_type<tc>, window_params = [{transform_indices = @transform_0, window_bounds = array<i64: 1, 16, 16, 4>}, {pipeline_mode = #tpu.pipeline_mode<synchronous>, transform_indices = @transform_1, window_bounds = array<i64: 36, 8>}, {pipeline_mode = #tpu.pipeline_mode<synchronous>, transform_indices = @transform_2, window_bounds = array<i64: 72, 8>}, {pipeline_mode = #tpu.pipeline_mode<synchronous>, transform_indices = @transform_3, window_bounds = array<i64: 72, 8>}, {transform_indices = @transform_4, window_bounds = array<i64: 1, 256, 8>}]} {
    %c0 = arith.constant 0 : index
    %c0_0 = arith.constant 0 : index
    %c0_1 = arith.constant 0 : index
    %c0_2 = arith.constant 0 : index
    %0 = vector.load %arg1[%c0, %c0_0, %c0_1, %c0_2] : memref<1x16x16x4xbf16, #tpu.memory_space<vmem>>, vector<1x16x16x4xbf16>
    %1 = vector.shape_cast %0 : vector<1x16x16x4xbf16> to vector<16x16x4xbf16>
    %c1 = arith.constant 1 : index
    %c1_3 = arith.constant 1 : index
    %c0_4 = arith.constant 0 : index
    %2 = vector.load %arg6[%c1, %c1_3, %c0_4] : memref<18x18x8xbf16, #tpu.memory_space<vmem>>, vector<16x16x4xbf16>
    tpu.vector_store %arg6[%c1, %c1_3, %c0_4], %1 {strides = array<i32>} : memref<18x18x8xbf16, #tpu.memory_space<vmem>>, vector<16x16x4xbf16>,
    %c2 = arith.constant 2 : index
    %c1_5 = arith.constant 1 : index
    %c0_6 = arith.constant 0 : index
    %3 = vector.load %arg6[%c2, %c1_5, %c0_6] : memref<18x18x8xbf16, #tpu.memory_space<vmem>>, vector<1x16x8xbf16>
    %4 = vector.shape_cast %3 : vector<1x16x8xbf16> to vector<16x8xbf16>
    %c0_7 = arith.constant 0 : index
    %c1_8 = arith.constant 1 : index
    %c0_9 = arith.constant 0 : index
    %5 = vector.load %arg6[%c0_7, %c1_8, %c0_9] : memref<18x18x8xbf16, #tpu.memory_space<vmem>>, vector<1x16x8xbf16>
    %6 = vector.shape_cast %5 : vector<1x16x8xbf16> to vector<16x8xbf16>
    %7 = vector.shape_cast %4 : vector<16x8xbf16> to vector<1x16x8xbf16>
    tpu.vector_store %arg6[%c0_7, %c1_8, %c0_9], %7 {strides = array<i32>} : memref<18x18x8xbf16, #tpu.memory_space<vmem>>, vector<1x16x8xbf16>,
    %c15 = arith.constant 15 : index
    %c1_10 = arith.constant 1 : index
    %c0_11 = arith.constant 0 : index
    %8 = vector.load %arg6[%c15, %c1_10, %c0_11] : memref<18x18x8xbf16, #tpu.memory_space<vmem>>, vector<1x16x8xbf16>
    %9 = vector.shape_cast %8 : vector<1x16x8xbf16> to vector<16x8xbf16>
    %c17 = arith.constant 17 : index
    %c1_12 = arith.constant 1 : index
    %c0_13 = arith.constant 0 : index
    %10 = vector.load %arg6[%c17, %c1_12, %c0_13] : memref<18x18x8xbf16, #tpu.memory_space<vmem>>, vector<1x16x8xbf16>
    %11 = vector.shape_cast %10 : vector<1x16x8xbf16> to vector<16x8xbf16>
    %12 = vector.shape_cast %9 : vector<16x8xbf16> to vector<1x16x8xbf16>
    tpu.vector_store %arg6[%c17, %c1_12, %c0_13], %12 {strides = array<i32>} : memref<18x18x8xbf16, #tpu.memory_space<vmem>>, vector<1x16x8xbf16>,
    %c0_14 = arith.constant 0 : index
    %c2_15 = arith.constant 2 : index
    %c0_16 = arith.constant 0 : index
    %13 = vector.load %arg6[%c0_14, %c2_15, %c0_16] : memref<18x18x8xbf16, #tpu.memory_space<vmem>>, vector<18x1x8xbf16>
    %14 = vector.shape_cast %13 : vector<18x1x8xbf16> to vector<18x8xbf16>
    %c0_17 = arith.constant 0 : index
    %c0_18 = arith.constant 0 : index
    %c0_19 = arith.constant 0 : index
    %15 = vector.load %arg6[%c0_17, %c0_18, %c0_19] : memref<18x18x8xbf16, #tpu.memory_space<vmem>>, vector<18x1x8xbf16>
    %16 = vector.shape_cast %15 : vector<18x1x8xbf16> to vector<18x8xbf16>
    %17 = vector.shape_cast %14 : vector<18x8xbf16> to vector<18x1x8xbf16>
    tpu.vector_store %arg6[%c0_17, %c0_18, %c0_19], %17 {strides = array<i32>} : memref<18x18x8xbf16, #tpu.memory_space<vmem>>, vector<18x1x8xbf16>,
    %c0_20 = arith.constant 0 : index
    %c15_21 = arith.constant 15 : index
    %c0_22 = arith.constant 0 : index
    %18 = vector.load %arg6[%c0_20, %c15_21, %c0_22] : memref<18x18x8xbf16, #tpu.memory_space<vmem>>, vector<18x1x8xbf16>
    %19 = vector.shape_cast %18 : vector<18x1x8xbf16> to vector<18x8xbf16>
    %c0_23 = arith.constant 0 : index
    %c17_24 = arith.constant 17 : index
    %c0_25 = arith.constant 0 : index
    %20 = vector.load %arg6[%c0_23, %c17_24, %c0_25] : memref<18x18x8xbf16, #tpu.memory_space<vmem>>, vector<18x1x8xbf16>
    %21 = vector.shape_cast %20 : vector<18x1x8xbf16> to vector<18x8xbf16>
    %22 = vector.shape_cast %19 : vector<18x8xbf16> to vector<18x1x8xbf16>
    tpu.vector_store %arg6[%c0_23, %c17_24, %c0_25], %22 {strides = array<i32>} : memref<18x18x8xbf16, #tpu.memory_space<vmem>>, vector<18x1x8xbf16>,
    %cst = arith.constant 0.000000e+00 : f32
    %23 = vector.broadcast %cst : f32 to vector<1x8xf32>
    %c0_26 = arith.constant 0 : index
    %c0_27 = arith.constant 0 : index
    %24 = vector.load %arg9[%c0_26, %c0_27] : memref<1x8xf32, #tpu.memory_space<vmem>>, vector<1x8xf32>
    tpu.vector_store %arg9[%c0_26, %c0_27], %23 {strides = array<i32>} : memref<1x8xf32, #tpu.memory_space<vmem>>, vector<1x8xf32>,
    %cst_28 = arith.constant 0.000000e+00 : f32
    %25 = vector.broadcast %cst_28 : f32 to vector<1x8xf32>
    %c0_29 = arith.constant 0 : index
    %c0_30 = arith.constant 0 : index
    %26 = vector.load %arg10[%c0_29, %c0_30] : memref<1x8xf32, #tpu.memory_space<vmem>>, vector<1x8xf32>
    tpu.vector_store %arg10[%c0_29, %c0_30], %25 {strides = array<i32>} : memref<1x8xf32, #tpu.memory_space<vmem>>, vector<1x8xf32>,
    %c0_i32 = arith.constant 0 : i32
    %c16_i32 = arith.constant 16 : i32
    %27 = arith.muli %c0_i32, %c16_i32 : i32
    %c256_i32 = arith.constant 256 : i32
    %28 = arith.muli %c0_i32, %c256_i32 : i32
    %c0_i32_31 = arith.constant 0 : i32
    %29 = arith.addi %27, %c0_i32_31 : i32
    %30 = arith.index_cast %29 : i32 to index
    %c0_32 = arith.constant 0 : index
    %c0_33 = arith.constant 0 : index
    %31 = vector.load %arg6[%30, %c0_32, %c0_33] : memref<18x18x8xbf16, #tpu.memory_space<vmem>>, vector<16x16x4xbf16>
    %c0_i32_34 = arith.constant 0 : i32
    %32 = arith.addi %27, %c0_i32_34 : i32
    %33 = arith.index_cast %32 : i32 to index
    %c1_35 = arith.constant 1 : index
    %c0_36 = arith.constant 0 : index
    %34 = vector.load %arg6[%33, %c1_35, %c0_36] : memref<18x18x8xbf16, #tpu.memory_space<vmem>>, vector<16x16x4xbf16>
    %c0_i32_37 = arith.constant 0 : i32
    %35 = arith.addi %27, %c0_i32_37 : i32
    %36 = arith.index_cast %35 : i32 to index
    %c2_38 = arith.constant 2 : index
    %c0_39 = arith.constant 0 : index
    %37 = vector.load %arg6[%36, %c2_38, %c0_39] : memref<18x18x8xbf16, #tpu.memory_space<vmem>>, vector<16x16x4xbf16>
    %c1_i32 = arith.constant 1 : i32
    %38 = arith.addi %27, %c1_i32 : i32
    %39 = arith.index_cast %38 : i32 to index
    %c0_40 = arith.constant 0 : index
    %c0_41 = arith.constant 0 : index
    %40 = vector.load %arg6[%39, %c0_40, %c0_41] : memref<18x18x8xbf16, #tpu.memory_space<vmem>>, vector<16x16x4xbf16>
    %c1_i32_42 = arith.constant 1 : i32
    %41 = arith.addi %27, %c1_i32_42 : i32
    %42 = arith.index_cast %41 : i32 to index
    %c1_43 = arith.constant 1 : index
    %c0_44 = arith.constant 0 : index
    %43 = vector.load %arg6[%42, %c1_43, %c0_44] : memref<18x18x8xbf16, #tpu.memory_space<vmem>>, vector<16x16x4xbf16>
    %c1_i32_45 = arith.constant 1 : i32
    %44 = arith.addi %27, %c1_i32_45 : i32
    %45 = arith.index_cast %44 : i32 to index
    %c2_46 = arith.constant 2 : index
    %c0_47 = arith.constant 0 : index
    %46 = vector.load %arg6[%45, %c2_46, %c0_47] : memref<18x18x8xbf16, #tpu.memory_space<vmem>>, vector<16x16x4xbf16>
    %c2_i32 = arith.constant 2 : i32
    %47 = arith.addi %27, %c2_i32 : i32
    %48 = arith.index_cast %47 : i32 to index
    %c0_48 = arith.constant 0 : index
    %c0_49 = arith.constant 0 : index
    %49 = vector.load %arg6[%48, %c0_48, %c0_49] : memref<18x18x8xbf16, #tpu.memory_space<vmem>>, vector<16x16x4xbf16>
    %c2_i32_50 = arith.constant 2 : i32
    %50 = arith.addi %27, %c2_i32_50 : i32
    %51 = arith.index_cast %50 : i32 to index
    %c1_51 = arith.constant 1 : index
    %c0_52 = arith.constant 0 : index
    %52 = vector.load %arg6[%51, %c1_51, %c0_52] : memref<18x18x8xbf16, #tpu.memory_space<vmem>>, vector<16x16x4xbf16>
    %c2_i32_53 = arith.constant 2 : i32
    %53 = arith.addi %27, %c2_i32_53 : i32
    %54 = arith.index_cast %53 : i32 to index
    %c2_54 = arith.constant 2 : index
    %c0_55 = arith.constant 0 : index
    %55 = vector.load %arg6[%54, %c2_54, %c0_55] : memref<18x18x8xbf16, #tpu.memory_space<vmem>>, vector<16x16x4xbf16>
    %56 = tpu.concatenate %31, %34, %37, %40, %43, %46, %49, %52, %55 in 2 : vector<16x16x4xbf16>, vector<16x16x4xbf16>, vector<16x16x4xbf16>, vector<16x16x4xbf16>, vector<16x16x4xbf16>, vector<16x16x4xbf16>, vector<16x16x4xbf16>, vector<16x16x4xbf16>, vector<16x16x4xbf16> -> vector<16x16x36xbf16>
    %57 = vector.shape_cast %56 : vector<16x16x36xbf16> to vector<256x36xbf16>
    %c0_56 = arith.constant 0 : index
    %c0_57 = arith.constant 0 : index
    %58 = vector.load %arg2[%c0_56, %c0_57] : memref<36x8xbf16, #tpu.memory_space<vmem>>, vector<36x8xbf16>
    %cst_58 = arith.constant dense<0.000000e+00> : vector<256x8xf32>
    %59 = tpu.matmul %57, %58, %cst_58 {dimension_numbers = #tpu.dot_dimension_numbers<[1], [0], [0], [1], [0, 0, 1, 1], [], []>} : vector<256x36xbf16>, vector<36x8xbf16>, vector<256x8xf32> -> vector<256x8xf32>
    %60 = arith.index_cast %28 : i32 to index
    %c0_59 = arith.constant 0 : index
    %61 = vector.load %arg7[%60, %c0_59] : memref<256x8xf32, #tpu.memory_space<vmem>>, vector<256x8xf32>
    tpu.vector_store %arg7[%60, %c0_59], %59 {strides = array<i32>} : memref<256x8xf32, #tpu.memory_space<vmem>>, vector<256x8xf32>,
    %c0_60 = arith.constant 0 : index
    %c0_61 = arith.constant 0 : index
    %62 = vector.load %arg9[%c0_60, %c0_61] : memref<1x8xf32, #tpu.memory_space<vmem>>, vector<1x8xf32>
    %cst_62 = arith.constant dense<0.000000e+00> : vector<8xf32>
    %63 = vector.multi_reduction <add>, %59, %cst_62 [0] : vector<256x8xf32> to vector<8xf32>
    %64 = vector.shape_cast %63 : vector<8xf32> to vector<1x8xf32>
    %65 = arith.addf %62, %64 : vector<1x8xf32>
    %c0_63 = arith.constant 0 : index
    %c0_64 = arith.constant 0 : index
    %66 = vector.load %arg9[%c0_63, %c0_64] : memref<1x8xf32, #tpu.memory_space<vmem>>, vector<1x8xf32>
    tpu.vector_store %arg9[%c0_63, %c0_64], %65 {strides = array<i32>} : memref<1x8xf32, #tpu.memory_space<vmem>>, vector<1x8xf32>,
    %c0_65 = arith.constant 0 : index
    %c0_66 = arith.constant 0 : index
    %67 = vector.load %arg10[%c0_65, %c0_66] : memref<1x8xf32, #tpu.memory_space<vmem>>, vector<1x8xf32>
    %68 = arith.mulf %59, %59 : vector<256x8xf32>
    %cst_67 = arith.constant dense<0.000000e+00> : vector<8xf32>
    %69 = vector.multi_reduction <add>, %68, %cst_67 [0] : vector<256x8xf32> to vector<8xf32>
    %70 = vector.shape_cast %69 : vector<8xf32> to vector<1x8xf32>
    %71 = arith.addf %67, %70 : vector<1x8xf32>
    %c0_68 = arith.constant 0 : index
    %c0_69 = arith.constant 0 : index
    %72 = vector.load %arg10[%c0_68, %c0_69] : memref<1x8xf32, #tpu.memory_space<vmem>>, vector<1x8xf32>
    tpu.vector_store %arg10[%c0_68, %c0_69], %71 {strides = array<i32>} : memref<1x8xf32, #tpu.memory_space<vmem>>, vector<1x8xf32>,
    %c1_i32_70 = arith.constant 1 : i32
    %c0_71 = arith.constant 0 : index
    %c0_72 = arith.constant 0 : index
    %73 = vector.load %arg9[%c0_71, %c0_72] : memref<1x8xf32, #tpu.memory_space<vmem>>, vector<1x8xf32>
    %cst_73 = arith.constant 3.906250e-03 : f32
    %74 = vector.broadcast %cst_73 : f32 to vector<1x8xf32>
    %75 = arith.mulf %73, %74 : vector<1x8xf32>
    %c0_74 = arith.constant 0 : index
    %c0_75 = arith.constant 0 : index
    %76 = vector.load %arg10[%c0_74, %c0_75] : memref<1x8xf32, #tpu.memory_space<vmem>>, vector<1x8xf32>
    %cst_76 = arith.constant 3.906250e-03 : f32
    %77 = vector.broadcast %cst_76 : f32 to vector<1x8xf32>
    %78 = arith.mulf %76, %77 : vector<1x8xf32>
    %79 = arith.mulf %75, %75 : vector<1x8xf32>
    %80 = arith.subf %78, %79 : vector<1x8xf32>
    %cst_77 = arith.constant 9.99999974E-6 : f32
    %81 = vector.broadcast %cst_77 : f32 to vector<1x8xf32>
    %82 = arith.addf %80, %81 : vector<1x8xf32>
    %83 = math.rsqrt %82 : vector<1x8xf32>
    %c0_i32_78 = arith.constant 0 : i32
    %c16_i32_79 = arith.constant 16 : i32
    %84 = arith.muli %c0_i32_78, %c16_i32_79 : i32
    %c256_i32_80 = arith.constant 256 : i32
    %85 = arith.muli %c0_i32_78, %c256_i32_80 : i32
    %86 = arith.index_cast %85 : i32 to index
    %c0_81 = arith.constant 0 : index
    %87 = vector.load %arg7[%86, %c0_81] : memref<256x8xf32, #tpu.memory_space<vmem>>, vector<256x8xf32>
    %88 = vector.broadcast %75 : vector<1x8xf32> to vector<256x8xf32>
    %89 = arith.subf %87, %88 : vector<256x8xf32>
    %90 = vector.broadcast %83 : vector<1x8xf32> to vector<256x8xf32>
    %91 = arith.mulf %89, %90 : vector<256x8xf32>
    %92 = arith.truncf %91 : vector<256x8xf32> to vector<256x8xbf16>
    %93 = arith.index_cast %85 : i32 to index
    %c0_82 = arith.constant 0 : index
    %94 = vector.load %arg8[%93, %c0_82] : memref<256x8xbf16, #tpu.memory_space<vmem>>, vector<256x8xbf16>
    tpu.vector_store %arg8[%93, %c0_82], %92 {strides = array<i32>} : memref<256x8xbf16, #tpu.memory_space<vmem>>, vector<256x8xbf16>,
    %95 = vector.extract_strided_slice %92 {offsets = [0, 0], sizes = [16, 8], strides = [1, 1]} : vector<256x8xbf16> to vector<16x8xbf16>
    %c1_i32_83 = arith.constant 1 : i32
    %96 = arith.addi %84, %c1_i32_83 : i32
    %c0_i32_84 = arith.constant 0 : i32
    %97 = arith.addi %96, %c0_i32_84 : i32
    %98 = arith.index_cast %97 : i32 to index
    %c1_85 = arith.constant 1 : index
    %c0_86 = arith.constant 0 : index
    %99 = vector.load %arg6[%98, %c1_85, %c0_86] : memref<18x18x8xbf16, #tpu.memory_space<vmem>>, vector<1x16x8xbf16>
    %100 = vector.shape_cast %99 : vector<1x16x8xbf16> to vector<16x8xbf16>
    %101 = vector.shape_cast %95 : vector<16x8xbf16> to vector<1x16x8xbf16>
    tpu.vector_store %arg6[%98, %c1_85, %c0_86], %101 {strides = array<i32>} : memref<18x18x8xbf16, #tpu.memory_space<vmem>>, vector<1x16x8xbf16>,
    %102 = vector.extract_strided_slice %92 {offsets = [16, 0], sizes = [16, 8], strides = [1, 1]} : vector<256x8xbf16> to vector<16x8xbf16>
    %c1_i32_87 = arith.constant 1 : i32
    %103 = arith.addi %84, %c1_i32_87 : i32
    %c1_i32_88 = arith.constant 1 : i32
    %104 = arith.addi %103, %c1_i32_88 : i32
    %105 = arith.index_cast %104 : i32 to index
    %c1_89 = arith.constant 1 : index
    %c0_90 = arith.constant 0 : index
    %106 = vector.load %arg6[%105, %c1_89, %c0_90] : memref<18x18x8xbf16, #tpu.memory_space<vmem>>, vector<1x16x8xbf16>
    %107 = vector.shape_cast %106 : vector<1x16x8xbf16> to vector<16x8xbf16>
    %108 = vector.shape_cast %102 : vector<16x8xbf16> to vector<1x16x8xbf16>
    tpu.vector_store %arg6[%105, %c1_89, %c0_90], %108 {strides = array<i32>} : memref<18x18x8xbf16, #tpu.memory_space<vmem>>, vector<1x16x8xbf16>,
    %109 = vector.extract_strided_slice %92 {offsets = [32, 0], sizes = [16, 8], strides = [1, 1]} : vector<256x8xbf16> to vector<16x8xbf16>
    %c1_i32_91 = arith.constant 1 : i32
    %110 = arith.addi %84, %c1_i32_91 : i32
    %c2_i32_92 = arith.constant 2 : i32
    %111 = arith.addi %110, %c2_i32_92 : i32
    %112 = arith.index_cast %111 : i32 to index
    %c1_93 = arith.constant 1 : index
    %c0_94 = arith.constant 0 : index
    %113 = vector.load %arg6[%112, %c1_93, %c0_94] : memref<18x18x8xbf16, #tpu.memory_space<vmem>>, vector<1x16x8xbf16>
    %114 = vector.shape_cast %113 : vector<1x16x8xbf16> to vector<16x8xbf16>
    %115 = vector.shape_cast %109 : vector<16x8xbf16> to vector<1x16x8xbf16>
    tpu.vector_store %arg6[%112, %c1_93, %c0_94], %115 {strides = array<i32>} : memref<18x18x8xbf16, #tpu.memory_space<vmem>>, vector<1x16x8xbf16>,
    %116 = vector.extract_strided_slice %92 {offsets = [48, 0], sizes = [16, 8], strides = [1, 1]} : vector<256x8xbf16> to vector<16x8xbf16>
    %c1_i32_95 = arith.constant 1 : i32
    %117 = arith.addi %84, %c1_i32_95 : i32
    %c3_i32 = arith.constant 3 : i32
    %118 = arith.addi %117, %c3_i32 : i32
    %119 = arith.index_cast %118 : i32 to index
    %c1_96 = arith.constant 1 : index
    %c0_97 = arith.constant 0 : index
    %120 = vector.load %arg6[%119, %c1_96, %c0_97] : memref<18x18x8xbf16, #tpu.memory_space<vmem>>, vector<1x16x8xbf16>
    %121 = vector.shape_cast %120 : vector<1x16x8xbf16> to vector<16x8xbf16>
    %122 = vector.shape_cast %116 : vector<16x8xbf16> to vector<1x16x8xbf16>
    tpu.vector_store %arg6[%119, %c1_96, %c0_97], %122 {strides = array<i32>} : memref<18x18x8xbf16, #tpu.memory_space<vmem>>, vector<1x16x8xbf16>,
    %123 = vector.extract_strided_slice %92 {offsets = [64, 0], sizes = [16, 8], strides = [1, 1]} : vector<256x8xbf16> to vector<16x8xbf16>
    %c1_i32_98 = arith.constant 1 : i32
    %124 = arith.addi %84, %c1_i32_98 : i32
    %c4_i32 = arith.constant 4 : i32
    %125 = arith.addi %124, %c4_i32 : i32
    %126 = arith.index_cast %125 : i32 to index
    %c1_99 = arith.constant 1 : index
    %c0_100 = arith.constant 0 : index
    %127 = vector.load %arg6[%126, %c1_99, %c0_100] : memref<18x18x8xbf16, #tpu.memory_space<vmem>>, vector<1x16x8xbf16>
    %128 = vector.shape_cast %127 : vector<1x16x8xbf16> to vector<16x8xbf16>
    %129 = vector.shape_cast %123 : vector<16x8xbf16> to vector<1x16x8xbf16>
    tpu.vector_store %arg6[%126, %c1_99, %c0_100], %129 {strides = array<i32>} : memref<18x18x8xbf16, #tpu.memory_space<vmem>>, vector<1x16x8xbf16>,
    %130 = vector.extract_strided_slice %92 {offsets = [80, 0], sizes = [16, 8], strides = [1, 1]} : vector<256x8xbf16> to vector<16x8xbf16>
    %c1_i32_101 = arith.constant 1 : i32
    %131 = arith.addi %84, %c1_i32_101 : i32
    %c5_i32 = arith.constant 5 : i32
    %132 = arith.addi %131, %c5_i32 : i32
    %133 = arith.index_cast %132 : i32 to index
    %c1_102 = arith.constant 1 : index
    %c0_103 = arith.constant 0 : index
    %134 = vector.load %arg6[%133, %c1_102, %c0_103] : memref<18x18x8xbf16, #tpu.memory_space<vmem>>, vector<1x16x8xbf16>
    %135 = vector.shape_cast %134 : vector<1x16x8xbf16> to vector<16x8xbf16>
    %136 = vector.shape_cast %130 : vector<16x8xbf16> to vector<1x16x8xbf16>
    tpu.vector_store %arg6[%133, %c1_102, %c0_103], %136 {strides = array<i32>} : memref<18x18x8xbf16, #tpu.memory_space<vmem>>, vector<1x16x8xbf16>,
    %137 = vector.extract_strided_slice %92 {offsets = [96, 0], sizes = [16, 8], strides = [1, 1]} : vector<256x8xbf16> to vector<16x8xbf16>
    %c1_i32_104 = arith.constant 1 : i32
    %138 = arith.addi %84, %c1_i32_104 : i32
    %c6_i32 = arith.constant 6 : i32
    %139 = arith.addi %138, %c6_i32 : i32
    %140 = arith.index_cast %139 : i32 to index
    %c1_105 = arith.constant 1 : index
    %c0_106 = arith.constant 0 : index
    %141 = vector.load %arg6[%140, %c1_105, %c0_106] : memref<18x18x8xbf16, #tpu.memory_space<vmem>>, vector<1x16x8xbf16>
    %142 = vector.shape_cast %141 : vector<1x16x8xbf16> to vector<16x8xbf16>
    %143 = vector.shape_cast %137 : vector<16x8xbf16> to vector<1x16x8xbf16>
    tpu.vector_store %arg6[%140, %c1_105, %c0_106], %143 {strides = array<i32>} : memref<18x18x8xbf16, #tpu.memory_space<vmem>>, vector<1x16x8xbf16>,
    %144 = vector.extract_strided_slice %92 {offsets = [112, 0], sizes = [16, 8], strides = [1, 1]} : vector<256x8xbf16> to vector<16x8xbf16>
    %c1_i32_107 = arith.constant 1 : i32
    %145 = arith.addi %84, %c1_i32_107 : i32
    %c7_i32 = arith.constant 7 : i32
    %146 = arith.addi %145, %c7_i32 : i32
    %147 = arith.index_cast %146 : i32 to index
    %c1_108 = arith.constant 1 : index
    %c0_109 = arith.constant 0 : index
    %148 = vector.load %arg6[%147, %c1_108, %c0_109] : memref<18x18x8xbf16, #tpu.memory_space<vmem>>, vector<1x16x8xbf16>
    %149 = vector.shape_cast %148 : vector<1x16x8xbf16> to vector<16x8xbf16>
    %150 = vector.shape_cast %144 : vector<16x8xbf16> to vector<1x16x8xbf16>
    tpu.vector_store %arg6[%147, %c1_108, %c0_109], %150 {strides = array<i32>} : memref<18x18x8xbf16, #tpu.memory_space<vmem>>, vector<1x16x8xbf16>,
    %151 = vector.extract_strided_slice %92 {offsets = [128, 0], sizes = [16, 8], strides = [1, 1]} : vector<256x8xbf16> to vector<16x8xbf16>
    %c1_i32_110 = arith.constant 1 : i32
    %152 = arith.addi %84, %c1_i32_110 : i32
    %c8_i32 = arith.constant 8 : i32
    %153 = arith.addi %152, %c8_i32 : i32
    %154 = arith.index_cast %153 : i32 to index
    %c1_111 = arith.constant 1 : index
    %c0_112 = arith.constant 0 : index
    %155 = vector.load %arg6[%154, %c1_111, %c0_112] : memref<18x18x8xbf16, #tpu.memory_space<vmem>>, vector<1x16x8xbf16>
    %156 = vector.shape_cast %155 : vector<1x16x8xbf16> to vector<16x8xbf16>
    %157 = vector.shape_cast %151 : vector<16x8xbf16> to vector<1x16x8xbf16>
    tpu.vector_store %arg6[%154, %c1_111, %c0_112], %157 {strides = array<i32>} : memref<18x18x8xbf16, #tpu.memory_space<vmem>>, vector<1x16x8xbf16>,
    %158 = vector.extract_strided_slice %92 {offsets = [144, 0], sizes = [16, 8], strides = [1, 1]} : vector<256x8xbf16> to vector<16x8xbf16>
    %c1_i32_113 = arith.constant 1 : i32
    %159 = arith.addi %84, %c1_i32_113 : i32
    %c9_i32 = arith.constant 9 : i32
    %160 = arith.addi %159, %c9_i32 : i32
    %161 = arith.index_cast %160 : i32 to index
    %c1_114 = arith.constant 1 : index
    %c0_115 = arith.constant 0 : index
    %162 = vector.load %arg6[%161, %c1_114, %c0_115] : memref<18x18x8xbf16, #tpu.memory_space<vmem>>, vector<1x16x8xbf16>
    %163 = vector.shape_cast %162 : vector<1x16x8xbf16> to vector<16x8xbf16>
    %164 = vector.shape_cast %158 : vector<16x8xbf16> to vector<1x16x8xbf16>
    tpu.vector_store %arg6[%161, %c1_114, %c0_115], %164 {strides = array<i32>} : memref<18x18x8xbf16, #tpu.memory_space<vmem>>, vector<1x16x8xbf16>,
    %165 = vector.extract_strided_slice %92 {offsets = [160, 0], sizes = [16, 8], strides = [1, 1]} : vector<256x8xbf16> to vector<16x8xbf16>
    %c1_i32_116 = arith.constant 1 : i32
    %166 = arith.addi %84, %c1_i32_116 : i32
    %c10_i32 = arith.constant 10 : i32
    %167 = arith.addi %166, %c10_i32 : i32
    %168 = arith.index_cast %167 : i32 to index
    %c1_117 = arith.constant 1 : index
    %c0_118 = arith.constant 0 : index
    %169 = vector.load %arg6[%168, %c1_117, %c0_118] : memref<18x18x8xbf16, #tpu.memory_space<vmem>>, vector<1x16x8xbf16>
    %170 = vector.shape_cast %169 : vector<1x16x8xbf16> to vector<16x8xbf16>
    %171 = vector.shape_cast %165 : vector<16x8xbf16> to vector<1x16x8xbf16>
    tpu.vector_store %arg6[%168, %c1_117, %c0_118], %171 {strides = array<i32>} : memref<18x18x8xbf16, #tpu.memory_space<vmem>>, vector<1x16x8xbf16>,
    %172 = vector.extract_strided_slice %92 {offsets = [176, 0], sizes = [16, 8], strides = [1, 1]} : vector<256x8xbf16> to vector<16x8xbf16>
    %c1_i32_119 = arith.constant 1 : i32
    %173 = arith.addi %84, %c1_i32_119 : i32
    %c11_i32 = arith.constant 11 : i32
    %174 = arith.addi %173, %c11_i32 : i32
    %175 = arith.index_cast %174 : i32 to index
    %c1_120 = arith.constant 1 : index
    %c0_121 = arith.constant 0 : index
    %176 = vector.load %arg6[%175, %c1_120, %c0_121] : memref<18x18x8xbf16, #tpu.memory_space<vmem>>, vector<1x16x8xbf16>
    %177 = vector.shape_cast %176 : vector<1x16x8xbf16> to vector<16x8xbf16>
    %178 = vector.shape_cast %172 : vector<16x8xbf16> to vector<1x16x8xbf16>
    tpu.vector_store %arg6[%175, %c1_120, %c0_121], %178 {strides = array<i32>} : memref<18x18x8xbf16, #tpu.memory_space<vmem>>, vector<1x16x8xbf16>,
    %179 = vector.extract_strided_slice %92 {offsets = [192, 0], sizes = [16, 8], strides = [1, 1]} : vector<256x8xbf16> to vector<16x8xbf16>
    %c1_i32_122 = arith.constant 1 : i32
    %180 = arith.addi %84, %c1_i32_122 : i32
    %c12_i32 = arith.constant 12 : i32
    %181 = arith.addi %180, %c12_i32 : i32
    %182 = arith.index_cast %181 : i32 to index
    %c1_123 = arith.constant 1 : index
    %c0_124 = arith.constant 0 : index
    %183 = vector.load %arg6[%182, %c1_123, %c0_124] : memref<18x18x8xbf16, #tpu.memory_space<vmem>>, vector<1x16x8xbf16>
    %184 = vector.shape_cast %183 : vector<1x16x8xbf16> to vector<16x8xbf16>
    %185 = vector.shape_cast %179 : vector<16x8xbf16> to vector<1x16x8xbf16>
    tpu.vector_store %arg6[%182, %c1_123, %c0_124], %185 {strides = array<i32>} : memref<18x18x8xbf16, #tpu.memory_space<vmem>>, vector<1x16x8xbf16>,
    %186 = vector.extract_strided_slice %92 {offsets = [208, 0], sizes = [16, 8], strides = [1, 1]} : vector<256x8xbf16> to vector<16x8xbf16>
    %c1_i32_125 = arith.constant 1 : i32
    %187 = arith.addi %84, %c1_i32_125 : i32
    %c13_i32 = arith.constant 13 : i32
    %188 = arith.addi %187, %c13_i32 : i32
    %189 = arith.index_cast %188 : i32 to index
    %c1_126 = arith.constant 1 : index
    %c0_127 = arith.constant 0 : index
    %190 = vector.load %arg6[%189, %c1_126, %c0_127] : memref<18x18x8xbf16, #tpu.memory_space<vmem>>, vector<1x16x8xbf16>
    %191 = vector.shape_cast %190 : vector<1x16x8xbf16> to vector<16x8xbf16>
    %192 = vector.shape_cast %186 : vector<16x8xbf16> to vector<1x16x8xbf16>
    tpu.vector_store %arg6[%189, %c1_126, %c0_127], %192 {strides = array<i32>} : memref<18x18x8xbf16, #tpu.memory_space<vmem>>, vector<1x16x8xbf16>,
    %193 = vector.extract_strided_slice %92 {offsets = [224, 0], sizes = [16, 8], strides = [1, 1]} : vector<256x8xbf16> to vector<16x8xbf16>
    %c1_i32_128 = arith.constant 1 : i32
    %194 = arith.addi %84, %c1_i32_128 : i32
    %c14_i32 = arith.constant 14 : i32
    %195 = arith.addi %194, %c14_i32 : i32
    %196 = arith.index_cast %195 : i32 to index
    %c1_129 = arith.constant 1 : index
    %c0_130 = arith.constant 0 : index
    %197 = vector.load %arg6[%196, %c1_129, %c0_130] : memref<18x18x8xbf16, #tpu.memory_space<vmem>>, vector<1x16x8xbf16>
    %198 = vector.shape_cast %197 : vector<1x16x8xbf16> to vector<16x8xbf16>
    %199 = vector.shape_cast %193 : vector<16x8xbf16> to vector<1x16x8xbf16>
    tpu.vector_store %arg6[%196, %c1_129, %c0_130], %199 {strides = array<i32>} : memref<18x18x8xbf16, #tpu.memory_space<vmem>>, vector<1x16x8xbf16>,
    %200 = vector.extract_strided_slice %92 {offsets = [240, 0], sizes = [16, 8], strides = [1, 1]} : vector<256x8xbf16> to vector<16x8xbf16>
    %c1_i32_131 = arith.constant 1 : i32
    %201 = arith.addi %84, %c1_i32_131 : i32
    %c15_i32 = arith.constant 15 : i32
    %202 = arith.addi %201, %c15_i32 : i32
    %203 = arith.index_cast %202 : i32 to index
    %c1_132 = arith.constant 1 : index
    %c0_133 = arith.constant 0 : index
    %204 = vector.load %arg6[%203, %c1_132, %c0_133] : memref<18x18x8xbf16, #tpu.memory_space<vmem>>, vector<1x16x8xbf16>
    %205 = vector.shape_cast %204 : vector<1x16x8xbf16> to vector<16x8xbf16>
    %206 = vector.shape_cast %200 : vector<16x8xbf16> to vector<1x16x8xbf16>
    tpu.vector_store %arg6[%203, %c1_132, %c0_133], %206 {strides = array<i32>} : memref<18x18x8xbf16, #tpu.memory_space<vmem>>, vector<1x16x8xbf16>,
    %c1_i32_134 = arith.constant 1 : i32
    %c2_135 = arith.constant 2 : index
    %c1_136 = arith.constant 1 : index
    %c0_137 = arith.constant 0 : index
    %207 = vector.load %arg6[%c2_135, %c1_136, %c0_137] : memref<18x18x8xbf16, #tpu.memory_space<vmem>>, vector<1x16x8xbf16>
    %208 = vector.shape_cast %207 : vector<1x16x8xbf16> to vector<16x8xbf16>
    %c0_138 = arith.constant 0 : index
    %c1_139 = arith.constant 1 : index
    %c0_140 = arith.constant 0 : index
    %209 = vector.load %arg6[%c0_138, %c1_139, %c0_140] : memref<18x18x8xbf16, #tpu.memory_space<vmem>>, vector<1x16x8xbf16>
    %210 = vector.shape_cast %209 : vector<1x16x8xbf16> to vector<16x8xbf16>
    %211 = vector.shape_cast %208 : vector<16x8xbf16> to vector<1x16x8xbf16>
    tpu.vector_store %arg6[%c0_138, %c1_139, %c0_140], %211 {strides = array<i32>} : memref<18x18x8xbf16, #tpu.memory_space<vmem>>, vector<1x16x8xbf16>,
    %c15_141 = arith.constant 15 : index
    %c1_142 = arith.constant 1 : index
    %c0_143 = arith.constant 0 : index
    %212 = vector.load %arg6[%c15_141, %c1_142, %c0_143] : memref<18x18x8xbf16, #tpu.memory_space<vmem>>, vector<1x16x8xbf16>
    %213 = vector.shape_cast %212 : vector<1x16x8xbf16> to vector<16x8xbf16>
    %c17_144 = arith.constant 17 : index
    %c1_145 = arith.constant 1 : index
    %c0_146 = arith.constant 0 : index
    %214 = vector.load %arg6[%c17_144, %c1_145, %c0_146] : memref<18x18x8xbf16, #tpu.memory_space<vmem>>, vector<1x16x8xbf16>
    %215 = vector.shape_cast %214 : vector<1x16x8xbf16> to vector<16x8xbf16>
    %216 = vector.shape_cast %213 : vector<16x8xbf16> to vector<1x16x8xbf16>
    tpu.vector_store %arg6[%c17_144, %c1_145, %c0_146], %216 {strides = array<i32>} : memref<18x18x8xbf16, #tpu.memory_space<vmem>>, vector<1x16x8xbf16>,
    %c0_147 = arith.constant 0 : index
    %c2_148 = arith.constant 2 : index
    %c0_149 = arith.constant 0 : index
    %217 = vector.load %arg6[%c0_147, %c2_148, %c0_149] : memref<18x18x8xbf16, #tpu.memory_space<vmem>>, vector<18x1x8xbf16>
    %218 = vector.shape_cast %217 : vector<18x1x8xbf16> to vector<18x8xbf16>
    %c0_150 = arith.constant 0 : index
    %c0_151 = arith.constant 0 : index
    %c0_152 = arith.constant 0 : index
    %219 = vector.load %arg6[%c0_150, %c0_151, %c0_152] : memref<18x18x8xbf16, #tpu.memory_space<vmem>>, vector<18x1x8xbf16>
    %220 = vector.shape_cast %219 : vector<18x1x8xbf16> to vector<18x8xbf16>
    %221 = vector.shape_cast %218 : vector<18x8xbf16> to vector<18x1x8xbf16>
    tpu.vector_store %arg6[%c0_150, %c0_151, %c0_152], %221 {strides = array<i32>} : memref<18x18x8xbf16, #tpu.memory_space<vmem>>, vector<18x1x8xbf16>,
    %c0_153 = arith.constant 0 : index
    %c15_154 = arith.constant 15 : index
    %c0_155 = arith.constant 0 : index
    %222 = vector.load %arg6[%c0_153, %c15_154, %c0_155] : memref<18x18x8xbf16, #tpu.memory_space<vmem>>, vector<18x1x8xbf16>
    %223 = vector.shape_cast %222 : vector<18x1x8xbf16> to vector<18x8xbf16>
    %c0_156 = arith.constant 0 : index
    %c17_157 = arith.constant 17 : index
    %c0_158 = arith.constant 0 : index
    %224 = vector.load %arg6[%c0_156, %c17_157, %c0_158] : memref<18x18x8xbf16, #tpu.memory_space<vmem>>, vector<18x1x8xbf16>
    %225 = vector.shape_cast %224 : vector<18x1x8xbf16> to vector<18x8xbf16>
    %226 = vector.shape_cast %223 : vector<18x8xbf16> to vector<18x1x8xbf16>
    tpu.vector_store %arg6[%c0_156, %c17_157, %c0_158], %226 {strides = array<i32>} : memref<18x18x8xbf16, #tpu.memory_space<vmem>>, vector<18x1x8xbf16>,
    %cst_159 = arith.constant 0.000000e+00 : f32
    %227 = vector.broadcast %cst_159 : f32 to vector<1x8xf32>
    %c0_160 = arith.constant 0 : index
    %c0_161 = arith.constant 0 : index
    %228 = vector.load %arg9[%c0_160, %c0_161] : memref<1x8xf32, #tpu.memory_space<vmem>>, vector<1x8xf32>
    tpu.vector_store %arg9[%c0_160, %c0_161], %227 {strides = array<i32>} : memref<1x8xf32, #tpu.memory_space<vmem>>, vector<1x8xf32>,
    %cst_162 = arith.constant 0.000000e+00 : f32
    %229 = vector.broadcast %cst_162 : f32 to vector<1x8xf32>
    %c0_163 = arith.constant 0 : index
    %c0_164 = arith.constant 0 : index
    %230 = vector.load %arg10[%c0_163, %c0_164] : memref<1x8xf32, #tpu.memory_space<vmem>>, vector<1x8xf32>
    tpu.vector_store %arg10[%c0_163, %c0_164], %229 {strides = array<i32>} : memref<1x8xf32, #tpu.memory_space<vmem>>, vector<1x8xf32>,
    %c0_i32_165 = arith.constant 0 : i32
    %c16_i32_166 = arith.constant 16 : i32
    %231 = arith.muli %c0_i32_165, %c16_i32_166 : i32
    %c256_i32_167 = arith.constant 256 : i32
    %232 = arith.muli %c0_i32_165, %c256_i32_167 : i32
    %c0_i32_168 = arith.constant 0 : i32
    %233 = arith.addi %231, %c0_i32_168 : i32
    %234 = arith.index_cast %233 : i32 to index
    %c0_169 = arith.constant 0 : index
    %c0_170 = arith.constant 0 : index
    %235 = vector.load %arg6[%234, %c0_169, %c0_170] : memref<18x18x8xbf16, #tpu.memory_space<vmem>>, vector<16x16x8xbf16>
    %c0_i32_171 = arith.constant 0 : i32
    %236 = arith.addi %231, %c0_i32_171 : i32
    %237 = arith.index_cast %236 : i32 to index
    %c1_172 = arith.constant 1 : index
    %c0_173 = arith.constant 0 : index
    %238 = vector.load %arg6[%237, %c1_172, %c0_173] : memref<18x18x8xbf16, #tpu.memory_space<vmem>>, vector<16x16x8xbf16>
    %c0_i32_174 = arith.constant 0 : i32
    %239 = arith.addi %231, %c0_i32_174 : i32
    %240 = arith.index_cast %239 : i32 to index
    %c2_175 = arith.constant 2 : index
    %c0_176 = arith.constant 0 : index
    %241 = vector.load %arg6[%240, %c2_175, %c0_176] : memref<18x18x8xbf16, #tpu.memory_space<vmem>>, vector<16x16x8xbf16>
    %c1_i32_177 = arith.constant 1 : i32
    %242 = arith.addi %231, %c1_i32_177 : i32
    %243 = arith.index_cast %242 : i32 to index
    %c0_178 = arith.constant 0 : index
    %c0_179 = arith.constant 0 : index
    %244 = vector.load %arg6[%243, %c0_178, %c0_179] : memref<18x18x8xbf16, #tpu.memory_space<vmem>>, vector<16x16x8xbf16>
    %c1_i32_180 = arith.constant 1 : i32
    %245 = arith.addi %231, %c1_i32_180 : i32
    %246 = arith.index_cast %245 : i32 to index
    %c1_181 = arith.constant 1 : index
    %c0_182 = arith.constant 0 : index
    %247 = vector.load %arg6[%246, %c1_181, %c0_182] : memref<18x18x8xbf16, #tpu.memory_space<vmem>>, vector<16x16x8xbf16>
    %c1_i32_183 = arith.constant 1 : i32
    %248 = arith.addi %231, %c1_i32_183 : i32
    %249 = arith.index_cast %248 : i32 to index
    %c2_184 = arith.constant 2 : index
    %c0_185 = arith.constant 0 : index
    %250 = vector.load %arg6[%249, %c2_184, %c0_185] : memref<18x18x8xbf16, #tpu.memory_space<vmem>>, vector<16x16x8xbf16>
    %c2_i32_186 = arith.constant 2 : i32
    %251 = arith.addi %231, %c2_i32_186 : i32
    %252 = arith.index_cast %251 : i32 to index
    %c0_187 = arith.constant 0 : index
    %c0_188 = arith.constant 0 : index
    %253 = vector.load %arg6[%252, %c0_187, %c0_188] : memref<18x18x8xbf16, #tpu.memory_space<vmem>>, vector<16x16x8xbf16>
    %c2_i32_189 = arith.constant 2 : i32
    %254 = arith.addi %231, %c2_i32_189 : i32
    %255 = arith.index_cast %254 : i32 to index
    %c1_190 = arith.constant 1 : index
    %c0_191 = arith.constant 0 : index
    %256 = vector.load %arg6[%255, %c1_190, %c0_191] : memref<18x18x8xbf16, #tpu.memory_space<vmem>>, vector<16x16x8xbf16>
    %c2_i32_192 = arith.constant 2 : i32
    %257 = arith.addi %231, %c2_i32_192 : i32
    %258 = arith.index_cast %257 : i32 to index
    %c2_193 = arith.constant 2 : index
    %c0_194 = arith.constant 0 : index
    %259 = vector.load %arg6[%258, %c2_193, %c0_194] : memref<18x18x8xbf16, #tpu.memory_space<vmem>>, vector<16x16x8xbf16>
    %260 = tpu.concatenate %235, %238, %241, %244, %247, %250, %253, %256, %259 in 2 : vector<16x16x8xbf16>, vector<16x16x8xbf16>, vector<16x16x8xbf16>, vector<16x16x8xbf16>, vector<16x16x8xbf16>, vector<16x16x8xbf16>, vector<16x16x8xbf16>, vector<16x16x8xbf16>, vector<16x16x8xbf16> -> vector<16x16x72xbf16>
    %261 = vector.shape_cast %260 : vector<16x16x72xbf16> to vector<256x72xbf16>
    %c0_195 = arith.constant 0 : index
    %c0_196 = arith.constant 0 : index
    %262 = vector.load %arg3[%c0_195, %c0_196] : memref<72x8xbf16, #tpu.memory_space<vmem>>, vector<72x8xbf16>
    %cst_197 = arith.constant dense<0.000000e+00> : vector<256x8xf32>
    %263 = tpu.matmul %261, %262, %cst_197 {dimension_numbers = #tpu.dot_dimension_numbers<[1], [0], [0], [1], [0, 0, 1, 1], [], []>} : vector<256x72xbf16>, vector<72x8xbf16>, vector<256x8xf32> -> vector<256x8xf32>
    %264 = arith.index_cast %232 : i32 to index
    %c0_198 = arith.constant 0 : index
    %265 = vector.load %arg7[%264, %c0_198] : memref<256x8xf32, #tpu.memory_space<vmem>>, vector<256x8xf32>
    tpu.vector_store %arg7[%264, %c0_198], %263 {strides = array<i32>} : memref<256x8xf32, #tpu.memory_space<vmem>>, vector<256x8xf32>,
    %c0_199 = arith.constant 0 : index
    %c0_200 = arith.constant 0 : index
    %266 = vector.load %arg9[%c0_199, %c0_200] : memref<1x8xf32, #tpu.memory_space<vmem>>, vector<1x8xf32>
    %cst_201 = arith.constant dense<0.000000e+00> : vector<8xf32>
    %267 = vector.multi_reduction <add>, %263, %cst_201 [0] : vector<256x8xf32> to vector<8xf32>
    %268 = vector.shape_cast %267 : vector<8xf32> to vector<1x8xf32>
    %269 = arith.addf %266, %268 : vector<1x8xf32>
    %c0_202 = arith.constant 0 : index
    %c0_203 = arith.constant 0 : index
    %270 = vector.load %arg9[%c0_202, %c0_203] : memref<1x8xf32, #tpu.memory_space<vmem>>, vector<1x8xf32>
    tpu.vector_store %arg9[%c0_202, %c0_203], %269 {strides = array<i32>} : memref<1x8xf32, #tpu.memory_space<vmem>>, vector<1x8xf32>,
    %c0_204 = arith.constant 0 : index
    %c0_205 = arith.constant 0 : index
    %271 = vector.load %arg10[%c0_204, %c0_205] : memref<1x8xf32, #tpu.memory_space<vmem>>, vector<1x8xf32>
    %272 = arith.mulf %263, %263 : vector<256x8xf32>
    %cst_206 = arith.constant dense<0.000000e+00> : vector<8xf32>
    %273 = vector.multi_reduction <add>, %272, %cst_206 [0] : vector<256x8xf32> to vector<8xf32>
    %274 = vector.shape_cast %273 : vector<8xf32> to vector<1x8xf32>
    %275 = arith.addf %271, %274 : vector<1x8xf32>
    %c0_207 = arith.constant 0 : index
    %c0_208 = arith.constant 0 : index
    %276 = vector.load %arg10[%c0_207, %c0_208] : memref<1x8xf32, #tpu.memory_space<vmem>>, vector<1x8xf32>
    tpu.vector_store %arg10[%c0_207, %c0_208], %275 {strides = array<i32>} : memref<1x8xf32, #tpu.memory_space<vmem>>, vector<1x8xf32>,
    %c1_i32_209 = arith.constant 1 : i32
    %c0_210 = arith.constant 0 : index
    %c0_211 = arith.constant 0 : index
    %277 = vector.load %arg9[%c0_210, %c0_211] : memref<1x8xf32, #tpu.memory_space<vmem>>, vector<1x8xf32>
    %cst_212 = arith.constant 3.906250e-03 : f32
    %278 = vector.broadcast %cst_212 : f32 to vector<1x8xf32>
    %279 = arith.mulf %277, %278 : vector<1x8xf32>
    %c0_213 = arith.constant 0 : index
    %c0_214 = arith.constant 0 : index
    %280 = vector.load %arg10[%c0_213, %c0_214] : memref<1x8xf32, #tpu.memory_space<vmem>>, vector<1x8xf32>
    %cst_215 = arith.constant 3.906250e-03 : f32
    %281 = vector.broadcast %cst_215 : f32 to vector<1x8xf32>
    %282 = arith.mulf %280, %281 : vector<1x8xf32>
    %283 = arith.mulf %279, %279 : vector<1x8xf32>
    %284 = arith.subf %282, %283 : vector<1x8xf32>
    %cst_216 = arith.constant 9.99999974E-6 : f32
    %285 = vector.broadcast %cst_216 : f32 to vector<1x8xf32>
    %286 = arith.addf %284, %285 : vector<1x8xf32>
    %287 = math.rsqrt %286 : vector<1x8xf32>
    %c0_i32_217 = arith.constant 0 : i32
    %c16_i32_218 = arith.constant 16 : i32
    %288 = arith.muli %c0_i32_217, %c16_i32_218 : i32
    %c256_i32_219 = arith.constant 256 : i32
    %289 = arith.muli %c0_i32_217, %c256_i32_219 : i32
    %290 = arith.index_cast %289 : i32 to index
    %c0_220 = arith.constant 0 : index
    %291 = vector.load %arg7[%290, %c0_220] : memref<256x8xf32, #tpu.memory_space<vmem>>, vector<256x8xf32>
    %292 = vector.broadcast %279 : vector<1x8xf32> to vector<256x8xf32>
    %293 = arith.subf %291, %292 : vector<256x8xf32>
    %294 = vector.broadcast %287 : vector<1x8xf32> to vector<256x8xf32>
    %295 = arith.mulf %293, %294 : vector<256x8xf32>
    %cst_221 = arith.constant 0.000000e+00 : f32
    %296 = vector.broadcast %cst_221 : f32 to vector<256x8xf32>
    %297 = arith.cmpf ogt, %295, %296 : vector<256x8xf32>
    %cst_222 = arith.constant 2.500000e-01 : f32
    %298 = vector.broadcast %cst_222 : f32 to vector<256x8xf32>
    %299 = arith.mulf %298, %295 : vector<256x8xf32>
    %300 = arith.select %297, %295, %299 : vector<256x8xi1>, vector<256x8xf32>
    %301 = arith.truncf %300 : vector<256x8xf32> to vector<256x8xbf16>
    %302 = vector.extract_strided_slice %301 {offsets = [0, 0], sizes = [16, 8], strides = [1, 1]} : vector<256x8xbf16> to vector<16x8xbf16>
    %c1_i32_223 = arith.constant 1 : i32
    %303 = arith.addi %288, %c1_i32_223 : i32
    %c0_i32_224 = arith.constant 0 : i32
    %304 = arith.addi %303, %c0_i32_224 : i32
    %305 = arith.index_cast %304 : i32 to index
    %c1_225 = arith.constant 1 : index
    %c0_226 = arith.constant 0 : index
    %306 = vector.load %arg6[%305, %c1_225, %c0_226] : memref<18x18x8xbf16, #tpu.memory_space<vmem>>, vector<1x16x8xbf16>
    %307 = vector.shape_cast %306 : vector<1x16x8xbf16> to vector<16x8xbf16>
    %308 = vector.shape_cast %302 : vector<16x8xbf16> to vector<1x16x8xbf16>
    tpu.vector_store %arg6[%305, %c1_225, %c0_226], %308 {strides = array<i32>} : memref<18x18x8xbf16, #tpu.memory_space<vmem>>, vector<1x16x8xbf16>,
    %309 = vector.extract_strided_slice %301 {offsets = [16, 0], sizes = [16, 8], strides = [1, 1]} : vector<256x8xbf16> to vector<16x8xbf16>
    %c1_i32_227 = arith.constant 1 : i32
    %310 = arith.addi %288, %c1_i32_227 : i32
    %c1_i32_228 = arith.constant 1 : i32
    %311 = arith.addi %310, %c1_i32_228 : i32
    %312 = arith.index_cast %311 : i32 to index
    %c1_229 = arith.constant 1 : index
    %c0_230 = arith.constant 0 : index
    %313 = vector.load %arg6[%312, %c1_229, %c0_230] : memref<18x18x8xbf16, #tpu.memory_space<vmem>>, vector<1x16x8xbf16>
    %314 = vector.shape_cast %313 : vector<1x16x8xbf16> to vector<16x8xbf16>
    %315 = vector.shape_cast %309 : vector<16x8xbf16> to vector<1x16x8xbf16>
    tpu.vector_store %arg6[%312, %c1_229, %c0_230], %315 {strides = array<i32>} : memref<18x18x8xbf16, #tpu.memory_space<vmem>>, vector<1x16x8xbf16>,
    %316 = vector.extract_strided_slice %301 {offsets = [32, 0], sizes = [16, 8], strides = [1, 1]} : vector<256x8xbf16> to vector<16x8xbf16>
    %c1_i32_231 = arith.constant 1 : i32
    %317 = arith.addi %288, %c1_i32_231 : i32
    %c2_i32_232 = arith.constant 2 : i32
    %318 = arith.addi %317, %c2_i32_232 : i32
    %319 = arith.index_cast %318 : i32 to index
    %c1_233 = arith.constant 1 : index
    %c0_234 = arith.constant 0 : index
    %320 = vector.load %arg6[%319, %c1_233, %c0_234] : memref<18x18x8xbf16, #tpu.memory_space<vmem>>, vector<1x16x8xbf16>
    %321 = vector.shape_cast %320 : vector<1x16x8xbf16> to vector<16x8xbf16>
    %322 = vector.shape_cast %316 : vector<16x8xbf16> to vector<1x16x8xbf16>
    tpu.vector_store %arg6[%319, %c1_233, %c0_234], %322 {strides = array<i32>} : memref<18x18x8xbf16, #tpu.memory_space<vmem>>, vector<1x16x8xbf16>,
    %323 = vector.extract_strided_slice %301 {offsets = [48, 0], sizes = [16, 8], strides = [1, 1]} : vector<256x8xbf16> to vector<16x8xbf16>
    %c1_i32_235 = arith.constant 1 : i32
    %324 = arith.addi %288, %c1_i32_235 : i32
    %c3_i32_236 = arith.constant 3 : i32
    %325 = arith.addi %324, %c3_i32_236 : i32
    %326 = arith.index_cast %325 : i32 to index
    %c1_237 = arith.constant 1 : index
    %c0_238 = arith.constant 0 : index
    %327 = vector.load %arg6[%326, %c1_237, %c0_238] : memref<18x18x8xbf16, #tpu.memory_space<vmem>>, vector<1x16x8xbf16>
    %328 = vector.shape_cast %327 : vector<1x16x8xbf16> to vector<16x8xbf16>
    %329 = vector.shape_cast %323 : vector<16x8xbf16> to vector<1x16x8xbf16>
    tpu.vector_store %arg6[%326, %c1_237, %c0_238], %329 {strides = array<i32>} : memref<18x18x8xbf16, #tpu.memory_space<vmem>>, vector<1x16x8xbf16>,
    %330 = vector.extract_strided_slice %301 {offsets = [64, 0], sizes = [16, 8], strides = [1, 1]} : vector<256x8xbf16> to vector<16x8xbf16>
    %c1_i32_239 = arith.constant 1 : i32
    %331 = arith.addi %288, %c1_i32_239 : i32
    %c4_i32_240 = arith.constant 4 : i32
    %332 = arith.addi %331, %c4_i32_240 : i32
    %333 = arith.index_cast %332 : i32 to index
    %c1_241 = arith.constant 1 : index
    %c0_242 = arith.constant 0 : index
    %334 = vector.load %arg6[%333, %c1_241, %c0_242] : memref<18x18x8xbf16, #tpu.memory_space<vmem>>, vector<1x16x8xbf16>
    %335 = vector.shape_cast %334 : vector<1x16x8xbf16> to vector<16x8xbf16>
    %336 = vector.shape_cast %330 : vector<16x8xbf16> to vector<1x16x8xbf16>
    tpu.vector_store %arg6[%333, %c1_241, %c0_242], %336 {strides = array<i32>} : memref<18x18x8xbf16, #tpu.memory_space<vmem>>, vector<1x16x8xbf16>,
    %337 = vector.extract_strided_slice %301 {offsets = [80, 0], sizes = [16, 8], strides = [1, 1]} : vector<256x8xbf16> to vector<16x8xbf16>
    %c1_i32_243 = arith.constant 1 : i32
    %338 = arith.addi %288, %c1_i32_243 : i32
    %c5_i32_244 = arith.constant 5 : i32
    %339 = arith.addi %338, %c5_i32_244 : i32
    %340 = arith.index_cast %339 : i32 to index
    %c1_245 = arith.constant 1 : index
    %c0_246 = arith.constant 0 : index
    %341 = vector.load %arg6[%340, %c1_245, %c0_246] : memref<18x18x8xbf16, #tpu.memory_space<vmem>>, vector<1x16x8xbf16>
    %342 = vector.shape_cast %341 : vector<1x16x8xbf16> to vector<16x8xbf16>
    %343 = vector.shape_cast %337 : vector<16x8xbf16> to vector<1x16x8xbf16>
    tpu.vector_store %arg6[%340, %c1_245, %c0_246], %343 {strides = array<i32>} : memref<18x18x8xbf16, #tpu.memory_space<vmem>>, vector<1x16x8xbf16>,
    %344 = vector.extract_strided_slice %301 {offsets = [96, 0], sizes = [16, 8], strides = [1, 1]} : vector<256x8xbf16> to vector<16x8xbf16>
    %c1_i32_247 = arith.constant 1 : i32
    %345 = arith.addi %288, %c1_i32_247 : i32
    %c6_i32_248 = arith.constant 6 : i32
    %346 = arith.addi %345, %c6_i32_248 : i32
    %347 = arith.index_cast %346 : i32 to index
    %c1_249 = arith.constant 1 : index
    %c0_250 = arith.constant 0 : index
    %348 = vector.load %arg6[%347, %c1_249, %c0_250] : memref<18x18x8xbf16, #tpu.memory_space<vmem>>, vector<1x16x8xbf16>
    %349 = vector.shape_cast %348 : vector<1x16x8xbf16> to vector<16x8xbf16>
    %350 = vector.shape_cast %344 : vector<16x8xbf16> to vector<1x16x8xbf16>
    tpu.vector_store %arg6[%347, %c1_249, %c0_250], %350 {strides = array<i32>} : memref<18x18x8xbf16, #tpu.memory_space<vmem>>, vector<1x16x8xbf16>,
    %351 = vector.extract_strided_slice %301 {offsets = [112, 0], sizes = [16, 8], strides = [1, 1]} : vector<256x8xbf16> to vector<16x8xbf16>
    %c1_i32_251 = arith.constant 1 : i32
    %352 = arith.addi %288, %c1_i32_251 : i32
    %c7_i32_252 = arith.constant 7 : i32
    %353 = arith.addi %352, %c7_i32_252 : i32
    %354 = arith.index_cast %353 : i32 to index
    %c1_253 = arith.constant 1 : index
    %c0_254 = arith.constant 0 : index
    %355 = vector.load %arg6[%354, %c1_253, %c0_254] : memref<18x18x8xbf16, #tpu.memory_space<vmem>>, vector<1x16x8xbf16>
    %356 = vector.shape_cast %355 : vector<1x16x8xbf16> to vector<16x8xbf16>
    %357 = vector.shape_cast %351 : vector<16x8xbf16> to vector<1x16x8xbf16>
    tpu.vector_store %arg6[%354, %c1_253, %c0_254], %357 {strides = array<i32>} : memref<18x18x8xbf16, #tpu.memory_space<vmem>>, vector<1x16x8xbf16>,
    %358 = vector.extract_strided_slice %301 {offsets = [128, 0], sizes = [16, 8], strides = [1, 1]} : vector<256x8xbf16> to vector<16x8xbf16>
    %c1_i32_255 = arith.constant 1 : i32
    %359 = arith.addi %288, %c1_i32_255 : i32
    %c8_i32_256 = arith.constant 8 : i32
    %360 = arith.addi %359, %c8_i32_256 : i32
    %361 = arith.index_cast %360 : i32 to index
    %c1_257 = arith.constant 1 : index
    %c0_258 = arith.constant 0 : index
    %362 = vector.load %arg6[%361, %c1_257, %c0_258] : memref<18x18x8xbf16, #tpu.memory_space<vmem>>, vector<1x16x8xbf16>
    %363 = vector.shape_cast %362 : vector<1x16x8xbf16> to vector<16x8xbf16>
    %364 = vector.shape_cast %358 : vector<16x8xbf16> to vector<1x16x8xbf16>
    tpu.vector_store %arg6[%361, %c1_257, %c0_258], %364 {strides = array<i32>} : memref<18x18x8xbf16, #tpu.memory_space<vmem>>, vector<1x16x8xbf16>,
    %365 = vector.extract_strided_slice %301 {offsets = [144, 0], sizes = [16, 8], strides = [1, 1]} : vector<256x8xbf16> to vector<16x8xbf16>
    %c1_i32_259 = arith.constant 1 : i32
    %366 = arith.addi %288, %c1_i32_259 : i32
    %c9_i32_260 = arith.constant 9 : i32
    %367 = arith.addi %366, %c9_i32_260 : i32
    %368 = arith.index_cast %367 : i32 to index
    %c1_261 = arith.constant 1 : index
    %c0_262 = arith.constant 0 : index
    %369 = vector.load %arg6[%368, %c1_261, %c0_262] : memref<18x18x8xbf16, #tpu.memory_space<vmem>>, vector<1x16x8xbf16>
    %370 = vector.shape_cast %369 : vector<1x16x8xbf16> to vector<16x8xbf16>
    %371 = vector.shape_cast %365 : vector<16x8xbf16> to vector<1x16x8xbf16>
    tpu.vector_store %arg6[%368, %c1_261, %c0_262], %371 {strides = array<i32>} : memref<18x18x8xbf16, #tpu.memory_space<vmem>>, vector<1x16x8xbf16>,
    %372 = vector.extract_strided_slice %301 {offsets = [160, 0], sizes = [16, 8], strides = [1, 1]} : vector<256x8xbf16> to vector<16x8xbf16>
    %c1_i32_263 = arith.constant 1 : i32
    %373 = arith.addi %288, %c1_i32_263 : i32
    %c10_i32_264 = arith.constant 10 : i32
    %374 = arith.addi %373, %c10_i32_264 : i32
    %375 = arith.index_cast %374 : i32 to index
    %c1_265 = arith.constant 1 : index
    %c0_266 = arith.constant 0 : index
    %376 = vector.load %arg6[%375, %c1_265, %c0_266] : memref<18x18x8xbf16, #tpu.memory_space<vmem>>, vector<1x16x8xbf16>
    %377 = vector.shape_cast %376 : vector<1x16x8xbf16> to vector<16x8xbf16>
    %378 = vector.shape_cast %372 : vector<16x8xbf16> to vector<1x16x8xbf16>
    tpu.vector_store %arg6[%375, %c1_265, %c0_266], %378 {strides = array<i32>} : memref<18x18x8xbf16, #tpu.memory_space<vmem>>, vector<1x16x8xbf16>,
    %379 = vector.extract_strided_slice %301 {offsets = [176, 0], sizes = [16, 8], strides = [1, 1]} : vector<256x8xbf16> to vector<16x8xbf16>
    %c1_i32_267 = arith.constant 1 : i32
    %380 = arith.addi %288, %c1_i32_267 : i32
    %c11_i32_268 = arith.constant 11 : i32
    %381 = arith.addi %380, %c11_i32_268 : i32
    %382 = arith.index_cast %381 : i32 to index
    %c1_269 = arith.constant 1 : index
    %c0_270 = arith.constant 0 : index
    %383 = vector.load %arg6[%382, %c1_269, %c0_270] : memref<18x18x8xbf16, #tpu.memory_space<vmem>>, vector<1x16x8xbf16>
    %384 = vector.shape_cast %383 : vector<1x16x8xbf16> to vector<16x8xbf16>
    %385 = vector.shape_cast %379 : vector<16x8xbf16> to vector<1x16x8xbf16>
    tpu.vector_store %arg6[%382, %c1_269, %c0_270], %385 {strides = array<i32>} : memref<18x18x8xbf16, #tpu.memory_space<vmem>>, vector<1x16x8xbf16>,
    %386 = vector.extract_strided_slice %301 {offsets = [192, 0], sizes = [16, 8], strides = [1, 1]} : vector<256x8xbf16> to vector<16x8xbf16>
    %c1_i32_271 = arith.constant 1 : i32
    %387 = arith.addi %288, %c1_i32_271 : i32
    %c12_i32_272 = arith.constant 12 : i32
    %388 = arith.addi %387, %c12_i32_272 : i32
    %389 = arith.index_cast %388 : i32 to index
    %c1_273 = arith.constant 1 : index
    %c0_274 = arith.constant 0 : index
    %390 = vector.load %arg6[%389, %c1_273, %c0_274] : memref<18x18x8xbf16, #tpu.memory_space<vmem>>, vector<1x16x8xbf16>
    %391 = vector.shape_cast %390 : vector<1x16x8xbf16> to vector<16x8xbf16>
    %392 = vector.shape_cast %386 : vector<16x8xbf16> to vector<1x16x8xbf16>
    tpu.vector_store %arg6[%389, %c1_273, %c0_274], %392 {strides = array<i32>} : memref<18x18x8xbf16, #tpu.memory_space<vmem>>, vector<1x16x8xbf16>,
    %393 = vector.extract_strided_slice %301 {offsets = [208, 0], sizes = [16, 8], strides = [1, 1]} : vector<256x8xbf16> to vector<16x8xbf16>
    %c1_i32_275 = arith.constant 1 : i32
    %394 = arith.addi %288, %c1_i32_275 : i32
    %c13_i32_276 = arith.constant 13 : i32
    %395 = arith.addi %394, %c13_i32_276 : i32
    %396 = arith.index_cast %395 : i32 to index
    %c1_277 = arith.constant 1 : index
    %c0_278 = arith.constant 0 : index
    %397 = vector.load %arg6[%396, %c1_277, %c0_278] : memref<18x18x8xbf16, #tpu.memory_space<vmem>>, vector<1x16x8xbf16>
    %398 = vector.shape_cast %397 : vector<1x16x8xbf16> to vector<16x8xbf16>
    %399 = vector.shape_cast %393 : vector<16x8xbf16> to vector<1x16x8xbf16>
    tpu.vector_store %arg6[%396, %c1_277, %c0_278], %399 {strides = array<i32>} : memref<18x18x8xbf16, #tpu.memory_space<vmem>>, vector<1x16x8xbf16>,
    %400 = vector.extract_strided_slice %301 {offsets = [224, 0], sizes = [16, 8], strides = [1, 1]} : vector<256x8xbf16> to vector<16x8xbf16>
    %c1_i32_279 = arith.constant 1 : i32
    %401 = arith.addi %288, %c1_i32_279 : i32
    %c14_i32_280 = arith.constant 14 : i32
    %402 = arith.addi %401, %c14_i32_280 : i32
    %403 = arith.index_cast %402 : i32 to index
    %c1_281 = arith.constant 1 : index
    %c0_282 = arith.constant 0 : index
    %404 = vector.load %arg6[%403, %c1_281, %c0_282] : memref<18x18x8xbf16, #tpu.memory_space<vmem>>, vector<1x16x8xbf16>
    %405 = vector.shape_cast %404 : vector<1x16x8xbf16> to vector<16x8xbf16>
    %406 = vector.shape_cast %400 : vector<16x8xbf16> to vector<1x16x8xbf16>
    tpu.vector_store %arg6[%403, %c1_281, %c0_282], %406 {strides = array<i32>} : memref<18x18x8xbf16, #tpu.memory_space<vmem>>, vector<1x16x8xbf16>,
    %407 = vector.extract_strided_slice %301 {offsets = [240, 0], sizes = [16, 8], strides = [1, 1]} : vector<256x8xbf16> to vector<16x8xbf16>
    %c1_i32_283 = arith.constant 1 : i32
    %408 = arith.addi %288, %c1_i32_283 : i32
    %c15_i32_284 = arith.constant 15 : i32
    %409 = arith.addi %408, %c15_i32_284 : i32
    %410 = arith.index_cast %409 : i32 to index
    %c1_285 = arith.constant 1 : index
    %c0_286 = arith.constant 0 : index
    %411 = vector.load %arg6[%410, %c1_285, %c0_286] : memref<18x18x8xbf16, #tpu.memory_space<vmem>>, vector<1x16x8xbf16>
    %412 = vector.shape_cast %411 : vector<1x16x8xbf16> to vector<16x8xbf16>
    %413 = vector.shape_cast %407 : vector<16x8xbf16> to vector<1x16x8xbf16>
    tpu.vector_store %arg6[%410, %c1_285, %c0_286], %413 {strides = array<i32>} : memref<18x18x8xbf16, #tpu.memory_space<vmem>>, vector<1x16x8xbf16>,
    %c1_i32_287 = arith.constant 1 : i32
    %c2_288 = arith.constant 2 : index
    %c1_289 = arith.constant 1 : index
    %c0_290 = arith.constant 0 : index
    %414 = vector.load %arg6[%c2_288, %c1_289, %c0_290] : memref<18x18x8xbf16, #tpu.memory_space<vmem>>, vector<1x16x8xbf16>
    %415 = vector.shape_cast %414 : vector<1x16x8xbf16> to vector<16x8xbf16>
    %c0_291 = arith.constant 0 : index
    %c1_292 = arith.constant 1 : index
    %c0_293 = arith.constant 0 : index
    %416 = vector.load %arg6[%c0_291, %c1_292, %c0_293] : memref<18x18x8xbf16, #tpu.memory_space<vmem>>, vector<1x16x8xbf16>
    %417 = vector.shape_cast %416 : vector<1x16x8xbf16> to vector<16x8xbf16>
    %418 = vector.shape_cast %415 : vector<16x8xbf16> to vector<1x16x8xbf16>
    tpu.vector_store %arg6[%c0_291, %c1_292, %c0_293], %418 {strides = array<i32>} : memref<18x18x8xbf16, #tpu.memory_space<vmem>>, vector<1x16x8xbf16>,
    %c15_294 = arith.constant 15 : index
    %c1_295 = arith.constant 1 : index
    %c0_296 = arith.constant 0 : index
    %419 = vector.load %arg6[%c15_294, %c1_295, %c0_296] : memref<18x18x8xbf16, #tpu.memory_space<vmem>>, vector<1x16x8xbf16>
    %420 = vector.shape_cast %419 : vector<1x16x8xbf16> to vector<16x8xbf16>
    %c17_297 = arith.constant 17 : index
    %c1_298 = arith.constant 1 : index
    %c0_299 = arith.constant 0 : index
    %421 = vector.load %arg6[%c17_297, %c1_298, %c0_299] : memref<18x18x8xbf16, #tpu.memory_space<vmem>>, vector<1x16x8xbf16>
    %422 = vector.shape_cast %421 : vector<1x16x8xbf16> to vector<16x8xbf16>
    %423 = vector.shape_cast %420 : vector<16x8xbf16> to vector<1x16x8xbf16>
    tpu.vector_store %arg6[%c17_297, %c1_298, %c0_299], %423 {strides = array<i32>} : memref<18x18x8xbf16, #tpu.memory_space<vmem>>, vector<1x16x8xbf16>,
    %c0_300 = arith.constant 0 : index
    %c2_301 = arith.constant 2 : index
    %c0_302 = arith.constant 0 : index
    %424 = vector.load %arg6[%c0_300, %c2_301, %c0_302] : memref<18x18x8xbf16, #tpu.memory_space<vmem>>, vector<18x1x8xbf16>
    %425 = vector.shape_cast %424 : vector<18x1x8xbf16> to vector<18x8xbf16>
    %c0_303 = arith.constant 0 : index
    %c0_304 = arith.constant 0 : index
    %c0_305 = arith.constant 0 : index
    %426 = vector.load %arg6[%c0_303, %c0_304, %c0_305] : memref<18x18x8xbf16, #tpu.memory_space<vmem>>, vector<18x1x8xbf16>
    %427 = vector.shape_cast %426 : vector<18x1x8xbf16> to vector<18x8xbf16>
    %428 = vector.shape_cast %425 : vector<18x8xbf16> to vector<18x1x8xbf16>
    tpu.vector_store %arg6[%c0_303, %c0_304, %c0_305], %428 {strides = array<i32>} : memref<18x18x8xbf16, #tpu.memory_space<vmem>>, vector<18x1x8xbf16>,
    %c0_306 = arith.constant 0 : index
    %c15_307 = arith.constant 15 : index
    %c0_308 = arith.constant 0 : index
    %429 = vector.load %arg6[%c0_306, %c15_307, %c0_308] : memref<18x18x8xbf16, #tpu.memory_space<vmem>>, vector<18x1x8xbf16>
    %430 = vector.shape_cast %429 : vector<18x1x8xbf16> to vector<18x8xbf16>
    %c0_309 = arith.constant 0 : index
    %c17_310 = arith.constant 17 : index
    %c0_311 = arith.constant 0 : index
    %431 = vector.load %arg6[%c0_309, %c17_310, %c0_311] : memref<18x18x8xbf16, #tpu.memory_space<vmem>>, vector<18x1x8xbf16>
    %432 = vector.shape_cast %431 : vector<18x1x8xbf16> to vector<18x8xbf16>
    %433 = vector.shape_cast %430 : vector<18x8xbf16> to vector<18x1x8xbf16>
    tpu.vector_store %arg6[%c0_309, %c17_310, %c0_311], %433 {strides = array<i32>} : memref<18x18x8xbf16, #tpu.memory_space<vmem>>, vector<18x1x8xbf16>,
    %cst_312 = arith.constant 0.000000e+00 : f32
    %434 = vector.broadcast %cst_312 : f32 to vector<1x8xf32>
    %c0_313 = arith.constant 0 : index
    %c0_314 = arith.constant 0 : index
    %435 = vector.load %arg9[%c0_313, %c0_314] : memref<1x8xf32, #tpu.memory_space<vmem>>, vector<1x8xf32>
    tpu.vector_store %arg9[%c0_313, %c0_314], %434 {strides = array<i32>} : memref<1x8xf32, #tpu.memory_space<vmem>>, vector<1x8xf32>,
    %cst_315 = arith.constant 0.000000e+00 : f32
    %436 = vector.broadcast %cst_315 : f32 to vector<1x8xf32>
    %c0_316 = arith.constant 0 : index
    %c0_317 = arith.constant 0 : index
    %437 = vector.load %arg10[%c0_316, %c0_317] : memref<1x8xf32, #tpu.memory_space<vmem>>, vector<1x8xf32>
    tpu.vector_store %arg10[%c0_316, %c0_317], %436 {strides = array<i32>} : memref<1x8xf32, #tpu.memory_space<vmem>>, vector<1x8xf32>,
    %c0_i32_318 = arith.constant 0 : i32
    %c16_i32_319 = arith.constant 16 : i32
    %438 = arith.muli %c0_i32_318, %c16_i32_319 : i32
    %c256_i32_320 = arith.constant 256 : i32
    %439 = arith.muli %c0_i32_318, %c256_i32_320 : i32
    %c0_i32_321 = arith.constant 0 : i32
    %440 = arith.addi %438, %c0_i32_321 : i32
    %441 = arith.index_cast %440 : i32 to index
    %c0_322 = arith.constant 0 : index
    %c0_323 = arith.constant 0 : index
    %442 = vector.load %arg6[%441, %c0_322, %c0_323] : memref<18x18x8xbf16, #tpu.memory_space<vmem>>, vector<16x16x8xbf16>
    %c0_i32_324 = arith.constant 0 : i32
    %443 = arith.addi %438, %c0_i32_324 : i32
    %444 = arith.index_cast %443 : i32 to index
    %c1_325 = arith.constant 1 : index
    %c0_326 = arith.constant 0 : index
    %445 = vector.load %arg6[%444, %c1_325, %c0_326] : memref<18x18x8xbf16, #tpu.memory_space<vmem>>, vector<16x16x8xbf16>
    %c0_i32_327 = arith.constant 0 : i32
    %446 = arith.addi %438, %c0_i32_327 : i32
    %447 = arith.index_cast %446 : i32 to index
    %c2_328 = arith.constant 2 : index
    %c0_329 = arith.constant 0 : index
    %448 = vector.load %arg6[%447, %c2_328, %c0_329] : memref<18x18x8xbf16, #tpu.memory_space<vmem>>, vector<16x16x8xbf16>
    %c1_i32_330 = arith.constant 1 : i32
    %449 = arith.addi %438, %c1_i32_330 : i32
    %450 = arith.index_cast %449 : i32 to index
    %c0_331 = arith.constant 0 : index
    %c0_332 = arith.constant 0 : index
    %451 = vector.load %arg6[%450, %c0_331, %c0_332] : memref<18x18x8xbf16, #tpu.memory_space<vmem>>, vector<16x16x8xbf16>
    %c1_i32_333 = arith.constant 1 : i32
    %452 = arith.addi %438, %c1_i32_333 : i32
    %453 = arith.index_cast %452 : i32 to index
    %c1_334 = arith.constant 1 : index
    %c0_335 = arith.constant 0 : index
    %454 = vector.load %arg6[%453, %c1_334, %c0_335] : memref<18x18x8xbf16, #tpu.memory_space<vmem>>, vector<16x16x8xbf16>
    %c1_i32_336 = arith.constant 1 : i32
    %455 = arith.addi %438, %c1_i32_336 : i32
    %456 = arith.index_cast %455 : i32 to index
    %c2_337 = arith.constant 2 : index
    %c0_338 = arith.constant 0 : index
    %457 = vector.load %arg6[%456, %c2_337, %c0_338] : memref<18x18x8xbf16, #tpu.memory_space<vmem>>, vector<16x16x8xbf16>
    %c2_i32_339 = arith.constant 2 : i32
    %458 = arith.addi %438, %c2_i32_339 : i32
    %459 = arith.index_cast %458 : i32 to index
    %c0_340 = arith.constant 0 : index
    %c0_341 = arith.constant 0 : index
    %460 = vector.load %arg6[%459, %c0_340, %c0_341] : memref<18x18x8xbf16, #tpu.memory_space<vmem>>, vector<16x16x8xbf16>
    %c2_i32_342 = arith.constant 2 : i32
    %461 = arith.addi %438, %c2_i32_342 : i32
    %462 = arith.index_cast %461 : i32 to index
    %c1_343 = arith.constant 1 : index
    %c0_344 = arith.constant 0 : index
    %463 = vector.load %arg6[%462, %c1_343, %c0_344] : memref<18x18x8xbf16, #tpu.memory_space<vmem>>, vector<16x16x8xbf16>
    %c2_i32_345 = arith.constant 2 : i32
    %464 = arith.addi %438, %c2_i32_345 : i32
    %465 = arith.index_cast %464 : i32 to index
    %c2_346 = arith.constant 2 : index
    %c0_347 = arith.constant 0 : index
    %466 = vector.load %arg6[%465, %c2_346, %c0_347] : memref<18x18x8xbf16, #tpu.memory_space<vmem>>, vector<16x16x8xbf16>
    %467 = tpu.concatenate %442, %445, %448, %451, %454, %457, %460, %463, %466 in 2 : vector<16x16x8xbf16>, vector<16x16x8xbf16>, vector<16x16x8xbf16>, vector<16x16x8xbf16>, vector<16x16x8xbf16>, vector<16x16x8xbf16>, vector<16x16x8xbf16>, vector<16x16x8xbf16>, vector<16x16x8xbf16> -> vector<16x16x72xbf16>
    %468 = vector.shape_cast %467 : vector<16x16x72xbf16> to vector<256x72xbf16>
    %c0_348 = arith.constant 0 : index
    %c0_349 = arith.constant 0 : index
    %469 = vector.load %arg4[%c0_348, %c0_349] : memref<72x8xbf16, #tpu.memory_space<vmem>>, vector<72x8xbf16>
    %cst_350 = arith.constant dense<0.000000e+00> : vector<256x8xf32>
    %470 = tpu.matmul %468, %469, %cst_350 {dimension_numbers = #tpu.dot_dimension_numbers<[1], [0], [0], [1], [0, 0, 1, 1], [], []>} : vector<256x72xbf16>, vector<72x8xbf16>, vector<256x8xf32> -> vector<256x8xf32>
    %471 = arith.index_cast %439 : i32 to index
    %c0_351 = arith.constant 0 : index
    %472 = vector.load %arg7[%471, %c0_351] : memref<256x8xf32, #tpu.memory_space<vmem>>, vector<256x8xf32>
    tpu.vector_store %arg7[%471, %c0_351], %470 {strides = array<i32>} : memref<256x8xf32, #tpu.memory_space<vmem>>, vector<256x8xf32>,
    %c0_352 = arith.constant 0 : index
    %c0_353 = arith.constant 0 : index
    %473 = vector.load %arg9[%c0_352, %c0_353] : memref<1x8xf32, #tpu.memory_space<vmem>>, vector<1x8xf32>
    %cst_354 = arith.constant dense<0.000000e+00> : vector<8xf32>
    %474 = vector.multi_reduction <add>, %470, %cst_354 [0] : vector<256x8xf32> to vector<8xf32>
    %475 = vector.shape_cast %474 : vector<8xf32> to vector<1x8xf32>
    %476 = arith.addf %473, %475 : vector<1x8xf32>
    %c0_355 = arith.constant 0 : index
    %c0_356 = arith.constant 0 : index
    %477 = vector.load %arg9[%c0_355, %c0_356] : memref<1x8xf32, #tpu.memory_space<vmem>>, vector<1x8xf32>
    tpu.vector_store %arg9[%c0_355, %c0_356], %476 {strides = array<i32>} : memref<1x8xf32, #tpu.memory_space<vmem>>, vector<1x8xf32>,
    %c0_357 = arith.constant 0 : index
    %c0_358 = arith.constant 0 : index
    %478 = vector.load %arg10[%c0_357, %c0_358] : memref<1x8xf32, #tpu.memory_space<vmem>>, vector<1x8xf32>
    %479 = arith.mulf %470, %470 : vector<256x8xf32>
    %cst_359 = arith.constant dense<0.000000e+00> : vector<8xf32>
    %480 = vector.multi_reduction <add>, %479, %cst_359 [0] : vector<256x8xf32> to vector<8xf32>
    %481 = vector.shape_cast %480 : vector<8xf32> to vector<1x8xf32>
    %482 = arith.addf %478, %481 : vector<1x8xf32>
    %c0_360 = arith.constant 0 : index
    %c0_361 = arith.constant 0 : index
    %483 = vector.load %arg10[%c0_360, %c0_361] : memref<1x8xf32, #tpu.memory_space<vmem>>, vector<1x8xf32>
    tpu.vector_store %arg10[%c0_360, %c0_361], %482 {strides = array<i32>} : memref<1x8xf32, #tpu.memory_space<vmem>>, vector<1x8xf32>,
    %c1_i32_362 = arith.constant 1 : i32
    %c0_363 = arith.constant 0 : index
    %c0_364 = arith.constant 0 : index
    %484 = vector.load %arg9[%c0_363, %c0_364] : memref<1x8xf32, #tpu.memory_space<vmem>>, vector<1x8xf32>
    %cst_365 = arith.constant 3.906250e-03 : f32
    %485 = vector.broadcast %cst_365 : f32 to vector<1x8xf32>
    %486 = arith.mulf %484, %485 : vector<1x8xf32>
    %c0_366 = arith.constant 0 : index
    %c0_367 = arith.constant 0 : index
    %487 = vector.load %arg10[%c0_366, %c0_367] : memref<1x8xf32, #tpu.memory_space<vmem>>, vector<1x8xf32>
    %cst_368 = arith.constant 3.906250e-03 : f32
    %488 = vector.broadcast %cst_368 : f32 to vector<1x8xf32>
    %489 = arith.mulf %487, %488 : vector<1x8xf32>
    %490 = arith.mulf %486, %486 : vector<1x8xf32>
    %491 = arith.subf %489, %490 : vector<1x8xf32>
    %cst_369 = arith.constant 9.99999974E-6 : f32
    %492 = vector.broadcast %cst_369 : f32 to vector<1x8xf32>
    %493 = arith.addf %491, %492 : vector<1x8xf32>
    %494 = math.rsqrt %493 : vector<1x8xf32>
    %c0_i32_370 = arith.constant 0 : i32
    %c256_i32_371 = arith.constant 256 : i32
    %495 = arith.muli %c0_i32_370, %c256_i32_371 : i32
    %496 = arith.index_cast %495 : i32 to index
    %c0_372 = arith.constant 0 : index
    %497 = vector.load %arg7[%496, %c0_372] : memref<256x8xf32, #tpu.memory_space<vmem>>, vector<256x8xf32>
    %498 = vector.broadcast %486 : vector<1x8xf32> to vector<256x8xf32>
    %499 = arith.subf %497, %498 : vector<256x8xf32>
    %500 = vector.broadcast %494 : vector<1x8xf32> to vector<256x8xf32>
    %501 = arith.mulf %499, %500 : vector<256x8xf32>
    %502 = arith.index_cast %495 : i32 to index
    %c0_373 = arith.constant 0 : index
    %503 = vector.load %arg8[%502, %c0_373] : memref<256x8xbf16, #tpu.memory_space<vmem>>, vector<256x8xbf16>
    %504 = arith.extf %503 : vector<256x8xbf16> to vector<256x8xf32>
    %505 = arith.addf %501, %504 : vector<256x8xf32>
    %cst_374 = arith.constant 0.000000e+00 : f32
    %506 = vector.broadcast %cst_374 : f32 to vector<256x8xf32>
    %507 = arith.cmpf ogt, %505, %506 : vector<256x8xf32>
    %cst_375 = arith.constant 2.500000e-01 : f32
    %508 = vector.broadcast %cst_375 : f32 to vector<256x8xf32>
    %509 = arith.mulf %508, %505 : vector<256x8xf32>
    %510 = arith.select %507, %505, %509 : vector<256x8xi1>, vector<256x8xf32>
    %511 = arith.truncf %510 : vector<256x8xf32> to vector<256x8xbf16>
    %c0_376 = arith.constant 0 : index
    %512 = arith.index_cast %495 : i32 to index
    %c0_377 = arith.constant 0 : index
    %513 = vector.load %arg5[%c0_376, %512, %c0_377] : memref<1x256x8xbf16, #tpu.memory_space<vmem>>, vector<1x256x8xbf16>
    %514 = vector.shape_cast %513 : vector<1x256x8xbf16> to vector<256x8xbf16>
    %515 = vector.shape_cast %511 : vector<256x8xbf16> to vector<1x256x8xbf16>
    tpu.vector_store %arg5[%c0_376, %512, %c0_377], %515 {strides = array<i32>} : memref<1x256x8xbf16, #tpu.memory_space<vmem>>, vector<1x256x8xbf16>,
    %c1_i32_378 = arith.constant 1 : i32
    return
  }
  func.func @transform_0(%arg0: i32) -> (i32, i32, i32, i32) {
    %c0_i32 = arith.constant 0 : i32
    %c0_i32_0 = arith.constant 0 : i32
    %c0_i32_1 = arith.constant 0 : i32
    %c0_i32_2 = arith.constant 0 : i32
    return %arg0, %c0_i32, %c0_i32_0, %c0_i32_1 : i32, i32, i32, i32
  }
  func.func @transform_1(%arg0: i32) -> (i32, i32) {
    %c0_i32 = arith.constant 0 : i32
    %c0_i32_0 = arith.constant 0 : i32
    %c0_i32_1 = arith.constant 0 : i32
    return %c0_i32, %c0_i32_0 : i32, i32
  }
  func.func @transform_2(%arg0: i32) -> (i32, i32) {
    %c0_i32 = arith.constant 0 : i32
    %c0_i32_0 = arith.constant 0 : i32
    %c0_i32_1 = arith.constant 0 : i32
    return %c0_i32, %c0_i32_0 : i32, i32
  }
  func.func @transform_3(%arg0: i32) -> (i32, i32) {
    %c0_i32 = arith.constant 0 : i32
    %c0_i32_0 = arith.constant 0 : i32
    %c0_i32_1 = arith.constant 0 : i32
    return %c0_i32, %c0_i32_0 : i32, i32
  }
  func.func @transform_4(%arg0: i32) -> (i32, i32, i32) {
    %c0_i32 = arith.constant 0 : i32
    %c0_i32_0 = arith.constant 0 : i32
    %c0_i32_1 = arith.constant 0 : i32
    return %arg0, %c0_i32, %c0_i32_0 : i32, i32, i32
  }
}

</mosaic_0001>

<llo_original>
// kernel: tpu_custom_call.1
$region0: #{tpu_custom_call.1}
  #allocation0 [shape = 'u32[]', space=smem, size = 0x4, offset = 0x4, fixed_abs, tag = 'smem constant byte address 0x4 - core index']
  #allocation1 [shape = 'u32[72,128]{1,0:T(1,128)}', space=vmem, size = 0x9000, scoped, tag = 'internal scratch']
  %s0 = inlined_call_operand.hbm [shape: f32[2,8,128], index: 0, kind: input, shape index: {}]
  %s1 = inlined_call_operand.hbm [shape: f32[8,128], index: 1, kind: input, shape index: {}]
  %s2 = inlined_call_operand.hbm [shape: f32[2,8,128], index: 2, kind: output, shape index: {}]
  %s3 = sld [smem:[#allocation0]]
  $region49: #{tpu_custom_call.1} parent=0
    _
  %s5 = ssub.s32 1, %s3
  %s6 = scalar_select 0, %s5, %s3
  $region1: #{tpu_custom_call.1} parent=0
    #allocation2 [shape = 'u8[8192]{0}', space=vmem, size = 0x2000, scoped, tag = 'input window, operand 0']
    #allocation3 [shape = 's32[2]{0}', space=sflag, size = 0x8, scoped, tag = 'scoped memory for tpu_custom_call.1']
    #allocation4 [shape = 's32[2]{0}', space=sflag, size = 0x8, scoped, tag = 'scoped memory for tpu_custom_call.1']
    #allocation5 [shape = 'u8[4096]{0}', space=vmem, size = 0x1000, scoped, tag = 'input window, operand 1, single buffered']
    #allocation6 [shape = 's32[1]{0}', space=sflag, size = 0x4, scoped, tag = 'scoped memory for tpu_custom_call.1']
    #allocation7 [shape = 'u8[8192]{0}', space=vmem, size = 0x2000, scoped, tag = 'output window, operand 0']
    %7 = vsyncpa [#allocation3], 0
    %s8 = scalar_lea.sflag [#allocation3], 1
    %9 = vsyncpa %s8, 0
    %10 = vsyncpa [#allocation6], 0
    %11 = vsyncpa [#allocation4], 0
    %s12 = scalar_lea.sflag [#allocation4], 1
    %13 = vsyncpa %s12, 0
    loop: start=0, step=1, limit=4
    $region2: #{tpu_custom_call.1} parent=1 // loop_pre_header
      _
    $region3: #{tpu_custom_call.1} parent=1 // loop_header
      %s15 = sphi 0, %s19
      %p16 = scmp.ge.s32.totalorder %s15, 4
      %s25 = sphi 0, %s27
      %s28 = sphi 0, %s25
      %s29 = sphi 0, %s28
      %s45 = sphi 0, %s29
      %s49 = sphi 0, %s49
      %s51 = sphi 0, %s49
      %s52 = sphi 0, %s51
      %s66 = sphi 0, %s52
      %s72 = sphi 0, %s74
      %s75 = sphi 0, %s72
      %s76 = sphi 0, %s75
      %s92 = sphi 0, %s76
    $region4: #{tpu_custom_call.1} parent=1 // loop_header_branch
      %18 = sbr.rel (%p16) target = $region8
    $region5: #{tpu_custom_call.1} parent=1 // loop_body
      %s20 = ssub.s32 %s15, 1
      %s21 = ssub.s32 %s15, 2
      %s22 = sadd.s32 %s15, 1
      %s23 = ssub.s32 %s15, %s22
      %p24 = scmp.eq.s32.totalorder %s23, 0
      %s26 = sadd.s32 %s25, 1
      %s27 = scalar_select %p24, %s25, %s26
      %p30 = pneg %p24
      %p31 = scmp.eq.s32.totalorder %s15, 1
      %p32 = por %p30, %p31
      %p33 = scmp.ne.s32.totalorder %s25, %s28
      %p34 = scmp.eq.s32.totalorder %s15, 0
      %p35 = por %p33, %p34
      %p36 = scmp.ne.s32.totalorder %s25, %s28
      %p37 = scmp.eq.s32.totalorder %s20, 1
      %p38 = por %p36, %p37
      %p39 = scmp.ne.s32.totalorder %s28, %s29
      %p40 = scmp.eq.s32.totalorder %s20, 0
      %p41 = por %p39, %p40
      %p42 = scmp.ne.s32.totalorder %s28, %s29
      %p43 = scmp.eq.s32.totalorder %s21, 1
      %p44 = por %p42, %p43
      %p46 = scmp.ne.s32.totalorder %s29, %s45
      %p47 = scmp.eq.s32.totalorder %s21, 0
      %p48 = por %p46, %p47
      %s50 = sadd.s32 %s49, 1
      %p53 = scmp.eq.s32.totalorder %s15, 1
      %p54 = scmp.ne.s32.totalorder %s49, %s51
      %p55 = scmp.eq.s32.totalorder %s15, 0
      %p56 = por %p54, %p55
      %p57 = scmp.ne.s32.totalorder %s49, %s51
      %p58 = scmp.eq.s32.totalorder %s20, 1
      %p59 = por %p57, %p58
      %p60 = scmp.ne.s32.totalorder %s51, %s52
      %p61 = scmp.eq.s32.totalorder %s20, 0
      %p62 = por %p60, %p61
      %p63 = scmp.ne.s32.totalorder %s51, %s52
      %p64 = scmp.eq.s32.totalorder %s21, 1
      %p65 = por %p63, %p64
      %p67 = scmp.ne.s32.totalorder %s52, %s66
      %p68 = scmp.eq.s32.totalorder %s21, 0
      %p69 = por %p67, %p68
      %s70 = ssub.s32 %s15, %s22
      %p71 = scmp.eq.s32.totalorder %s70, 0
      %s73 = sadd.s32 %s72, 1
      %s74 = scalar_select %p71, %s72, %s73
      %p77 = pneg %p71
      %p78 = scmp.eq.s32.totalorder %s15, 1
      %p79 = por %p77, %p78
      %p80 = scmp.ne.s32.totalorder %s72, %s75
      %p81 = scmp.eq.s32.totalorder %s15, 0
      %p82 = por %p80, %p81
      %p83 = scmp.ne.s32.totalorder %s72, %s75
      %p84 = scmp.eq.s32.totalorder %s20, 1
      %p85 = por %p83, %p84
      %p86 = scmp.ne.s32.totalorder %s75, %s76
      %p87 = scmp.eq.s32.totalorder %s20, 0
      %p88 = por %p86, %p87
      %p89 = scmp.ne.s32.totalorder %s75, %s76
      %p90 = scmp.eq.s32.totalorder %s21, 1
      %p91 = por %p89, %p90
      %p93 = scmp.ne.s32.totalorder %s76, %s92
      %p94 = scmp.eq.s32.totalorder %s21, 0
      %p95 = por %p93, %p94
      %p96 = scmp.le.s32.totalorder 1, %s15
      %p97 = scmp.lt.s32.totalorder %s15, 3
      %p98 = pnand %p96, %p97
      %p99 = pneg %p98
      // Predicated region
      $region9: #{tpu_custom_call.1} parent=5 // pred_check
        _
      $region10: #{tpu_custom_call.1} parent=5 // pred_check_branch
        %101 = sbr.rel (%p98) target = $region12
      $region11: #{tpu_custom_call.1} parent=5 // pred_region
        %s102 = ssub.s32 %s15, 1
        // Predicated region
        $region13: #{tpu_custom_call.1} parent=11 // pred_check
          %p103 = pneg %p62
        $region14: #{tpu_custom_call.1} parent=11 // pred_check_branch
          %105 = sbr.rel (%p103) target = $region16
        $region15: #{tpu_custom_call.1} parent=11 // pred_region
          %107 = vsyncadd [#allocation6], 0
          %s109 = sshll.u32 %s1, 4
          %s110 = int_to_ptr.hbm [resolvable:$true] %s109
          %s111 = sshll.u32 [#allocation5], 4
          %s112 = int_to_ptr.vmem [resolvable:$true] %s111
          %114 = dma.hbm_to_vmem [thread:$0]  %s110, 128, %s112, [#allocation6]
        $region16: #{tpu_custom_call.1} parent=11 // pred_fallthru
          _
      $region12: #{tpu_custom_call.1} parent=5 // pred_fallthru
        _
      %p115 = scmp.lt.s32.totalorder %s15, 2
      // Predicated region
      $region17: #{tpu_custom_call.1} parent=5 // pred_check
        %p116 = pneg %p115
      $region18: #{tpu_custom_call.1} parent=5 // pred_check_branch
        %118 = sbr.rel (%p116) target = $region20
      $region19: #{tpu_custom_call.1} parent=5 // pred_region
        // Predicated region
        $region21: #{tpu_custom_call.1} parent=19 // pred_check
          %p119 = pneg %p35
        $region22: #{tpu_custom_call.1} parent=19 // pred_check_branch
          %121 = sbr.rel (%p119) target = $region24
        $region23: #{tpu_custom_call.1} parent=19 // pred_region
          %s122 = sand.u32 %s25, 1
          %s123 = scalar_lea.sflag [#allocation3], %s122
          %s124 = sand.u32 %s25, 1
          %s125 = smul.addr %s124, 8
          %s126 = scalar_lea.vmem [#allocation2], %s125
          %128 = vsyncadd %s123, 0
          %s129 = smul.addr %s15, 8
          %s130 = scalar_lea.hbm %s0, %s129
          %s132 = sshll.u32 %s130, 4
          %s133 = int_to_ptr.hbm [resolvable:$true] %s132
          %s134 = sshll.u32 %s126, 4
          %s135 = int_to_ptr.vmem [resolvable:$true] %s134
          %137 = dma.hbm_to_vmem [thread:$0]  %s133, 128, %s135, %s123
        $region24: #{tpu_custom_call.1} parent=19 // pred_fallthru
          _
      $region20: #{tpu_custom_call.1} parent=5 // pred_fallthru
        _
      %p138 = scmp.le.s32.totalorder 1, %s15
      %p139 = scmp.lt.s32.totalorder %s15, 3
      %p140 = pnand %p138, %p139
      %p141 = pneg %p140
      // Predicated region
      $region25: #{tpu_custom_call.1} parent=5 // pred_check
        _
      $region26: #{tpu_custom_call.1} parent=5 // pred_check_branch
        %143 = sbr.rel (%p140) target = $region28
      $region27: #{tpu_custom_call.1} parent=5 // pred_region
        %s144 = ssub.s32 %s15, 1
        %s145 = sand.u32 %s28, 1
        %s146 = scalar_lea.sflag [#allocation3], %s145
        %s147 = sand.u32 %s28, 1
        %s148 = smul.addr %s147, 8
        %s149 = scalar_lea.vmem [#allocation2], %s148
        // Predicated region
        $region29: #{tpu_custom_call.1} parent=27 // pred_check
          %p150 = pneg %p41
        $region30: #{tpu_custom_call.1} parent=27 // pred_check_branch
          %152 = sbr.rel (%p150) target = $region32
        $region31: #{tpu_custom_call.1} parent=27 // pred_region
          %154 = dma.done %s146, 128
        $region32: #{tpu_custom_call.1} parent=27 // pred_fallthru
          _
        // Predicated region
        $region33: #{tpu_custom_call.1} parent=27 // pred_check
          %p155 = pneg %p62
        $region34: #{tpu_custom_call.1} parent=27 // pred_check_branch
          %157 = sbr.rel (%p155) target = $region36
        $region35: #{tpu_custom_call.1} parent=27 // pred_region
          %159 = dma.done [#allocation6], 128
        $region36: #{tpu_custom_call.1} parent=27 // pred_fallthru
          _
        %s160 = sand.u32 %s28, 1
        %s161 = scalar_lea.sflag [#allocation3], %s160
        %s162 = sand.u32 %s28, 1
        %s163 = smul.addr %s162, 8
        %s164 = scalar_lea.vmem [#allocation2], %s163
        %p165 = pneg %p41
        %p166 = pneg %p38
        %p167 = pneg %p62
        %p168 = pneg %p59
        %p169 = pneg %p88
        %p170 = pneg %p85
        %s171 = sand.u32 %s75, 1
        %s172 = scalar_lea.sflag [#allocation4], %s171
        %s173 = sand.u32 %s75, 1
        %s174 = smul.addr %s173, 8
        %s175 = scalar_lea.vmem [#allocation7], %s174
        %v176 = vld [vmem:[%s149] sm:$0xff]
        %v177 = vld [vmem:[#allocation5] sm:$0xff]
        %v178 = vadd.f32 %v176, %v177
        %179 = vst [vmem:[%s175] sm:$0xff] %v178
        %s180 = sand.u32 %s75, 1
        %s181 = scalar_lea.sflag [#allocation4], %s180
        %s182 = sand.u32 %s75, 1
        %s183 = smul.addr %s182, 8
        %s184 = scalar_lea.vmem [#allocation7], %s183
        // Predicated region
        $region37: #{tpu_custom_call.1} parent=27 // pred_check
          %p185 = pneg %p85
        $region38: #{tpu_custom_call.1} parent=27 // pred_check_branch
          %187 = sbr.rel (%p185) target = $region40
        $region39: #{tpu_custom_call.1} parent=27 // pred_region
          %189 = vsyncadd %s181, 0
          %s190 = smul.addr %s20, 8
          %s191 = scalar_lea.hbm %s2, %s190
          %s193 = sshll.u32 %s184, 4
          %s194 = int_to_ptr.vmem [resolvable:$true] %s193
          %s195 = sshll.u32 %s191, 4
          %s196 = int_to_ptr.hbm [resolvable:$true] %s195
          %198 = dma.vmem_to_hbm [thread:$0]  %s194, 128, %s196, %s181
        $region40: #{tpu_custom_call.1} parent=27 // pred_fallthru
          _
      $region28: #{tpu_custom_call.1} parent=5 // pred_fallthru
        _
      %p199 = scmp.le.s32.totalorder 2, %s15
      // Predicated region
      $region41: #{tpu_custom_call.1} parent=5 // pred_check
        %p200 = pneg %p199
      $region42: #{tpu_custom_call.1} parent=5 // pred_check_branch
        %202 = sbr.rel (%p200) target = $region44
      $region43: #{tpu_custom_call.1} parent=5 // pred_region
        %s203 = ssub.s32 %s15, 2
        // Predicated region
        $region45: #{tpu_custom_call.1} parent=43 // pred_check
          %p204 = pneg %p91
        $region46: #{tpu_custom_call.1} parent=43 // pred_check_branch
          %206 = sbr.rel (%p204) target = $region48
        $region47: #{tpu_custom_call.1} parent=43 // pred_region
          %s207 = sand.u32 %s76, 1
          %s208 = scalar_lea.sflag [#allocation4], %s207
          %s209 = sand.u32 %s76, 1
          %s210 = smul.addr %s209, 8
          %s211 = scalar_lea.vmem [#allocation7], %s210
          %213 = dma.done %s208, 128
        $region48: #{tpu_custom_call.1} parent=43 // pred_fallthru
          _
      $region44: #{tpu_custom_call.1} parent=5 // pred_fallthru
        _
    $region6: #{tpu_custom_call.1} parent=1 // loop_footer
      %s19 = sadd.s32 1, %s15
    $region7: #{tpu_custom_call.1} parent=1 // loop_footer_branch
      %14 = sbr.rel target = $region3
    $region8: #{tpu_custom_call.1} parent=1 // loop_exit
      _
    %214 = vsyncpa [#allocation3], 1
    %s215 = scalar_lea.sflag [#allocation3], 1
    %216 = vsyncpa %s215, 1
    %217 = vsyncpa [#allocation6], 1
    %218 = vsyncpa [#allocation4], 1
    %s219 = scalar_lea.sflag [#allocation4], 1
    %220 = vsyncpa %s219, 1

// kernel: tpu_custom_call.1
$region0: #{tpu_custom_call.1}
  #allocation0 [shape = 'u32[]', space=smem, size = 0x4, offset = 0x4, fixed_abs, tag = 'smem constant byte address 0x4 - core index']
  #allocation1 [shape = 'u32[72,128]{1,0:T(1,128)}', space=vmem, size = 0x9000, scoped, tag = 'internal scratch']
  #allocation2 [shape = 'bf16[18,18,8]{2,1,0:T(8,128)(2,1)}', space=vmem, size = 0x1b000, scoped, tag = 'scratch operand']
  #allocation3 [shape = 'f32[256,8]{1,0:T(8,128)}', space=vmem, size = 0x20000, scoped, tag = 'scratch operand']
  #allocation4 [shape = 'bf16[256,8]{1,0:T(8,128)(2,1)}', space=vmem, size = 0x10000, scoped, tag = 'scratch operand']
  #allocation5 [shape = 'f32[1,8]{1,0:T(1,128)}', space=vmem, size = 0x200, scoped, tag = 'scratch operand']
  #allocation6 [shape = 'f32[1,8]{1,0:T(1,128)}', space=vmem, size = 0x200, scoped, tag = 'scratch operand']
  %s0 = inlined_call_operand.vmem [shape: bf16[2,16,16,4], index: 0, kind: input, shape index: {}]
  %s1 = inlined_call_operand.vmem [shape: bf16[36,8], index: 1, kind: input, shape index: {}]
  %s2 = inlined_call_operand.vmem [shape: bf16[72,8], index: 2, kind: input, shape index: {}]
  %s3 = inlined_call_operand.vmem [shape: bf16[72,8], index: 3, kind: input, shape index: {}]
  %s4 = inlined_call_operand.vmem [shape: bf16[2,256,8], index: 4, kind: output, shape index: {}]
  %s5 = sld [smem:[#allocation0]]
  $region49: #{tpu_custom_call.1} parent=0
    _
  %s7 = ssub.s32 1, %s5
  %s8 = scalar_select 0, %s7, %s5
  loop: start=0, step=1, limit=4
  $region2: #{tpu_custom_call.1} parent=0 // loop_pre_header
    _
  $region3: #{tpu_custom_call.1} parent=0 // loop_header
    %s10 = sphi 0, %s14
    %p11 = scmp.ge.s32.totalorder %s10, 4
    %s20 = sphi 0, %s22
    %s23 = sphi 0, %s20
    %s24 = sphi 0, %s23
    %s40 = sphi 0, %s24
    %s44 = sphi 0, %s44
    %s46 = sphi 0, %s44
    %s47 = sphi 0, %s46
    %s61 = sphi 0, %s47
    %s65 = sphi 0, %s65
    %s67 = sphi 0, %s65
    %s68 = sphi 0, %s67
    %s82 = sphi 0, %s68
    %s86 = sphi 0, %s86
    %s88 = sphi 0, %s86
    %s89 = sphi 0, %s88
    %s103 = sphi 0, %s89
    %s109 = sphi 0, %s111
    %s112 = sphi 0, %s109
    %s113 = sphi 0, %s112
    %s129 = sphi 0, %s113
  $region4: #{tpu_custom_call.1} parent=0 // loop_header_branch
    %13 = sbr.rel (%p11) target = $region8
  $region5: #{tpu_custom_call.1} parent=0 // loop_body
    %s15 = ssub.s32 %s10, 1
    %s16 = ssub.s32 %s10, 2
    %s17 = sadd.s32 %s10, 1
    %s18 = ssub.s32 %s10, %s17
    %p19 = scmp.eq.s32.totalorder %s18, 0
    %s21 = sadd.s32 %s20, 1
    %s22 = scalar_select %p19, %s20, %s21
    %p25 = pneg %p19
    %p26 = scmp.eq.s32.totalorder %s10, 1
    %p27 = por %p25, %p26
    %p28 = scmp.ne.s32.totalorder %s20, %s23
    %p29 = scmp.eq.s32.totalorder %s10, 0
    %p30 = por %p28, %p29
    %p31 = scmp.ne.s32.totalorder %s20, %s23
    %p32 = scmp.eq.s32.totalorder %s15, 1
    %p33 = por %p31, %p32
    %p34 = scmp.ne.s32.totalorder %s23, %s24
    %p35 = scmp.eq.s32.totalorder %s15, 0
    %p36 = por %p34, %p35
    %p37 = scmp.ne.s32.totalorder %s23, %s24
    %p38 = scmp.eq.s32.totalorder %s16, 1
    %p39 = por %p37, %p38
    %p41 = scmp.ne.s32.totalorder %s24, %s40
    %p42 = scmp.eq.s32.totalorder %s16, 0
    %p43 = por %p41, %p42
    %s45 = sadd.s32 %s44, 1
    %p48 = scmp.eq.s32.totalorder %s10, 1
    %p49 = scmp.ne.s32.totalorder %s44, %s46
    %p50 = scmp.eq.s32.totalorder %s10, 0
    %p51 = por %p49, %p50
    %p52 = scmp.ne.s32.totalorder %s44, %s46
    %p53 = scmp.eq.s32.totalorder %s15, 1
    %p54 = por %p52, %p53
    %p55 = scmp.ne.s32.totalorder %s46, %s47
    %p56 = scmp.eq.s32.totalorder %s15, 0
    %p57 = por %p55, %p56
    %p58 = scmp.ne.s32.totalorder %s46, %s47
    %p59 = scmp.eq.s32.totalorder %s16, 1
    %p60 = por %p58, %p59
    %p62 = scmp.ne.s32.totalorder %s47, %s61
    %p63 = scmp.eq.s32.totalorder %s16, 0
    %p64 = por %p62, %p63
    %s66 = sadd.s32 %s65, 1
    %p69 = scmp.eq.s32.totalorder %s10, 1
    %p70 = scmp.ne.s32.totalorder %s65, %s67
    %p71 = scmp.eq.s32.totalorder %s10, 0
    %p72 = por %p70, %p71
    %p73 = scmp.ne.s32.totalorder %s65, %s67
    %p74 = scmp.eq.s32.totalorder %s15, 1
    %p75 = por %p73, %p74
    %p76 = scmp.ne.s32.totalorder %s67, %s68
    %p77 = scmp.eq.s32.totalorder %s15, 0
    %p78 = por %p76, %p77
    %p79 = scmp.ne.s32.totalorder %s67, %s68
    %p80 = scmp.eq.s32.totalorder %s16, 1
    %p81 = por %p79, %p80
    %p83 = scmp.ne.s32.totalorder %s68, %s82
    %p84 = scmp.eq.s32.totalorder %s16, 0
    %p85 = por %p83, %p84
    %s87 = sadd.s32 %s86, 1
    %p90 = scmp.eq.s32.totalorder %s10, 1
    %p91 = scmp.ne.s32.totalorder %s86, %s88
    %p92 = scmp.eq.s32.totalorder %s10, 0
    %p93 = por %p91, %p92
    %p94 = scmp.ne.s32.totalorder %s86, %s88
    %p95 = scmp.eq.s32.totalorder %s15, 1
    %p96 = por %p94, %p95
    %p97 = scmp.ne.s32.totalorder %s88, %s89
    %p98 = scmp.eq.s32.totalorder %s15, 0
    %p99 = por %p97, %p98
    %p100 = scmp.ne.s32.totalorder %s88, %s89
    %p101 = scmp.eq.s32.totalorder %s16, 1
    %p102 = por %p100, %p101
    %p104 = scmp.ne.s32.totalorder %s89, %s103
    %p105 = scmp.eq.s32.totalorder %s16, 0
    %p106 = por %p104, %p105
    %s107 = ssub.s32 %s10, %s17
    %p108 = scmp.eq.s32.totalorder %s107, 0
    %s110 = sadd.s32 %s109, 1
    %s111 = scalar_select %p108, %s109, %s110
    %p114 = pneg %p108
    %p115 = scmp.eq.s32.totalorder %s10, 1
    %p116 = por %p114, %p115
    %p117 = scmp.ne.s32.totalorder %s109, %s112
    %p118 = scmp.eq.s32.totalorder %s10, 0
    %p119 = por %p117, %p118
    %p120 = scmp.ne.s32.totalorder %s109, %s112
    %p121 = scmp.eq.s32.totalorder %s15, 1
    %p122 = por %p120, %p121
    %p123 = scmp.ne.s32.totalorder %s112, %s113
    %p124 = scmp.eq.s32.totalorder %s15, 0
    %p125 = por %p123, %p124
    %p126 = scmp.ne.s32.totalorder %s112, %s113
    %p127 = scmp.eq.s32.totalorder %s16, 1
    %p128 = por %p126, %p127
    %p130 = scmp.ne.s32.totalorder %s113, %s129
    %p131 = scmp.eq.s32.totalorder %s16, 0
    %p132 = por %p130, %p131
    %p133 = scmp.le.s32.totalorder 1, %s10
    %p134 = scmp.lt.s32.totalorder %s10, 3
    %p135 = pnand %p133, %p134
    %p136 = pneg %p135
    // Predicated region
    $region9: #{tpu_custom_call.1} parent=5 // pred_check
      _
    $region10: #{tpu_custom_call.1} parent=5 // pred_check_branch
      %138 = sbr.rel (%p135) target = $region12
    $region11: #{tpu_custom_call.1} parent=5 // pred_region
      %s139 = ssub.s32 %s10, 1
      // Predicated region
      $region13: #{tpu_custom_call.1} parent=11 // pred_check
        %p140 = pneg %p57
      $region14: #{tpu_custom_call.1} parent=11 // pred_check_branch
        %142 = sbr.rel (%p140) target = $region16
      $region15: #{tpu_custom_call.1} parent=11 // pred_region
        _
      $region16: #{tpu_custom_call.1} parent=11 // pred_fallthru
        _
      // Predicated region
      $region17: #{tpu_custom_call.1} parent=11 // pred_check
        %p143 = pneg %p78
      $region18: #{tpu_custom_call.1} parent=11 // pred_check_branch
        %145 = sbr.rel (%p143) target = $region20
      $region19: #{tpu_custom_call.1} parent=11 // pred_region
        _
      $region20: #{tpu_custom_call.1} parent=11 // pred_fallthru
        _
      // Predicated region
      $region21: #{tpu_custom_call.1} parent=11 // pred_check
        %p146 = pneg %p99
      $region22: #{tpu_custom_call.1} parent=11 // pred_check_branch
        %148 = sbr.rel (%p146) target = $region24
      $region23: #{tpu_custom_call.1} parent=11 // pred_region
        _
      $region24: #{tpu_custom_call.1} parent=11 // pred_fallthru
        _
    $region12: #{tpu_custom_call.1} parent=5 // pred_fallthru
      _
    %p149 = scmp.lt.s32.totalorder %s10, 2
    // Predicated region
    $region25: #{tpu_custom_call.1} parent=5 // pred_check
      %p150 = pneg %p149
    $region26: #{tpu_custom_call.1} parent=5 // pred_check_branch
      %152 = sbr.rel (%p150) target = $region28
    $region27: #{tpu_custom_call.1} parent=5 // pred_region
      // Predicated region
      $region29: #{tpu_custom_call.1} parent=27 // pred_check
        %p153 = pneg %p30
      $region30: #{tpu_custom_call.1} parent=27 // pred_check_branch
        %155 = sbr.rel (%p153) target = $region32
      $region31: #{tpu_custom_call.1} parent=27 // pred_region
        %p156 = scmp.lt.s32.totalorder %s10, 1
        %s157 = scalar_select %p156, %s10, 1
        %s158 = smul.addr %s157, 32
        %s159 = smul.addr %s158, 4
        %s160 = scalar_lea.vmem %s0, %s159
      $region32: #{tpu_custom_call.1} parent=27 // pred_fallthru
        _
    $region28: #{tpu_custom_call.1} parent=5 // pred_fallthru
      _
    %p161 = scmp.le.s32.totalorder 1, %s10
    %p162 = scmp.lt.s32.totalorder %s10, 3
    %p163 = pnand %p161, %p162
    %p164 = pneg %p163
    // Predicated region
    $region33: #{tpu_custom_call.1} parent=5 // pred_check
      _
    $region34: #{tpu_custom_call.1} parent=5 // pred_check_branch
      %166 = sbr.rel (%p163) target = $region36
    $region35: #{tpu_custom_call.1} parent=5 // pred_region
      %s167 = ssub.s32 %s10, 1
      %p168 = scmp.lt.s32.totalorder %s15, 1
      %s169 = scalar_select %p168, %s15, 1
      %s170 = smul.addr %s169, 32
      %s171 = smul.addr %s170, 4
      %s172 = scalar_lea.vmem %s0, %s171
      %p173 = pneg %p36
      %p174 = pneg %p33
      %p175 = pneg %p57
      %p176 = pneg %p54
      %p177 = pneg %p78
      %p178 = pneg %p75
      %p179 = pneg %p99
      %p180 = pneg %p96
      %p181 = pneg %p125
      %p182 = pneg %p122
      %p183 = scmp.lt.s32.totalorder %s15, 1
      %s184 = scalar_select %p183, %s15, 1
      %s185 = smul.addr %s184, 32
      %s186 = smul.addr %s185, 4
      %s187 = scalar_lea.vmem %s4, %s186
      %p188 = scmp.lt.s32.totalorder %s15, 1
      %s189 = scalar_select %p188, %s15, 1
      %s190 = smul.addr %s189, 32
      %s191 = smul.addr %s190, 4
      %s192 = scalar_lea.vmem %s0, %s191
      %p193 = scmp.lt.s32.totalorder %s15, 1
      %s194 = scalar_select %p193, %s15, 1
      %s195 = smul.addr %s194, 32
      %s196 = smul.addr %s195, 4
      %s197 = scalar_lea.vmem %s4, %s196
      %v199 = vld [vmem:[%s192] sm:$0xf]
      %v200 = vld [vmem:[%s192 + $0x4] sm:$0xf]
      %v201 = vld [vmem:[%s192 + $0x8] sm:$0xf]
      %v202 = vld [vmem:[%s192 + $0xc] sm:$0xf]
      %v203 = vld [vmem:[%s192 + $0x10] sm:$0xf]
      %v204 = vld [vmem:[%s192 + $0x14] sm:$0xf]
      %v205 = vld [vmem:[%s192 + $0x18] sm:$0xf]
      %v206 = vld [vmem:[%s192 + $0x1c] sm:$0xf]
      %v207 = vld [vmem:[%s192 + $0x20] sm:$0xf]
      %v208 = vld [vmem:[%s192 + $0x24] sm:$0xf]
      %v209 = vld [vmem:[%s192 + $0x28] sm:$0xf]
      %v210 = vld [vmem:[%s192 + $0x2c] sm:$0xf]
      %v211 = vld [vmem:[%s192 + $0x30] sm:$0xf]
      %v212 = vld [vmem:[%s192 + $0x34] sm:$0xf]
      %v213 = vld [vmem:[%s192 + $0x38] sm:$0xf]
      %v214 = vld [vmem:[%s192 + $0x3c] sm:$0xf]
      %v215 = vld [vmem:[%s192 + $0x40] sm:$0xf]
      %v216 = vld [vmem:[%s192 + $0x44] sm:$0xf]
      %v217 = vld [vmem:[%s192 + $0x48] sm:$0xf]
      %v218 = vld [vmem:[%s192 + $0x4c] sm:$0xf]
      %v219 = vld [vmem:[%s192 + $0x50] sm:$0xf]
      %v220 = vld [vmem:[%s192 + $0x54] sm:$0xf]
      %v221 = vld [vmem:[%s192 + $0x58] sm:$0xf]
      %v222 = vld [vmem:[%s192 + $0x5c] sm:$0xf]
      %v223 = vld [vmem:[%s192 + $0x60] sm:$0xf]
      %v224 = vld [vmem:[%s192 + $0x64] sm:$0xf]
      %v225 = vld [vmem:[%s192 + $0x68] sm:$0xf]
      %v226 = vld [vmem:[%s192 + $0x6c] sm:$0xf]
      %v227 = vld [vmem:[%s192 + $0x70] sm:$0xf]
      %v228 = vld [vmem:[%s192 + $0x74] sm:$0xf]
      %v229 = vld [vmem:[%s192 + $0x78] sm:$0xf]
      %v230 = vld [vmem:[%s192 + $0x7c] sm:$0xf]
      %vm231 = vsmask.f32 256
      %vm232 = vsmask.f32 4368
      %vm233 = vmor %vm231, %vm232
      %v235 = vshrl.u32 %v199, 16
      %v237 = vrot.slane %v235, 7
      %v238 = vshll.u32 %v199, 16
      %v240 = vor.u32 %v237, %v238
      %v241 = vrot.slane %v237, 4
      %v243 = vshrl.u32 %v200, 16
      %v245 = vrot.slane %v243, 7
      %v246 = vshll.u32 %v200, 16
      %v248 = vor.u32 %v245, %v246
      %v249 = vsel %vm233, %v241, %v248
      %v250 = vrot.slane %v245, 4
      %v252 = vshrl.u32 %v201, 16
      %v254 = vrot.slane %v252, 7
      %v255 = vshll.u32 %v201, 16
      %v257 = vor.u32 %v254, %v255
      %v258 = vrot.slane %v254, 4
      %v260 = vshrl.u32 %v202, 16
      %v262 = vrot.slane %v260, 7
      %v263 = vshll.u32 %v202, 16
      %v265 = vor.u32 %v262, %v263
      %v266 = vsel %vm233, %v258, %v265
      %v267 = vrot.slane %v262, 4
      %v269 = vshrl.u32 %v203, 16
      %v271 = vrot.slane %v269, 7
      %v272 = vshll.u32 %v203, 16
      %v274 = vor.u32 %v271, %v272
      %v275 = vrot.slane %v271, 4
      %v277 = vshrl.u32 %v204, 16
      %v279 = vrot.slane %v277, 7
      %v280 = vshll.u32 %v204, 16
      %v282 = vor.u32 %v279, %v280
      %v283 = vsel %vm233, %v275, %v282
      %v284 = vrot.slane %v279, 4
      %v286 = vshrl.u32 %v205, 16
      %v288 = vrot.slane %v286, 7
      %v289 = vshll.u32 %v205, 16
      %v291 = vor.u32 %v288, %v289
      %v292 = vrot.slane %v288, 4
      %v294 = vshrl.u32 %v206, 16
      %v296 = vrot.slane %v294, 7
      %v297 = vshll.u32 %v206, 16
      %v299 = vor.u32 %v296, %v297
      %v300 = vsel %vm233, %v292, %v299
      %v301 = vrot.slane %v296, 4
      %v303 = vshrl.u32 %v207, 16
      %v305 = vrot.slane %v303, 7
      %v306 = vshll.u32 %v207, 16
      %v308 = vor.u32 %v305, %v306
      %v309 = vrot.slane %v305, 4
      %v311 = vshrl.u32 %v208, 16
      %v313 = vrot.slane %v311, 7
      %v314 = vshll.u32 %v208, 16
      %v316 = vor.u32 %v313, %v314
      %v317 = vsel %vm233, %v309, %v316
      %v318 = vrot.slane %v313, 4
      %v320 = vshrl.u32 %v209, 16
      %v322 = vrot.slane %v320, 7
      %v323 = vshll.u32 %v209, 16
      %v325 = vor.u32 %v322, %v323
      %v326 = vrot.slane %v322, 4
      %v328 = vshrl.u32 %v210, 16
      %v330 = vrot.slane %v328, 7
      %v331 = vshll.u32 %v210, 16
      %v333 = vor.u32 %v330, %v331
      %v334 = vsel %vm233, %v326, %v333
      %v335 = vrot.slane %v330, 4
      %v337 = vshrl.u32 %v211, 16
      %v339 = vrot.slane %v337, 7
      %v340 = vshll.u32 %v211, 16
      %v342 = vor.u32 %v339, %v340
      %v343 = vrot.slane %v339, 4
      %v345 = vshrl.u32 %v212, 16
      %v347 = vrot.slane %v345, 7
      %v348 = vshll.u32 %v212, 16
      %v350 = vor.u32 %v347, %v348
      %v351 = vsel %vm233, %v343, %v350
      %v352 = vrot.slane %v347, 4
      %v354 = vshrl.u32 %v213, 16
      %v356 = vrot.slane %v354, 7
      %v357 = vshll.u32 %v213, 16
      %v359 = vor.u32 %v356, %v357
      %v360 = vrot.slane %v356, 4
      %v362 = vshrl.u32 %v214, 16
      %v364 = vrot.slane %v362, 7
      %v365 = vshll.u32 %v214, 16
      %v367 = vor.u32 %v364, %v365
      %v368 = vsel %vm233, %v360, %v367
      %v369 = vrot.slane %v364, 4
      %v371 = vshrl.u32 %v215, 16
      %v373 = vrot.slane %v371, 7
      %v374 = vshll.u32 %v215, 16
      %v376 = vor.u32 %v373, %v374
      %v377 = vrot.slane %v373, 4
      %v379 = vshrl.u32 %v216, 16
      %v381 = vrot.slane %v379, 7
      %v382 = vshll.u32 %v216, 16
      %v384 = vor.u32 %v381, %v382
      %v385 = vsel %vm233, %v377, %v384
      %v386 = vrot.slane %v381, 4
      %v388 = vshrl.u32 %v217, 16
      %v390 = vrot.slane %v388, 7
      %v391 = vshll.u32 %v217, 16
      %v393 = vor.u32 %v390, %v391
      %v394 = vrot.slane %v390, 4
      %v396 = vshrl.u32 %v218, 16
      %v398 = vrot.slane %v396, 7
      %v399 = vshll.u32 %v218, 16
      %v401 = vor.u32 %v398, %v399
      %v402 = vsel %vm233, %v394, %v401
      %v403 = vrot.slane %v398, 4
      %v405 = vshrl.u32 %v219, 16
      %v407 = vrot.slane %v405, 7
      %v408 = vshll.u32 %v219, 16
      %v410 = vor.u32 %v407, %v408
      %v411 = vrot.slane %v407, 4
      %v413 = vshrl.u32 %v220, 16
      %v415 = vrot.slane %v413, 7
      %v416 = vshll.u32 %v220, 16
      %v418 = vor.u32 %v415, %v416
      %v419 = vsel %vm233, %v411, %v418
      %v420 = vrot.slane %v415, 4
      %v422 = vshrl.u32 %v221, 16
      %v424 = vrot.slane %v422, 7
      %v425 = vshll.u32 %v221, 16
      %v427 = vor.u32 %v424, %v425
      %v428 = vrot.slane %v424, 4
      %v430 = vshrl.u32 %v222, 16
      %v432 = vrot.slane %v430, 7
      %v433 = vshll.u32 %v222, 16
      %v435 = vor.u32 %v432, %v433
      %v436 = vsel %vm233, %v428, %v435
      %v437 = vrot.slane %v432, 4
      %v439 = vshrl.u32 %v223, 16
      %v441 = vrot.slane %v439, 7
      %v442 = vshll.u32 %v223, 16
      %v444 = vor.u32 %v441, %v442
      %v445 = vrot.slane %v441, 4
      %v447 = vshrl.u32 %v224, 16
      %v449 = vrot.slane %v447, 7
      %v450 = vshll.u32 %v224, 16
      %v452 = vor.u32 %v449, %v450
      %v453 = vsel %vm233, %v445, %v452
      %v454 = vrot.slane %v449, 4
      %v456 = vshrl.u32 %v225, 16
      %v458 = vrot.slane %v456, 7
      %v459 = vshll.u32 %v225, 16
      %v461 = vor.u32 %v458, %v459
      %v462 = vrot.slane %v458, 4
      %v464 = vshrl.u32 %v226, 16
      %v466 = vrot.slane %v464, 7
      %v467 = vshll.u32 %v226, 16
      %v469 = vor.u32 %v466, %v467
      %v470 = vsel %vm233, %v462, %v469
      %v471 = vrot.slane %v466, 4
      %v473 = vshrl.u32 %v227, 16
      %v475 = vrot.slane %v473, 7
      %v476 = vshll.u32 %v227, 16
      %v478 = vor.u32 %v475, %v476
      %v479 = vrot.slane %v475, 4
      %v481 = vshrl.u32 %v228, 16
      %v483 = vrot.slane %v481, 7
      %v484 = vshll.u32 %v228, 16
      %v486 = vor.u32 %v483, %v484
      %v487 = vsel %vm233, %v479, %v486
      %v488 = vrot.slane %v483, 4
      %v490 = vshrl.u32 %v229, 16
      %v492 = vrot.slane %v490, 7
      %v493 = vshll.u32 %v229, 16
      %v495 = vor.u32 %v492, %v493
      %v496 = vrot.slane %v492, 4
      %v498 = vshrl.u32 %v230, 16
      %v500 = vrot.slane %v498, 7
      %v501 = vshll.u32 %v230, 16
      %v503 = vor.u32 %v500, %v501
      %v504 = vsel %vm233, %v496, %v503
      %v505 = vrot.slane %v500, 4
      %s554 = scalar_lea.vmem [#allocation2], 12
      %vm555 = vcmask 27648
      %vm556 = vsmask.f32 7938
      %vm557 = vmand %vm555, %vm556
      %v558 = vld [vmem:[%s554] sm:$0xf]
      %v559 = vsel %vm557, %v240, %v558
      %560 = vst [vmem:[%s554] sm:$0xf] %v559
      %vm561 = vcmask 27648
      %562 = vst.msk [vmem:[%s554 + $0x4] sm:$0xf] %vm561, %v249
      %vm563 = vcmask 24576
      %vm564 = vmand %vm563, %vm231
      %v565 = vld [vmem:[%s554 + $0x8] sm:$0x1]
      %v566 = vsel %vm564, %v250, %v565
      %567 = vst [vmem:[%s554 + $0x8] sm:$0x1] %v566
      %v568 = vld [vmem:[%s554 + $0xc] sm:$0xf]
      %v569 = vsel %vm557, %v257, %v568
      %570 = vst [vmem:[%s554 + $0xc] sm:$0xf] %v569
      %571 = vst.msk [vmem:[%s554 + $0x10] sm:$0xf] %vm561, %v266
      %v572 = vld [vmem:[%s554 + $0x14] sm:$0x1]
      %v573 = vsel %vm564, %v267, %v572
      %574 = vst [vmem:[%s554 + $0x14] sm:$0x1] %v573
      %v575 = vld [vmem:[%s554 + $0x18] sm:$0xf]
      %v576 = vsel %vm557, %v274, %v575
      %577 = vst [vmem:[%s554 + $0x18] sm:$0xf] %v576
      %578 = vst.msk [vmem:[%s554 + $0x1c] sm:$0xf] %vm561, %v283
      %v579 = vld [vmem:[%s554 + $0x20] sm:$0x1]
      %v580 = vsel %vm564, %v284, %v579
      %581 = vst [vmem:[%s554 + $0x20] sm:$0x1] %v580
      %v582 = vld [vmem:[%s554 + $0x24] sm:$0xf]
      %v583 = vsel %vm557, %v291, %v582
      %584 = vst [vmem:[%s554 + $0x24] sm:$0xf] %v583
      %585 = vst.msk [vmem:[%s554 + $0x28] sm:$0xf] %vm561, %v300
      %v586 = vld [vmem:[%s554 + $0x2c] sm:$0x1]
      %v587 = vsel %vm564, %v301, %v586
      %588 = vst [vmem:[%s554 + $0x2c] sm:$0x1] %v587
      %v589 = vld [vmem:[%s554 + $0x30] sm:$0xf]
      %v590 = vsel %vm557, %v308, %v589
      %591 = vst [vmem:[%s554 + $0x30] sm:$0xf] %v590
      %592 = vst.msk [vmem:[%s554 + $0x34] sm:$0xf] %vm561, %v317
      %v593 = vld [vmem:[%s554 + $0x38] sm:$0x1]
      %v594 = vsel %vm564, %v318, %v593
      %595 = vst [vmem:[%s554 + $0x38] sm:$0x1] %v594
      %v596 = vld [vmem:[%s554 + $0x3c] sm:$0xf]
      %v597 = vsel %vm557, %v325, %v596
      %598 = vst [vmem:[%s554 + $0x3c] sm:$0xf] %v597
      %599 = vst.msk [vmem:[%s554 + $0x40] sm:$0xf] %vm561, %v334
      %v600 = vld [vmem:[%s554 + $0x44] sm:$0x1]
      %v601 = vsel %vm564, %v335, %v600
      %602 = vst [vmem:[%s554 + $0x44] sm:$0x1] %v601
      %v603 = vld [vmem:[%s554 + $0x48] sm:$0xf]
      %v604 = vsel %vm557, %v342, %v603
      %605 = vst [vmem:[%s554 + $0x48] sm:$0xf] %v604
      %606 = vst.msk [vmem:[%s554 + $0x4c] sm:$0xf] %vm561, %v351
      %v607 = vld [vmem:[%s554 + $0x50] sm:$0x1]
      %v608 = vsel %vm564, %v352, %v607
      %609 = vst [vmem:[%s554 + $0x50] sm:$0x1] %v608
      %v610 = vld [vmem:[%s554 + $0x54] sm:$0xf]
      %v611 = vsel %vm557, %v359, %v610
      %612 = vst [vmem:[%s554 + $0x54] sm:$0xf] %v611
      %613 = vst.msk [vmem:[%s554 + $0x58] sm:$0xf] %vm561, %v368
      %v614 = vld [vmem:[%s554 + $0x5c] sm:$0x1]
      %v615 = vsel %vm564, %v369, %v614
      %616 = vst [vmem:[%s554 + $0x5c] sm:$0x1] %v615
      %v617 = vld [vmem:[%s554 + $0x60] sm:$0xf]
      %v618 = vsel %vm557, %v376, %v617
      %619 = vst [vmem:[%s554 + $0x60] sm:$0xf] %v618
      %620 = vst.msk [vmem:[%s554 + $0x64] sm:$0xf] %vm561, %v385
      %v621 = vld [vmem:[%s554 + $0x68] sm:$0x1]
      %v622 = vsel %vm564, %v386, %v621
      %623 = vst [vmem:[%s554 + $0x68] sm:$0x1] %v622
      %v624 = vld [vmem:[%s554 + $0x6c] sm:$0xf]
      %v625 = vsel %vm557, %v393, %v624
      %626 = vst [vmem:[%s554 + $0x6c] sm:$0xf] %v625
      %627 = vst.msk [vmem:[%s554 + $0x70] sm:$0xf] %vm561, %v402
      %v628 = vld [vmem:[%s554 + $0x74] sm:$0x1]
      %v629 = vsel %vm564, %v403, %v628
      %630 = vst [vmem:[%s554 + $0x74] sm:$0x1] %v629
      %v631 = vld [vmem:[%s554 + $0x78] sm:$0xf]
      %v632 = vsel %vm557, %v410, %v631
      %633 = vst [vmem:[%s554 + $0x78] sm:$0xf] %v632
      %634 = vst.msk [vmem:[%s554 + $0x7c] sm:$0xf] %vm561, %v419
      %v635 = vld [vmem:[%s554 + $0x80] sm:$0x1]
      %v636 = vsel %vm564, %v420, %v635
      %637 = vst [vmem:[%s554 + $0x80] sm:$0x1] %v636
      %v638 = vld [vmem:[%s554 + $0x84] sm:$0xf]
      %v639 = vsel %vm557, %v427, %v638
      %640 = vst [vmem:[%s554 + $0x84] sm:$0xf] %v639
      %641 = vst.msk [vmem:[%s554 + $0x88] sm:$0xf] %vm561, %v436
      %v642 = vld [vmem:[%s554 + $0x8c] sm:$0x1]
      %v643 = vsel %vm564, %v437, %v642
      %644 = vst [vmem:[%s554 + $0x8c] sm:$0x1] %v643
      %v645 = vld [vmem:[%s554 + $0x90] sm:$0xf]
      %v646 = vsel %vm557, %v444, %v645
      %647 = vst [vmem:[%s554 + $0x90] sm:$0xf] %v646
      %648 = vst.msk [vmem:[%s554 + $0x94] sm:$0xf] %vm561, %v453
      %v649 = vld [vmem:[%s554 + $0x98] sm:$0x1]
      %v650 = vsel %vm564, %v454, %v649
      %651 = vst [vmem:[%s554 + $0x98] sm:$0x1] %v650
      %v652 = vld [vmem:[%s554 + $0x9c] sm:$0xf]
      %v653 = vsel %vm557, %v461, %v652
      %654 = vst [vmem:[%s554 + $0x9c] sm:$0xf] %v653
      %655 = vst.msk [vmem:[%s554 + $0xa0] sm:$0xf] %vm561, %v470
      %v656 = vld [vmem:[%s554 + $0xa4] sm:$0x1]
      %v657 = vsel %vm564, %v471, %v656
      %658 = vst [vmem:[%s554 + $0xa4] sm:$0x1] %v657
      %v659 = vld [vmem:[%s554 + $0xa8] sm:$0xf]
      %v660 = vsel %vm557, %v478, %v659
      %661 = vst [vmem:[%s554 + $0xa8] sm:$0xf] %v660
      %662 = vst.msk [vmem:[%s554 + $0xac] sm:$0xf] %vm561, %v487
      %v663 = vld [vmem:[%s554 + $0xb0] sm:$0x1]
      %v664 = vsel %vm564, %v488, %v663
      %665 = vst [vmem:[%s554 + $0xb0] sm:$0x1] %v664
      %v666 = vld [vmem:[%s554 + $0xb4] sm:$0xf]
      %v667 = vsel %vm557, %v495, %v666
      %668 = vst [vmem:[%s554 + $0xb4] sm:$0xf] %v667
      %669 = vst.msk [vmem:[%s554 + $0xb8] sm:$0xf] %vm561, %v504
      %v670 = vld [vmem:[%s554 + $0xbc] sm:$0x1]
      %v671 = vsel %vm564, %v505, %v670
      %672 = vst [vmem:[%s554 + $0xbc] sm:$0x1] %v671
      %s673 = scalar_lea.vmem [#allocation2], 24
      %v674 = vld [vmem:[%s673] sm:$0xf]
      %v675 = vld [vmem:[%s673 + $0x4] sm:$0xf]
      %v676 = vld [vmem:[%s673 + $0x8] sm:$0x1]
      %vm677 = vcmask 60416
      %vm678 = vmand %vm677, %vm556
      %v679 = vld [vmem:[#allocation2] sm:$0xf]
      %v680 = vsel %vm678, %v674, %v679
      %681 = vst [vmem:[#allocation2] sm:$0xf] %v680
      %vm682 = vcmask 60416
      %683 = vst.msk [vmem:[#allocation2 + $0x4] sm:$0xf] %vm682, %v675
      %vm684 = vcmask 57344
      %vm685 = vmand %vm684, %vm231
      %v686 = vld [vmem:[#allocation2 + $0x8] sm:$0x1]
      %v687 = vsel %vm685, %v676, %v686
      %688 = vst [vmem:[#allocation2 + $0x8] sm:$0x1] %v687
      %s689 = scalar_lea.vmem [#allocation2], 180
      %v690 = vld [vmem:[%s689] sm:$0xf]
      %v691 = vld [vmem:[%s689 + $0x4] sm:$0xf]
      %v692 = vld [vmem:[%s689 + $0x8] sm:$0x1]
      %s693 = scalar_lea.vmem [#allocation2], 204
      %v694 = vld [vmem:[%s693] sm:$0xf]
      %v695 = vsel %vm678, %v690, %v694
      %696 = vst [vmem:[%s693] sm:$0xf] %v695
      %697 = vst.msk [vmem:[%s693 + $0x4] sm:$0xf] %vm682, %v691
      %v698 = vld [vmem:[%s693 + $0x8] sm:$0x1]
      %v699 = vsel %vm685, %v692, %v698
      %700 = vst [vmem:[%s693 + $0x8] sm:$0x1] %v699
      %v701 = vld [vmem:[#allocation2] sm:$0x2]
      %v702 = vld [vmem:[#allocation2 + $0xc] sm:$0x2]
      %v703 = vld [vmem:[#allocation2 + $0x18] sm:$0x2]
      %v704 = vld [vmem:[#allocation2 + $0x24] sm:$0x2]
      %v705 = vld [vmem:[#allocation2 + $0x30] sm:$0x2]
      %v706 = vld [vmem:[#allocation2 + $0x3c] sm:$0x2]
      %v707 = vld [vmem:[#allocation2 + $0x48] sm:$0x2]
      %v708 = vld [vmem:[#allocation2 + $0x54] sm:$0x2]
      %v709 = vld [vmem:[#allocation2 + $0x60] sm:$0x2]
      %v710 = vld [vmem:[#allocation2 + $0x6c] sm:$0x2]
      %v711 = vld [vmem:[#allocation2 + $0x78] sm:$0x2]
      %v712 = vld [vmem:[#allocation2 + $0x84] sm:$0x2]
      %v713 = vld [vmem:[#allocation2 + $0x90] sm:$0x2]
      %v714 = vld [vmem:[#allocation2 + $0x9c] sm:$0x2]
      %v715 = vld [vmem:[#allocation2 + $0xa8] sm:$0x2]
      %v716 = vld [vmem:[#allocation2 + $0xb4] sm:$0x2]
      %v717 = vld [vmem:[#allocation2 + $0xc0] sm:$0x2]
      %v718 = vld [vmem:[#allocation2 + $0xcc] sm:$0x2]
      %v737 = vrot.slane %v701, 5
      %v738 = vrot.slane %v737, 4
      %v739 = vrot.slane %v702, 5
      %v740 = vrot.slane %v739, 4
      %v741 = vrot.slane %v703, 5
      %v742 = vrot.slane %v741, 4
      %v743 = vrot.slane %v704, 5
      %v744 = vrot.slane %v743, 4
      %v745 = vrot.slane %v705, 5
      %v746 = vrot.slane %v745, 4
      %v747 = vrot.slane %v706, 5
      %v748 = vrot.slane %v747, 4
      %v749 = vrot.slane %v707, 5
      %v750 = vrot.slane %v749, 4
      %v751 = vrot.slane %v708, 5
      %v752 = vrot.slane %v751, 4
      %v753 = vrot.slane %v709, 5
      %v754 = vrot.slane %v753, 4
      %v755 = vrot.slane %v710, 5
      %v756 = vrot.slane %v755, 4
      %v757 = vrot.slane %v711, 5
      %v758 = vrot.slane %v757, 4
      %v759 = vrot.slane %v712, 5
      %v760 = vrot.slane %v759, 4
      %v761 = vrot.slane %v713, 5
      %v762 = vrot.slane %v761, 4
      %v763 = vrot.slane %v714, 5
      %v764 = vrot.slane %v763, 4
      %v765 = vrot.slane %v715, 5
      %v766 = vrot.slane %v765, 4
      %v767 = vrot.slane %v716, 5
      %v768 = vrot.slane %v767, 4
      %v769 = vrot.slane %v717, 5
      %v770 = vrot.slane %v769, 4
      %v771 = vrot.slane %v718, 5
      %v772 = vrot.slane %v771, 4
      %v791 = vld [vmem:[#allocation2] sm:$0x1]
      %v792 = vsel %vm685, %v738, %v791
      %793 = vst [vmem:[#allocation2] sm:$0x1] %v792
      %v794 = vld [vmem:[#allocation2 + $0xc] sm:$0x1]
      %v795 = vsel %vm685, %v740, %v794
      %796 = vst [vmem:[#allocation2 + $0xc] sm:$0x1] %v795
      %v797 = vld [vmem:[#allocation2 + $0x18] sm:$0x1]
      %v798 = vsel %vm685, %v742, %v797
      %799 = vst [vmem:[#allocation2 + $0x18] sm:$0x1] %v798
      %v800 = vld [vmem:[#allocation2 + $0x24] sm:$0x1]
      %v801 = vsel %vm685, %v744, %v800
      %802 = vst [vmem:[#allocation2 + $0x24] sm:$0x1] %v801
      %v803 = vld [vmem:[#allocation2 + $0x30] sm:$0x1]
      %v804 = vsel %vm685, %v746, %v803
      %805 = vst [vmem:[#allocation2 + $0x30] sm:$0x1] %v804
      %v806 = vld [vmem:[#allocation2 + $0x3c] sm:$0x1]
      %v807 = vsel %vm685, %v748, %v806
      %808 = vst [vmem:[#allocation2 + $0x3c] sm:$0x1] %v807
      %v809 = vld [vmem:[#allocation2 + $0x48] sm:$0x1]
      %v810 = vsel %vm685, %v750, %v809
      %811 = vst [vmem:[#allocation2 + $0x48] sm:$0x1] %v810
      %v812 = vld [vmem:[#allocation2 + $0x54] sm:$0x1]
      %v813 = vsel %vm685, %v752, %v812
      %814 = vst [vmem:[#allocation2 + $0x54] sm:$0x1] %v813
      %v815 = vld [vmem:[#allocation2 + $0x60] sm:$0x1]
      %v816 = vsel %vm685, %v754, %v815
      %817 = vst [vmem:[#allocation2 + $0x60] sm:$0x1] %v816
      %v818 = vld [vmem:[#allocation2 + $0x6c] sm:$0x1]
      %v819 = vsel %vm685, %v756, %v818
      %820 = vst [vmem:[#allocation2 + $0x6c] sm:$0x1] %v819
      %v821 = vld [vmem:[#allocation2 + $0x78] sm:$0x1]
      %v822 = vsel %vm685, %v758, %v821
      %823 = vst [vmem:[#allocation2 + $0x78] sm:$0x1] %v822
      %v824 = vld [vmem:[#allocation2 + $0x84] sm:$0x1]
      %v825 = vsel %vm685, %v760, %v824
      %826 = vst [vmem:[#allocation2 + $0x84] sm:$0x1] %v825
      %v827 = vld [vmem:[#allocation2 + $0x90] sm:$0x1]
      %v828 = vsel %vm685, %v762, %v827
      %829 = vst [vmem:[#allocation2 + $0x90] sm:$0x1] %v828
      %v830 = vld [vmem:[#allocation2 + $0x9c] sm:$0x1]
      %v831 = vsel %vm685, %v764, %v830
      %832 = vst [vmem:[#allocation2 + $0x9c] sm:$0x1] %v831
      %v833 = vld [vmem:[#allocation2 + $0xa8] sm:$0x1]
      %v834 = vsel %vm685, %v766, %v833
      %835 = vst [vmem:[#allocation2 + $0xa8] sm:$0x1] %v834
      %v836 = vld [vmem:[#allocation2 + $0xb4] sm:$0x1]
      %v837 = vsel %vm685, %v768, %v836
      %838 = vst [vmem:[#allocation2 + $0xb4] sm:$0x1] %v837
      %v839 = vld [vmem:[#allocation2 + $0xc0] sm:$0x1]
      %v840 = vsel %vm685, %v770, %v839
      %841 = vst [vmem:[#allocation2 + $0xc0] sm:$0x1] %v840
      %v842 = vld [vmem:[#allocation2 + $0xcc] sm:$0x1]
      %v843 = vsel %vm685, %v772, %v842
      %844 = vst [vmem:[#allocation2 + $0xcc] sm:$0x1] %v843
      %v845 = vld [vmem:[#allocation2 + $0x4] sm:$0x8]
      %v846 = vld [vmem:[#allocation2 + $0x10] sm:$0x8]
      %v847 = vld [vmem:[#allocation2 + $0x1c] sm:$0x8]
      %v848 = vld [vmem:[#allocation2 + $0x28] sm:$0x8]
      %v849 = vld [vmem:[#allocation2 + $0x34] sm:$0x8]
      %v850 = vld [vmem:[#allocation2 + $0x40] sm:$0x8]
      %v851 = vld [vmem:[#allocation2 + $0x4c] sm:$0x8]
      %v852 = vld [vmem:[#allocation2 + $0x58] sm:$0x8]
      %v853 = vld [vmem:[#allocation2 + $0x64] sm:$0x8]
      %v854 = vld [vmem:[#allocation2 + $0x70] sm:$0x8]
      %v855 = vld [vmem:[#allocation2 + $0x7c] sm:$0x8]
      %v856 = vld [vmem:[#allocation2 + $0x88] sm:$0x8]
      %v857 = vld [vmem:[#allocation2 + $0x94] sm:$0x8]
      %v858 = vld [vmem:[#allocation2 + $0xa0] sm:$0x8]
      %v859 = vld [vmem:[#allocation2 + $0xac] sm:$0x8]
      %v860 = vld [vmem:[#allocation2 + $0xb8] sm:$0x8]
      %v861 = vld [vmem:[#allocation2 + $0xc4] sm:$0x8]
      %v862 = vld [vmem:[#allocation2 + $0xd0] sm:$0x8]
      %v881 = vrot.slane %v845, 7
      %v882 = vrot.slane %v881, 4
      %v883 = vrot.slane %v846, 7
      %v884 = vrot.slane %v883, 4
      %v885 = vrot.slane %v847, 7
      %v886 = vrot.slane %v885, 4
      %v887 = vrot.slane %v848, 7
      %v888 = vrot.slane %v887, 4
      %v889 = vrot.slane %v849, 7
      %v890 = vrot.slane %v889, 4
      %v891 = vrot.slane %v850, 7
      %v892 = vrot.slane %v891, 4
      %v893 = vrot.slane %v851, 7
      %v894 = vrot.slane %v893, 4
      %v895 = vrot.slane %v852, 7
      %v896 = vrot.slane %v895, 4
      %v897 = vrot.slane %v853, 7
      %v898 = vrot.slane %v897, 4
      %v899 = vrot.slane %v854, 7
      %v900 = vrot.slane %v899, 4
      %v901 = vrot.slane %v855, 7
      %v902 = vrot.slane %v901, 4
      %v903 = vrot.slane %v856, 7
      %v904 = vrot.slane %v903, 4
      %v905 = vrot.slane %v857, 7
      %v906 = vrot.slane %v905, 4
      %v907 = vrot.slane %v858, 7
      %v908 = vrot.slane %v907, 4
      %v909 = vrot.slane %v859, 7
      %v910 = vrot.slane %v909, 4
      %v911 = vrot.slane %v860, 7
      %v912 = vrot.slane %v911, 4
      %v913 = vrot.slane %v861, 7
      %v914 = vrot.slane %v913, 4
      %v915 = vrot.slane %v862, 7
      %v916 = vrot.slane %v915, 4
      %vm935 = vmand %vm684, %vm556
      %v936 = vld [vmem:[#allocation2 + $0x8] sm:$0x1]
      %v937 = vsel %vm935, %v882, %v936
      %938 = vst [vmem:[#allocation2 + $0x8] sm:$0x1] %v937
      %v939 = vld [vmem:[#allocation2 + $0x14] sm:$0x1]
      %v940 = vsel %vm935, %v884, %v939
      %941 = vst [vmem:[#allocation2 + $0x14] sm:$0x1] %v940
      %v942 = vld [vmem:[#allocation2 + $0x20] sm:$0x1]
      %v943 = vsel %vm935, %v886, %v942
      %944 = vst [vmem:[#allocation2 + $0x20] sm:$0x1] %v943
      %v945 = vld [vmem:[#allocation2 + $0x2c] sm:$0x1]
      %v946 = vsel %vm935, %v888, %v945
      %947 = vst [vmem:[#allocation2 + $0x2c] sm:$0x1] %v946
      %v948 = vld [vmem:[#allocation2 + $0x38] sm:$0x1]
      %v949 = vsel %vm935, %v890, %v948
      %950 = vst [vmem:[#allocation2 + $0x38] sm:$0x1] %v949
      %v951 = vld [vmem:[#allocation2 + $0x44] sm:$0x1]
      %v952 = vsel %vm935, %v892, %v951
      %953 = vst [vmem:[#allocation2 + $0x44] sm:$0x1] %v952
      %v954 = vld [vmem:[#allocation2 + $0x50] sm:$0x1]
      %v955 = vsel %vm935, %v894, %v954
      %956 = vst [vmem:[#allocation2 + $0x50] sm:$0x1] %v955
      %v957 = vld [vmem:[#allocation2 + $0x5c] sm:$0x1]
      %v958 = vsel %vm935, %v896, %v957
      %959 = vst [vmem:[#allocation2 + $0x5c] sm:$0x1] %v958
      %v960 = vld [vmem:[#allocation2 + $0x68] sm:$0x1]
      %v961 = vsel %vm935, %v898, %v960
      %962 = vst [vmem:[#allocation2 + $0x68] sm:$0x1] %v961
      %v963 = vld [vmem:[#allocation2 + $0x74] sm:$0x1]
      %v964 = vsel %vm935, %v900, %v963
      %965 = vst [vmem:[#allocation2 + $0x74] sm:$0x1] %v964
      %v966 = vld [vmem:[#allocation2 + $0x80] sm:$0x1]
      %v967 = vsel %vm935, %v902, %v966
      %968 = vst [vmem:[#allocation2 + $0x80] sm:$0x1] %v967
      %v969 = vld [vmem:[#allocation2 + $0x8c] sm:$0x1]
      %v970 = vsel %vm935, %v904, %v969
      %971 = vst [vmem:[#allocation2 + $0x8c] sm:$0x1] %v970
      %v972 = vld [vmem:[#allocation2 + $0x98] sm:$0x1]
      %v973 = vsel %vm935, %v906, %v972
      %974 = vst [vmem:[#allocation2 + $0x98] sm:$0x1] %v973
      %v975 = vld [vmem:[#allocation2 + $0xa4] sm:$0x1]
      %v976 = vsel %vm935, %v908, %v975
      %977 = vst [vmem:[#allocation2 + $0xa4] sm:$0x1] %v976
      %v978 = vld [vmem:[#allocation2 + $0xb0] sm:$0x1]
      %v979 = vsel %vm935, %v910, %v978
      %980 = vst [vmem:[#allocation2 + $0xb0] sm:$0x1] %v979
      %v981 = vld [vmem:[#allocation2 + $0xbc] sm:$0x1]
      %v982 = vsel %vm935, %v912, %v981
      %983 = vst [vmem:[#allocation2 + $0xbc] sm:$0x1] %v982
      %v984 = vld [vmem:[#allocation2 + $0xc8] sm:$0x1]
      %v985 = vsel %vm935, %v914, %v984
      %986 = vst [vmem:[#allocation2 + $0xc8] sm:$0x1] %v985
      %v987 = vld [vmem:[#allocation2 + $0xd4] sm:$0x1]
      %v988 = vsel %vm935, %v916, %v987
      %989 = vst [vmem:[#allocation2 + $0xd4] sm:$0x1] %v988
      %vm990 = vcmask 57344
      %991 = vst.msk [vmem:[#allocation5] sm:$0x1] %vm990, 0.0
      %992 = vst.msk [vmem:[#allocation6] sm:$0x1] %vm990, 0.0
      %v993 = vld [vmem:[#allocation2] sm:$0xf]
      %v994 = vld [vmem:[#allocation2 + $0x4] sm:$0xf]
      %v995 = vld [vmem:[#allocation2 + $0xc] sm:$0xf]
      %v996 = vld [vmem:[#allocation2 + $0x10] sm:$0xf]
      %v997 = vld [vmem:[#allocation2 + $0x18] sm:$0xf]
      %v998 = vld [vmem:[#allocation2 + $0x1c] sm:$0xf]
      %v999 = vld [vmem:[#allocation2 + $0x24] sm:$0xf]
      %v1000 = vld [vmem:[#allocation2 + $0x28] sm:$0xf]
      %v1001 = vld [vmem:[#allocation2 + $0x30] sm:$0xf]
      %v1002 = vld [vmem:[#allocation2 + $0x34] sm:$0xf]
      %v1003 = vld [vmem:[#allocation2 + $0x3c] sm:$0xf]
      %v1004 = vld [vmem:[#allocation2 + $0x40] sm:$0xf]
      %v1005 = vld [vmem:[#allocation2 + $0x48] sm:$0xf]
      %v1006 = vld [vmem:[#allocation2 + $0x4c] sm:$0xf]
      %v1007 = vld [vmem:[#allocation2 + $0x54] sm:$0xf]
      %v1008 = vld [vmem:[#allocation2 + $0x58] sm:$0xf]
      %v1009 = vld [vmem:[#allocation2 + $0x60] sm:$0xf]
      %v1010 = vld [vmem:[#allocation2 + $0x64] sm:$0xf]
      %v1011 = vld [vmem:[#allocation2 + $0x6c] sm:$0xf]
      %v1012 = vld [vmem:[#allocation2 + $0x70] sm:$0xf]
      %v1013 = vld [vmem:[#allocation2 + $0x78] sm:$0xf]
      %v1014 = vld [vmem:[#allocation2 + $0x7c] sm:$0xf]
      %v1015 = vld [vmem:[#allocation2 + $0x84] sm:$0xf]
      %v1016 = vld [vmem:[#allocation2 + $0x88] sm:$0xf]
      %v1017 = vld [vmem:[#allocation2 + $0x90] sm:$0xf]
      %v1018 = vld [vmem:[#allocation2 + $0x94] sm:$0xf]
      %v1019 = vld [vmem:[#allocation2 + $0x9c] sm:$0xf]
      %v1020 = vld [vmem:[#allocation2 + $0xa0] sm:$0xf]
      %v1021 = vld [vmem:[#allocation2 + $0xa8] sm:$0xf]
      %v1022 = vld [vmem:[#allocation2 + $0xac] sm:$0xf]
      %v1023 = vld [vmem:[#allocation2 + $0xb4] sm:$0xf]
      %v1024 = vld [vmem:[#allocation2 + $0xb8] sm:$0xf]
      %v1025 = vld [vmem:[#allocation2 + $0x8] sm:$0x1]
      %v1026 = vld [vmem:[#allocation2 + $0x14] sm:$0x1]
      %v1027 = vld [vmem:[#allocation2 + $0x20] sm:$0x1]
      %v1028 = vld [vmem:[#allocation2 + $0x2c] sm:$0x1]
      %v1029 = vld [vmem:[#allocation2 + $0x38] sm:$0x1]
      %v1030 = vld [vmem:[#allocation2 + $0x44] sm:$0x1]
      %v1031 = vld [vmem:[#allocation2 + $0x50] sm:$0x1]
      %v1032 = vld [vmem:[#allocation2 + $0x5c] sm:$0x1]
      %v1033 = vld [vmem:[#allocation2 + $0x68] sm:$0x1]
      %v1034 = vld [vmem:[#allocation2 + $0x74] sm:$0x1]
      %v1035 = vld [vmem:[#allocation2 + $0x80] sm:$0x1]
      %v1036 = vld [vmem:[#allocation2 + $0x8c] sm:$0x1]
      %v1037 = vld [vmem:[#allocation2 + $0x98] sm:$0x1]
      %v1038 = vld [vmem:[#allocation2 + $0xa4] sm:$0x1]
      %v1039 = vld [vmem:[#allocation2 + $0xb0] sm:$0x1]
      %v1040 = vld [vmem:[#allocation2 + $0xbc] sm:$0x1]
      %v1041 = vld [vmem:[#allocation2] sm:$0xe]
      %v1042 = vld [vmem:[#allocation2 + $0xc] sm:$0xe]
      %v1043 = vld [vmem:[#allocation2 + $0x18] sm:$0xe]
      %v1044 = vld [vmem:[#allocation2 + $0x24] sm:$0xe]
      %v1045 = vld [vmem:[#allocation2 + $0x30] sm:$0xe]
      %v1046 = vld [vmem:[#allocation2 + $0x3c] sm:$0xe]
      %v1047 = vld [vmem:[#allocation2 + $0x48] sm:$0xe]
      %v1048 = vld [vmem:[#allocation2 + $0x54] sm:$0xe]
      %v1049 = vld [vmem:[#allocation2 + $0x60] sm:$0xe]
      %v1050 = vld [vmem:[#allocation2 + $0x6c] sm:$0xe]
      %v1051 = vld [vmem:[#allocation2 + $0x78] sm:$0xe]
      %v1052 = vld [vmem:[#allocation2 + $0x84] sm:$0xe]
      %v1053 = vld [vmem:[#allocation2 + $0x90] sm:$0xe]
      %v1054 = vld [vmem:[#allocation2 + $0x9c] sm:$0xe]
      %v1055 = vld [vmem:[#allocation2 + $0xa8] sm:$0xe]
      %v1056 = vld [vmem:[#allocation2 + $0xb4] sm:$0xe]
      %v1057 = vld [vmem:[%s554] sm:$0xf]
      %v1058 = vld [vmem:[%s554 + $0x4] sm:$0xf]
      %v1059 = vld [vmem:[%s554 + $0xc] sm:$0xf]
      %v1060 = vld [vmem:[%s554 + $0x10] sm:$0xf]
      %v1061 = vld [vmem:[%s554 + $0x18] sm:$0xf]
      %v1062 = vld [vmem:[%s554 + $0x1c] sm:$0xf]
      %v1063 = vld [vmem:[%s554 + $0x24] sm:$0xf]
      %v1064 = vld [vmem:[%s554 + $0x28] sm:$0xf]
      %v1065 = vld [vmem:[%s554 + $0x30] sm:$0xf]
      %v1066 = vld [vmem:[%s554 + $0x34] sm:$0xf]
      %v1067 = vld [vmem:[%s554 + $0x3c] sm:$0xf]
      %v1068 = vld [vmem:[%s554 + $0x40] sm:$0xf]
      %v1069 = vld [vmem:[%s554 + $0x48] sm:$0xf]
      %v1070 = vld [vmem:[%s554 + $0x4c] sm:$0xf]
      %v1071 = vld [vmem:[%s554 + $0x54] sm:$0xf]
      %v1072 = vld [vmem:[%s554 + $0x58] sm:$0xf]
      %v1073 = vld [vmem:[%s554 + $0x60] sm:$0xf]
      %v1074 = vld [vmem:[%s554 + $0x64] sm:$0xf]
      %v1075 = vld [vmem:[%s554 + $0x6c] sm:$0xf]
      %v1076 = vld [vmem:[%s554 + $0x70] sm:$0xf]
      %v1077 = vld [vmem:[%s554 + $0x78] sm:$0xf]
      %v1078 = vld [vmem:[%s554 + $0x7c] sm:$0xf]
      %v1079 = vld [vmem:[%s554 + $0x84] sm:$0xf]
      %v1080 = vld [vmem:[%s554 + $0x88] sm:$0xf]
      %v1081 = vld [vmem:[%s554 + $0x90] sm:$0xf]
      %v1082 = vld [vmem:[%s554 + $0x94] sm:$0xf]
      %v1083 = vld [vmem:[%s554 + $0x9c] sm:$0xf]
      %v1084 = vld [vmem:[%s554 + $0xa0] sm:$0xf]
      %v1085 = vld [vmem:[%s554 + $0xa8] sm:$0xf]
      %v1086 = vld [vmem:[%s554 + $0xac] sm:$0xf]
      %v1087 = vld [vmem:[%s554 + $0xb4] sm:$0xf]
      %v1088 = vld [vmem:[%s554 + $0xb8] sm:$0xf]
      %v1089 = vld [vmem:[%s554 + $0x8] sm:$0x1]
      %v1090 = vld [vmem:[%s554 + $0x14] sm:$0x1]
      %v1091 = vld [vmem:[%s554 + $0x20] sm:$0x1]
      %v1092 = vld [vmem:[%s554 + $0x2c] sm:$0x1]
      %v1093 = vld [vmem:[%s554 + $0x38] sm:$0x1]
      %v1094 = vld [vmem:[%s554 + $0x44] sm:$0x1]
      %v1095 = vld [vmem:[%s554 + $0x50] sm:$0x1]
      %v1096 = vld [vmem:[%s554 + $0x5c] sm:$0x1]
      %v1097 = vld [vmem:[%s554 + $0x68] sm:$0x1]
      %v1098 = vld [vmem:[%s554 + $0x74] sm:$0x1]
      %v1099 = vld [vmem:[%s554 + $0x80] sm:$0x1]
      %v1100 = vld [vmem:[%s554 + $0x8c] sm:$0x1]
      %v1101 = vld [vmem:[%s554 + $0x98] sm:$0x1]
      %v1102 = vld [vmem:[%s554 + $0xa4] sm:$0x1]
      %v1103 = vld [vmem:[%s554 + $0xb0] sm:$0x1]
      %v1104 = vld [vmem:[%s554 + $0xbc] sm:$0x1]
      %v1105 = vld [vmem:[%s554] sm:$0xe]
      %v1106 = vld [vmem:[%s554 + $0xc] sm:$0xe]
      %v1107 = vld [vmem:[%s554 + $0x18] sm:$0xe]
      %v1108 = vld [vmem:[%s554 + $0x24] sm:$0xe]
      %v1109 = vld [vmem:[%s554 + $0x30] sm:$0xe]
      %v1110 = vld [vmem:[%s554 + $0x3c] sm:$0xe]
      %v1111 = vld [vmem:[%s554 + $0x48] sm:$0xe]
      %v1112 = vld [vmem:[%s554 + $0x54] sm:$0xe]
      %v1113 = vld [vmem:[%s554 + $0x60] sm:$0xe]
      %v1114 = vld [vmem:[%s554 + $0x6c] sm:$0xe]
      %v1115 = vld [vmem:[%s554 + $0x78] sm:$0xe]
      %v1116 = vld [vmem:[%s554 + $0x84] sm:$0xe]
      %v1117 = vld [vmem:[%s554 + $0x90] sm:$0xe]
      %v1118 = vld [vmem:[%s554 + $0x9c] sm:$0xe]
      %v1119 = vld [vmem:[%s554 + $0xa8] sm:$0xe]
      %v1120 = vld [vmem:[%s554 + $0xb4] sm:$0xe]
      %v1121 = vld [vmem:[%s673] sm:$0xf]
      %v1122 = vld [vmem:[%s673 + $0x4] sm:$0xf]
      %v1123 = vld [vmem:[%s673 + $0xc] sm:$0xf]
      %v1124 = vld [vmem:[%s673 + $0x10] sm:$0xf]
      %v1125 = vld [vmem:[%s673 + $0x18] sm:$0xf]
      %v1126 = vld [vmem:[%s673 + $0x1c] sm:$0xf]
      %v1127 = vld [vmem:[%s673 + $0x24] sm:$0xf]
      %v1128 = vld [vmem:[%s673 + $0x28] sm:$0xf]
      %v1129 = vld [vmem:[%s673 + $0x30] sm:$0xf]
      %v1130 = vld [vmem:[%s673 + $0x34] sm:$0xf]
      %v1131 = vld [vmem:[%s673 + $0x3c] sm:$0xf]
      %v1132 = vld [vmem:[%s673 + $0x40] sm:$0xf]
      %v1133 = vld [vmem:[%s673 + $0x48] sm:$0xf]
      %v1134 = vld [vmem:[%s673 + $0x4c] sm:$0xf]
      %v1135 = vld [vmem:[%s673 + $0x54] sm:$0xf]
      %v1136 = vld [vmem:[%s673 + $0x58] sm:$0xf]
      %v1137 = vld [vmem:[%s673 + $0x60] sm:$0xf]
      %v1138 = vld [vmem:[%s673 + $0x64] sm:$0xf]
      %v1139 = vld [vmem:[%s673 + $0x6c] sm:$0xf]
      %v1140 = vld [vmem:[%s673 + $0x70] sm:$0xf]
      %v1141 = vld [vmem:[%s673 + $0x78] sm:$0xf]
      %v1142 = vld [vmem:[%s673 + $0x7c] sm:$0xf]
      %v1143 = vld [vmem:[%s673 + $0x84] sm:$0xf]
      %v1144 = vld [vmem:[%s673 + $0x88] sm:$0xf]
      %v1145 = vld [vmem:[%s673 + $0x90] sm:$0xf]
      %v1146 = vld [vmem:[%s673 + $0x94] sm:$0xf]
      %v1147 = vld [vmem:[%s673 + $0x9c] sm:$0xf]
      %v1148 = vld [vmem:[%s673 + $0xa0] sm:$0xf]
      %v1149 = vld [vmem:[%s673 + $0xa8] sm:$0xf]
      %v1150 = vld [vmem:[%s673 + $0xac] sm:$0xf]
      %v1151 = vld [vmem:[%s673 + $0xb4] sm:$0xf]
      %v1152 = vld [vmem:[%s673 + $0xb8] sm:$0xf]
      %v1153 = vld [vmem:[%s673 + $0x8] sm:$0x1]
      %v1154 = vld [vmem:[%s673 + $0x14] sm:$0x1]
      %v1155 = vld [vmem:[%s673 + $0x20] sm:$0x1]
      %v1156 = vld [vmem:[%s673 + $0x2c] sm:$0x1]
      %v1157 = vld [vmem:[%s673 + $0x38] sm:$0x1]
      %v1158 = vld [vmem:[%s673 + $0x44] sm:$0x1]
      %v1159 = vld [vmem:[%s673 + $0x50] sm:$0x1]
      %v1160 = vld [vmem:[%s673 + $0x5c] sm:$0x1]
      %v1161 = vld [vmem:[%s673 + $0x68] sm:$0x1]
      %v1162 = vld [vmem:[%s673 + $0x74] sm:$0x1]
      %v1163 = vld [vmem:[%s673 + $0x80] sm:$0x1]
      %v1164 = vld [vmem:[%s673 + $0x8c] sm:$0x1]
      %v1165 = vld [vmem:[%s673 + $0x98] sm:$0x1]
      %v1166 = vld [vmem:[%s673 + $0xa4] sm:$0x1]
      %v1167 = vld [vmem:[%s673 + $0xb0] sm:$0x1]
      %v1168 = vld [vmem:[%s673 + $0xbc] sm:$0x1]
      %v1169 = vld [vmem:[%s673] sm:$0xe]
      %v1170 = vld [vmem:[%s673 + $0xc] sm:$0xe]
      %v1171 = vld [vmem:[%s673 + $0x18] sm:$0xe]
      %v1172 = vld [vmem:[%s673 + $0x24] sm:$0xe]
      %v1173 = vld [vmem:[%s673 + $0x30] sm:$0xe]
      %v1174 = vld [vmem:[%s673 + $0x3c] sm:$0xe]
      %v1175 = vld [vmem:[%s673 + $0x48] sm:$0xe]
      %v1176 = vld [vmem:[%s673 + $0x54] sm:$0xe]
      %v1177 = vld [vmem:[%s673 + $0x60] sm:$0xe]
      %v1178 = vld [vmem:[%s673 + $0x6c] sm:$0xe]
      %v1179 = vld [vmem:[%s673 + $0x78] sm:$0xe]
      %v1180 = vld [vmem:[%s673 + $0x84] sm:$0xe]
      %v1181 = vld [vmem:[%s673 + $0x90] sm:$0xe]
      %v1182 = vld [vmem:[%s673 + $0x9c] sm:$0xe]
      %v1183 = vld [vmem:[%s673 + $0xa8] sm:$0xe]
      %v1184 = vld [vmem:[%s673 + $0xb4] sm:$0xe]
      %v1217 = vunpack.c.l.b16 %v993
      %v1218 = vunpack.c.l.b16 %v994
      %v1219 = vunpack.c.l.b16 %v995
      %v1220 = vunpack.c.l.b16 %v996
      %v1221 = vunpack.c.l.b16 %v997
      %v1222 = vunpack.c.l.b16 %v998
      %v1223 = vunpack.c.l.b16 %v999
      %v1224 = vunpack.c.l.b16 %v1000
      %v1225 = vunpack.c.l.b16 %v1001
      %v1226 = vunpack.c.l.b16 %v1002
      %v1227 = vunpack.c.l.b16 %v1003
      %v1228 = vunpack.c.l.b16 %v1004
      %v1229 = vunpack.c.l.b16 %v1005
      %v1230 = vunpack.c.l.b16 %v1006
      %v1231 = vunpack.c.l.b16 %v1007
      %v1232 = vunpack.c.l.b16 %v1008
      %v1233 = vunpack.c.l.b16 %v1009
      %v1234 = vunpack.c.l.b16 %v1010
      %v1235 = vunpack.c.l.b16 %v1011
      %v1236 = vunpack.c.l.b16 %v1012
      %v1237 = vunpack.c.l.b16 %v1013
      %v1238 = vunpack.c.l.b16 %v1014
      %v1239 = vunpack.c.l.b16 %v1015
      %v1240 = vunpack.c.l.b16 %v1016
      %v1241 = vunpack.c.l.b16 %v1017
      %v1242 = vunpack.c.l.b16 %v1018
      %v1243 = vunpack.c.l.b16 %v1019
      %v1244 = vunpack.c.l.b16 %v1020
      %v1245 = vunpack.c.l.b16 %v1021
      %v1246 = vunpack.c.l.b16 %v1022
      %v1247 = vunpack.c.l.b16 %v1023
      %v1248 = vunpack.c.l.b16 %v1024
      %v1249 = vpack.c.b16 %v1218, %v1217
      %v1250 = vpack.c.b16 %v1220, %v1219
      %v1251 = vpack.c.b16 %v1222, %v1221
      %v1252 = vpack.c.b16 %v1224, %v1223
      %v1253 = vpack.c.b16 %v1226, %v1225
      %v1254 = vpack.c.b16 %v1228, %v1227
      %v1255 = vpack.c.b16 %v1230, %v1229
      %v1256 = vpack.c.b16 %v1232, %v1231
      %v1257 = vpack.c.b16 %v1234, %v1233
      %v1258 = vpack.c.b16 %v1236, %v1235
      %v1259 = vpack.c.b16 %v1238, %v1237
      %v1260 = vpack.c.b16 %v1240, %v1239
      %v1261 = vpack.c.b16 %v1242, %v1241
      %v1262 = vpack.c.b16 %v1244, %v1243
      %v1263 = vpack.c.b16 %v1246, %v1245
      %v1264 = vpack.c.b16 %v1248, %v1247
      %v1281 = vunpack.c.l.b16 %v1025
      %v1282 = vunpack.c.l.b16 %v1026
      %v1283 = vunpack.c.l.b16 %v1027
      %v1284 = vunpack.c.l.b16 %v1028
      %v1285 = vunpack.c.l.b16 %v1029
      %v1286 = vunpack.c.l.b16 %v1030
      %v1287 = vunpack.c.l.b16 %v1031
      %v1288 = vunpack.c.l.b16 %v1032
      %v1289 = vunpack.c.l.b16 %v1033
      %v1290 = vunpack.c.l.b16 %v1034
      %v1291 = vunpack.c.l.b16 %v1035
      %v1292 = vunpack.c.l.b16 %v1036
      %v1293 = vunpack.c.l.b16 %v1037
      %v1294 = vunpack.c.l.b16 %v1038
      %v1295 = vunpack.c.l.b16 %v1039
      %v1296 = vunpack.c.l.b16 %v1040
      %v1297 = vpack.c.b16 %v1281, %v1281
      %v1298 = vpack.c.b16 %v1282, %v1282
      %v1299 = vpack.c.b16 %v1283, %v1283
      %v1300 = vpack.c.b16 %v1284, %v1284
      %v1301 = vpack.c.b16 %v1285, %v1285
      %v1302 = vpack.c.b16 %v1286, %v1286
      %v1303 = vpack.c.b16 %v1287, %v1287
      %v1304 = vpack.c.b16 %v1288, %v1288
      %v1305 = vpack.c.b16 %v1289, %v1289
      %v1306 = vpack.c.b16 %v1290, %v1290
      %v1307 = vpack.c.b16 %v1291, %v1291
      %v1308 = vpack.c.b16 %v1292, %v1292
      %v1309 = vpack.c.b16 %v1293, %v1293
      %v1310 = vpack.c.b16 %v1294, %v1294
      %v1311 = vpack.c.b16 %v1295, %v1295
      %v1312 = vpack.c.b16 %v1296, %v1296
      %vm1313 = vsmask.f32 7424
      %v1315 = vshrl.u32 %v1249, 16
      %v1317 = vshll.u32 %v1249, 16
      %v1319 = vrot.slane %v1317, 1
      %v1320 = vor.u32 %v1315, %v1319
      %v1322 = vshll.u32 %v1297, 16
      %v1324 = vrot.slane %v1322, 1
      %v1325 = vsel %vm1313, %v1320, %v1324
      %v1327 = vshrl.u32 %v1250, 16
      %v1329 = vshll.u32 %v1250, 16
      %v1331 = vrot.slane %v1329, 1
      %v1332 = vor.u32 %v1327, %v1331
      %v1334 = vshll.u32 %v1298, 16
      %v1336 = vrot.slane %v1334, 1
      %v1337 = vsel %vm1313, %v1332, %v1336
      %v1339 = vshrl.u32 %v1251, 16
      %v1341 = vshll.u32 %v1251, 16
      %v1343 = vrot.slane %v1341, 1
      %v1344 = vor.u32 %v1339, %v1343
      %v1346 = vshll.u32 %v1299, 16
      %v1348 = vrot.slane %v1346, 1
      %v1349 = vsel %vm1313, %v1344, %v1348
      %v1351 = vshrl.u32 %v1252, 16
      %v1353 = vshll.u32 %v1252, 16
      %v1355 = vrot.slane %v1353, 1
      %v1356 = vor.u32 %v1351, %v1355
      %v1358 = vshll.u32 %v1300, 16
      %v1360 = vrot.slane %v1358, 1
      %v1361 = vsel %vm1313, %v1356, %v1360
      %v1363 = vshrl.u32 %v1253, 16
      %v1365 = vshll.u32 %v1253, 16
      %v1367 = vrot.slane %v1365, 1
      %v1368 = vor.u32 %v1363, %v1367
      %v1370 = vshll.u32 %v1301, 16
      %v1372 = vrot.slane %v1370, 1
      %v1373 = vsel %vm1313, %v1368, %v1372
      %v1375 = vshrl.u32 %v1254, 16
      %v1377 = vshll.u32 %v1254, 16
      %v1379 = vrot.slane %v1377, 1
      %v1380 = vor.u32 %v1375, %v1379
      %v1382 = vshll.u32 %v1302, 16
      %v1384 = vrot.slane %v1382, 1
      %v1385 = vsel %vm1313, %v1380, %v1384
      %v1387 = vshrl.u32 %v1255, 16
      %v1389 = vshll.u32 %v1255, 16
      %v1391 = vrot.slane %v1389, 1
      %v1392 = vor.u32 %v1387, %v1391
      %v1394 = vshll.u32 %v1303, 16
      %v1396 = vrot.slane %v1394, 1
      %v1397 = vsel %vm1313, %v1392, %v1396
      %v1399 = vshrl.u32 %v1256, 16
      %v1401 = vshll.u32 %v1256, 16
      %v1403 = vrot.slane %v1401, 1
      %v1404 = vor.u32 %v1399, %v1403
      %v1406 = vshll.u32 %v1304, 16
      %v1408 = vrot.slane %v1406, 1
      %v1409 = vsel %vm1313, %v1404, %v1408
      %v1411 = vshrl.u32 %v1257, 16
      %v1413 = vshll.u32 %v1257, 16
      %v1415 = vrot.slane %v1413, 1
      %v1416 = vor.u32 %v1411, %v1415
      %v1418 = vshll.u32 %v1305, 16
      %v1420 = vrot.slane %v1418, 1
      %v1421 = vsel %vm1313, %v1416, %v1420
      %v1423 = vshrl.u32 %v1258, 16
      %v1425 = vshll.u32 %v1258, 16
      %v1427 = vrot.slane %v1425, 1
      %v1428 = vor.u32 %v1423, %v1427
      %v1430 = vshll.u32 %v1306, 16
      %v1432 = vrot.slane %v1430, 1
      %v1433 = vsel %vm1313, %v1428, %v1432
      %v1435 = vshrl.u32 %v1259, 16
      %v1437 = vshll.u32 %v1259, 16
      %v1439 = vrot.slane %v1437, 1
      %v1440 = vor.u32 %v1435, %v1439
      %v1442 = vshll.u32 %v1307, 16
      %v1444 = vrot.slane %v1442, 1
      %v1445 = vsel %vm1313, %v1440, %v1444
      %v1447 = vshrl.u32 %v1260, 16
      %v1449 = vshll.u32 %v1260, 16
      %v1451 = vrot.slane %v1449, 1
      %v1452 = vor.u32 %v1447, %v1451
      %v1454 = vshll.u32 %v1308, 16
      %v1456 = vrot.slane %v1454, 1
      %v1457 = vsel %vm1313, %v1452, %v1456
      %v1459 = vshrl.u32 %v1261, 16
      %v1461 = vshll.u32 %v1261, 16
      %v1463 = vrot.slane %v1461, 1
      %v1464 = vor.u32 %v1459, %v1463
      %v1466 = vshll.u32 %v1309, 16
      %v1468 = vrot.slane %v1466, 1
      %v1469 = vsel %vm1313, %v1464, %v1468
      %v1471 = vshrl.u32 %v1262, 16
      %v1473 = vshll.u32 %v1262, 16
      %v1475 = vrot.slane %v1473, 1
      %v1476 = vor.u32 %v1471, %v1475
      %v1478 = vshll.u32 %v1310, 16
      %v1480 = vrot.slane %v1478, 1
      %v1481 = vsel %vm1313, %v1476, %v1480
      %v1483 = vshrl.u32 %v1263, 16
      %v1485 = vshll.u32 %v1263, 16
      %v1487 = vrot.slane %v1485, 1
      %v1488 = vor.u32 %v1483, %v1487
      %v1490 = vshll.u32 %v1311, 16
      %v1492 = vrot.slane %v1490, 1
      %v1493 = vsel %vm1313, %v1488, %v1492
      %v1495 = vshrl.u32 %v1264, 16
      %v1497 = vshll.u32 %v1264, 16
      %v1499 = vrot.slane %v1497, 1
      %v1500 = vor.u32 %v1495, %v1499
      %v1502 = vshll.u32 %v1312, 16
      %v1504 = vrot.slane %v1502, 1
      %v1505 = vsel %vm1313, %v1500, %v1504
      %1506 = vrot.lane.b32.xlu0 %v1325, 4
      %v1507 = vpop.permute.xlu0 %1506
      %1508 = vrot.lane.b32.xlu0 %v1337, 4
      %v1509 = vpop.permute.xlu0 %1508
      %1510 = vrot.lane.b32.xlu0 %v1349, 4
      %v1511 = vpop.permute.xlu0 %1510
      %1512 = vrot.lane.b32.xlu0 %v1361, 4
      %v1513 = vpop.permute.xlu0 %1512
      %1514 = vrot.lane.b32.xlu0 %v1373, 4
      %v1515 = vpop.permute.xlu0 %1514
      %1516 = vrot.lane.b32.xlu0 %v1385, 4
      %v1517 = vpop.permute.xlu0 %1516
      %1518 = vrot.lane.b32.xlu0 %v1397, 4
      %v1519 = vpop.permute.xlu0 %1518
      %1520 = vrot.lane.b32.xlu0 %v1409, 4
      %v1521 = vpop.permute.xlu0 %1520
      %1522 = vrot.lane.b32.xlu0 %v1421, 4
      %v1523 = vpop.permute.xlu0 %1522
      %1524 = vrot.lane.b32.xlu0 %v1433, 4
      %v1525 = vpop.permute.xlu0 %1524
      %1526 = vrot.lane.b32.xlu0 %v1445, 4
      %v1527 = vpop.permute.xlu0 %1526
      %1528 = vrot.lane.b32.xlu0 %v1457, 4
      %v1529 = vpop.permute.xlu0 %1528
      %1530 = vrot.lane.b32.xlu0 %v1469, 4
      %v1531 = vpop.permute.xlu0 %1530
      %1532 = vrot.lane.b32.xlu0 %v1481, 4
      %v1533 = vpop.permute.xlu0 %1532
      %1534 = vrot.lane.b32.xlu0 %v1493, 4
      %v1535 = vpop.permute.xlu0 %1534
      %1536 = vrot.lane.b32.xlu0 %v1505, 4
      %v1537 = vpop.permute.xlu0 %1536
      %v1554 = vunpack.c.l.b16 %v1041
      %v1555 = vunpack.c.l.b16 %v1042
      %v1556 = vunpack.c.l.b16 %v1043
      %v1557 = vunpack.c.l.b16 %v1044
      %v1558 = vunpack.c.l.b16 %v1045
      %v1559 = vunpack.c.l.b16 %v1046
      %v1560 = vunpack.c.l.b16 %v1047
      %v1561 = vunpack.c.l.b16 %v1048
      %v1562 = vunpack.c.l.b16 %v1049
      %v1563 = vunpack.c.l.b16 %v1050
      %v1564 = vunpack.c.l.b16 %v1051
      %v1565 = vunpack.c.l.b16 %v1052
      %v1566 = vunpack.c.l.b16 %v1053
      %v1567 = vunpack.c.l.b16 %v1054
      %v1568 = vunpack.c.l.b16 %v1055
      %v1569 = vunpack.c.l.b16 %v1056
      %v1570 = vpack.c.b16 %v1218, %v1554
      %v1571 = vpack.c.b16 %v1220, %v1555
      %v1572 = vpack.c.b16 %v1222, %v1556
      %v1573 = vpack.c.b16 %v1224, %v1557
      %v1574 = vpack.c.b16 %v1226, %v1558
      %v1575 = vpack.c.b16 %v1228, %v1559
      %v1576 = vpack.c.b16 %v1230, %v1560
      %v1577 = vpack.c.b16 %v1232, %v1561
      %v1578 = vpack.c.b16 %v1234, %v1562
      %v1579 = vpack.c.b16 %v1236, %v1563
      %v1580 = vpack.c.b16 %v1238, %v1564
      %v1581 = vpack.c.b16 %v1240, %v1565
      %v1582 = vpack.c.b16 %v1242, %v1566
      %v1583 = vpack.c.b16 %v1244, %v1567
      %v1584 = vpack.c.b16 %v1246, %v1568
      %v1585 = vpack.c.b16 %v1248, %v1569
      %vm1586 = vcmask 1046528
      %v1587 = vrot.slane %v1570, 1
      %v1588 = vrot.slane %v1297, 1
      %v1589 = vsel %vm1586, %v1587, %v1588
      %v1590 = vrot.slane %v1571, 1
      %v1591 = vrot.slane %v1298, 1
      %v1592 = vsel %vm1586, %v1590, %v1591
      %v1593 = vrot.slane %v1572, 1
      %v1594 = vrot.slane %v1299, 1
      %v1595 = vsel %vm1586, %v1593, %v1594
      %v1596 = vrot.slane %v1573, 1
      %v1597 = vrot.slane %v1300, 1
      %v1598 = vsel %vm1586, %v1596, %v1597
      %v1599 = vrot.slane %v1574, 1
      %v1600 = vrot.slane %v1301, 1
      %v1601 = vsel %vm1586, %v1599, %v1600
      %v1602 = vrot.slane %v1575, 1
      %v1603 = vrot.slane %v1302, 1
      %v1604 = vsel %vm1586, %v1602, %v1603
      %v1605 = vrot.slane %v1576, 1
      %v1606 = vrot.slane %v1303, 1
      %v1607 = vsel %vm1586, %v1605, %v1606
      %v1608 = vrot.slane %v1577, 1
      %v1609 = vrot.slane %v1304, 1
      %v1610 = vsel %vm1586, %v1608, %v1609
      %v1611 = vrot.slane %v1578, 1
      %v1612 = vrot.slane %v1305, 1
      %v1613 = vsel %vm1586, %v1611, %v1612
      %v1614 = vrot.slane %v1579, 1
      %v1615 = vrot.slane %v1306, 1
      %v1616 = vsel %vm1586, %v1614, %v1615
      %v1617 = vrot.slane %v1580, 1
      %v1618 = vrot.slane %v1307, 1
      %v1619 = vsel %vm1586, %v1617, %v1618
      %v1620 = vrot.slane %v1581, 1
      %v1621 = vrot.slane %v1308, 1
      %v1622 = vsel %vm1586, %v1620, %v1621
      %v1623 = vrot.slane %v1582, 1
      %v1624 = vrot.slane %v1309, 1
      %v1625 = vsel %vm1586, %v1623, %v1624
      %v1626 = vrot.slane %v1583, 1
      %v1627 = vrot.slane %v1310, 1
      %v1628 = vsel %vm1586, %v1626, %v1627
      %v1629 = vrot.slane %v1584, 1
      %v1630 = vrot.slane %v1311, 1
      %v1631 = vsel %vm1586, %v1629, %v1630
      %v1632 = vrot.slane %v1585, 1
      %v1633 = vrot.slane %v1312, 1
      %v1634 = vsel %vm1586, %v1632, %v1633
      %1635 = vrot.lane.b32.xlu0 %v1589, 8
      %v1636 = vpop.permute.xlu0 %1635
      %1637 = vrot.lane.b32.xlu0 %v1592, 8
      %v1638 = vpop.permute.xlu0 %1637
      %1639 = vrot.lane.b32.xlu0 %v1595, 8
      %v1640 = vpop.permute.xlu0 %1639
      %1641 = vrot.lane.b32.xlu0 %v1598, 8
      %v1642 = vpop.permute.xlu0 %1641
      %1643 = vrot.lane.b32.xlu0 %v1601, 8
      %v1644 = vpop.permute.xlu0 %1643
      %1645 = vrot.lane.b32.xlu0 %v1604, 8
      %v1646 = vpop.permute.xlu0 %1645
      %1647 = vrot.lane.b32.xlu0 %v1607, 8
      %v1648 = vpop.permute.xlu0 %1647
      %1649 = vrot.lane.b32.xlu0 %v1610, 8
      %v1650 = vpop.permute.xlu0 %1649
      %1651 = vrot.lane.b32.xlu0 %v1613, 8
      %v1652 = vpop.permute.xlu0 %1651
      %1653 = vrot.lane.b32.xlu0 %v1616, 8
      %v1654 = vpop.permute.xlu0 %1653
      %1655 = vrot.lane.b32.xlu0 %v1619, 8
      %v1656 = vpop.permute.xlu0 %1655
      %1657 = vrot.lane.b32.xlu0 %v1622, 8
      %v1658 = vpop.permute.xlu0 %1657
      %1659 = vrot.lane.b32.xlu0 %v1625, 8
      %v1660 = vpop.permute.xlu0 %1659
      %1661 = vrot.lane.b32.xlu0 %v1628, 8
      %v1662 = vpop.permute.xlu0 %1661
      %1663 = vrot.lane.b32.xlu0 %v1631, 8
      %v1664 = vpop.permute.xlu0 %1663
      %1665 = vrot.lane.b32.xlu0 %v1634, 8
      %v1666 = vpop.permute.xlu0 %1665
      %v1699 = vunpack.c.l.b16 %v1057
      %v1700 = vunpack.c.l.b16 %v1058
      %v1701 = vunpack.c.l.b16 %v1059
      %v1702 = vunpack.c.l.b16 %v1060
      %v1703 = vunpack.c.l.b16 %v1061
      %v1704 = vunpack.c.l.b16 %v1062
      %v1705 = vunpack.c.l.b16 %v1063
      %v1706 = vunpack.c.l.b16 %v1064
      %v1707 = vunpack.c.l.b16 %v1065
      %v1708 = vunpack.c.l.b16 %v1066
      %v1709 = vunpack.c.l.b16 %v1067
      %v1710 = vunpack.c.l.b16 %v1068
      %v1711 = vunpack.c.l.b16 %v1069
      %v1712 = vunpack.c.l.b16 %v1070
      %v1713 = vunpack.c.l.b16 %v1071
      %v1714 = vunpack.c.l.b16 %v1072
      %v1715 = vunpack.c.l.b16 %v1073
      %v1716 = vunpack.c.l.b16 %v1074
      %v1717 = vunpack.c.l.b16 %v1075
      %v1718 = vunpack.c.l.b16 %v1076
      %v1719 = vunpack.c.l.b16 %v1077
      %v1720 = vunpack.c.l.b16 %v1078
      %v1721 = vunpack.c.l.b16 %v1079
      %v1722 = vunpack.c.l.b16 %v1080
      %v1723 = vunpack.c.l.b16 %v1081
      %v1724 = vunpack.c.l.b16 %v1082
      %v1725 = vunpack.c.l.b16 %v1083
      %v1726 = vunpack.c.l.b16 %v1084
      %v1727 = vunpack.c.l.b16 %v1085
      %v1728 = vunpack.c.l.b16 %v1086
      %v1729 = vunpack.c.l.b16 %v1087
      %v1730 = vunpack.c.l.b16 %v1088
      %v1731 = vpack.c.b16 %v1700, %v1699
      %v1732 = vpack.c.b16 %v1702, %v1701
      %v1733 = vpack.c.b16 %v1704, %v1703
      %v1734 = vpack.c.b16 %v1706, %v1705
      %v1735 = vpack.c.b16 %v1708, %v1707
      %v1736 = vpack.c.b16 %v1710, %v1709
      %v1737 = vpack.c.b16 %v1712, %v1711
      %v1738 = vpack.c.b16 %v1714, %v1713
      %v1739 = vpack.c.b16 %v1716, %v1715
      %v1740 = vpack.c.b16 %v1718, %v1717
      %v1741 = vpack.c.b16 %v1720, %v1719
      %v1742 = vpack.c.b16 %v1722, %v1721
      %v1743 = vpack.c.b16 %v1724, %v1723
      %v1744 = vpack.c.b16 %v1726, %v1725
      %v1745 = vpack.c.b16 %v1728, %v1727
      %v1746 = vpack.c.b16 %v1730, %v1729
      %1747 = vrot.lane.b32.xlu0 %v1731, 12
      %v1748 = vpop.permute.xlu0 %1747
      %1749 = vrot.lane.b32.xlu0 %v1732, 12
      %v1750 = vpop.permute.xlu0 %1749
      %1751 = vrot.lane.b32.xlu0 %v1733, 12
      %v1752 = vpop.permute.xlu0 %1751
      %1753 = vrot.lane.b32.xlu0 %v1734, 12
      %v1754 = vpop.permute.xlu0 %1753
      %1755 = vrot.lane.b32.xlu0 %v1735, 12
      %v1756 = vpop.permute.xlu0 %1755
      %1757 = vrot.lane.b32.xlu0 %v1736, 12
      %v1758 = vpop.permute.xlu0 %1757
      %1759 = vrot.lane.b32.xlu0 %v1737, 12
      %v1760 = vpop.permute.xlu0 %1759
      %1761 = vrot.lane.b32.xlu0 %v1738, 12
      %v1762 = vpop.permute.xlu0 %1761
      %1763 = vrot.lane.b32.xlu0 %v1739, 12
      %v1764 = vpop.permute.xlu0 %1763
      %1765 = vrot.lane.b32.xlu0 %v1740, 12
      %v1766 = vpop.permute.xlu0 %1765
      %1767 = vrot.lane.b32.xlu0 %v1741, 12
      %v1768 = vpop.permute.xlu0 %1767
      %1769 = vrot.lane.b32.xlu0 %v1742, 12
      %v1770 = vpop.permute.xlu0 %1769
      %1771 = vrot.lane.b32.xlu0 %v1743, 12
      %v1772 = vpop.permute.xlu0 %1771
      %1773 = vrot.lane.b32.xlu0 %v1744, 12
      %v1774 = vpop.permute.xlu0 %1773
      %1775 = vrot.lane.b32.xlu0 %v1745, 12
      %v1776 = vpop.permute.xlu0 %1775
      %1777 = vrot.lane.b32.xlu0 %v1746, 12
      %v1778 = vpop.permute.xlu0 %1777
      %v1795 = vunpack.c.l.b16 %v1089
      %v1796 = vunpack.c.l.b16 %v1090
      %v1797 = vunpack.c.l.b16 %v1091
      %v1798 = vunpack.c.l.b16 %v1092
      %v1799 = vunpack.c.l.b16 %v1093
      %v1800 = vunpack.c.l.b16 %v1094
      %v1801 = vunpack.c.l.b16 %v1095
      %v1802 = vunpack.c.l.b16 %v1096
      %v1803 = vunpack.c.l.b16 %v1097
      %v1804 = vunpack.c.l.b16 %v1098
      %v1805 = vunpack.c.l.b16 %v1099
      %v1806 = vunpack.c.l.b16 %v1100
      %v1807 = vunpack.c.l.b16 %v1101
      %v1808 = vunpack.c.l.b16 %v1102
      %v1809 = vunpack.c.l.b16 %v1103
      %v1810 = vunpack.c.l.b16 %v1104
      %v1811 = vpack.c.b16 %v1795, %v1795
      %v1812 = vpack.c.b16 %v1796, %v1796
      %v1813 = vpack.c.b16 %v1797, %v1797
      %v1814 = vpack.c.b16 %v1798, %v1798
      %v1815 = vpack.c.b16 %v1799, %v1799
      %v1816 = vpack.c.b16 %v1800, %v1800
      %v1817 = vpack.c.b16 %v1801, %v1801
      %v1818 = vpack.c.b16 %v1802, %v1802
      %v1819 = vpack.c.b16 %v1803, %v1803
      %v1820 = vpack.c.b16 %v1804, %v1804
      %v1821 = vpack.c.b16 %v1805, %v1805
      %v1822 = vpack.c.b16 %v1806, %v1806
      %v1823 = vpack.c.b16 %v1807, %v1807
      %v1824 = vpack.c.b16 %v1808, %v1808
      %v1825 = vpack.c.b16 %v1809, %v1809
      %v1826 = vpack.c.b16 %v1810, %v1810
      %v1828 = vshrl.u32 %v1731, 16
      %v1830 = vshll.u32 %v1731, 16
      %v1832 = vrot.slane %v1830, 1
      %v1833 = vor.u32 %v1828, %v1832
      %v1835 = vshll.u32 %v1811, 16
      %v1837 = vrot.slane %v1835, 1
      %v1838 = vsel %vm1313, %v1833, %v1837
      %v1840 = vshrl.u32 %v1732, 16
      %v1842 = vshll.u32 %v1732, 16
      %v1844 = vrot.slane %v1842, 1
      %v1845 = vor.u32 %v1840, %v1844
      %v1847 = vshll.u32 %v1812, 16
      %v1849 = vrot.slane %v1847, 1
      %v1850 = vsel %vm1313, %v1845, %v1849
      %v1852 = vshrl.u32 %v1733, 16
      %v1854 = vshll.u32 %v1733, 16
      %v1856 = vrot.slane %v1854, 1
      %v1857 = vor.u32 %v1852, %v1856
      %v1859 = vshll.u32 %v1813, 16
      %v1861 = vrot.slane %v1859, 1
      %v1862 = vsel %vm1313, %v1857, %v1861
      %v1864 = vshrl.u32 %v1734, 16
      %v1866 = vshll.u32 %v1734, 16
      %v1868 = vrot.slane %v1866, 1
      %v1869 = vor.u32 %v1864, %v1868
      %v1871 = vshll.u32 %v1814, 16
      %v1873 = vrot.slane %v1871, 1
      %v1874 = vsel %vm1313, %v1869, %v1873
      %v1876 = vshrl.u32 %v1735, 16
      %v1878 = vshll.u32 %v1735, 16
      %v1880 = vrot.slane %v1878, 1
      %v1881 = vor.u32 %v1876, %v1880
      %v1883 = vshll.u32 %v1815, 16
      %v1885 = vrot.slane %v1883, 1
      %v1886 = vsel %vm1313, %v1881, %v1885
      %v1888 = vshrl.u32 %v1736, 16
      %v1890 = vshll.u32 %v1736, 16
      %v1892 = vrot.slane %v1890, 1
      %v1893 = vor.u32 %v1888, %v1892
      %v1895 = vshll.u32 %v1816, 16
      %v1897 = vrot.slane %v1895, 1
      %v1898 = vsel %vm1313, %v1893, %v1897
      %v1900 = vshrl.u32 %v1737, 16
      %v1902 = vshll.u32 %v1737, 16
      %v1904 = vrot.slane %v1902, 1
      %v1905 = vor.u32 %v1900, %v1904
      %v1907 = vshll.u32 %v1817, 16
      %v1909 = vrot.slane %v1907, 1
      %v1910 = vsel %vm1313, %v1905, %v1909
      %v1912 = vshrl.u32 %v1738, 16
      %v1914 = vshll.u32 %v1738, 16
      %v1916 = vrot.slane %v1914, 1
      %v1917 = vor.u32 %v1912, %v1916
      %v1919 = vshll.u32 %v1818, 16
      %v1921 = vrot.slane %v1919, 1
      %v1922 = vsel %vm1313, %v1917, %v1921
      %v1924 = vshrl.u32 %v1739, 16
      %v1926 = vshll.u32 %v1739, 16
      %v1928 = vrot.slane %v1926, 1
      %v1929 = vor.u32 %v1924, %v1928
      %v1931 = vshll.u32 %v1819, 16
      %v1933 = vrot.slane %v1931, 1
      %v1934 = vsel %vm1313, %v1929, %v1933
      %v1936 = vshrl.u32 %v1740, 16
      %v1938 = vshll.u32 %v1740, 16
      %v1940 = vrot.slane %v1938, 1
      %v1941 = vor.u32 %v1936, %v1940
      %v1943 = vshll.u32 %v1820, 16
      %v1945 = vrot.slane %v1943, 1
      %v1946 = vsel %vm1313, %v1941, %v1945
      %v1948 = vshrl.u32 %v1741, 16
      %v1950 = vshll.u32 %v1741, 16
      %v1952 = vrot.slane %v1950, 1
      %v1953 = vor.u32 %v1948, %v1952
      %v1955 = vshll.u32 %v1821, 16
      %v1957 = vrot.slane %v1955, 1
      %v1958 = vsel %vm1313, %v1953, %v1957
      %v1960 = vshrl.u32 %v1742, 16
      %v1962 = vshll.u32 %v1742, 16
      %v1964 = vrot.slane %v1962, 1
      %v1965 = vor.u32 %v1960, %v1964
      %v1967 = vshll.u32 %v1822, 16
      %v1969 = vrot.slane %v1967, 1
      %v1970 = vsel %vm1313, %v1965, %v1969
      %v1972 = vshrl.u32 %v1743, 16
      %v1974 = vshll.u32 %v1743, 16
      %v1976 = vrot.slane %v1974, 1
      %v1977 = vor.u32 %v1972, %v1976
      %v1979 = vshll.u32 %v1823, 16
      %v1981 = vrot.slane %v1979, 1
      %v1982 = vsel %vm1313, %v1977, %v1981
      %v1984 = vshrl.u32 %v1744, 16
      %v1986 = vshll.u32 %v1744, 16
      %v1988 = vrot.slane %v1986, 1
      %v1989 = vor.u32 %v1984, %v1988
      %v1991 = vshll.u32 %v1824, 16
      %v1993 = vrot.slane %v1991, 1
      %v1994 = vsel %vm1313, %v1989, %v1993
      %v1996 = vshrl.u32 %v1745, 16
      %v1998 = vshll.u32 %v1745, 16
      %v2000 = vrot.slane %v1998, 1
      %v2001 = vor.u32 %v1996, %v2000
      %v2003 = vshll.u32 %v1825, 16
      %v2005 = vrot.slane %v2003, 1
      %v2006 = vsel %vm1313, %v2001, %v2005
      %v2008 = vshrl.u32 %v1746, 16
      %v2010 = vshll.u32 %v1746, 16
      %v2012 = vrot.slane %v2010, 1
      %v2013 = vor.u32 %v2008, %v2012
      %v2015 = vshll.u32 %v1826, 16
      %v2017 = vrot.slane %v2015, 1
      %v2018 = vsel %vm1313, %v2013, %v2017
      %2019 = vrot.lane.b32.xlu0 %v1838, 16
      %v2020 = vpop.permute.xlu0 %2019
      %2021 = vrot.lane.b32.xlu0 %v1850, 16
      %v2022 = vpop.permute.xlu0 %2021
      %2023 = vrot.lane.b32.xlu0 %v1862, 16
      %v2024 = vpop.permute.xlu0 %2023
      %2025 = vrot.lane.b32.xlu0 %v1874, 16
      %v2026 = vpop.permute.xlu0 %2025
      %2027 = vrot.lane.b32.xlu0 %v1886, 16
      %v2028 = vpop.permute.xlu0 %2027
      %2029 = vrot.lane.b32.xlu0 %v1898, 16
      %v2030 = vpop.permute.xlu0 %2029
      %2031 = vrot.lane.b32.xlu0 %v1910, 16
      %v2032 = vpop.permute.xlu0 %2031
      %2033 = vrot.lane.b32.xlu0 %v1922, 16
      %v2034 = vpop.permute.xlu0 %2033
      %2035 = vrot.lane.b32.xlu0 %v1934, 16
      %v2036 = vpop.permute.xlu0 %2035
      %2037 = vrot.lane.b32.xlu0 %v1946, 16
      %v2038 = vpop.permute.xlu0 %2037
      %2039 = vrot.lane.b32.xlu0 %v1958, 16
      %v2040 = vpop.permute.xlu0 %2039
      %2041 = vrot.lane.b32.xlu0 %v1970, 16
      %v2042 = vpop.permute.xlu0 %2041
      %2043 = vrot.lane.b32.xlu0 %v1982, 16
      %v2044 = vpop.permute.xlu0 %2043
      %2045 = vrot.lane.b32.xlu0 %v1994, 16
      %v2046 = vpop.permute.xlu0 %2045
      %2047 = vrot.lane.b32.xlu0 %v2006, 16
      %v2048 = vpop.permute.xlu0 %2047
      %2049 = vrot.lane.b32.xlu0 %v2018, 16
      %v2050 = vpop.permute.xlu0 %2049
      %v2067 = vunpack.c.l.b16 %v1105
      %v2068 = vunpack.c.l.b16 %v1106
      %v2069 = vunpack.c.l.b16 %v1107
      %v2070 = vunpack.c.l.b16 %v1108
      %v2071 = vunpack.c.l.b16 %v1109
      %v2072 = vunpack.c.l.b16 %v1110
      %v2073 = vunpack.c.l.b16 %v1111
      %v2074 = vunpack.c.l.b16 %v1112
      %v2075 = vunpack.c.l.b16 %v1113
      %v2076 = vunpack.c.l.b16 %v1114
      %v2077 = vunpack.c.l.b16 %v1115
      %v2078 = vunpack.c.l.b16 %v1116
      %v2079 = vunpack.c.l.b16 %v1117
      %v2080 = vunpack.c.l.b16 %v1118
      %v2081 = vunpack.c.l.b16 %v1119
      %v2082 = vunpack.c.l.b16 %v1120
      %v2083 = vpack.c.b16 %v1700, %v2067
      %v2084 = vpack.c.b16 %v1702, %v2068
      %v2085 = vpack.c.b16 %v1704, %v2069
      %v2086 = vpack.c.b16 %v1706, %v2070
      %v2087 = vpack.c.b16 %v1708, %v2071
      %v2088 = vpack.c.b16 %v1710, %v2072
      %v2089 = vpack.c.b16 %v1712, %v2073
      %v2090 = vpack.c.b16 %v1714, %v2074
      %v2091 = vpack.c.b16 %v1716, %v2075
      %v2092 = vpack.c.b16 %v1718, %v2076
      %v2093 = vpack.c.b16 %v1720, %v2077
      %v2094 = vpack.c.b16 %v1722, %v2078
      %v2095 = vpack.c.b16 %v1724, %v2079
      %v2096 = vpack.c.b16 %v1726, %v2080
      %v2097 = vpack.c.b16 %v1728, %v2081
      %v2098 = vpack.c.b16 %v1730, %v2082
      %v2099 = vrot.slane %v2083, 1
      %v2100 = vrot.slane %v1811, 1
      %v2101 = vsel %vm1586, %v2099, %v2100
      %v2102 = vrot.slane %v2084, 1
      %v2103 = vrot.slane %v1812, 1
      %v2104 = vsel %vm1586, %v2102, %v2103
      %v2105 = vrot.slane %v2085, 1
      %v2106 = vrot.slane %v1813, 1
      %v2107 = vsel %vm1586, %v2105, %v2106
      %v2108 = vrot.slane %v2086, 1
      %v2109 = vrot.slane %v1814, 1
      %v2110 = vsel %vm1586, %v2108, %v2109
      %v2111 = vrot.slane %v2087, 1
      %v2112 = vrot.slane %v1815, 1
      %v2113 = vsel %vm1586, %v2111, %v2112
      %v2114 = vrot.slane %v2088, 1
      %v2115 = vrot.slane %v1816, 1
      %v2116 = vsel %vm1586, %v2114, %v2115
      %v2117 = vrot.slane %v2089, 1
      %v2118 = vrot.slane %v1817, 1
      %v2119 = vsel %vm1586, %v2117, %v2118
      %v2120 = vrot.slane %v2090, 1
      %v2121 = vrot.slane %v1818, 1
      %v2122 = vsel %vm1586, %v2120, %v2121
      %v2123 = vrot.slane %v2091, 1
      %v2124 = vrot.slane %v1819, 1
      %v2125 = vsel %vm1586, %v2123, %v2124
      %v2126 = vrot.slane %v2092, 1
      %v2127 = vrot.slane %v1820, 1
      %v2128 = vsel %vm1586, %v2126, %v2127
      %v2129 = vrot.slane %v2093, 1
      %v2130 = vrot.slane %v1821, 1
      %v2131 = vsel %vm1586, %v2129, %v2130
      %v2132 = vrot.slane %v2094, 1
      %v2133 = vrot.slane %v1822, 1
      %v2134 = vsel %vm1586, %v2132, %v2133
      %v2135 = vrot.slane %v2095, 1
      %v2136 = vrot.slane %v1823, 1
      %v2137 = vsel %vm1586, %v2135, %v2136
      %v2138 = vrot.slane %v2096, 1
      %v2139 = vrot.slane %v1824, 1
      %v2140 = vsel %vm1586, %v2138, %v2139
      %v2141 = vrot.slane %v2097, 1
      %v2142 = vrot.slane %v1825, 1
      %v2143 = vsel %vm1586, %v2141, %v2142
      %v2144 = vrot.slane %v2098, 1
      %v2145 = vrot.slane %v1826, 1
      %v2146 = vsel %vm1586, %v2144, %v2145
      %2147 = vrot.lane.b32.xlu0 %v2101, 20
      %v2148 = vpop.permute.xlu0 %2147
      %2149 = vrot.lane.b32.xlu0 %v2104, 20
      %v2150 = vpop.permute.xlu0 %2149
      %2151 = vrot.lane.b32.xlu0 %v2107, 20
      %v2152 = vpop.permute.xlu0 %2151
      %2153 = vrot.lane.b32.xlu0 %v2110, 20
      %v2154 = vpop.permute.xlu0 %2153
      %2155 = vrot.lane.b32.xlu0 %v2113, 20
      %v2156 = vpop.permute.xlu0 %2155
      %2157 = vrot.lane.b32.xlu0 %v2116, 20
      %v2158 = vpop.permute.xlu0 %2157
      %2159 = vrot.lane.b32.xlu0 %v2119, 20
      %v2160 = vpop.permute.xlu0 %2159
      %2161 = vrot.lane.b32.xlu0 %v2122, 20
      %v2162 = vpop.permute.xlu0 %2161
      %2163 = vrot.lane.b32.xlu0 %v2125, 20
      %v2164 = vpop.permute.xlu0 %2163
      %2165 = vrot.lane.b32.xlu0 %v2128, 20
      %v2166 = vpop.permute.xlu0 %2165
      %2167 = vrot.lane.b32.xlu0 %v2131, 20
      %v2168 = vpop.permute.xlu0 %2167
      %2169 = vrot.lane.b32.xlu0 %v2134, 20
      %v2170 = vpop.permute.xlu0 %2169
      %2171 = vrot.lane.b32.xlu0 %v2137, 20
      %v2172 = vpop.permute.xlu0 %2171
      %2173 = vrot.lane.b32.xlu0 %v2140, 20
      %v2174 = vpop.permute.xlu0 %2173
      %2175 = vrot.lane.b32.xlu0 %v2143, 20
      %v2176 = vpop.permute.xlu0 %2175
      %2177 = vrot.lane.b32.xlu0 %v2146, 20
      %v2178 = vpop.permute.xlu0 %2177
      %v2211 = vunpack.c.l.b16 %v1121
      %v2212 = vunpack.c.l.b16 %v1122
      %v2213 = vunpack.c.l.b16 %v1123
      %v2214 = vunpack.c.l.b16 %v1124
      %v2215 = vunpack.c.l.b16 %v1125
      %v2216 = vunpack.c.l.b16 %v1126
      %v2217 = vunpack.c.l.b16 %v1127
      %v2218 = vunpack.c.l.b16 %v1128
      %v2219 = vunpack.c.l.b16 %v1129
      %v2220 = vunpack.c.l.b16 %v1130
      %v2221 = vunpack.c.l.b16 %v1131
      %v2222 = vunpack.c.l.b16 %v1132
      %v2223 = vunpack.c.l.b16 %v1133
      %v2224 = vunpack.c.l.b16 %v1134
      %v2225 = vunpack.c.l.b16 %v1135
      %v2226 = vunpack.c.l.b16 %v1136
      %v2227 = vunpack.c.l.b16 %v1137
      %v2228 = vunpack.c.l.b16 %v1138
      %v2229 = vunpack.c.l.b16 %v1139
      %v2230 = vunpack.c.l.b16 %v1140
      %v2231 = vunpack.c.l.b16 %v1141
      %v2232 = vunpack.c.l.b16 %v1142
      %v2233 = vunpack.c.l.b16 %v1143
      %v2234 = vunpack.c.l.b16 %v1144
      %v2235 = vunpack.c.l.b16 %v1145
      %v2236 = vunpack.c.l.b16 %v1146
      %v2237 = vunpack.c.l.b16 %v1147
      %v2238 = vunpack.c.l.b16 %v1148
      %v2239 = vunpack.c.l.b16 %v1149
      %v2240 = vunpack.c.l.b16 %v1150
      %v2241 = vunpack.c.l.b16 %v1151
      %v2242 = vunpack.c.l.b16 %v1152
      %v2243 = vpack.c.b16 %v2212, %v2211
      %v2244 = vpack.c.b16 %v2214, %v2213
      %v2245 = vpack.c.b16 %v2216, %v2215
      %v2246 = vpack.c.b16 %v2218, %v2217
      %v2247 = vpack.c.b16 %v2220, %v2219
      %v2248 = vpack.c.b16 %v2222, %v2221
      %v2249 = vpack.c.b16 %v2224, %v2223
      %v2250 = vpack.c.b16 %v2226, %v2225
      %v2251 = vpack.c.b16 %v2228, %v2227
      %v2252 = vpack.c.b16 %v2230, %v2229
      %v2253 = vpack.c.b16 %v2232, %v2231
      %v2254 = vpack.c.b16 %v2234, %v2233
      %v2255 = vpack.c.b16 %v2236, %v2235
      %v2256 = vpack.c.b16 %v2238, %v2237
      %v2257 = vpack.c.b16 %v2240, %v2239
      %v2258 = vpack.c.b16 %v2242, %v2241
      %2259 = vrot.lane.b32.xlu0 %v2243, 24
      %v2260 = vpop.permute.xlu0 %2259
      %2261 = vrot.lane.b32.xlu0 %v2244, 24
      %v2262 = vpop.permute.xlu0 %2261
      %2263 = vrot.lane.b32.xlu0 %v2245, 24
      %v2264 = vpop.permute.xlu0 %2263
      %2265 = vrot.lane.b32.xlu0 %v2246, 24
      %v2266 = vpop.permute.xlu0 %2265
      %2267 = vrot.lane.b32.xlu0 %v2247, 24
      %v2268 = vpop.permute.xlu0 %2267
      %2269 = vrot.lane.b32.xlu0 %v2248, 24
      %v2270 = vpop.permute.xlu0 %2269
      %2271 = vrot.lane.b32.xlu0 %v2249, 24
      %v2272 = vpop.permute.xlu0 %2271
      %2273 = vrot.lane.b32.xlu0 %v2250, 24
      %v2274 = vpop.permute.xlu0 %2273
      %2275 = vrot.lane.b32.xlu0 %v2251, 24
      %v2276 = vpop.permute.xlu0 %2275
      %2277 = vrot.lane.b32.xlu0 %v2252, 24
      %v2278 = vpop.permute.xlu0 %2277
      %2279 = vrot.lane.b32.xlu0 %v2253, 24
      %v2280 = vpop.permute.xlu0 %2279
      %2281 = vrot.lane.b32.xlu0 %v2254, 24
      %v2282 = vpop.permute.xlu0 %2281
      %2283 = vrot.lane.b32.xlu0 %v2255, 24
      %v2284 = vpop.permute.xlu0 %2283
      %2285 = vrot.lane.b32.xlu0 %v2256, 24
      %v2286 = vpop.permute.xlu0 %2285
      %2287 = vrot.lane.b32.xlu0 %v2257, 24
      %v2288 = vpop.permute.xlu0 %2287
      %2289 = vrot.lane.b32.xlu0 %v2258, 24
      %v2290 = vpop.permute.xlu0 %2289
      %v2307 = vunpack.c.l.b16 %v1153
      %v2308 = vunpack.c.l.b16 %v1154
      %v2309 = vunpack.c.l.b16 %v1155
      %v2310 = vunpack.c.l.b16 %v1156
      %v2311 = vunpack.c.l.b16 %v1157
      %v2312 = vunpack.c.l.b16 %v1158
      %v2313 = vunpack.c.l.b16 %v1159
      %v2314 = vunpack.c.l.b16 %v1160
      %v2315 = vunpack.c.l.b16 %v1161
      %v2316 = vunpack.c.l.b16 %v1162
      %v2317 = vunpack.c.l.b16 %v1163
      %v2318 = vunpack.c.l.b16 %v1164
      %v2319 = vunpack.c.l.b16 %v1165
      %v2320 = vunpack.c.l.b16 %v1166
      %v2321 = vunpack.c.l.b16 %v1167
      %v2322 = vunpack.c.l.b16 %v1168
      %v2323 = vpack.c.b16 %v2307, %v2307
      %v2324 = vpack.c.b16 %v2308, %v2308
      %v2325 = vpack.c.b16 %v2309, %v2309
      %v2326 = vpack.c.b16 %v2310, %v2310
      %v2327 = vpack.c.b16 %v2311, %v2311
      %v2328 = vpack.c.b16 %v2312, %v2312
      %v2329 = vpack.c.b16 %v2313, %v2313
      %v2330 = vpack.c.b16 %v2314, %v2314
      %v2331 = vpack.c.b16 %v2315, %v2315
      %v2332 = vpack.c.b16 %v2316, %v2316
      %v2333 = vpack.c.b16 %v2317, %v2317
      %v2334 = vpack.c.b16 %v2318, %v2318
      %v2335 = vpack.c.b16 %v2319, %v2319
      %v2336 = vpack.c.b16 %v2320, %v2320
      %v2337 = vpack.c.b16 %v2321, %v2321
      %v2338 = vpack.c.b16 %v2322, %v2322
      %v2340 = vshrl.u32 %v2243, 16
      %v2342 = vshll.u32 %v2243, 16
      %v2344 = vrot.slane %v2342, 1
      %v2345 = vor.u32 %v2340, %v2344
      %v2347 = vshll.u32 %v2323, 16
      %v2349 = vrot.slane %v2347, 1
      %v2350 = vsel %vm1313, %v2345, %v2349
      %v2352 = vshrl.u32 %v2244, 16
      %v2354 = vshll.u32 %v2244, 16
      %v2356 = vrot.slane %v2354, 1
      %v2357 = vor.u32 %v2352, %v2356
      %v2359 = vshll.u32 %v2324, 16
      %v2361 = vrot.slane %v2359, 1
      %v2362 = vsel %vm1313, %v2357, %v2361
      %v2364 = vshrl.u32 %v2245, 16
      %v2366 = vshll.u32 %v2245, 16
      %v2368 = vrot.slane %v2366, 1
      %v2369 = vor.u32 %v2364, %v2368
      %v2371 = vshll.u32 %v2325, 16
      %v2373 = vrot.slane %v2371, 1
      %v2374 = vsel %vm1313, %v2369, %v2373
      %v2376 = vshrl.u32 %v2246, 16
      %v2378 = vshll.u32 %v2246, 16
      %v2380 = vrot.slane %v2378, 1
      %v2381 = vor.u32 %v2376, %v2380
      %v2383 = vshll.u32 %v2326, 16
      %v2385 = vrot.slane %v2383, 1
      %v2386 = vsel %vm1313, %v2381, %v2385
      %v2388 = vshrl.u32 %v2247, 16
      %v2390 = vshll.u32 %v2247, 16
      %v2392 = vrot.slane %v2390, 1
      %v2393 = vor.u32 %v2388, %v2392
      %v2395 = vshll.u32 %v2327, 16
      %v2397 = vrot.slane %v2395, 1
      %v2398 = vsel %vm1313, %v2393, %v2397
      %v2400 = vshrl.u32 %v2248, 16
      %v2402 = vshll.u32 %v2248, 16
      %v2404 = vrot.slane %v2402, 1
      %v2405 = vor.u32 %v2400, %v2404
      %v2407 = vshll.u32 %v2328, 16
      %v2409 = vrot.slane %v2407, 1
      %v2410 = vsel %vm1313, %v2405, %v2409
      %v2412 = vshrl.u32 %v2249, 16
      %v2414 = vshll.u32 %v2249, 16
      %v2416 = vrot.slane %v2414, 1
      %v2417 = vor.u32 %v2412, %v2416
      %v2419 = vshll.u32 %v2329, 16
      %v2421 = vrot.slane %v2419, 1
      %v2422 = vsel %vm1313, %v2417, %v2421
      %v2424 = vshrl.u32 %v2250, 16
      %v2426 = vshll.u32 %v2250, 16
      %v2428 = vrot.slane %v2426, 1
      %v2429 = vor.u32 %v2424, %v2428
      %v2431 = vshll.u32 %v2330, 16
      %v2433 = vrot.slane %v2431, 1
      %v2434 = vsel %vm1313, %v2429, %v2433
      %v2436 = vshrl.u32 %v2251, 16
      %v2438 = vshll.u32 %v2251, 16
      %v2440 = vrot.slane %v2438, 1
      %v2441 = vor.u32 %v2436, %v2440
      %v2443 = vshll.u32 %v2331, 16
      %v2445 = vrot.slane %v2443, 1
      %v2446 = vsel %vm1313, %v2441, %v2445
      %v2448 = vshrl.u32 %v2252, 16
      %v2450 = vshll.u32 %v2252, 16
      %v2452 = vrot.slane %v2450, 1
      %v2453 = vor.u32 %v2448, %v2452
      %v2455 = vshll.u32 %v2332, 16
      %v2457 = vrot.slane %v2455, 1
      %v2458 = vsel %vm1313, %v2453, %v2457
      %v2460 = vshrl.u32 %v2253, 16
      %v2462 = vshll.u32 %v2253, 16
      %v2464 = vrot.slane %v2462, 1
      %v2465 = vor.u32 %v2460, %v2464
      %v2467 = vshll.u32 %v2333, 16
      %v2469 = vrot.slane %v2467, 1
      %v2470 = vsel %vm1313, %v2465, %v2469
      %v2472 = vshrl.u32 %v2254, 16
      %v2474 = vshll.u32 %v2254, 16
      %v2476 = vrot.slane %v2474, 1
      %v2477 = vor.u32 %v2472, %v2476
      %v2479 = vshll.u32 %v2334, 16
      %v2481 = vrot.slane %v2479, 1
      %v2482 = vsel %vm1313, %v2477, %v2481
      %v2484 = vshrl.u32 %v2255, 16
      %v2486 = vshll.u32 %v2255, 16
      %v2488 = vrot.slane %v2486, 1
      %v2489 = vor.u32 %v2484, %v2488
      %v2491 = vshll.u32 %v2335, 16
      %v2493 = vrot.slane %v2491, 1
      %v2494 = vsel %vm1313, %v2489, %v2493
      %v2496 = vshrl.u32 %v2256, 16
      %v2498 = vshll.u32 %v2256, 16
      %v2500 = vrot.slane %v2498, 1
      %v2501 = vor.u32 %v2496, %v2500
      %v2503 = vshll.u32 %v2336, 16
      %v2505 = vrot.slane %v2503, 1
      %v2506 = vsel %vm1313, %v2501, %v2505
      %v2508 = vshrl.u32 %v2257, 16
      %v2510 = vshll.u32 %v2257, 16
      %v2512 = vrot.slane %v2510, 1
      %v2513 = vor.u32 %v2508, %v2512
      %v2515 = vshll.u32 %v2337, 16
      %v2517 = vrot.slane %v2515, 1
      %v2518 = vsel %vm1313, %v2513, %v2517
      %v2520 = vshrl.u32 %v2258, 16
      %v2522 = vshll.u32 %v2258, 16
      %v2524 = vrot.slane %v2522, 1
      %v2525 = vor.u32 %v2520, %v2524
      %v2527 = vshll.u32 %v2338, 16
      %v2529 = vrot.slane %v2527, 1
      %v2530 = vsel %vm1313, %v2525, %v2529
      %2531 = vrot.lane.b32.xlu0 %v2350, 28
      %v2532 = vpop.permute.xlu0 %2531
      %2533 = vrot.lane.b32.xlu0 %v2362, 28
      %v2534 = vpop.permute.xlu0 %2533
      %2535 = vrot.lane.b32.xlu0 %v2374, 28
      %v2536 = vpop.permute.xlu0 %2535
      %2537 = vrot.lane.b32.xlu0 %v2386, 28
      %v2538 = vpop.permute.xlu0 %2537
      %2539 = vrot.lane.b32.xlu0 %v2398, 28
      %v2540 = vpop.permute.xlu0 %2539
      %2541 = vrot.lane.b32.xlu0 %v2410, 28
      %v2542 = vpop.permute.xlu0 %2541
      %2543 = vrot.lane.b32.xlu0 %v2422, 28
      %v2544 = vpop.permute.xlu0 %2543
      %2545 = vrot.lane.b32.xlu0 %v2434, 28
      %v2546 = vpop.permute.xlu0 %2545
      %2547 = vrot.lane.b32.xlu0 %v2446, 28
      %v2548 = vpop.permute.xlu0 %2547
      %2549 = vrot.lane.b32.xlu0 %v2458, 28
      %v2550 = vpop.permute.xlu0 %2549
      %2551 = vrot.lane.b32.xlu0 %v2470, 28
      %v2552 = vpop.permute.xlu0 %2551
      %2553 = vrot.lane.b32.xlu0 %v2482, 28
      %v2554 = vpop.permute.xlu0 %2553
      %2555 = vrot.lane.b32.xlu0 %v2494, 28
      %v2556 = vpop.permute.xlu0 %2555
      %2557 = vrot.lane.b32.xlu0 %v2506, 28
      %v2558 = vpop.permute.xlu0 %2557
      %2559 = vrot.lane.b32.xlu0 %v2518, 28
      %v2560 = vpop.permute.xlu0 %2559
      %2561 = vrot.lane.b32.xlu0 %v2530, 28
      %v2562 = vpop.permute.xlu0 %2561
      %v2579 = vunpack.c.l.b16 %v1169
      %v2580 = vunpack.c.l.b16 %v1170
      %v2581 = vunpack.c.l.b16 %v1171
      %v2582 = vunpack.c.l.b16 %v1172
      %v2583 = vunpack.c.l.b16 %v1173
      %v2584 = vunpack.c.l.b16 %v1174
      %v2585 = vunpack.c.l.b16 %v1175
      %v2586 = vunpack.c.l.b16 %v1176
      %v2587 = vunpack.c.l.b16 %v1177
      %v2588 = vunpack.c.l.b16 %v1178
      %v2589 = vunpack.c.l.b16 %v1179
      %v2590 = vunpack.c.l.b16 %v1180
      %v2591 = vunpack.c.l.b16 %v1181
      %v2592 = vunpack.c.l.b16 %v1182
      %v2593 = vunpack.c.l.b16 %v1183
      %v2594 = vunpack.c.l.b16 %v1184
      %v2595 = vpack.c.b16 %v2212, %v2579
      %v2596 = vpack.c.b16 %v2214, %v2580
      %v2597 = vpack.c.b16 %v2216, %v2581
      %v2598 = vpack.c.b16 %v2218, %v2582
      %v2599 = vpack.c.b16 %v2220, %v2583
      %v2600 = vpack.c.b16 %v2222, %v2584
      %v2601 = vpack.c.b16 %v2224, %v2585
      %v2602 = vpack.c.b16 %v2226, %v2586
      %v2603 = vpack.c.b16 %v2228, %v2587
      %v2604 = vpack.c.b16 %v2230, %v2588
      %v2605 = vpack.c.b16 %v2232, %v2589
      %v2606 = vpack.c.b16 %v2234, %v2590
      %v2607 = vpack.c.b16 %v2236, %v2591
      %v2608 = vpack.c.b16 %v2238, %v2592
      %v2609 = vpack.c.b16 %v2240, %v2593
      %v2610 = vpack.c.b16 %v2242, %v2594
      %v2611 = vrot.slane %v2595, 1
      %v2612 = vrot.slane %v2323, 1
      %v2613 = vsel %vm1586, %v2611, %v2612
      %v2614 = vrot.slane %v2596, 1
      %v2615 = vrot.slane %v2324, 1
      %v2616 = vsel %vm1586, %v2614, %v2615
      %v2617 = vrot.slane %v2597, 1
      %v2618 = vrot.slane %v2325, 1
      %v2619 = vsel %vm1586, %v2617, %v2618
      %v2620 = vrot.slane %v2598, 1
      %v2621 = vrot.slane %v2326, 1
      %v2622 = vsel %vm1586, %v2620, %v2621
      %v2623 = vrot.slane %v2599, 1
      %v2624 = vrot.slane %v2327, 1
      %v2625 = vsel %vm1586, %v2623, %v2624
      %v2626 = vrot.slane %v2600, 1
      %v2627 = vrot.slane %v2328, 1
      %v2628 = vsel %vm1586, %v2626, %v2627
      %v2629 = vrot.slane %v2601, 1
      %v2630 = vrot.slane %v2329, 1
      %v2631 = vsel %vm1586, %v2629, %v2630
      %v2632 = vrot.slane %v2602, 1
      %v2633 = vrot.slane %v2330, 1
      %v2634 = vsel %vm1586, %v2632, %v2633
      %v2635 = vrot.slane %v2603, 1
      %v2636 = vrot.slane %v2331, 1
      %v2637 = vsel %vm1586, %v2635, %v2636
      %v2638 = vrot.slane %v2604, 1
      %v2639 = vrot.slane %v2332, 1
      %v2640 = vsel %vm1586, %v2638, %v2639
      %v2641 = vrot.slane %v2605, 1
      %v2642 = vrot.slane %v2333, 1
      %v2643 = vsel %vm1586, %v2641, %v2642
      %v2644 = vrot.slane %v2606, 1
      %v2645 = vrot.slane %v2334, 1
      %v2646 = vsel %vm1586, %v2644, %v2645
      %v2647 = vrot.slane %v2607, 1
      %v2648 = vrot.slane %v2335, 1
      %v2649 = vsel %vm1586, %v2647, %v2648
      %v2650 = vrot.slane %v2608, 1
      %v2651 = vrot.slane %v2336, 1
      %v2652 = vsel %vm1586, %v2650, %v2651
      %v2653 = vrot.slane %v2609, 1
      %v2654 = vrot.slane %v2337, 1
      %v2655 = vsel %vm1586, %v2653, %v2654
      %v2656 = vrot.slane %v2610, 1
      %v2657 = vrot.slane %v2338, 1
      %v2658 = vsel %vm1586, %v2656, %v2657
      %2659 = vrot.lane.b32.xlu0 %v2613, 32
      %v2660 = vpop.permute.xlu0 %2659
      %2661 = vrot.lane.b32.xlu0 %v2616, 32
      %v2662 = vpop.permute.xlu0 %2661
      %2663 = vrot.lane.b32.xlu0 %v2619, 32
      %v2664 = vpop.permute.xlu0 %2663
      %2665 = vrot.lane.b32.xlu0 %v2622, 32
      %v2666 = vpop.permute.xlu0 %2665
      %2667 = vrot.lane.b32.xlu0 %v2625, 32
      %v2668 = vpop.permute.xlu0 %2667
      %2669 = vrot.lane.b32.xlu0 %v2628, 32
      %v2670 = vpop.permute.xlu0 %2669
      %2671 = vrot.lane.b32.xlu0 %v2631, 32
      %v2672 = vpop.permute.xlu0 %2671
      %2673 = vrot.lane.b32.xlu0 %v2634, 32
      %v2674 = vpop.permute.xlu0 %2673
      %2675 = vrot.lane.b32.xlu0 %v2637, 32
      %v2676 = vpop.permute.xlu0 %2675
      %2677 = vrot.lane.b32.xlu0 %v2640, 32
      %v2678 = vpop.permute.xlu0 %2677
      %2679 = vrot.lane.b32.xlu0 %v2643, 32
      %v2680 = vpop.permute.xlu0 %2679
      %2681 = vrot.lane.b32.xlu0 %v2646, 32
      %v2682 = vpop.permute.xlu0 %2681
      %2683 = vrot.lane.b32.xlu0 %v2649, 32
      %v2684 = vpop.permute.xlu0 %2683
      %2685 = vrot.lane.b32.xlu0 %v2652, 32
      %v2686 = vpop.permute.xlu0 %2685
      %2687 = vrot.lane.b32.xlu0 %v2655, 32
      %v2688 = vpop.permute.xlu0 %2687
      %2689 = vrot.lane.b32.xlu0 %v2658, 32
      %v2690 = vpop.permute.xlu0 %2689
      %vm2691 = vcmask 31744
      %v2693 = vsel %vm2691, %v1249, %v1507
      %v2695 = vsel %vm2691, %v1250, %v1509
      %v2697 = vsel %vm2691, %v1251, %v1511
      %v2699 = vsel %vm2691, %v1252, %v1513
      %v2701 = vsel %vm2691, %v1253, %v1515
      %v2703 = vsel %vm2691, %v1254, %v1517
      %v2705 = vsel %vm2691, %v1255, %v1519
      %v2707 = vsel %vm2691, %v1256, %v1521
      %v2709 = vsel %vm2691, %v1257, %v1523
      %v2711 = vsel %vm2691, %v1258, %v1525
      %v2713 = vsel %vm2691, %v1259, %v1527
      %v2715 = vsel %vm2691, %v1260, %v1529
      %v2717 = vsel %vm2691, %v1261, %v1531
      %v2719 = vsel %vm2691, %v1262, %v1533
      %v2721 = vsel %vm2691, %v1263, %v1535
      %v2723 = vsel %vm2691, %v1264, %v1537
      %vm2724 = vcmask 64512
      %v2726 = vsel %vm2724, %v2693, %v1636
      %v2728 = vsel %vm2724, %v2695, %v1638
      %v2730 = vsel %vm2724, %v2697, %v1640
      %v2732 = vsel %vm2724, %v2699, %v1642
      %v2734 = vsel %vm2724, %v2701, %v1644
      %v2736 = vsel %vm2724, %v2703, %v1646
      %v2738 = vsel %vm2724, %v2705, %v1648
      %v2740 = vsel %vm2724, %v2707, %v1650
      %v2742 = vsel %vm2724, %v2709, %v1652
      %v2744 = vsel %vm2724, %v2711, %v1654
      %v2746 = vsel %vm2724, %v2713, %v1656
      %v2748 = vsel %vm2724, %v2715, %v1658
      %v2750 = vsel %vm2724, %v2717, %v1660
      %v2752 = vsel %vm2724, %v2719, %v1662
      %v2754 = vsel %vm2724, %v2721, %v1664
      %v2756 = vsel %vm2724, %v2723, %v1666
      %vm2757 = vcmask 97280
      %v2759 = vsel %vm2757, %v2726, %v1748
      %v2761 = vsel %vm2757, %v2728, %v1750
      %v2763 = vsel %vm2757, %v2730, %v1752
      %v2765 = vsel %vm2757, %v2732, %v1754
      %v2767 = vsel %vm2757, %v2734, %v1756
      %v2769 = vsel %vm2757, %v2736, %v1758
      %v2771 = vsel %vm2757, %v2738, %v1760
      %v2773 = vsel %vm2757, %v2740, %v1762
      %v2775 = vsel %vm2757, %v2742, %v1764
      %v2777 = vsel %vm2757, %v2744, %v1766
      %v2779 = vsel %vm2757, %v2746, %v1768
      %v2781 = vsel %vm2757, %v2748, %v1770
      %v2783 = vsel %vm2757, %v2750, %v1772
      %v2785 = vsel %vm2757, %v2752, %v1774
      %v2787 = vsel %vm2757, %v2754, %v1776
      %v2789 = vsel %vm2757, %v2756, %v1778
      %vm2790 = vcmask 130048
      %v2792 = vsel %vm2790, %v2759, %v2020
      %v2794 = vsel %vm2790, %v2761, %v2022
      %v2796 = vsel %vm2790, %v2763, %v2024
      %v2798 = vsel %vm2790, %v2765, %v2026
      %v2800 = vsel %vm2790, %v2767, %v2028
      %v2802 = vsel %vm2790, %v2769, %v2030
      %v2804 = vsel %vm2790, %v2771, %v2032
      %v2806 = vsel %vm2790, %v2773, %v2034
      %v2808 = vsel %vm2790, %v2775, %v2036
      %v2810 = vsel %vm2790, %v2777, %v2038
      %v2812 = vsel %vm2790, %v2779, %v2040
      %v2814 = vsel %vm2790, %v2781, %v2042
      %v2816 = vsel %vm2790, %v2783, %v2044
      %v2818 = vsel %vm2790, %v2785, %v2046
      %v2820 = vsel %vm2790, %v2787, %v2048
      %v2822 = vsel %vm2790, %v2789, %v2050
      %vm2823 = vcmask 162816
      %v2825 = vsel %vm2823, %v2792, %v2148
      %v2827 = vsel %vm2823, %v2794, %v2150
      %v2829 = vsel %vm2823, %v2796, %v2152
      %v2831 = vsel %vm2823, %v2798, %v2154
      %v2833 = vsel %vm2823, %v2800, %v2156
      %v2835 = vsel %vm2823, %v2802, %v2158
      %v2837 = vsel %vm2823, %v2804, %v2160
      %v2839 = vsel %vm2823, %v2806, %v2162
      %v2841 = vsel %vm2823, %v2808, %v2164
      %v2843 = vsel %vm2823, %v2810, %v2166
      %v2845 = vsel %vm2823, %v2812, %v2168
      %v2847 = vsel %vm2823, %v2814, %v2170
      %v2849 = vsel %vm2823, %v2816, %v2172
      %v2851 = vsel %vm2823, %v2818, %v2174
      %v2853 = vsel %vm2823, %v2820, %v2176
      %v2855 = vsel %vm2823, %v2822, %v2178
      %vm2856 = vcmask 195584
      %v2858 = vsel %vm2856, %v2825, %v2260
      %v2860 = vsel %vm2856, %v2827, %v2262
      %v2862 = vsel %vm2856, %v2829, %v2264
      %v2864 = vsel %vm2856, %v2831, %v2266
      %v2866 = vsel %vm2856, %v2833, %v2268
      %v2868 = vsel %vm2856, %v2835, %v2270
      %v2870 = vsel %vm2856, %v2837, %v2272
      %v2872 = vsel %vm2856, %v2839, %v2274
      %v2874 = vsel %vm2856, %v2841, %v2276
      %v2876 = vsel %vm2856, %v2843, %v2278
      %v2878 = vsel %vm2856, %v2845, %v2280
      %v2880 = vsel %vm2856, %v2847, %v2282
      %v2882 = vsel %vm2856, %v2849, %v2284
      %v2884 = vsel %vm2856, %v2851, %v2286
      %v2886 = vsel %vm2856, %v2853, %v2288
      %v2888 = vsel %vm2856, %v2855, %v2290
      %vm2889 = vcmask 228352
      %v2891 = vsel %vm2889, %v2858, %v2532
      %v2893 = vsel %vm2889, %v2860, %v2534
      %v2895 = vsel %vm2889, %v2862, %v2536
      %v2897 = vsel %vm2889, %v2864, %v2538
      %v2899 = vsel %vm2889, %v2866, %v2540
      %v2901 = vsel %vm2889, %v2868, %v2542
      %v2903 = vsel %vm2889, %v2870, %v2544
      %v2905 = vsel %vm2889, %v2872, %v2546
      %v2907 = vsel %vm2889, %v2874, %v2548
      %v2909 = vsel %vm2889, %v2876, %v2550
      %v2911 = vsel %vm2889, %v2878, %v2552
      %v2913 = vsel %vm2889, %v2880, %v2554
      %v2915 = vsel %vm2889, %v2882, %v2556
      %v2917 = vsel %vm2889, %v2884, %v2558
      %v2919 = vsel %vm2889, %v2886, %v2560
      %v2921 = vsel %vm2889, %v2888, %v2562
      %vm2922 = vcmask 261120
      %v2924 = vsel %vm2922, %v2891, %v2660
      %v2926 = vsel %vm2922, %v2893, %v2662
      %v2928 = vsel %vm2922, %v2895, %v2664
      %v2930 = vsel %vm2922, %v2897, %v2666
      %v2932 = vsel %vm2922, %v2899, %v2668
      %v2934 = vsel %vm2922, %v2901, %v2670
      %v2936 = vsel %vm2922, %v2903, %v2672
      %v2938 = vsel %vm2922, %v2905, %v2674
      %v2940 = vsel %vm2922, %v2907, %v2676
      %v2942 = vsel %vm2922, %v2909, %v2678
      %v2944 = vsel %vm2922, %v2911, %v2680
      %v2946 = vsel %vm2922, %v2913, %v2682
      %v2948 = vsel %vm2922, %v2915, %v2684
      %v2950 = vsel %vm2922, %v2917, %v2686
      %v2952 = vsel %vm2922, %v2919, %v2688
      %v2954 = vsel %vm2922, %v2921, %v2690
      %v2955 = vld [vmem:[%s1] sm:$0xf]
      %v2956 = vld [vmem:[%s1 + $0x4] sm:$0xf]
      %v2957 = vld [vmem:[%s1 + $0x8] sm:$0xf]
      %v2958 = vld [vmem:[%s1 + $0xc] sm:$0xf]
      %v2959 = vld [vmem:[%s1 + $0x10] sm:$0x3]
      %v2965 = vunpack.c.l.b16 %v2955
      %v2966 = vunpack.c.l.b16 %v2956
      %v2967 = vunpack.c.l.b16 %v2957
      %v2968 = vunpack.c.l.b16 %v2958
      %v2969 = vunpack.c.l.b16 %v2959
      %v2970 = vpack.c.b16 %v2966, %v2965
      %v2971 = vpack.c.b16 %v2968, %v2967
      %v2972 = vpack.c.b16 %v2969, %v2969
      %vm2975 = vcmask 293888
      %v2976 = vsel %vm2975, %v2924, 0
      %v2978 = vsel %vm2975, %v2926, 0
      %v2980 = vsel %vm2975, %v2928, 0
      %v2982 = vsel %vm2975, %v2930, 0
      %v2984 = vsel %vm2975, %v2932, 0
      %v2986 = vsel %vm2975, %v2934, 0
      %v2988 = vsel %vm2975, %v2936, 0
      %v2990 = vsel %vm2975, %v2938, 0
      %v2992 = vsel %vm2975, %v2940, 0
      %v2994 = vsel %vm2975, %v2942, 0
      %v2996 = vsel %vm2975, %v2944, 0
      %v2998 = vsel %vm2975, %v2946, 0
      %v3000 = vsel %vm2975, %v2948, 0
      %v3002 = vsel %vm2975, %v2950, 0
      %v3004 = vsel %vm2975, %v2952, 0
      %v3006 = vsel %vm2975, %v2954, 0
      %vm3008 = vcmask 1041408
      %v3010 = vsel %vm3008, %v2972, 0
      %3012 = vmatpush.bf16.msra.mxu0 0
      %3013 = vmatpush.bf16.msra.mxu0 0
      %3014 = vmatpush.bf16.msra.mxu0 0
      %3015 = vmatpush.bf16.msra.mxu0 0
      %3016 = vmatpush.bf16.msra.mxu0 0
      %3017 = vmatpush.bf16.msra.mxu0 %v3010
      %3018 = vmatpush.bf16.msra.mxu0 %v2971
      %3019 = vmatpush.bf16.msra.mxu0 %v2970
      %3020 = vmatmul.bf16.gmra.mxu0 %v2976
      %v3021 = vpop.f32.mrf.mxu0
      %v3022 = vadd.f32 0.0, %v3021
      %v3023 = vpop.f32.mrf.mxu0
      %v3024 = vadd.f32 0.0, %v3023
      %3025 = vmatmul.bf16.gmra.mxu0 %v2978
      %v3026 = vpop.f32.mrf.mxu0
      %v3027 = vadd.f32 0.0, %v3026
      %v3028 = vpop.f32.mrf.mxu0
      %v3029 = vadd.f32 0.0, %v3028
      %3030 = vmatmul.bf16.gmra.mxu0 %v2980
      %v3031 = vpop.f32.mrf.mxu0
      %v3032 = vadd.f32 0.0, %v3031
      %v3033 = vpop.f32.mrf.mxu0
      %v3034 = vadd.f32 0.0, %v3033
      %3035 = vmatmul.bf16.gmra.mxu0 %v2982
      %v3036 = vpop.f32.mrf.mxu0
      %v3037 = vadd.f32 0.0, %v3036
      %v3038 = vpop.f32.mrf.mxu0
      %v3039 = vadd.f32 0.0, %v3038
      %3040 = vmatmul.bf16.gmra.mxu0 %v2984
      %v3041 = vpop.f32.mrf.mxu0
      %v3042 = vadd.f32 0.0, %v3041
      %v3043 = vpop.f32.mrf.mxu0
      %v3044 = vadd.f32 0.0, %v3043
      %3045 = vmatmul.bf16.gmra.mxu0 %v2986
      %v3046 = vpop.f32.mrf.mxu0
      %v3047 = vadd.f32 0.0, %v3046
      %v3048 = vpop.f32.mrf.mxu0
      %v3049 = vadd.f32 0.0, %v3048
      %3050 = vmatmul.bf16.gmra.mxu0 %v2988
      %v3051 = vpop.f32.mrf.mxu0
      %v3052 = vadd.f32 0.0, %v3051
      %v3053 = vpop.f32.mrf.mxu0
      %v3054 = vadd.f32 0.0, %v3053
      %3055 = vmatmul.bf16.gmra.mxu0 %v2990
      %v3056 = vpop.f32.mrf.mxu0
      %v3057 = vadd.f32 0.0, %v3056
      %v3058 = vpop.f32.mrf.mxu0
      %v3059 = vadd.f32 0.0, %v3058
      %3060 = vmatmul.bf16.gmra.mxu0 %v2992
      %v3061 = vpop.f32.mrf.mxu0
      %v3062 = vadd.f32 0.0, %v3061
      %v3063 = vpop.f32.mrf.mxu0
      %v3064 = vadd.f32 0.0, %v3063
      %3065 = vmatmul.bf16.gmra.mxu0 %v2994
      %v3066 = vpop.f32.mrf.mxu0
      %v3067 = vadd.f32 0.0, %v3066
      %v3068 = vpop.f32.mrf.mxu0
      %v3069 = vadd.f32 0.0, %v3068
      %3070 = vmatmul.bf16.gmra.mxu0 %v2996
      %v3071 = vpop.f32.mrf.mxu0
      %v3072 = vadd.f32 0.0, %v3071
      %v3073 = vpop.f32.mrf.mxu0
      %v3074 = vadd.f32 0.0, %v3073
      %3075 = vmatmul.bf16.gmra.mxu0 %v2998
      %v3076 = vpop.f32.mrf.mxu0
      %v3077 = vadd.f32 0.0, %v3076
      %v3078 = vpop.f32.mrf.mxu0
      %v3079 = vadd.f32 0.0, %v3078
      %3080 = vmatmul.bf16.gmra.mxu0 %v3000
      %v3081 = vpop.f32.mrf.mxu0
      %v3082 = vadd.f32 0.0, %v3081
      %v3083 = vpop.f32.mrf.mxu0
      %v3084 = vadd.f32 0.0, %v3083
      %3085 = vmatmul.bf16.gmra.mxu0 %v3002
      %v3086 = vpop.f32.mrf.mxu0
      %v3087 = vadd.f32 0.0, %v3086
      %v3088 = vpop.f32.mrf.mxu0
      %v3089 = vadd.f32 0.0, %v3088
      %3090 = vmatmul.bf16.gmra.mxu0 %v3004
      %v3091 = vpop.f32.mrf.mxu0
      %v3092 = vadd.f32 0.0, %v3091
      %v3093 = vpop.f32.mrf.mxu0
      %v3094 = vadd.f32 0.0, %v3093
      %3095 = vmatmul.bf16.gmra.mxu0 %v3006
      %v3096 = vpop.f32.mrf.mxu0
      %v3097 = vadd.f32 0.0, %v3096
      %v3098 = vpop.f32.mrf.mxu0
      %v3099 = vadd.f32 0.0, %v3098
      %3100 = vdwg.mxu0
      %3101 = vst.msk [vmem:[#allocation3] sm:$0xff] %vm2724, %v3022
      %3102 = vst.msk [vmem:[#allocation3 + $0x8] sm:$0xff] %vm2724, %v3024
      %3103 = vst.msk [vmem:[#allocation3 + $0x10] sm:$0xff] %vm2724, %v3027
      %3104 = vst.msk [vmem:[#allocation3 + $0x18] sm:$0xff] %vm2724, %v3029
      %3105 = vst.msk [vmem:[#allocation3 + $0x20] sm:$0xff] %vm2724, %v3032
      %3106 = vst.msk [vmem:[#allocation3 + $0x28] sm:$0xff] %vm2724, %v3034
      %3107 = vst.msk [vmem:[#allocation3 + $0x30] sm:$0xff] %vm2724, %v3037
      %3108 = vst.msk [vmem:[#allocation3 + $0x38] sm:$0xff] %vm2724, %v3039
      %3109 = vst.msk [vmem:[#allocation3 + $0x40] sm:$0xff] %vm2724, %v3042
      %3110 = vst.msk [vmem:[#allocation3 + $0x48] sm:$0xff] %vm2724, %v3044
      %3111 = vst.msk [vmem:[#allocation3 + $0x50] sm:$0xff] %vm2724, %v3047
      %3112 = vst.msk [vmem:[#allocation3 + $0x58] sm:$0xff] %vm2724, %v3049
      %3113 = vst.msk [vmem:[#allocation3 + $0x60] sm:$0xff] %vm2724, %v3052
      %3114 = vst.msk [vmem:[#allocation3 + $0x68] sm:$0xff] %vm2724, %v3054
      %3115 = vst.msk [vmem:[#allocation3 + $0x70] sm:$0xff] %vm2724, %v3057
      %3116 = vst.msk [vmem:[#allocation3 + $0x78] sm:$0xff] %vm2724, %v3059
      %3117 = vst.msk [vmem:[#allocation3 + $0x80] sm:$0xff] %vm2724, %v3062
      %3118 = vst.msk [vmem:[#allocation3 + $0x88] sm:$0xff] %vm2724, %v3064
      %3119 = vst.msk [vmem:[#allocation3 + $0x90] sm:$0xff] %vm2724, %v3067
      %3120 = vst.msk [vmem:[#allocation3 + $0x98] sm:$0xff] %vm2724, %v3069
      %3121 = vst.msk [vmem:[#allocation3 + $0xa0] sm:$0xff] %vm2724, %v3072
      %3122 = vst.msk [vmem:[#allocation3 + $0xa8] sm:$0xff] %vm2724, %v3074
      %3123 = vst.msk [vmem:[#allocation3 + $0xb0] sm:$0xff] %vm2724, %v3077
      %3124 = vst.msk [vmem:[#allocation3 + $0xb8] sm:$0xff] %vm2724, %v3079
      %3125 = vst.msk [vmem:[#allocation3 + $0xc0] sm:$0xff] %vm2724, %v3082
      %3126 = vst.msk [vmem:[#allocation3 + $0xc8] sm:$0xff] %vm2724, %v3084
      %3127 = vst.msk [vmem:[#allocation3 + $0xd0] sm:$0xff] %vm2724, %v3087
      %3128 = vst.msk [vmem:[#allocation3 + $0xd8] sm:$0xff] %vm2724, %v3089
      %3129 = vst.msk [vmem:[#allocation3 + $0xe0] sm:$0xff] %vm2724, %v3092
      %3130 = vst.msk [vmem:[#allocation3 + $0xe8] sm:$0xff] %vm2724, %v3094
      %3131 = vst.msk [vmem:[#allocation3 + $0xf0] sm:$0xff] %vm2724, %v3097
      %3132 = vst.msk [vmem:[#allocation3 + $0xf8] sm:$0xff] %vm2724, %v3099
      %v3133 = vld [vmem:[#allocation5] sm:$0x1]
      %v3134 = vsel %vm2724, %v3022, 0.0
      %v3135 = vsel %vm2724, %v3024, 0.0
      %v3136 = vadd.f32 %v3134, %v3135
      %v3137 = vsel %vm2724, %v3027, 0.0
      %v3138 = vadd.f32 %v3136, %v3137
      %v3139 = vsel %vm2724, %v3029, 0.0
      %v3140 = vadd.f32 %v3138, %v3139
      %v3141 = vsel %vm2724, %v3032, 0.0
      %v3142 = vadd.f32 %v3140, %v3141
      %v3143 = vsel %vm2724, %v3034, 0.0
      %v3144 = vadd.f32 %v3142, %v3143
      %v3145 = vsel %vm2724, %v3037, 0.0
      %v3146 = vadd.f32 %v3144, %v3145
      %v3147 = vsel %vm2724, %v3039, 0.0
      %v3148 = vadd.f32 %v3146, %v3147
      %v3149 = vsel %vm2724, %v3042, 0.0
      %v3150 = vadd.f32 %v3148, %v3149
      %v3151 = vsel %vm2724, %v3044, 0.0
      %v3152 = vadd.f32 %v3150, %v3151
      %v3153 = vsel %vm2724, %v3047, 0.0
      %v3154 = vadd.f32 %v3152, %v3153
      %v3155 = vsel %vm2724, %v3049, 0.0
      %v3156 = vadd.f32 %v3154, %v3155
      %v3157 = vsel %vm2724, %v3052, 0.0
      %v3158 = vadd.f32 %v3156, %v3157
      %v3159 = vsel %vm2724, %v3054, 0.0
      %v3160 = vadd.f32 %v3158, %v3159
      %v3161 = vsel %vm2724, %v3057, 0.0
      %v3162 = vadd.f32 %v3160, %v3161
      %v3163 = vsel %vm2724, %v3059, 0.0
      %v3164 = vadd.f32 %v3162, %v3163
      %v3165 = vsel %vm2724, %v3062, 0.0
      %v3166 = vadd.f32 %v3164, %v3165
      %v3167 = vsel %vm2724, %v3064, 0.0
      %v3168 = vadd.f32 %v3166, %v3167
      %v3169 = vsel %vm2724, %v3067, 0.0
      %v3170 = vadd.f32 %v3168, %v3169
      %v3171 = vsel %vm2724, %v3069, 0.0
      %v3172 = vadd.f32 %v3170, %v3171
      %v3173 = vsel %vm2724, %v3072, 0.0
      %v3174 = vadd.f32 %v3172, %v3173
      %v3175 = vsel %vm2724, %v3074, 0.0
      %v3176 = vadd.f32 %v3174, %v3175
      %v3177 = vsel %vm2724, %v3077, 0.0
      %v3178 = vadd.f32 %v3176, %v3177
      %v3179 = vsel %vm2724, %v3079, 0.0
      %v3180 = vadd.f32 %v3178, %v3179
      %v3181 = vsel %vm2724, %v3082, 0.0
      %v3182 = vadd.f32 %v3180, %v3181
      %v3183 = vsel %vm2724, %v3084, 0.0
      %v3184 = vadd.f32 %v3182, %v3183
      %v3185 = vsel %vm2724, %v3087, 0.0
      %v3186 = vadd.f32 %v3184, %v3185
      %v3187 = vsel %vm2724, %v3089, 0.0
      %v3188 = vadd.f32 %v3186, %v3187
      %v3189 = vsel %vm2724, %v3092, 0.0
      %v3190 = vadd.f32 %v3188, %v3189
      %v3191 = vsel %vm2724, %v3094, 0.0
      %v3192 = vadd.f32 %v3190, %v3191
      %v3193 = vsel %vm2724, %v3097, 0.0
      %v3194 = vadd.f32 %v3192, %v3193
      %v3195 = vsel %vm2724, %v3099, 0.0
      %v3196 = vadd.f32 %v3194, %v3195
      %v3197 = vrot.slane %v3196, 4
      %v3198 = vadd.f32 %v3196, %v3197
      %v3199 = vrot.slane %v3198, 2
      %v3200 = vadd.f32 %v3198, %v3199
      %v3201 = vrot.slane %v3200, 1
      %v3202 = vadd.f32 %v3200, %v3201
      %v3203 = vadd.f32 %v3133, %v3202
      %3204 = vst.msk [vmem:[#allocation5] sm:$0x1] %vm990, %v3203
      %v3205 = vld [vmem:[#allocation6] sm:$0x1]
      %v3206 = vmul.f32 %v3022, %v3022
      %v3207 = vmul.f32 %v3024, %v3024
      %v3208 = vmul.f32 %v3027, %v3027
      %v3209 = vmul.f32 %v3029, %v3029
      %v3210 = vmul.f32 %v3032, %v3032
      %v3211 = vmul.f32 %v3034, %v3034
      %v3212 = vmul.f32 %v3037, %v3037
      %v3213 = vmul.f32 %v3039, %v3039
      %v3214 = vmul.f32 %v3042, %v3042
      %v3215 = vmul.f32 %v3044, %v3044
      %v3216 = vmul.f32 %v3047, %v3047
      %v3217 = vmul.f32 %v3049, %v3049
      %v3218 = vmul.f32 %v3052, %v3052
      %v3219 = vmul.f32 %v3054, %v3054
      %v3220 = vmul.f32 %v3057, %v3057
      %v3221 = vmul.f32 %v3059, %v3059
      %v3222 = vmul.f32 %v3062, %v3062
      %v3223 = vmul.f32 %v3064, %v3064
      %v3224 = vmul.f32 %v3067, %v3067
      %v3225 = vmul.f32 %v3069, %v3069
      %v3226 = vmul.f32 %v3072, %v3072
      %v3227 = vmul.f32 %v3074, %v3074
      %v3228 = vmul.f32 %v3077, %v3077
      %v3229 = vmul.f32 %v3079, %v3079
      %v3230 = vmul.f32 %v3082, %v3082
      %v3231 = vmul.f32 %v3084, %v3084
      %v3232 = vmul.f32 %v3087, %v3087
      %v3233 = vmul.f32 %v3089, %v3089
      %v3234 = vmul.f32 %v3092, %v3092
      %v3235 = vmul.f32 %v3094, %v3094
      %v3236 = vmul.f32 %v3097, %v3097
      %v3237 = vmul.f32 %v3099, %v3099
      %v3238 = vsel %vm2724, %v3206, 0.0
      %v3239 = vsel %vm2724, %v3207, 0.0
      %v3240 = vadd.f32 %v3238, %v3239
      %v3241 = vsel %vm2724, %v3208, 0.0
      %v3242 = vadd.f32 %v3240, %v3241
      %v3243 = vsel %vm2724, %v3209, 0.0
      %v3244 = vadd.f32 %v3242, %v3243
      %v3245 = vsel %vm2724, %v3210, 0.0
      %v3246 = vadd.f32 %v3244, %v3245
      %v3247 = vsel %vm2724, %v3211, 0.0
      %v3248 = vadd.f32 %v3246, %v3247
      %v3249 = vsel %vm2724, %v3212, 0.0
      %v3250 = vadd.f32 %v3248, %v3249
      %v3251 = vsel %vm2724, %v3213, 0.0
      %v3252 = vadd.f32 %v3250, %v3251
      %v3253 = vsel %vm2724, %v3214, 0.0
      %v3254 = vadd.f32 %v3252, %v3253
      %v3255 = vsel %vm2724, %v3215, 0.0
      %v3256 = vadd.f32 %v3254, %v3255
      %v3257 = vsel %vm2724, %v3216, 0.0
      %v3258 = vadd.f32 %v3256, %v3257
      %v3259 = vsel %vm2724, %v3217, 0.0
      %v3260 = vadd.f32 %v3258, %v3259
      %v3261 = vsel %vm2724, %v3218, 0.0
      %v3262 = vadd.f32 %v3260, %v3261
      %v3263 = vsel %vm2724, %v3219, 0.0
      %v3264 = vadd.f32 %v3262, %v3263
      %v3265 = vsel %vm2724, %v3220, 0.0
      %v3266 = vadd.f32 %v3264, %v3265
      %v3267 = vsel %vm2724, %v3221, 0.0
      %v3268 = vadd.f32 %v3266, %v3267
      %v3269 = vsel %vm2724, %v3222, 0.0
      %v3270 = vadd.f32 %v3268, %v3269
      %v3271 = vsel %vm2724, %v3223, 0.0
      %v3272 = vadd.f32 %v3270, %v3271
      %v3273 = vsel %vm2724, %v3224, 0.0
      %v3274 = vadd.f32 %v3272, %v3273
      %v3275 = vsel %vm2724, %v3225, 0.0
      %v3276 = vadd.f32 %v3274, %v3275
      %v3277 = vsel %vm2724, %v3226, 0.0
      %v3278 = vadd.f32 %v3276, %v3277
      %v3279 = vsel %vm2724, %v3227, 0.0
      %v3280 = vadd.f32 %v3278, %v3279
      %v3281 = vsel %vm2724, %v3228, 0.0
      %v3282 = vadd.f32 %v3280, %v3281
      %v3283 = vsel %vm2724, %v3229, 0.0
      %v3284 = vadd.f32 %v3282, %v3283
      %v3285 = vsel %vm2724, %v3230, 0.0
      %v3286 = vadd.f32 %v3284, %v3285
      %v3287 = vsel %vm2724, %v3231, 0.0
      %v3288 = vadd.f32 %v3286, %v3287
      %v3289 = vsel %vm2724, %v3232, 0.0
      %v3290 = vadd.f32 %v3288, %v3289
      %v3291 = vsel %vm2724, %v3233, 0.0
      %v3292 = vadd.f32 %v3290, %v3291
      %v3293 = vsel %vm2724, %v3234, 0.0
      %v3294 = vadd.f32 %v3292, %v3293
      %v3295 = vsel %vm2724, %v3235, 0.0
      %v3296 = vadd.f32 %v3294, %v3295
      %v3297 = vsel %vm2724, %v3236, 0.0
      %v3298 = vadd.f32 %v3296, %v3297
      %v3299 = vsel %vm2724, %v3237, 0.0
      %v3300 = vadd.f32 %v3298, %v3299
      %v3301 = vrot.slane %v3300, 4
      %v3302 = vadd.f32 %v3300, %v3301
      %v3303 = vrot.slane %v3302, 2
      %v3304 = vadd.f32 %v3302, %v3303
      %v3305 = vrot.slane %v3304, 1
      %v3306 = vadd.f32 %v3304, %v3305
      %v3307 = vadd.f32 %v3205, %v3306
      %3308 = vst.msk [vmem:[#allocation6] sm:$0x1] %vm990, %v3307
      %v3309 = vld [vmem:[#allocation5] sm:$0x1]
      %v3310 = vmul.f32 %v3309, 0.00390625
      %v3311 = vld [vmem:[#allocation6] sm:$0x1]
      %v3312 = vmul.f32 %v3311, 0.00390625
      %v3313 = vmul.f32 %v3310, %v3310
      %v3314 = vsub.f32 %v3312, %v3313
      %v3315 = vadd.f32 %v3314, 1e-05
      %v3316 = vrsqrt.pop %v3315
      %v3317 = vmul.f32 %v3316, %v3315
      %v3318 = vmul.f32 %v3317, %v3316
      %v3319 = vmul.f32 0.5, %v3318
      %v3320 = vsub.f32 1.5, %v3319
      %v3321 = vmul.f32 %v3316, %v3320
      %vm3322 = vweird.f32 %v3315
      %vm3323 = vweird.f32 %v3316
      %vm3324 = vmor %vm3322, %vm3323
      %v3325 = vsel %vm3324, %v3316, %v3321
      %v3326 = vld [vmem:[#allocation3] sm:$0xff]
      %v3327 = vld [vmem:[#allocation3 + $0x8] sm:$0xff]
      %v3328 = vld [vmem:[#allocation3 + $0x10] sm:$0xff]
      %v3329 = vld [vmem:[#allocation3 + $0x18] sm:$0xff]
      %v3330 = vld [vmem:[#allocation3 + $0x20] sm:$0xff]
      %v3331 = vld [vmem:[#allocation3 + $0x28] sm:$0xff]
      %v3332 = vld [vmem:[#allocation3 + $0x30] sm:$0xff]
      %v3333 = vld [vmem:[#allocation3 + $0x38] sm:$0xff]
      %v3334 = vld [vmem:[#allocation3 + $0x40] sm:$0xff]
      %v3335 = vld [vmem:[#allocation3 + $0x48] sm:$0xff]
      %v3336 = vld [vmem:[#allocation3 + $0x50] sm:$0xff]
      %v3337 = vld [vmem:[#allocation3 + $0x58] sm:$0xff]
      %v3338 = vld [vmem:[#allocation3 + $0x60] sm:$0xff]
      %v3339 = vld [vmem:[#allocation3 + $0x68] sm:$0xff]
      %v3340 = vld [vmem:[#allocation3 + $0x70] sm:$0xff]
      %v3341 = vld [vmem:[#allocation3 + $0x78] sm:$0xff]
      %v3342 = vld [vmem:[#allocation3 + $0x80] sm:$0xff]
      %v3343 = vld [vmem:[#allocation3 + $0x88] sm:$0xff]
      %v3344 = vld [vmem:[#allocation3 + $0x90] sm:$0xff]
      %v3345 = vld [vmem:[#allocation3 + $0x98] sm:$0xff]
      %v3346 = vld [vmem:[#allocation3 + $0xa0] sm:$0xff]
      %v3347 = vld [vmem:[#allocation3 + $0xa8] sm:$0xff]
      %v3348 = vld [vmem:[#allocation3 + $0xb0] sm:$0xff]
      %v3349 = vld [vmem:[#allocation3 + $0xb8] sm:$0xff]
      %v3350 = vld [vmem:[#allocation3 + $0xc0] sm:$0xff]
      %v3351 = vld [vmem:[#allocation3 + $0xc8] sm:$0xff]
      %v3352 = vld [vmem:[#allocation3 + $0xd0] sm:$0xff]
      %v3353 = vld [vmem:[#allocation3 + $0xd8] sm:$0xff]
      %v3354 = vld [vmem:[#allocation3 + $0xe0] sm:$0xff]
      %v3355 = vld [vmem:[#allocation3 + $0xe8] sm:$0xff]
      %v3356 = vld [vmem:[#allocation3 + $0xf0] sm:$0xff]
      %v3357 = vld [vmem:[#allocation3 + $0xf8] sm:$0xff]
      %v3359 = vperm.slane %v3310, 0
      %v3361 = vsub.f32 %v3326, %v3359
      %v3362 = vsub.f32 %v3327, %v3359
      %v3363 = vsub.f32 %v3328, %v3359
      %v3364 = vsub.f32 %v3329, %v3359
      %v3365 = vsub.f32 %v3330, %v3359
      %v3366 = vsub.f32 %v3331, %v3359
      %v3367 = vsub.f32 %v3332, %v3359
      %v3368 = vsub.f32 %v3333, %v3359
      %v3369 = vsub.f32 %v3334, %v3359
      %v3370 = vsub.f32 %v3335, %v3359
      %v3371 = vsub.f32 %v3336, %v3359
      %v3372 = vsub.f32 %v3337, %v3359
      %v3373 = vsub.f32 %v3338, %v3359
      %v3374 = vsub.f32 %v3339, %v3359
      %v3375 = vsub.f32 %v3340, %v3359
      %v3376 = vsub.f32 %v3341, %v3359
      %v3377 = vsub.f32 %v3342, %v3359
      %v3378 = vsub.f32 %v3343, %v3359
      %v3379 = vsub.f32 %v3344, %v3359
      %v3380 = vsub.f32 %v3345, %v3359
      %v3381 = vsub.f32 %v3346, %v3359
      %v3382 = vsub.f32 %v3347, %v3359
      %v3383 = vsub.f32 %v3348, %v3359
      %v3384 = vsub.f32 %v3349, %v3359
      %v3385 = vsub.f32 %v3350, %v3359
      %v3386 = vsub.f32 %v3351, %v3359
      %v3387 = vsub.f32 %v3352, %v3359
      %v3388 = vsub.f32 %v3353, %v3359
      %v3389 = vsub.f32 %v3354, %v3359
      %v3390 = vsub.f32 %v3355, %v3359
      %v3391 = vsub.f32 %v3356, %v3359
      %v3392 = vsub.f32 %v3357, %v3359
      %v3394 = vperm.slane %v3325, 0
      %v3396 = vmul.f32 %v3361, %v3394
      %v3397 = vmul.f32 %v3362, %v3394
      %v3398 = vmul.f32 %v3363, %v3394
      %v3399 = vmul.f32 %v3364, %v3394
      %v3400 = vmul.f32 %v3365, %v3394
      %v3401 = vmul.f32 %v3366, %v3394
      %v3402 = vmul.f32 %v3367, %v3394
      %v3403 = vmul.f32 %v3368, %v3394
      %v3404 = vmul.f32 %v3369, %v3394
      %v3405 = vmul.f32 %v3370, %v3394
      %v3406 = vmul.f32 %v3371, %v3394
      %v3407 = vmul.f32 %v3372, %v3394
      %v3408 = vmul.f32 %v3373, %v3394
      %v3409 = vmul.f32 %v3374, %v3394
      %v3410 = vmul.f32 %v3375, %v3394
      %v3411 = vmul.f32 %v3376, %v3394
      %v3412 = vmul.f32 %v3377, %v3394
      %v3413 = vmul.f32 %v3378, %v3394
      %v3414 = vmul.f32 %v3379, %v3394
      %v3415 = vmul.f32 %v3380, %v3394
      %v3416 = vmul.f32 %v3381, %v3394
      %v3417 = vmul.f32 %v3382, %v3394
      %v3418 = vmul.f32 %v3383, %v3394
      %v3419 = vmul.f32 %v3384, %v3394
      %v3420 = vmul.f32 %v3385, %v3394
      %v3421 = vmul.f32 %v3386, %v3394
      %v3422 = vmul.f32 %v3387, %v3394
      %v3423 = vmul.f32 %v3388, %v3394
      %v3424 = vmul.f32 %v3389, %v3394
      %v3425 = vmul.f32 %v3390, %v3394
      %v3426 = vmul.f32 %v3391, %v3394
      %v3427 = vmul.f32 %v3392, %v3394
      %v3428 = vpack.c.bf16 %v3396, %v3396
      %v3429 = vpack.c.bf16 %v3397, %v3397
      %v3430 = vpack.c.bf16 %v3398, %v3398
      %v3431 = vpack.c.bf16 %v3399, %v3399
      %v3432 = vpack.c.bf16 %v3400, %v3400
      %v3433 = vpack.c.bf16 %v3401, %v3401
      %v3434 = vpack.c.bf16 %v3402, %v3402
      %v3435 = vpack.c.bf16 %v3403, %v3403
      %v3436 = vpack.c.bf16 %v3404, %v3404
      %v3437 = vpack.c.bf16 %v3405, %v3405
      %v3438 = vpack.c.bf16 %v3406, %v3406
      %v3439 = vpack.c.bf16 %v3407, %v3407
      %v3440 = vpack.c.bf16 %v3408, %v3408
      %v3441 = vpack.c.bf16 %v3409, %v3409
      %v3442 = vpack.c.bf16 %v3410, %v3410
      %v3443 = vpack.c.bf16 %v3411, %v3411
      %v3444 = vpack.c.bf16 %v3412, %v3412
      %v3445 = vpack.c.bf16 %v3413, %v3413
      %v3446 = vpack.c.bf16 %v3414, %v3414
      %v3447 = vpack.c.bf16 %v3415, %v3415
      %v3448 = vpack.c.bf16 %v3416, %v3416
      %v3449 = vpack.c.bf16 %v3417, %v3417
      %v3450 = vpack.c.bf16 %v3418, %v3418
      %v3451 = vpack.c.bf16 %v3419, %v3419
      %v3452 = vpack.c.bf16 %v3420, %v3420
      %v3453 = vpack.c.bf16 %v3421, %v3421
      %v3454 = vpack.c.bf16 %v3422, %v3422
      %v3455 = vpack.c.bf16 %v3423, %v3423
      %v3456 = vpack.c.bf16 %v3424, %v3424
      %v3457 = vpack.c.bf16 %v3425, %v3425
      %v3458 = vpack.c.bf16 %v3426, %v3426
      %v3459 = vpack.c.bf16 %v3427, %v3427
      %3460 = vst.msk [vmem:[#allocation4] sm:$0xf] %vm682, %v3428
      %3461 = vst.msk [vmem:[#allocation4 + $0x4] sm:$0xf] %vm682, %v3429
      %3462 = vst.msk [vmem:[#allocation4 + $0x8] sm:$0xf] %vm682, %v3430
      %3463 = vst.msk [vmem:[#allocation4 + $0xc] sm:$0xf] %vm682, %v3431
      %3464 = vst.msk [vmem:[#allocation4 + $0x10] sm:$0xf] %vm682, %v3432
      %3465 = vst.msk [vmem:[#allocation4 + $0x14] sm:$0xf] %vm682, %v3433
      %3466 = vst.msk [vmem:[#allocation4 + $0x18] sm:$0xf] %vm682, %v3434
      %3467 = vst.msk [vmem:[#allocation4 + $0x1c] sm:$0xf] %vm682, %v3435
      %3468 = vst.msk [vmem:[#allocation4 + $0x20] sm:$0xf] %vm682, %v3436
      %3469 = vst.msk [vmem:[#allocation4 + $0x24] sm:$0xf] %vm682, %v3437
      %3470 = vst.msk [vmem:[#allocation4 + $0x28] sm:$0xf] %vm682, %v3438
      %3471 = vst.msk [vmem:[#allocation4 + $0x2c] sm:$0xf] %vm682, %v3439
      %3472 = vst.msk [vmem:[#allocation4 + $0x30] sm:$0xf] %vm682, %v3440
      %3473 = vst.msk [vmem:[#allocation4 + $0x34] sm:$0xf] %vm682, %v3441
      %3474 = vst.msk [vmem:[#allocation4 + $0x38] sm:$0xf] %vm682, %v3442
      %3475 = vst.msk [vmem:[#allocation4 + $0x3c] sm:$0xf] %vm682, %v3443
      %3476 = vst.msk [vmem:[#allocation4 + $0x40] sm:$0xf] %vm682, %v3444
      %3477 = vst.msk [vmem:[#allocation4 + $0x44] sm:$0xf] %vm682, %v3445
      %3478 = vst.msk [vmem:[#allocation4 + $0x48] sm:$0xf] %vm682, %v3446
      %3479 = vst.msk [vmem:[#allocation4 + $0x4c] sm:$0xf] %vm682, %v3447
      %3480 = vst.msk [vmem:[#allocation4 + $0x50] sm:$0xf] %vm682, %v3448
      %3481 = vst.msk [vmem:[#allocation4 + $0x54] sm:$0xf] %vm682, %v3449
      %3482 = vst.msk [vmem:[#allocation4 + $0x58] sm:$0xf] %vm682, %v3450
      %3483 = vst.msk [vmem:[#allocation4 + $0x5c] sm:$0xf] %vm682, %v3451
      %3484 = vst.msk [vmem:[#allocation4 + $0x60] sm:$0xf] %vm682, %v3452
      %3485 = vst.msk [vmem:[#allocation4 + $0x64] sm:$0xf] %vm682, %v3453
      %3486 = vst.msk [vmem:[#allocation4 + $0x68] sm:$0xf] %vm682, %v3454
      %3487 = vst.msk [vmem:[#allocation4 + $0x6c] sm:$0xf] %vm682, %v3455
      %3488 = vst.msk [vmem:[#allocation4 + $0x70] sm:$0xf] %vm682, %v3456
      %3489 = vst.msk [vmem:[#allocation4 + $0x74] sm:$0xf] %vm682, %v3457
      %3490 = vst.msk [vmem:[#allocation4 + $0x78] sm:$0xf] %vm682, %v3458
      %3491 = vst.msk [vmem:[#allocation4 + $0x7c] sm:$0xf] %vm682, %v3459
      %v3493 = vshrl.u32 %v3428, 16
      %v3495 = vrot.slane %v3493, 7
      %v3496 = vshll.u32 %v3428, 16
      %v3498 = vor.u32 %v3495, %v3496
      %v3499 = vrot.slane %v3495, 4
      %v3501 = vshrl.u32 %v3429, 16
      %v3503 = vrot.slane %v3501, 7
      %v3504 = vshll.u32 %v3429, 16
      %v3506 = vor.u32 %v3503, %v3504
      %v3507 = vsel %vm233, %v3499, %v3506
      %v3508 = vrot.slane %v3503, 4
      %v3512 = vld [vmem:[%s554] sm:$0xf]
      %v3513 = vsel %vm678, %v3498, %v3512
      %3514 = vst [vmem:[%s554] sm:$0xf] %v3513
      %3515 = vst.msk [vmem:[%s554 + $0x4] sm:$0xf] %vm682, %v3507
      %v3516 = vld [vmem:[%s554 + $0x8] sm:$0x1]
      %v3517 = vsel %vm685, %v3508, %v3516
      %3518 = vst [vmem:[%s554 + $0x8] sm:$0x1] %v3517
      %v3520 = vshrl.u32 %v3430, 16
      %v3522 = vrot.slane %v3520, 7
      %v3523 = vshll.u32 %v3430, 16
      %v3525 = vor.u32 %v3522, %v3523
      %v3526 = vrot.slane %v3522, 4
      %v3528 = vshrl.u32 %v3431, 16
      %v3530 = vrot.slane %v3528, 7
      %v3531 = vshll.u32 %v3431, 16
      %v3533 = vor.u32 %v3530, %v3531
      %v3534 = vsel %vm233, %v3526, %v3533
      %v3535 = vrot.slane %v3530, 4
      %v3539 = vld [vmem:[%s673] sm:$0xf]
      %v3540 = vsel %vm678, %v3525, %v3539
      %3541 = vst [vmem:[%s673] sm:$0xf] %v3540
      %3542 = vst.msk [vmem:[%s673 + $0x4] sm:$0xf] %vm682, %v3534
      %v3543 = vld [vmem:[%s673 + $0x8] sm:$0x1]
      %v3544 = vsel %vm685, %v3535, %v3543
      %3545 = vst [vmem:[%s673 + $0x8] sm:$0x1] %v3544
      %v3547 = vshrl.u32 %v3432, 16
      %v3549 = vrot.slane %v3547, 7
      %v3550 = vshll.u32 %v3432, 16
      %v3552 = vor.u32 %v3549, %v3550
      %v3553 = vrot.slane %v3549, 4
      %v3555 = vshrl.u32 %v3433, 16
      %v3557 = vrot.slane %v3555, 7
      %v3558 = vshll.u32 %v3433, 16
      %v3560 = vor.u32 %v3557, %v3558
      %v3561 = vsel %vm233, %v3553, %v3560
      %v3562 = vrot.slane %v3557, 4
      %s3566 = scalar_lea.vmem [#allocation2], 36
      %v3567 = vld [vmem:[%s3566] sm:$0xf]
      %v3568 = vsel %vm678, %v3552, %v3567
      %3569 = vst [vmem:[%s3566] sm:$0xf] %v3568
      %3570 = vst.msk [vmem:[%s3566 + $0x4] sm:$0xf] %vm682, %v3561
      %v3571 = vld [vmem:[%s3566 + $0x8] sm:$0x1]
      %v3572 = vsel %vm685, %v3562, %v3571
      %3573 = vst [vmem:[%s3566 + $0x8] sm:$0x1] %v3572
      %v3575 = vshrl.u32 %v3434, 16
      %v3577 = vrot.slane %v3575, 7
      %v3578 = vshll.u32 %v3434, 16
      %v3580 = vor.u32 %v3577, %v3578
      %v3581 = vrot.slane %v3577, 4
      %v3583 = vshrl.u32 %v3435, 16
      %v3585 = vrot.slane %v3583, 7
      %v3586 = vshll.u32 %v3435, 16
      %v3588 = vor.u32 %v3585, %v3586
      %v3589 = vsel %vm233, %v3581, %v3588
      %v3590 = vrot.slane %v3585, 4
      %s3594 = scalar_lea.vmem [#allocation2], 48
      %v3595 = vld [vmem:[%s3594] sm:$0xf]
      %v3596 = vsel %vm678, %v3580, %v3595
      %3597 = vst [vmem:[%s3594] sm:$0xf] %v3596
      %3598 = vst.msk [vmem:[%s3594 + $0x4] sm:$0xf] %vm682, %v3589
      %v3599 = vld [vmem:[%s3594 + $0x8] sm:$0x1]
      %v3600 = vsel %vm685, %v3590, %v3599
      %3601 = vst [vmem:[%s3594 + $0x8] sm:$0x1] %v3600
      %v3603 = vshrl.u32 %v3436, 16
      %v3605 = vrot.slane %v3603, 7
      %v3606 = vshll.u32 %v3436, 16
      %v3608 = vor.u32 %v3605, %v3606
      %v3609 = vrot.slane %v3605, 4
      %v3611 = vshrl.u32 %v3437, 16
      %v3613 = vrot.slane %v3611, 7
      %v3614 = vshll.u32 %v3437, 16
      %v3616 = vor.u32 %v3613, %v3614
      %v3617 = vsel %vm233, %v3609, %v3616
      %v3618 = vrot.slane %v3613, 4
      %s3622 = scalar_lea.vmem [#allocation2], 60
      %v3623 = vld [vmem:[%s3622] sm:$0xf]
      %v3624 = vsel %vm678, %v3608, %v3623
      %3625 = vst [vmem:[%s3622] sm:$0xf] %v3624
      %3626 = vst.msk [vmem:[%s3622 + $0x4] sm:$0xf] %vm682, %v3617
      %v3627 = vld [vmem:[%s3622 + $0x8] sm:$0x1]
      %v3628 = vsel %vm685, %v3618, %v3627
      %3629 = vst [vmem:[%s3622 + $0x8] sm:$0x1] %v3628
      %v3631 = vshrl.u32 %v3438, 16
      %v3633 = vrot.slane %v3631, 7
      %v3634 = vshll.u32 %v3438, 16
      %v3636 = vor.u32 %v3633, %v3634
      %v3637 = vrot.slane %v3633, 4
      %v3639 = vshrl.u32 %v3439, 16
      %v3641 = vrot.slane %v3639, 7
      %v3642 = vshll.u32 %v3439, 16
      %v3644 = vor.u32 %v3641, %v3642
      %v3645 = vsel %vm233, %v3637, %v3644
      %v3646 = vrot.slane %v3641, 4
      %s3650 = scalar_lea.vmem [#allocation2], 72
      %v3651 = vld [vmem:[%s3650] sm:$0xf]
      %v3652 = vsel %vm678, %v3636, %v3651
      %3653 = vst [vmem:[%s3650] sm:$0xf] %v3652
      %3654 = vst.msk [vmem:[%s3650 + $0x4] sm:$0xf] %vm682, %v3645
      %v3655 = vld [vmem:[%s3650 + $0x8] sm:$0x1]
      %v3656 = vsel %vm685, %v3646, %v3655
      %3657 = vst [vmem:[%s3650 + $0x8] sm:$0x1] %v3656
      %v3659 = vshrl.u32 %v3440, 16
      %v3661 = vrot.slane %v3659, 7
      %v3662 = vshll.u32 %v3440, 16
      %v3664 = vor.u32 %v3661, %v3662
      %v3665 = vrot.slane %v3661, 4
      %v3667 = vshrl.u32 %v3441, 16
      %v3669 = vrot.slane %v3667, 7
      %v3670 = vshll.u32 %v3441, 16
      %v3672 = vor.u32 %v3669, %v3670
      %v3673 = vsel %vm233, %v3665, %v3672
      %v3674 = vrot.slane %v3669, 4
      %s3678 = scalar_lea.vmem [#allocation2], 84
      %v3679 = vld [vmem:[%s3678] sm:$0xf]
      %v3680 = vsel %vm678, %v3664, %v3679
      %3681 = vst [vmem:[%s3678] sm:$0xf] %v3680
      %3682 = vst.msk [vmem:[%s3678 + $0x4] sm:$0xf] %vm682, %v3673
      %v3683 = vld [vmem:[%s3678 + $0x8] sm:$0x1]
      %v3684 = vsel %vm685, %v3674, %v3683
      %3685 = vst [vmem:[%s3678 + $0x8] sm:$0x1] %v3684
      %v3687 = vshrl.u32 %v3442, 16
      %v3689 = vrot.slane %v3687, 7
      %v3690 = vshll.u32 %v3442, 16
      %v3692 = vor.u32 %v3689, %v3690
      %v3693 = vrot.slane %v3689, 4
      %v3695 = vshrl.u32 %v3443, 16
      %v3697 = vrot.slane %v3695, 7
      %v3698 = vshll.u32 %v3443, 16
      %v3700 = vor.u32 %v3697, %v3698
      %v3701 = vsel %vm233, %v3693, %v3700
      %v3702 = vrot.slane %v3697, 4
      %s3706 = scalar_lea.vmem [#allocation2], 96
      %v3707 = vld [vmem:[%s3706] sm:$0xf]
      %v3708 = vsel %vm678, %v3692, %v3707
      %3709 = vst [vmem:[%s3706] sm:$0xf] %v3708
      %3710 = vst.msk [vmem:[%s3706 + $0x4] sm:$0xf] %vm682, %v3701
      %v3711 = vld [vmem:[%s3706 + $0x8] sm:$0x1]
      %v3712 = vsel %vm685, %v3702, %v3711
      %3713 = vst [vmem:[%s3706 + $0x8] sm:$0x1] %v3712
      %v3715 = vshrl.u32 %v3444, 16
      %v3717 = vrot.slane %v3715, 7
      %v3718 = vshll.u32 %v3444, 16
      %v3720 = vor.u32 %v3717, %v3718
      %v3721 = vrot.slane %v3717, 4
      %v3723 = vshrl.u32 %v3445, 16
      %v3725 = vrot.slane %v3723, 7
      %v3726 = vshll.u32 %v3445, 16
      %v3728 = vor.u32 %v3725, %v3726
      %v3729 = vsel %vm233, %v3721, %v3728
      %v3730 = vrot.slane %v3725, 4
      %s3734 = scalar_lea.vmem [#allocation2], 108
      %v3735 = vld [vmem:[%s3734] sm:$0xf]
      %v3736 = vsel %vm678, %v3720, %v3735
      %3737 = vst [vmem:[%s3734] sm:$0xf] %v3736
      %3738 = vst.msk [vmem:[%s3734 + $0x4] sm:$0xf] %vm682, %v3729
      %v3739 = vld [vmem:[%s3734 + $0x8] sm:$0x1]
      %v3740 = vsel %vm685, %v3730, %v3739
      %3741 = vst [vmem:[%s3734 + $0x8] sm:$0x1] %v3740
      %v3743 = vshrl.u32 %v3446, 16
      %v3745 = vrot.slane %v3743, 7
      %v3746 = vshll.u32 %v3446, 16
      %v3748 = vor.u32 %v3745, %v3746
      %v3749 = vrot.slane %v3745, 4
      %v3751 = vshrl.u32 %v3447, 16
      %v3753 = vrot.slane %v3751, 7
      %v3754 = vshll.u32 %v3447, 16
      %v3756 = vor.u32 %v3753, %v3754
      %v3757 = vsel %vm233, %v3749, %v3756
      %v3758 = vrot.slane %v3753, 4
      %s3762 = scalar_lea.vmem [#allocation2], 120
      %v3763 = vld [vmem:[%s3762] sm:$0xf]
      %v3764 = vsel %vm678, %v3748, %v3763
      %3765 = vst [vmem:[%s3762] sm:$0xf] %v3764
      %3766 = vst.msk [vmem:[%s3762 + $0x4] sm:$0xf] %vm682, %v3757
      %v3767 = vld [vmem:[%s3762 + $0x8] sm:$0x1]
      %v3768 = vsel %vm685, %v3758, %v3767
      %3769 = vst [vmem:[%s3762 + $0x8] sm:$0x1] %v3768
      %v3771 = vshrl.u32 %v3448, 16
      %v3773 = vrot.slane %v3771, 7
      %v3774 = vshll.u32 %v3448, 16
      %v3776 = vor.u32 %v3773, %v3774
      %v3777 = vrot.slane %v3773, 4
      %v3779 = vshrl.u32 %v3449, 16
      %v3781 = vrot.slane %v3779, 7
      %v3782 = vshll.u32 %v3449, 16
      %v3784 = vor.u32 %v3781, %v3782
      %v3785 = vsel %vm233, %v3777, %v3784
      %v3786 = vrot.slane %v3781, 4
      %s3790 = scalar_lea.vmem [#allocation2], 132
      %v3791 = vld [vmem:[%s3790] sm:$0xf]
      %v3792 = vsel %vm678, %v3776, %v3791
      %3793 = vst [vmem:[%s3790] sm:$0xf] %v3792
      %3794 = vst.msk [vmem:[%s3790 + $0x4] sm:$0xf] %vm682, %v3785
      %v3795 = vld [vmem:[%s3790 + $0x8] sm:$0x1]
      %v3796 = vsel %vm685, %v3786, %v3795
      %3797 = vst [vmem:[%s3790 + $0x8] sm:$0x1] %v3796
      %v3799 = vshrl.u32 %v3450, 16
      %v3801 = vrot.slane %v3799, 7
      %v3802 = vshll.u32 %v3450, 16
      %v3804 = vor.u32 %v3801, %v3802
      %v3805 = vrot.slane %v3801, 4
      %v3807 = vshrl.u32 %v3451, 16
      %v3809 = vrot.slane %v3807, 7
      %v3810 = vshll.u32 %v3451, 16
      %v3812 = vor.u32 %v3809, %v3810
      %v3813 = vsel %vm233, %v3805, %v3812
      %v3814 = vrot.slane %v3809, 4
      %s3818 = scalar_lea.vmem [#allocation2], 144
      %v3819 = vld [vmem:[%s3818] sm:$0xf]
      %v3820 = vsel %vm678, %v3804, %v3819
      %3821 = vst [vmem:[%s3818] sm:$0xf] %v3820
      %3822 = vst.msk [vmem:[%s3818 + $0x4] sm:$0xf] %vm682, %v3813
      %v3823 = vld [vmem:[%s3818 + $0x8] sm:$0x1]
      %v3824 = vsel %vm685, %v3814, %v3823
      %3825 = vst [vmem:[%s3818 + $0x8] sm:$0x1] %v3824
      %v3827 = vshrl.u32 %v3452, 16
      %v3829 = vrot.slane %v3827, 7
      %v3830 = vshll.u32 %v3452, 16
      %v3832 = vor.u32 %v3829, %v3830
      %v3833 = vrot.slane %v3829, 4
      %v3835 = vshrl.u32 %v3453, 16
      %v3837 = vrot.slane %v3835, 7
      %v3838 = vshll.u32 %v3453, 16
      %v3840 = vor.u32 %v3837, %v3838
      %v3841 = vsel %vm233, %v3833, %v3840
      %v3842 = vrot.slane %v3837, 4
      %s3846 = scalar_lea.vmem [#allocation2], 156
      %v3847 = vld [vmem:[%s3846] sm:$0xf]
      %v3848 = vsel %vm678, %v3832, %v3847
      %3849 = vst [vmem:[%s3846] sm:$0xf] %v3848
      %3850 = vst.msk [vmem:[%s3846 + $0x4] sm:$0xf] %vm682, %v3841
      %v3851 = vld [vmem:[%s3846 + $0x8] sm:$0x1]
      %v3852 = vsel %vm685, %v3842, %v3851
      %3853 = vst [vmem:[%s3846 + $0x8] sm:$0x1] %v3852
      %v3855 = vshrl.u32 %v3454, 16
      %v3857 = vrot.slane %v3855, 7
      %v3858 = vshll.u32 %v3454, 16
      %v3860 = vor.u32 %v3857, %v3858
      %v3861 = vrot.slane %v3857, 4
      %v3863 = vshrl.u32 %v3455, 16
      %v3865 = vrot.slane %v3863, 7
      %v3866 = vshll.u32 %v3455, 16
      %v3868 = vor.u32 %v3865, %v3866
      %v3869 = vsel %vm233, %v3861, %v3868
      %v3870 = vrot.slane %v3865, 4
      %s3874 = scalar_lea.vmem [#allocation2], 168
      %v3875 = vld [vmem:[%s3874] sm:$0xf]
      %v3876 = vsel %vm678, %v3860, %v3875
      %3877 = vst [vmem:[%s3874] sm:$0xf] %v3876
      %3878 = vst.msk [vmem:[%s3874 + $0x4] sm:$0xf] %vm682, %v3869
      %v3879 = vld [vmem:[%s3874 + $0x8] sm:$0x1]
      %v3880 = vsel %vm685, %v3870, %v3879
      %3881 = vst [vmem:[%s3874 + $0x8] sm:$0x1] %v3880
      %v3883 = vshrl.u32 %v3456, 16
      %v3885 = vrot.slane %v3883, 7
      %v3886 = vshll.u32 %v3456, 16
      %v3888 = vor.u32 %v3885, %v3886
      %v3889 = vrot.slane %v3885, 4
      %v3891 = vshrl.u32 %v3457, 16
      %v3893 = vrot.slane %v3891, 7
      %v3894 = vshll.u32 %v3457, 16
      %v3896 = vor.u32 %v3893, %v3894
      %v3897 = vsel %vm233, %v3889, %v3896
      %v3898 = vrot.slane %v3893, 4
      %v3902 = vld [vmem:[%s689] sm:$0xf]
      %v3903 = vsel %vm678, %v3888, %v3902
      %3904 = vst [vmem:[%s689] sm:$0xf] %v3903
      %3905 = vst.msk [vmem:[%s689 + $0x4] sm:$0xf] %vm682, %v3897
      %v3906 = vld [vmem:[%s689 + $0x8] sm:$0x1]
      %v3907 = vsel %vm685, %v3898, %v3906
      %3908 = vst [vmem:[%s689 + $0x8] sm:$0x1] %v3907
      %v3910 = vshrl.u32 %v3458, 16
      %v3912 = vrot.slane %v3910, 7
      %v3913 = vshll.u32 %v3458, 16
      %v3915 = vor.u32 %v3912, %v3913
      %v3916 = vrot.slane %v3912, 4
      %v3918 = vshrl.u32 %v3459, 16
      %v3920 = vrot.slane %v3918, 7
      %v3921 = vshll.u32 %v3459, 16
      %v3923 = vor.u32 %v3920, %v3921
      %v3924 = vsel %vm233, %v3916, %v3923
      %v3925 = vrot.slane %v3920, 4
      %s3929 = scalar_lea.vmem [#allocation2], 192
      %v3930 = vld [vmem:[%s3929] sm:$0xf]
      %v3931 = vsel %vm678, %v3915, %v3930
      %3932 = vst [vmem:[%s3929] sm:$0xf] %v3931
      %3933 = vst.msk [vmem:[%s3929 + $0x4] sm:$0xf] %vm682, %v3924
      %v3934 = vld [vmem:[%s3929 + $0x8] sm:$0x1]
      %v3935 = vsel %vm685, %v3925, %v3934
      %3936 = vst [vmem:[%s3929 + $0x8] sm:$0x1] %v3935
      %v3937 = vld [vmem:[%s673] sm:$0xf]
      %v3938 = vld [vmem:[%s673 + $0x4] sm:$0xf]
      %v3939 = vld [vmem:[%s673 + $0x8] sm:$0x1]
      %v3940 = vld [vmem:[#allocation2] sm:$0xf]
      %v3941 = vsel %vm678, %v3937, %v3940
      %3942 = vst [vmem:[#allocation2] sm:$0xf] %v3941
      %3943 = vst.msk [vmem:[#allocation2 + $0x4] sm:$0xf] %vm682, %v3938
      %v3944 = vld [vmem:[#allocation2 + $0x8] sm:$0x1]
      %v3945 = vsel %vm685, %v3939, %v3944
      %3946 = vst [vmem:[#allocation2 + $0x8] sm:$0x1] %v3945
      %v3947 = vld [vmem:[%s689] sm:$0xf]
      %v3948 = vld [vmem:[%s689 + $0x4] sm:$0xf]
      %v3949 = vld [vmem:[%s689 + $0x8] sm:$0x1]
      %v3950 = vld [vmem:[%s693] sm:$0xf]
      %v3951 = vsel %vm678, %v3947, %v3950
      %3952 = vst [vmem:[%s693] sm:$0xf] %v3951
      %3953 = vst.msk [vmem:[%s693 + $0x4] sm:$0xf] %vm682, %v3948
      %v3954 = vld [vmem:[%s693 + $0x8] sm:$0x1]
      %v3955 = vsel %vm685, %v3949, %v3954
      %3956 = vst [vmem:[%s693 + $0x8] sm:$0x1] %v3955
      %v3957 = vld [vmem:[#allocation2] sm:$0x2]
      %v3958 = vld [vmem:[#allocation2 + $0xc] sm:$0x2]
      %v3959 = vld [vmem:[#allocation2 + $0x18] sm:$0x2]
      %v3960 = vld [vmem:[#allocation2 + $0x24] sm:$0x2]
      %v3961 = vld [vmem:[#allocation2 + $0x30] sm:$0x2]
      %v3962 = vld [vmem:[#allocation2 + $0x3c] sm:$0x2]
      %v3963 = vld [vmem:[#allocation2 + $0x48] sm:$0x2]
      %v3964 = vld [vmem:[#allocation2 + $0x54] sm:$0x2]
      %v3965 = vld [vmem:[#allocation2 + $0x60] sm:$0x2]
      %v3966 = vld [vmem:[#allocation2 + $0x6c] sm:$0x2]
      %v3967 = vld [vmem:[#allocation2 + $0x78] sm:$0x2]
      %v3968 = vld [vmem:[#allocation2 + $0x84] sm:$0x2]
      %v3969 = vld [vmem:[#allocation2 + $0x90] sm:$0x2]
      %v3970 = vld [vmem:[#allocation2 + $0x9c] sm:$0x2]
      %v3971 = vld [vmem:[#allocation2 + $0xa8] sm:$0x2]
      %v3972 = vld [vmem:[#allocation2 + $0xb4] sm:$0x2]
      %v3973 = vld [vmem:[#allocation2 + $0xc0] sm:$0x2]
      %v3974 = vld [vmem:[#allocation2 + $0xcc] sm:$0x2]
      %v3993 = vrot.slane %v3957, 5
      %v3994 = vrot.slane %v3993, 4
      %v3995 = vrot.slane %v3958, 5
      %v3996 = vrot.slane %v3995, 4
      %v3997 = vrot.slane %v3959, 5
      %v3998 = vrot.slane %v3997, 4
      %v3999 = vrot.slane %v3960, 5
      %v4000 = vrot.slane %v3999, 4
      %v4001 = vrot.slane %v3961, 5
      %v4002 = vrot.slane %v4001, 4
      %v4003 = vrot.slane %v3962, 5
      %v4004 = vrot.slane %v4003, 4
      %v4005 = vrot.slane %v3963, 5
      %v4006 = vrot.slane %v4005, 4
      %v4007 = vrot.slane %v3964, 5
      %v4008 = vrot.slane %v4007, 4
      %v4009 = vrot.slane %v3965, 5
      %v4010 = vrot.slane %v4009, 4
      %v4011 = vrot.slane %v3966, 5
      %v4012 = vrot.slane %v4011, 4
      %v4013 = vrot.slane %v3967, 5
      %v4014 = vrot.slane %v4013, 4
      %v4015 = vrot.slane %v3968, 5
      %v4016 = vrot.slane %v4015, 4
      %v4017 = vrot.slane %v3969, 5
      %v4018 = vrot.slane %v4017, 4
      %v4019 = vrot.slane %v3970, 5
      %v4020 = vrot.slane %v4019, 4
      %v4021 = vrot.slane %v3971, 5
      %v4022 = vrot.slane %v4021, 4
      %v4023 = vrot.slane %v3972, 5
      %v4024 = vrot.slane %v4023, 4
      %v4025 = vrot.slane %v3973, 5
      %v4026 = vrot.slane %v4025, 4
      %v4027 = vrot.slane %v3974, 5
      %v4028 = vrot.slane %v4027, 4
      %v4047 = vld [vmem:[#allocation2] sm:$0x1]
      %v4048 = vsel %vm685, %v3994, %v4047
      %4049 = vst [vmem:[#allocation2] sm:$0x1] %v4048
      %v4050 = vld [vmem:[#allocation2 + $0xc] sm:$0x1]
      %v4051 = vsel %vm685, %v3996, %v4050
      %4052 = vst [vmem:[#allocation2 + $0xc] sm:$0x1] %v4051
      %v4053 = vld [vmem:[#allocation2 + $0x18] sm:$0x1]
      %v4054 = vsel %vm685, %v3998, %v4053
      %4055 = vst [vmem:[#allocation2 + $0x18] sm:$0x1] %v4054
      %v4056 = vld [vmem:[#allocation2 + $0x24] sm:$0x1]
      %v4057 = vsel %vm685, %v4000, %v4056
      %4058 = vst [vmem:[#allocation2 + $0x24] sm:$0x1] %v4057
      %v4059 = vld [vmem:[#allocation2 + $0x30] sm:$0x1]
      %v4060 = vsel %vm685, %v4002, %v4059
      %4061 = vst [vmem:[#allocation2 + $0x30] sm:$0x1] %v4060
      %v4062 = vld [vmem:[#allocation2 + $0x3c] sm:$0x1]
      %v4063 = vsel %vm685, %v4004, %v4062
      %4064 = vst [vmem:[#allocation2 + $0x3c] sm:$0x1] %v4063
      %v4065 = vld [vmem:[#allocation2 + $0x48] sm:$0x1]
      %v4066 = vsel %vm685, %v4006, %v4065
      %4067 = vst [vmem:[#allocation2 + $0x48] sm:$0x1] %v4066
      %v4068 = vld [vmem:[#allocation2 + $0x54] sm:$0x1]
      %v4069 = vsel %vm685, %v4008, %v4068
      %4070 = vst [vmem:[#allocation2 + $0x54] sm:$0x1] %v4069
      %v4071 = vld [vmem:[#allocation2 + $0x60] sm:$0x1]
      %v4072 = vsel %vm685, %v4010, %v4071
      %4073 = vst [vmem:[#allocation2 + $0x60] sm:$0x1] %v4072
      %v4074 = vld [vmem:[#allocation2 + $0x6c] sm:$0x1]
      %v4075 = vsel %vm685, %v4012, %v4074
      %4076 = vst [vmem:[#allocation2 + $0x6c] sm:$0x1] %v4075
      %v4077 = vld [vmem:[#allocation2 + $0x78] sm:$0x1]
      %v4078 = vsel %vm685, %v4014, %v4077
      %4079 = vst [vmem:[#allocation2 + $0x78] sm:$0x1] %v4078
      %v4080 = vld [vmem:[#allocation2 + $0x84] sm:$0x1]
      %v4081 = vsel %vm685, %v4016, %v4080
      %4082 = vst [vmem:[#allocation2 + $0x84] sm:$0x1] %v4081
      %v4083 = vld [vmem:[#allocation2 + $0x90] sm:$0x1]
      %v4084 = vsel %vm685, %v4018, %v4083
      %4085 = vst [vmem:[#allocation2 + $0x90] sm:$0x1] %v4084
      %v4086 = vld [vmem:[#allocation2 + $0x9c] sm:$0x1]
      %v4087 = vsel %vm685, %v4020, %v4086
      %4088 = vst [vmem:[#allocation2 + $0x9c] sm:$0x1] %v4087
      %v4089 = vld [vmem:[#allocation2 + $0xa8] sm:$0x1]
      %v4090 = vsel %vm685, %v4022, %v4089
      %4091 = vst [vmem:[#allocation2 + $0xa8] sm:$0x1] %v4090
      %v4092 = vld [vmem:[#allocation2 + $0xb4] sm:$0x1]
      %v4093 = vsel %vm685, %v4024, %v4092
      %4094 = vst [vmem:[#allocation2 + $0xb4] sm:$0x1] %v4093
      %v4095 = vld [vmem:[#allocation2 + $0xc0] sm:$0x1]
      %v4096 = vsel %vm685, %v4026, %v4095
      %4097 = vst [vmem:[#allocation2 + $0xc0] sm:$0x1] %v4096
      %v4098 = vld [vmem:[#allocation2 + $0xcc] sm:$0x1]
      %v4099 = vsel %vm685, %v4028, %v4098
      %4100 = vst [vmem:[#allocation2 + $0xcc] sm:$0x1] %v4099
      %v4101 = vld [vmem:[#allocation2 + $0x4] sm:$0x8]
      %v4102 = vld [vmem:[#allocation2 + $0x10] sm:$0x8]
      %v4103 = vld [vmem:[#allocation2 + $0x1c] sm:$0x8]
      %v4104 = vld [vmem:[#allocation2 + $0x28] sm:$0x8]
      %v4105 = vld [vmem:[#allocation2 + $0x34] sm:$0x8]
      %v4106 = vld [vmem:[#allocation2 + $0x40] sm:$0x8]
      %v4107 = vld [vmem:[#allocation2 + $0x4c] sm:$0x8]
      %v4108 = vld [vmem:[#allocation2 + $0x58] sm:$0x8]
      %v4109 = vld [vmem:[#allocation2 + $0x64] sm:$0x8]
      %v4110 = vld [vmem:[#allocation2 + $0x70] sm:$0x8]
      %v4111 = vld [vmem:[#allocation2 + $0x7c] sm:$0x8]
      %v4112 = vld [vmem:[#allocation2 + $0x88] sm:$0x8]
      %v4113 = vld [vmem:[#allocation2 + $0x94] sm:$0x8]
      %v4114 = vld [vmem:[#allocation2 + $0xa0] sm:$0x8]
      %v4115 = vld [vmem:[#allocation2 + $0xac] sm:$0x8]
      %v4116 = vld [vmem:[#allocation2 + $0xb8] sm:$0x8]
      %v4117 = vld [vmem:[#allocation2 + $0xc4] sm:$0x8]
      %v4118 = vld [vmem:[#allocation2 + $0xd0] sm:$0x8]
      %v4137 = vrot.slane %v4101, 7
      %v4138 = vrot.slane %v4137, 4
      %v4139 = vrot.slane %v4102, 7
      %v4140 = vrot.slane %v4139, 4
      %v4141 = vrot.slane %v4103, 7
      %v4142 = vrot.slane %v4141, 4
      %v4143 = vrot.slane %v4104, 7
      %v4144 = vrot.slane %v4143, 4
      %v4145 = vrot.slane %v4105, 7
      %v4146 = vrot.slane %v4145, 4
      %v4147 = vrot.slane %v4106, 7
      %v4148 = vrot.slane %v4147, 4
      %v4149 = vrot.slane %v4107, 7
      %v4150 = vrot.slane %v4149, 4
      %v4151 = vrot.slane %v4108, 7
      %v4152 = vrot.slane %v4151, 4
      %v4153 = vrot.slane %v4109, 7
      %v4154 = vrot.slane %v4153, 4
      %v4155 = vrot.slane %v4110, 7
      %v4156 = vrot.slane %v4155, 4
      %v4157 = vrot.slane %v4111, 7
      %v4158 = vrot.slane %v4157, 4
      %v4159 = vrot.slane %v4112, 7
      %v4160 = vrot.slane %v4159, 4
      %v4161 = vrot.slane %v4113, 7
      %v4162 = vrot.slane %v4161, 4
      %v4163 = vrot.slane %v4114, 7
      %v4164 = vrot.slane %v4163, 4
      %v4165 = vrot.slane %v4115, 7
      %v4166 = vrot.slane %v4165, 4
      %v4167 = vrot.slane %v4116, 7
      %v4168 = vrot.slane %v4167, 4
      %v4169 = vrot.slane %v4117, 7
      %v4170 = vrot.slane %v4169, 4
      %v4171 = vrot.slane %v4118, 7
      %v4172 = vrot.slane %v4171, 4
      %v4191 = vld [vmem:[#allocation2 + $0x8] sm:$0x1]
      %v4192 = vsel %vm935, %v4138, %v4191
      %4193 = vst [vmem:[#allocation2 + $0x8] sm:$0x1] %v4192
      %v4194 = vld [vmem:[#allocation2 + $0x14] sm:$0x1]
      %v4195 = vsel %vm935, %v4140, %v4194
      %4196 = vst [vmem:[#allocation2 + $0x14] sm:$0x1] %v4195
      %v4197 = vld [vmem:[#allocation2 + $0x20] sm:$0x1]
      %v4198 = vsel %vm935, %v4142, %v4197
      %4199 = vst [vmem:[#allocation2 + $0x20] sm:$0x1] %v4198
      %v4200 = vld [vmem:[#allocation2 + $0x2c] sm:$0x1]
      %v4201 = vsel %vm935, %v4144, %v4200
      %4202 = vst [vmem:[#allocation2 + $0x2c] sm:$0x1] %v4201
      %v4203 = vld [vmem:[#allocation2 + $0x38] sm:$0x1]
      %v4204 = vsel %vm935, %v4146, %v4203
      %4205 = vst [vmem:[#allocation2 + $0x38] sm:$0x1] %v4204
      %v4206 = vld [vmem:[#allocation2 + $0x44] sm:$0x1]
      %v4207 = vsel %vm935, %v4148, %v4206
      %4208 = vst [vmem:[#allocation2 + $0x44] sm:$0x1] %v4207
      %v4209 = vld [vmem:[#allocation2 + $0x50] sm:$0x1]
      %v4210 = vsel %vm935, %v4150, %v4209
      %4211 = vst [vmem:[#allocation2 + $0x50] sm:$0x1] %v4210
      %v4212 = vld [vmem:[#allocation2 + $0x5c] sm:$0x1]
      %v4213 = vsel %vm935, %v4152, %v4212
      %4214 = vst [vmem:[#allocation2 + $0x5c] sm:$0x1] %v4213
      %v4215 = vld [vmem:[#allocation2 + $0x68] sm:$0x1]
      %v4216 = vsel %vm935, %v4154, %v4215
      %4217 = vst [vmem:[#allocation2 + $0x68] sm:$0x1] %v4216
      %v4218 = vld [vmem:[#allocation2 + $0x74] sm:$0x1]
      %v4219 = vsel %vm935, %v4156, %v4218
      %4220 = vst [vmem:[#allocation2 + $0x74] sm:$0x1] %v4219
      %v4221 = vld [vmem:[#allocation2 + $0x80] sm:$0x1]
      %v4222 = vsel %vm935, %v4158, %v4221
      %4223 = vst [vmem:[#allocation2 + $0x80] sm:$0x1] %v4222
      %v4224 = vld [vmem:[#allocation2 + $0x8c] sm:$0x1]
      %v4225 = vsel %vm935, %v4160, %v4224
      %4226 = vst [vmem:[#allocation2 + $0x8c] sm:$0x1] %v4225
      %v4227 = vld [vmem:[#allocation2 + $0x98] sm:$0x1]
      %v4228 = vsel %vm935, %v4162, %v4227
      %4229 = vst [vmem:[#allocation2 + $0x98] sm:$0x1] %v4228
      %v4230 = vld [vmem:[#allocation2 + $0xa4] sm:$0x1]
      %v4231 = vsel %vm935, %v4164, %v4230
      %4232 = vst [vmem:[#allocation2 + $0xa4] sm:$0x1] %v4231
      %v4233 = vld [vmem:[#allocation2 + $0xb0] sm:$0x1]
      %v4234 = vsel %vm935, %v4166, %v4233
      %4235 = vst [vmem:[#allocation2 + $0xb0] sm:$0x1] %v4234
      %v4236 = vld [vmem:[#allocation2 + $0xbc] sm:$0x1]
      %v4237 = vsel %vm935, %v4168, %v4236
      %4238 = vst [vmem:[#allocation2 + $0xbc] sm:$0x1] %v4237
      %v4239 = vld [vmem:[#allocation2 + $0xc8] sm:$0x1]
      %v4240 = vsel %vm935, %v4170, %v4239
      %4241 = vst [vmem:[#allocation2 + $0xc8] sm:$0x1] %v4240
      %v4242 = vld [vmem:[#allocation2 + $0xd4] sm:$0x1]
      %v4243 = vsel %vm935, %v4172, %v4242
      %4244 = vst [vmem:[#allocation2 + $0xd4] sm:$0x1] %v4243
      %4245 = vst.msk [vmem:[#allocation5] sm:$0x1] %vm990, 0.0
      %4246 = vst.msk [vmem:[#allocation6] sm:$0x1] %vm990, 0.0
      %v4247 = vld [vmem:[#allocation2] sm:$0xf]
      %v4248 = vld [vmem:[#allocation2 + $0x4] sm:$0xf]
      %v4249 = vld [vmem:[#allocation2 + $0xc] sm:$0xf]
      %v4250 = vld [vmem:[#allocation2 + $0x10] sm:$0xf]
      %v4251 = vld [vmem:[#allocation2 + $0x18] sm:$0xf]
      %v4252 = vld [vmem:[#allocation2 + $0x1c] sm:$0xf]
      %v4253 = vld [vmem:[#allocation2 + $0x24] sm:$0xf]
      %v4254 = vld [vmem:[#allocation2 + $0x28] sm:$0xf]
      %v4255 = vld [vmem:[#allocation2 + $0x30] sm:$0xf]
      %v4256 = vld [vmem:[#allocation2 + $0x34] sm:$0xf]
      %v4257 = vld [vmem:[#allocation2 + $0x3c] sm:$0xf]
      %v4258 = vld [vmem:[#allocation2 + $0x40] sm:$0xf]
      %v4259 = vld [vmem:[#allocation2 + $0x48] sm:$0xf]
      %v4260 = vld [vmem:[#allocation2 + $0x4c] sm:$0xf]
      %v4261 = vld [vmem:[#allocation2 + $0x54] sm:$0xf]
      %v4262 = vld [vmem:[#allocation2 + $0x58] sm:$0xf]
      %v4263 = vld [vmem:[#allocation2 + $0x60] sm:$0xf]
      %v4264 = vld [vmem:[#allocation2 + $0x64] sm:$0xf]
      %v4265 = vld [vmem:[#allocation2 + $0x6c] sm:$0xf]
      %v4266 = vld [vmem:[#allocation2 + $0x70] sm:$0xf]
      %v4267 = vld [vmem:[#allocation2 + $0x78] sm:$0xf]
      %v4268 = vld [vmem:[#allocation2 + $0x7c] sm:$0xf]
      %v4269 = vld [vmem:[#allocation2 + $0x84] sm:$0xf]
      %v4270 = vld [vmem:[#allocation2 + $0x88] sm:$0xf]
      %v4271 = vld [vmem:[#allocation2 + $0x90] sm:$0xf]
      %v4272 = vld [vmem:[#allocation2 + $0x94] sm:$0xf]
      %v4273 = vld [vmem:[#allocation2 + $0x9c] sm:$0xf]
      %v4274 = vld [vmem:[#allocation2 + $0xa0] sm:$0xf]
      %v4275 = vld [vmem:[#allocation2 + $0xa8] sm:$0xf]
      %v4276 = vld [vmem:[#allocation2 + $0xac] sm:$0xf]
      %v4277 = vld [vmem:[#allocation2 + $0xb4] sm:$0xf]
      %v4278 = vld [vmem:[#allocation2 + $0xb8] sm:$0xf]
      %v4279 = vld [vmem:[#allocation2 + $0x8] sm:$0x1]
      %v4280 = vld [vmem:[#allocation2 + $0x14] sm:$0x1]
      %v4281 = vld [vmem:[#allocation2 + $0x20] sm:$0x1]
      %v4282 = vld [vmem:[#allocation2 + $0x2c] sm:$0x1]
      %v4283 = vld [vmem:[#allocation2 + $0x38] sm:$0x1]
      %v4284 = vld [vmem:[#allocation2 + $0x44] sm:$0x1]
      %v4285 = vld [vmem:[#allocation2 + $0x50] sm:$0x1]
      %v4286 = vld [vmem:[#allocation2 + $0x5c] sm:$0x1]
      %v4287 = vld [vmem:[#allocation2 + $0x68] sm:$0x1]
      %v4288 = vld [vmem:[#allocation2 + $0x74] sm:$0x1]
      %v4289 = vld [vmem:[#allocation2 + $0x80] sm:$0x1]
      %v4290 = vld [vmem:[#allocation2 + $0x8c] sm:$0x1]
      %v4291 = vld [vmem:[#allocation2 + $0x98] sm:$0x1]
      %v4292 = vld [vmem:[#allocation2 + $0xa4] sm:$0x1]
      %v4293 = vld [vmem:[#allocation2 + $0xb0] sm:$0x1]
      %v4294 = vld [vmem:[#allocation2 + $0xbc] sm:$0x1]
      %v4295 = vld [vmem:[#allocation2] sm:$0xe]
      %v4296 = vld [vmem:[#allocation2 + $0xc] sm:$0xe]
      %v4297 = vld [vmem:[#allocation2 + $0x18] sm:$0xe]
      %v4298 = vld [vmem:[#allocation2 + $0x24] sm:$0xe]
      %v4299 = vld [vmem:[#allocation2 + $0x30] sm:$0xe]
      %v4300 = vld [vmem:[#allocation2 + $0x3c] sm:$0xe]
      %v4301 = vld [vmem:[#allocation2 + $0x48] sm:$0xe]
      %v4302 = vld [vmem:[#allocation2 + $0x54] sm:$0xe]
      %v4303 = vld [vmem:[#allocation2 + $0x60] sm:$0xe]
      %v4304 = vld [vmem:[#allocation2 + $0x6c] sm:$0xe]
      %v4305 = vld [vmem:[#allocation2 + $0x78] sm:$0xe]
      %v4306 = vld [vmem:[#allocation2 + $0x84] sm:$0xe]
      %v4307 = vld [vmem:[#allocation2 + $0x90] sm:$0xe]
      %v4308 = vld [vmem:[#allocation2 + $0x9c] sm:$0xe]
      %v4309 = vld [vmem:[#allocation2 + $0xa8] sm:$0xe]
      %v4310 = vld [vmem:[#allocation2 + $0xb4] sm:$0xe]
      %v4311 = vld [vmem:[%s554] sm:$0xf]
      %v4312 = vld [vmem:[%s554 + $0x4] sm:$0xf]
      %v4313 = vld [vmem:[%s554 + $0xc] sm:$0xf]
      %v4314 = vld [vmem:[%s554 + $0x10] sm:$0xf]
      %v4315 = vld [vmem:[%s554 + $0x18] sm:$0xf]
      %v4316 = vld [vmem:[%s554 + $0x1c] sm:$0xf]
      %v4317 = vld [vmem:[%s554 + $0x24] sm:$0xf]
      %v4318 = vld [vmem:[%s554 + $0x28] sm:$0xf]
      %v4319 = vld [vmem:[%s554 + $0x30] sm:$0xf]
      %v4320 = vld [vmem:[%s554 + $0x34] sm:$0xf]
      %v4321 = vld [vmem:[%s554 + $0x3c] sm:$0xf]
      %v4322 = vld [vmem:[%s554 + $0x40] sm:$0xf]
      %v4323 = vld [vmem:[%s554 + $0x48] sm:$0xf]
      %v4324 = vld [vmem:[%s554 + $0x4c] sm:$0xf]
      %v4325 = vld [vmem:[%s554 + $0x54] sm:$0xf]
      %v4326 = vld [vmem:[%s554 + $0x58] sm:$0xf]
      %v4327 = vld [vmem:[%s554 + $0x60] sm:$0xf]
      %v4328 = vld [vmem:[%s554 + $0x64] sm:$0xf]
      %v4329 = vld [vmem:[%s554 + $0x6c] sm:$0xf]
      %v4330 = vld [vmem:[%s554 + $0x70] sm:$0xf]
      %v4331 = vld [vmem:[%s554 + $0x78] sm:$0xf]
      %v4332 = vld [vmem:[%s554 + $0x7c] sm:$0xf]
      %v4333 = vld [vmem:[%s554 + $0x84] sm:$0xf]
      %v4334 = vld [vmem:[%s554 + $0x88] sm:$0xf]
      %v4335 = vld [vmem:[%s554 + $0x90] sm:$0xf]
      %v4336 = vld [vmem:[%s554 + $0x94] sm:$0xf]
      %v4337 = vld [vmem:[%s554 + $0x9c] sm:$0xf]
      %v4338 = vld [vmem:[%s554 + $0xa0] sm:$0xf]
      %v4339 = vld [vmem:[%s554 + $0xa8] sm:$0xf]
      %v4340 = vld [vmem:[%s554 + $0xac] sm:$0xf]
      %v4341 = vld [vmem:[%s554 + $0xb4] sm:$0xf]
      %v4342 = vld [vmem:[%s554 + $0xb8] sm:$0xf]
      %v4343 = vld [vmem:[%s554 + $0x8] sm:$0x1]
      %v4344 = vld [vmem:[%s554 + $0x14] sm:$0x1]
      %v4345 = vld [vmem:[%s554 + $0x20] sm:$0x1]
      %v4346 = vld [vmem:[%s554 + $0x2c] sm:$0x1]
      %v4347 = vld [vmem:[%s554 + $0x38] sm:$0x1]
      %v4348 = vld [vmem:[%s554 + $0x44] sm:$0x1]
      %v4349 = vld [vmem:[%s554 + $0x50] sm:$0x1]
      %v4350 = vld [vmem:[%s554 + $0x5c] sm:$0x1]
      %v4351 = vld [vmem:[%s554 + $0x68] sm:$0x1]
      %v4352 = vld [vmem:[%s554 + $0x74] sm:$0x1]
      %v4353 = vld [vmem:[%s554 + $0x80] sm:$0x1]
      %v4354 = vld [vmem:[%s554 + $0x8c] sm:$0x1]
      %v4355 = vld [vmem:[%s554 + $0x98] sm:$0x1]
      %v4356 = vld [vmem:[%s554 + $0xa4] sm:$0x1]
      %v4357 = vld [vmem:[%s554 + $0xb0] sm:$0x1]
      %v4358 = vld [vmem:[%s554 + $0xbc] sm:$0x1]
      %v4359 = vld [vmem:[%s554] sm:$0xe]
      %v4360 = vld [vmem:[%s554 + $0xc] sm:$0xe]
      %v4361 = vld [vmem:[%s554 + $0x18] sm:$0xe]
      %v4362 = vld [vmem:[%s554 + $0x24] sm:$0xe]
      %v4363 = vld [vmem:[%s554 + $0x30] sm:$0xe]
      %v4364 = vld [vmem:[%s554 + $0x3c] sm:$0xe]
      %v4365 = vld [vmem:[%s554 + $0x48] sm:$0xe]
      %v4366 = vld [vmem:[%s554 + $0x54] sm:$0xe]
      %v4367 = vld [vmem:[%s554 + $0x60] sm:$0xe]
      %v4368 = vld [vmem:[%s554 + $0x6c] sm:$0xe]
      %v4369 = vld [vmem:[%s554 + $0x78] sm:$0xe]
      %v4370 = vld [vmem:[%s554 + $0x84] sm:$0xe]
      %v4371 = vld [vmem:[%s554 + $0x90] sm:$0xe]
      %v4372 = vld [vmem:[%s554 + $0x9c] sm:$0xe]
      %v4373 = vld [vmem:[%s554 + $0xa8] sm:$0xe]
      %v4374 = vld [vmem:[%s554 + $0xb4] sm:$0xe]
      %v4375 = vld [vmem:[%s673] sm:$0xf]
      %v4376 = vld [vmem:[%s673 + $0x4] sm:$0xf]
      %v4377 = vld [vmem:[%s673 + $0xc] sm:$0xf]
      %v4378 = vld [vmem:[%s673 + $0x10] sm:$0xf]
      %v4379 = vld [vmem:[%s673 + $0x18] sm:$0xf]
      %v4380 = vld [vmem:[%s673 + $0x1c] sm:$0xf]
      %v4381 = vld [vmem:[%s673 + $0x24] sm:$0xf]
      %v4382 = vld [vmem:[%s673 + $0x28] sm:$0xf]
      %v4383 = vld [vmem:[%s673 + $0x30] sm:$0xf]
      %v4384 = vld [vmem:[%s673 + $0x34] sm:$0xf]
      %v4385 = vld [vmem:[%s673 + $0x3c] sm:$0xf]
      %v4386 = vld [vmem:[%s673 + $0x40] sm:$0xf]
      %v4387 = vld [vmem:[%s673 + $0x48] sm:$0xf]
      %v4388 = vld [vmem:[%s673 + $0x4c] sm:$0xf]
      %v4389 = vld [vmem:[%s673 + $0x54] sm:$0xf]
      %v4390 = vld [vmem:[%s673 + $0x58] sm:$0xf]
      %v4391 = vld [vmem:[%s673 + $0x60] sm:$0xf]
      %v4392 = vld [vmem:[%s673 + $0x64] sm:$0xf]
      %v4393 = vld [vmem:[%s673 + $0x6c] sm:$0xf]
      %v4394 = vld [vmem:[%s673 + $0x70] sm:$0xf]
      %v4395 = vld [vmem:[%s673 + $0x78] sm:$0xf]
      %v4396 = vld [vmem:[%s673 + $0x7c] sm:$0xf]
      %v4397 = vld [vmem:[%s673 + $0x84] sm:$0xf]
      %v4398 = vld [vmem:[%s673 + $0x88] sm:$0xf]
      %v4399 = vld [vmem:[%s673 + $0x90] sm:$0xf]
      %v4400 = vld [vmem:[%s673 + $0x94] sm:$0xf]
      %v4401 = vld [vmem:[%s673 + $0x9c] sm:$0xf]
      %v4402 = vld [vmem:[%s673 + $0xa0] sm:$0xf]
      %v4403 = vld [vmem:[%s673 + $0xa8] sm:$0xf]
      %v4404 = vld [vmem:[%s673 + $0xac] sm:$0xf]
      %v4405 = vld [vmem:[%s673 + $0xb4] sm:$0xf]
      %v4406 = vld [vmem:[%s673 + $0xb8] sm:$0xf]
      %v4407 = vld [vmem:[%s673 + $0x8] sm:$0x1]
      %v4408 = vld [vmem:[%s673 + $0x14] sm:$0x1]
      %v4409 = vld [vmem:[%s673 + $0x20] sm:$0x1]
      %v4410 = vld [vmem:[%s673 + $0x2c] sm:$0x1]
      %v4411 = vld [vmem:[%s673 + $0x38] sm:$0x1]
      %v4412 = vld [vmem:[%s673 + $0x44] sm:$0x1]
      %v4413 = vld [vmem:[%s673 + $0x50] sm:$0x1]
      %v4414 = vld [vmem:[%s673 + $0x5c] sm:$0x1]
      %v4415 = vld [vmem:[%s673 + $0x68] sm:$0x1]
      %v4416 = vld [vmem:[%s673 + $0x74] sm:$0x1]
      %v4417 = vld [vmem:[%s673 + $0x80] sm:$0x1]
      %v4418 = vld [vmem:[%s673 + $0x8c] sm:$0x1]
      %v4419 = vld [vmem:[%s673 + $0x98] sm:$0x1]
      %v4420 = vld [vmem:[%s673 + $0xa4] sm:$0x1]
      %v4421 = vld [vmem:[%s673 + $0xb0] sm:$0x1]
      %v4422 = vld [vmem:[%s673 + $0xbc] sm:$0x1]
      %v4423 = vld [vmem:[%s673] sm:$0xe]
      %v4424 = vld [vmem:[%s673 + $0xc] sm:$0xe]
      %v4425 = vld [vmem:[%s673 + $0x18] sm:$0xe]
      %v4426 = vld [vmem:[%s673 + $0x24] sm:$0xe]
      %v4427 = vld [vmem:[%s673 + $0x30] sm:$0xe]
      %v4428 = vld [vmem:[%s673 + $0x3c] sm:$0xe]
      %v4429 = vld [vmem:[%s673 + $0x48] sm:$0xe]
      %v4430 = vld [vmem:[%s673 + $0x54] sm:$0xe]
      %v4431 = vld [vmem:[%s673 + $0x60] sm:$0xe]
      %v4432 = vld [vmem:[%s673 + $0x6c] sm:$0xe]
      %v4433 = vld [vmem:[%s673 + $0x78] sm:$0xe]
      %v4434 = vld [vmem:[%s673 + $0x84] sm:$0xe]
      %v4435 = vld [vmem:[%s673 + $0x90] sm:$0xe]
      %v4436 = vld [vmem:[%s673 + $0x9c] sm:$0xe]
      %v4437 = vld [vmem:[%s673 + $0xa8] sm:$0xe]
      %v4438 = vld [vmem:[%s673 + $0xb4] sm:$0xe]
      %v4471 = vunpack.c.l.b16 %v4247
      %v4472 = vunpack.c.l.b16 %v4248
      %v4473 = vunpack.c.l.b16 %v4249
      %v4474 = vunpack.c.l.b16 %v4250
      %v4475 = vunpack.c.l.b16 %v4251
      %v4476 = vunpack.c.l.b16 %v4252
      %v4477 = vunpack.c.l.b16 %v4253
      %v4478 = vunpack.c.l.b16 %v4254
      %v4479 = vunpack.c.l.b16 %v4255
      %v4480 = vunpack.c.l.b16 %v4256
      %v4481 = vunpack.c.l.b16 %v4257
      %v4482 = vunpack.c.l.b16 %v4258
      %v4483 = vunpack.c.l.b16 %v4259
      %v4484 = vunpack.c.l.b16 %v4260
      %v4485 = vunpack.c.l.b16 %v4261
      %v4486 = vunpack.c.l.b16 %v4262
      %v4487 = vunpack.c.l.b16 %v4263
      %v4488 = vunpack.c.l.b16 %v4264
      %v4489 = vunpack.c.l.b16 %v4265
      %v4490 = vunpack.c.l.b16 %v4266
      %v4491 = vunpack.c.l.b16 %v4267
      %v4492 = vunpack.c.l.b16 %v4268
      %v4493 = vunpack.c.l.b16 %v4269
      %v4494 = vunpack.c.l.b16 %v4270
      %v4495 = vunpack.c.l.b16 %v4271
      %v4496 = vunpack.c.l.b16 %v4272
      %v4497 = vunpack.c.l.b16 %v4273
      %v4498 = vunpack.c.l.b16 %v4274
      %v4499 = vunpack.c.l.b16 %v4275
      %v4500 = vunpack.c.l.b16 %v4276
      %v4501 = vunpack.c.l.b16 %v4277
      %v4502 = vunpack.c.l.b16 %v4278
      %v4503 = vpack.c.b16 %v4472, %v4471
      %v4504 = vpack.c.b16 %v4474, %v4473
      %v4505 = vpack.c.b16 %v4476, %v4475
      %v4506 = vpack.c.b16 %v4478, %v4477
      %v4507 = vpack.c.b16 %v4480, %v4479
      %v4508 = vpack.c.b16 %v4482, %v4481
      %v4509 = vpack.c.b16 %v4484, %v4483
      %v4510 = vpack.c.b16 %v4486, %v4485
      %v4511 = vpack.c.b16 %v4488, %v4487
      %v4512 = vpack.c.b16 %v4490, %v4489
      %v4513 = vpack.c.b16 %v4492, %v4491
      %v4514 = vpack.c.b16 %v4494, %v4493
      %v4515 = vpack.c.b16 %v4496, %v4495
      %v4516 = vpack.c.b16 %v4498, %v4497
      %v4517 = vpack.c.b16 %v4500, %v4499
      %v4518 = vpack.c.b16 %v4502, %v4501
      %v4535 = vunpack.c.l.b16 %v4279
      %v4536 = vunpack.c.l.b16 %v4280
      %v4537 = vunpack.c.l.b16 %v4281
      %v4538 = vunpack.c.l.b16 %v4282
      %v4539 = vunpack.c.l.b16 %v4283
      %v4540 = vunpack.c.l.b16 %v4284
      %v4541 = vunpack.c.l.b16 %v4285
      %v4542 = vunpack.c.l.b16 %v4286
      %v4543 = vunpack.c.l.b16 %v4287
      %v4544 = vunpack.c.l.b16 %v4288
      %v4545 = vunpack.c.l.b16 %v4289
      %v4546 = vunpack.c.l.b16 %v4290
      %v4547 = vunpack.c.l.b16 %v4291
      %v4548 = vunpack.c.l.b16 %v4292
      %v4549 = vunpack.c.l.b16 %v4293
      %v4550 = vunpack.c.l.b16 %v4294
      %v4551 = vpack.c.b16 %v4535, %v4535
      %v4552 = vpack.c.b16 %v4536, %v4536
      %v4553 = vpack.c.b16 %v4537, %v4537
      %v4554 = vpack.c.b16 %v4538, %v4538
      %v4555 = vpack.c.b16 %v4539, %v4539
      %v4556 = vpack.c.b16 %v4540, %v4540
      %v4557 = vpack.c.b16 %v4541, %v4541
      %v4558 = vpack.c.b16 %v4542, %v4542
      %v4559 = vpack.c.b16 %v4543, %v4543
      %v4560 = vpack.c.b16 %v4544, %v4544
      %v4561 = vpack.c.b16 %v4545, %v4545
      %v4562 = vpack.c.b16 %v4546, %v4546
      %v4563 = vpack.c.b16 %v4547, %v4547
      %v4564 = vpack.c.b16 %v4548, %v4548
      %v4565 = vpack.c.b16 %v4549, %v4549
      %v4566 = vpack.c.b16 %v4550, %v4550
      %v4568 = vshrl.u32 %v4503, 16
      %v4570 = vshll.u32 %v4503, 16
      %v4572 = vrot.slane %v4570, 1
      %v4573 = vor.u32 %v4568, %v4572
      %v4575 = vshll.u32 %v4551, 16
      %v4577 = vrot.slane %v4575, 1
      %v4578 = vsel %vm1313, %v4573, %v4577
      %v4580 = vshrl.u32 %v4504, 16
      %v4582 = vshll.u32 %v4504, 16
      %v4584 = vrot.slane %v4582, 1
      %v4585 = vor.u32 %v4580, %v4584
      %v4587 = vshll.u32 %v4552, 16
      %v4589 = vrot.slane %v4587, 1
      %v4590 = vsel %vm1313, %v4585, %v4589
      %v4592 = vshrl.u32 %v4505, 16
      %v4594 = vshll.u32 %v4505, 16
      %v4596 = vrot.slane %v4594, 1
      %v4597 = vor.u32 %v4592, %v4596
      %v4599 = vshll.u32 %v4553, 16
      %v4601 = vrot.slane %v4599, 1
      %v4602 = vsel %vm1313, %v4597, %v4601
      %v4604 = vshrl.u32 %v4506, 16
      %v4606 = vshll.u32 %v4506, 16
      %v4608 = vrot.slane %v4606, 1
      %v4609 = vor.u32 %v4604, %v4608
      %v4611 = vshll.u32 %v4554, 16
      %v4613 = vrot.slane %v4611, 1
      %v4614 = vsel %vm1313, %v4609, %v4613
      %v4616 = vshrl.u32 %v4507, 16
      %v4618 = vshll.u32 %v4507, 16
      %v4620 = vrot.slane %v4618, 1
      %v4621 = vor.u32 %v4616, %v4620
      %v4623 = vshll.u32 %v4555, 16
      %v4625 = vrot.slane %v4623, 1
      %v4626 = vsel %vm1313, %v4621, %v4625
      %v4628 = vshrl.u32 %v4508, 16
      %v4630 = vshll.u32 %v4508, 16
      %v4632 = vrot.slane %v4630, 1
      %v4633 = vor.u32 %v4628, %v4632
      %v4635 = vshll.u32 %v4556, 16
      %v4637 = vrot.slane %v4635, 1
      %v4638 = vsel %vm1313, %v4633, %v4637
      %v4640 = vshrl.u32 %v4509, 16
      %v4642 = vshll.u32 %v4509, 16
      %v4644 = vrot.slane %v4642, 1
      %v4645 = vor.u32 %v4640, %v4644
      %v4647 = vshll.u32 %v4557, 16
      %v4649 = vrot.slane %v4647, 1
      %v4650 = vsel %vm1313, %v4645, %v4649
      %v4652 = vshrl.u32 %v4510, 16
      %v4654 = vshll.u32 %v4510, 16
      %v4656 = vrot.slane %v4654, 1
      %v4657 = vor.u32 %v4652, %v4656
      %v4659 = vshll.u32 %v4558, 16
      %v4661 = vrot.slane %v4659, 1
      %v4662 = vsel %vm1313, %v4657, %v4661
      %v4664 = vshrl.u32 %v4511, 16
      %v4666 = vshll.u32 %v4511, 16
      %v4668 = vrot.slane %v4666, 1
      %v4669 = vor.u32 %v4664, %v4668
      %v4671 = vshll.u32 %v4559, 16
      %v4673 = vrot.slane %v4671, 1
      %v4674 = vsel %vm1313, %v4669, %v4673
      %v4676 = vshrl.u32 %v4512, 16
      %v4678 = vshll.u32 %v4512, 16
      %v4680 = vrot.slane %v4678, 1
      %v4681 = vor.u32 %v4676, %v4680
      %v4683 = vshll.u32 %v4560, 16
      %v4685 = vrot.slane %v4683, 1
      %v4686 = vsel %vm1313, %v4681, %v4685
      %v4688 = vshrl.u32 %v4513, 16
      %v4690 = vshll.u32 %v4513, 16
      %v4692 = vrot.slane %v4690, 1
      %v4693 = vor.u32 %v4688, %v4692
      %v4695 = vshll.u32 %v4561, 16
      %v4697 = vrot.slane %v4695, 1
      %v4698 = vsel %vm1313, %v4693, %v4697
      %v4700 = vshrl.u32 %v4514, 16
      %v4702 = vshll.u32 %v4514, 16
      %v4704 = vrot.slane %v4702, 1
      %v4705 = vor.u32 %v4700, %v4704
      %v4707 = vshll.u32 %v4562, 16
      %v4709 = vrot.slane %v4707, 1
      %v4710 = vsel %vm1313, %v4705, %v4709
      %v4712 = vshrl.u32 %v4515, 16
      %v4714 = vshll.u32 %v4515, 16
      %v4716 = vrot.slane %v4714, 1
      %v4717 = vor.u32 %v4712, %v4716
      %v4719 = vshll.u32 %v4563, 16
      %v4721 = vrot.slane %v4719, 1
      %v4722 = vsel %vm1313, %v4717, %v4721
      %v4724 = vshrl.u32 %v4516, 16
      %v4726 = vshll.u32 %v4516, 16
      %v4728 = vrot.slane %v4726, 1
      %v4729 = vor.u32 %v4724, %v4728
      %v4731 = vshll.u32 %v4564, 16
      %v4733 = vrot.slane %v4731, 1
      %v4734 = vsel %vm1313, %v4729, %v4733
      %v4736 = vshrl.u32 %v4517, 16
      %v4738 = vshll.u32 %v4517, 16
      %v4740 = vrot.slane %v4738, 1
      %v4741 = vor.u32 %v4736, %v4740
      %v4743 = vshll.u32 %v4565, 16
      %v4745 = vrot.slane %v4743, 1
      %v4746 = vsel %vm1313, %v4741, %v4745
      %v4748 = vshrl.u32 %v4518, 16
      %v4750 = vshll.u32 %v4518, 16
      %v4752 = vrot.slane %v4750, 1
      %v4753 = vor.u32 %v4748, %v4752
      %v4755 = vshll.u32 %v4566, 16
      %v4757 = vrot.slane %v4755, 1
      %v4758 = vsel %vm1313, %v4753, %v4757
      %4759 = vrot.lane.b32.xlu0 %v4578, 8
      %v4760 = vpop.permute.xlu0 %4759
      %4761 = vrot.lane.b32.xlu0 %v4590, 8
      %v4762 = vpop.permute.xlu0 %4761
      %4763 = vrot.lane.b32.xlu0 %v4602, 8
      %v4764 = vpop.permute.xlu0 %4763
      %4765 = vrot.lane.b32.xlu0 %v4614, 8
      %v4766 = vpop.permute.xlu0 %4765
      %4767 = vrot.lane.b32.xlu0 %v4626, 8
      %v4768 = vpop.permute.xlu0 %4767
      %4769 = vrot.lane.b32.xlu0 %v4638, 8
      %v4770 = vpop.permute.xlu0 %4769
      %4771 = vrot.lane.b32.xlu0 %v4650, 8
      %v4772 = vpop.permute.xlu0 %4771
      %4773 = vrot.lane.b32.xlu0 %v4662, 8
      %v4774 = vpop.permute.xlu0 %4773
      %4775 = vrot.lane.b32.xlu0 %v4674, 8
      %v4776 = vpop.permute.xlu0 %4775
      %4777 = vrot.lane.b32.xlu0 %v4686, 8
      %v4778 = vpop.permute.xlu0 %4777
      %4779 = vrot.lane.b32.xlu0 %v4698, 8
      %v4780 = vpop.permute.xlu0 %4779
      %4781 = vrot.lane.b32.xlu0 %v4710, 8
      %v4782 = vpop.permute.xlu0 %4781
      %4783 = vrot.lane.b32.xlu0 %v4722, 8
      %v4784 = vpop.permute.xlu0 %4783
      %4785 = vrot.lane.b32.xlu0 %v4734, 8
      %v4786 = vpop.permute.xlu0 %4785
      %4787 = vrot.lane.b32.xlu0 %v4746, 8
      %v4788 = vpop.permute.xlu0 %4787
      %4789 = vrot.lane.b32.xlu0 %v4758, 8
      %v4790 = vpop.permute.xlu0 %4789
      %v4807 = vunpack.c.l.b16 %v4295
      %v4808 = vunpack.c.l.b16 %v4296
      %v4809 = vunpack.c.l.b16 %v4297
      %v4810 = vunpack.c.l.b16 %v4298
      %v4811 = vunpack.c.l.b16 %v4299
      %v4812 = vunpack.c.l.b16 %v4300
      %v4813 = vunpack.c.l.b16 %v4301
      %v4814 = vunpack.c.l.b16 %v4302
      %v4815 = vunpack.c.l.b16 %v4303
      %v4816 = vunpack.c.l.b16 %v4304
      %v4817 = vunpack.c.l.b16 %v4305
      %v4818 = vunpack.c.l.b16 %v4306
      %v4819 = vunpack.c.l.b16 %v4307
      %v4820 = vunpack.c.l.b16 %v4308
      %v4821 = vunpack.c.l.b16 %v4309
      %v4822 = vunpack.c.l.b16 %v4310
      %v4823 = vpack.c.b16 %v4472, %v4807
      %v4824 = vpack.c.b16 %v4474, %v4808
      %v4825 = vpack.c.b16 %v4476, %v4809
      %v4826 = vpack.c.b16 %v4478, %v4810
      %v4827 = vpack.c.b16 %v4480, %v4811
      %v4828 = vpack.c.b16 %v4482, %v4812
      %v4829 = vpack.c.b16 %v4484, %v4813
      %v4830 = vpack.c.b16 %v4486, %v4814
      %v4831 = vpack.c.b16 %v4488, %v4815
      %v4832 = vpack.c.b16 %v4490, %v4816
      %v4833 = vpack.c.b16 %v4492, %v4817
      %v4834 = vpack.c.b16 %v4494, %v4818
      %v4835 = vpack.c.b16 %v4496, %v4819
      %v4836 = vpack.c.b16 %v4498, %v4820
      %v4837 = vpack.c.b16 %v4500, %v4821
      %v4838 = vpack.c.b16 %v4502, %v4822
      %v4839 = vrot.slane %v4823, 1
      %v4840 = vrot.slane %v4551, 1
      %v4841 = vsel %vm1586, %v4839, %v4840
      %v4842 = vrot.slane %v4824, 1
      %v4843 = vrot.slane %v4552, 1
      %v4844 = vsel %vm1586, %v4842, %v4843
      %v4845 = vrot.slane %v4825, 1
      %v4846 = vrot.slane %v4553, 1
      %v4847 = vsel %vm1586, %v4845, %v4846
      %v4848 = vrot.slane %v4826, 1
      %v4849 = vrot.slane %v4554, 1
      %v4850 = vsel %vm1586, %v4848, %v4849
      %v4851 = vrot.slane %v4827, 1
      %v4852 = vrot.slane %v4555, 1
      %v4853 = vsel %vm1586, %v4851, %v4852
      %v4854 = vrot.slane %v4828, 1
      %v4855 = vrot.slane %v4556, 1
      %v4856 = vsel %vm1586, %v4854, %v4855
      %v4857 = vrot.slane %v4829, 1
      %v4858 = vrot.slane %v4557, 1
      %v4859 = vsel %vm1586, %v4857, %v4858
      %v4860 = vrot.slane %v4830, 1
      %v4861 = vrot.slane %v4558, 1
      %v4862 = vsel %vm1586, %v4860, %v4861
      %v4863 = vrot.slane %v4831, 1
      %v4864 = vrot.slane %v4559, 1
      %v4865 = vsel %vm1586, %v4863, %v4864
      %v4866 = vrot.slane %v4832, 1
      %v4867 = vrot.slane %v4560, 1
      %v4868 = vsel %vm1586, %v4866, %v4867
      %v4869 = vrot.slane %v4833, 1
      %v4870 = vrot.slane %v4561, 1
      %v4871 = vsel %vm1586, %v4869, %v4870
      %v4872 = vrot.slane %v4834, 1
      %v4873 = vrot.slane %v4562, 1
      %v4874 = vsel %vm1586, %v4872, %v4873
      %v4875 = vrot.slane %v4835, 1
      %v4876 = vrot.slane %v4563, 1
      %v4877 = vsel %vm1586, %v4875, %v4876
      %v4878 = vrot.slane %v4836, 1
      %v4879 = vrot.slane %v4564, 1
      %v4880 = vsel %vm1586, %v4878, %v4879
      %v4881 = vrot.slane %v4837, 1
      %v4882 = vrot.slane %v4565, 1
      %v4883 = vsel %vm1586, %v4881, %v4882
      %v4884 = vrot.slane %v4838, 1
      %v4885 = vrot.slane %v4566, 1
      %v4886 = vsel %vm1586, %v4884, %v4885
      %4887 = vrot.lane.b32.xlu0 %v4841, 16
      %v4888 = vpop.permute.xlu0 %4887
      %4889 = vrot.lane.b32.xlu0 %v4844, 16
      %v4890 = vpop.permute.xlu0 %4889
      %4891 = vrot.lane.b32.xlu0 %v4847, 16
      %v4892 = vpop.permute.xlu0 %4891
      %4893 = vrot.lane.b32.xlu0 %v4850, 16
      %v4894 = vpop.permute.xlu0 %4893
      %4895 = vrot.lane.b32.xlu0 %v4853, 16
      %v4896 = vpop.permute.xlu0 %4895
      %4897 = vrot.lane.b32.xlu0 %v4856, 16
      %v4898 = vpop.permute.xlu0 %4897
      %4899 = vrot.lane.b32.xlu0 %v4859, 16
      %v4900 = vpop.permute.xlu0 %4899
      %4901 = vrot.lane.b32.xlu0 %v4862, 16
      %v4902 = vpop.permute.xlu0 %4901
      %4903 = vrot.lane.b32.xlu0 %v4865, 16
      %v4904 = vpop.permute.xlu0 %4903
      %4905 = vrot.lane.b32.xlu0 %v4868, 16
      %v4906 = vpop.permute.xlu0 %4905
      %4907 = vrot.lane.b32.xlu0 %v4871, 16
      %v4908 = vpop.permute.xlu0 %4907
      %4909 = vrot.lane.b32.xlu0 %v4874, 16
      %v4910 = vpop.permute.xlu0 %4909
      %4911 = vrot.lane.b32.xlu0 %v4877, 16
      %v4912 = vpop.permute.xlu0 %4911
      %4913 = vrot.lane.b32.xlu0 %v4880, 16
      %v4914 = vpop.permute.xlu0 %4913
      %4915 = vrot.lane.b32.xlu0 %v4883, 16
      %v4916 = vpop.permute.xlu0 %4915
      %4917 = vrot.lane.b32.xlu0 %v4886, 16
      %v4918 = vpop.permute.xlu0 %4917
      %v4951 = vunpack.c.l.b16 %v4311
      %v4952 = vunpack.c.l.b16 %v4312
      %v4953 = vunpack.c.l.b16 %v4313
      %v4954 = vunpack.c.l.b16 %v4314
      %v4955 = vunpack.c.l.b16 %v4315
      %v4956 = vunpack.c.l.b16 %v4316
      %v4957 = vunpack.c.l.b16 %v4317
      %v4958 = vunpack.c.l.b16 %v4318
      %v4959 = vunpack.c.l.b16 %v4319
      %v4960 = vunpack.c.l.b16 %v4320
      %v4961 = vunpack.c.l.b16 %v4321
      %v4962 = vunpack.c.l.b16 %v4322
      %v4963 = vunpack.c.l.b16 %v4323
      %v4964 = vunpack.c.l.b16 %v4324
      %v4965 = vunpack.c.l.b16 %v4325
      %v4966 = vunpack.c.l.b16 %v4326
      %v4967 = vunpack.c.l.b16 %v4327
      %v4968 = vunpack.c.l.b16 %v4328
      %v4969 = vunpack.c.l.b16 %v4329
      %v4970 = vunpack.c.l.b16 %v4330
      %v4971 = vunpack.c.l.b16 %v4331
      %v4972 = vunpack.c.l.b16 %v4332
      %v4973 = vunpack.c.l.b16 %v4333
      %v4974 = vunpack.c.l.b16 %v4334
      %v4975 = vunpack.c.l.b16 %v4335
      %v4976 = vunpack.c.l.b16 %v4336
      %v4977 = vunpack.c.l.b16 %v4337
      %v4978 = vunpack.c.l.b16 %v4338
      %v4979 = vunpack.c.l.b16 %v4339
      %v4980 = vunpack.c.l.b16 %v4340
      %v4981 = vunpack.c.l.b16 %v4341
      %v4982 = vunpack.c.l.b16 %v4342
      %v4983 = vpack.c.b16 %v4952, %v4951
      %v4984 = vpack.c.b16 %v4954, %v4953
      %v4985 = vpack.c.b16 %v4956, %v4955
      %v4986 = vpack.c.b16 %v4958, %v4957
      %v4987 = vpack.c.b16 %v4960, %v4959
      %v4988 = vpack.c.b16 %v4962, %v4961
      %v4989 = vpack.c.b16 %v4964, %v4963
      %v4990 = vpack.c.b16 %v4966, %v4965
      %v4991 = vpack.c.b16 %v4968, %v4967
      %v4992 = vpack.c.b16 %v4970, %v4969
      %v4993 = vpack.c.b16 %v4972, %v4971
      %v4994 = vpack.c.b16 %v4974, %v4973
      %v4995 = vpack.c.b16 %v4976, %v4975
      %v4996 = vpack.c.b16 %v4978, %v4977
      %v4997 = vpack.c.b16 %v4980, %v4979
      %v4998 = vpack.c.b16 %v4982, %v4981
      %4999 = vrot.lane.b32.xlu0 %v4983, 24
      %v5000 = vpop.permute.xlu0 %4999
      %5001 = vrot.lane.b32.xlu0 %v4984, 24
      %v5002 = vpop.permute.xlu0 %5001
      %5003 = vrot.lane.b32.xlu0 %v4985, 24
      %v5004 = vpop.permute.xlu0 %5003
      %5005 = vrot.lane.b32.xlu0 %v4986, 24
      %v5006 = vpop.permute.xlu0 %5005
      %5007 = vrot.lane.b32.xlu0 %v4987, 24
      %v5008 = vpop.permute.xlu0 %5007
      %5009 = vrot.lane.b32.xlu0 %v4988, 24
      %v5010 = vpop.permute.xlu0 %5009
      %5011 = vrot.lane.b32.xlu0 %v4989, 24
      %v5012 = vpop.permute.xlu0 %5011
      %5013 = vrot.lane.b32.xlu0 %v4990, 24
      %v5014 = vpop.permute.xlu0 %5013
      %5015 = vrot.lane.b32.xlu0 %v4991, 24
      %v5016 = vpop.permute.xlu0 %5015
      %5017 = vrot.lane.b32.xlu0 %v4992, 24
      %v5018 = vpop.permute.xlu0 %5017
      %5019 = vrot.lane.b32.xlu0 %v4993, 24
      %v5020 = vpop.permute.xlu0 %5019
      %5021 = vrot.lane.b32.xlu0 %v4994, 24
      %v5022 = vpop.permute.xlu0 %5021
      %5023 = vrot.lane.b32.xlu0 %v4995, 24
      %v5024 = vpop.permute.xlu0 %5023
      %5025 = vrot.lane.b32.xlu0 %v4996, 24
      %v5026 = vpop.permute.xlu0 %5025
      %5027 = vrot.lane.b32.xlu0 %v4997, 24
      %v5028 = vpop.permute.xlu0 %5027
      %5029 = vrot.lane.b32.xlu0 %v4998, 24
      %v5030 = vpop.permute.xlu0 %5029
      %v5047 = vunpack.c.l.b16 %v4343
      %v5048 = vunpack.c.l.b16 %v4344
      %v5049 = vunpack.c.l.b16 %v4345
      %v5050 = vunpack.c.l.b16 %v4346
      %v5051 = vunpack.c.l.b16 %v4347
      %v5052 = vunpack.c.l.b16 %v4348
      %v5053 = vunpack.c.l.b16 %v4349
      %v5054 = vunpack.c.l.b16 %v4350
      %v5055 = vunpack.c.l.b16 %v4351
      %v5056 = vunpack.c.l.b16 %v4352
      %v5057 = vunpack.c.l.b16 %v4353
      %v5058 = vunpack.c.l.b16 %v4354
      %v5059 = vunpack.c.l.b16 %v4355
      %v5060 = vunpack.c.l.b16 %v4356
      %v5061 = vunpack.c.l.b16 %v4357
      %v5062 = vunpack.c.l.b16 %v4358
      %v5063 = vpack.c.b16 %v5047, %v5047
      %v5064 = vpack.c.b16 %v5048, %v5048
      %v5065 = vpack.c.b16 %v5049, %v5049
      %v5066 = vpack.c.b16 %v5050, %v5050
      %v5067 = vpack.c.b16 %v5051, %v5051
      %v5068 = vpack.c.b16 %v5052, %v5052
      %v5069 = vpack.c.b16 %v5053, %v5053
      %v5070 = vpack.c.b16 %v5054, %v5054
      %v5071 = vpack.c.b16 %v5055, %v5055
      %v5072 = vpack.c.b16 %v5056, %v5056
      %v5073 = vpack.c.b16 %v5057, %v5057
      %v5074 = vpack.c.b16 %v5058, %v5058
      %v5075 = vpack.c.b16 %v5059, %v5059
      %v5076 = vpack.c.b16 %v5060, %v5060
      %v5077 = vpack.c.b16 %v5061, %v5061
      %v5078 = vpack.c.b16 %v5062, %v5062
      %v5080 = vshrl.u32 %v4983, 16
      %v5082 = vshll.u32 %v4983, 16
      %v5084 = vrot.slane %v5082, 1
      %v5085 = vor.u32 %v5080, %v5084
      %v5087 = vshll.u32 %v5063, 16
      %v5089 = vrot.slane %v5087, 1
      %v5090 = vsel %vm1313, %v5085, %v5089
      %v5092 = vshrl.u32 %v4984, 16
      %v5094 = vshll.u32 %v4984, 16
      %v5096 = vrot.slane %v5094, 1
      %v5097 = vor.u32 %v5092, %v5096
      %v5099 = vshll.u32 %v5064, 16
      %v5101 = vrot.slane %v5099, 1
      %v5102 = vsel %vm1313, %v5097, %v5101
      %v5104 = vshrl.u32 %v4985, 16
      %v5106 = vshll.u32 %v4985, 16
      %v5108 = vrot.slane %v5106, 1
      %v5109 = vor.u32 %v5104, %v5108
      %v5111 = vshll.u32 %v5065, 16
      %v5113 = vrot.slane %v5111, 1
      %v5114 = vsel %vm1313, %v5109, %v5113
      %v5116 = vshrl.u32 %v4986, 16
      %v5118 = vshll.u32 %v4986, 16
      %v5120 = vrot.slane %v5118, 1
      %v5121 = vor.u32 %v5116, %v5120
      %v5123 = vshll.u32 %v5066, 16
      %v5125 = vrot.slane %v5123, 1
      %v5126 = vsel %vm1313, %v5121, %v5125
      %v5128 = vshrl.u32 %v4987, 16
      %v5130 = vshll.u32 %v4987, 16
      %v5132 = vrot.slane %v5130, 1
      %v5133 = vor.u32 %v5128, %v5132
      %v5135 = vshll.u32 %v5067, 16
      %v5137 = vrot.slane %v5135, 1
      %v5138 = vsel %vm1313, %v5133, %v5137
      %v5140 = vshrl.u32 %v4988, 16
      %v5142 = vshll.u32 %v4988, 16
      %v5144 = vrot.slane %v5142, 1
      %v5145 = vor.u32 %v5140, %v5144
      %v5147 = vshll.u32 %v5068, 16
      %v5149 = vrot.slane %v5147, 1
      %v5150 = vsel %vm1313, %v5145, %v5149
      %v5152 = vshrl.u32 %v4989, 16
      %v5154 = vshll.u32 %v4989, 16
      %v5156 = vrot.slane %v5154, 1
      %v5157 = vor.u32 %v5152, %v5156
      %v5159 = vshll.u32 %v5069, 16
      %v5161 = vrot.slane %v5159, 1
      %v5162 = vsel %vm1313, %v5157, %v5161
      %v5164 = vshrl.u32 %v4990, 16
      %v5166 = vshll.u32 %v4990, 16
      %v5168 = vrot.slane %v5166, 1
      %v5169 = vor.u32 %v5164, %v5168
      %v5171 = vshll.u32 %v5070, 16
      %v5173 = vrot.slane %v5171, 1
      %v5174 = vsel %vm1313, %v5169, %v5173
      %v5176 = vshrl.u32 %v4991, 16
      %v5178 = vshll.u32 %v4991, 16
      %v5180 = vrot.slane %v5178, 1
      %v5181 = vor.u32 %v5176, %v5180
      %v5183 = vshll.u32 %v5071, 16
      %v5185 = vrot.slane %v5183, 1
      %v5186 = vsel %vm1313, %v5181, %v5185
      %v5188 = vshrl.u32 %v4992, 16
      %v5190 = vshll.u32 %v4992, 16
      %v5192 = vrot.slane %v5190, 1
      %v5193 = vor.u32 %v5188, %v5192
      %v5195 = vshll.u32 %v5072, 16
      %v5197 = vrot.slane %v5195, 1
      %v5198 = vsel %vm1313, %v5193, %v5197
      %v5200 = vshrl.u32 %v4993, 16
      %v5202 = vshll.u32 %v4993, 16
      %v5204 = vrot.slane %v5202, 1
      %v5205 = vor.u32 %v5200, %v5204
      %v5207 = vshll.u32 %v5073, 16
      %v5209 = vrot.slane %v5207, 1
      %v5210 = vsel %vm1313, %v5205, %v5209
      %v5212 = vshrl.u32 %v4994, 16
      %v5214 = vshll.u32 %v4994, 16
      %v5216 = vrot.slane %v5214, 1
      %v5217 = vor.u32 %v5212, %v5216
      %v5219 = vshll.u32 %v5074, 16
      %v5221 = vrot.slane %v5219, 1
      %v5222 = vsel %vm1313, %v5217, %v5221
      %v5224 = vshrl.u32 %v4995, 16
      %v5226 = vshll.u32 %v4995, 16
      %v5228 = vrot.slane %v5226, 1
      %v5229 = vor.u32 %v5224, %v5228
      %v5231 = vshll.u32 %v5075, 16
      %v5233 = vrot.slane %v5231, 1
      %v5234 = vsel %vm1313, %v5229, %v5233
      %v5236 = vshrl.u32 %v4996, 16
      %v5238 = vshll.u32 %v4996, 16
      %v5240 = vrot.slane %v5238, 1
      %v5241 = vor.u32 %v5236, %v5240
      %v5243 = vshll.u32 %v5076, 16
      %v5245 = vrot.slane %v5243, 1
      %v5246 = vsel %vm1313, %v5241, %v5245
      %v5248 = vshrl.u32 %v4997, 16
      %v5250 = vshll.u32 %v4997, 16
      %v5252 = vrot.slane %v5250, 1
      %v5253 = vor.u32 %v5248, %v5252
      %v5255 = vshll.u32 %v5077, 16
      %v5257 = vrot.slane %v5255, 1
      %v5258 = vsel %vm1313, %v5253, %v5257
      %v5260 = vshrl.u32 %v4998, 16
      %v5262 = vshll.u32 %v4998, 16
      %v5264 = vrot.slane %v5262, 1
      %v5265 = vor.u32 %v5260, %v5264
      %v5267 = vshll.u32 %v5078, 16
      %v5269 = vrot.slane %v5267, 1
      %v5270 = vsel %vm1313, %v5265, %v5269
      %5271 = vrot.lane.b32.xlu0 %v5090, 32
      %v5272 = vpop.permute.xlu0 %5271
      %5273 = vrot.lane.b32.xlu0 %v5102, 32
      %v5274 = vpop.permute.xlu0 %5273
      %5275 = vrot.lane.b32.xlu0 %v5114, 32
      %v5276 = vpop.permute.xlu0 %5275
      %5277 = vrot.lane.b32.xlu0 %v5126, 32
      %v5278 = vpop.permute.xlu0 %5277
      %5279 = vrot.lane.b32.xlu0 %v5138, 32
      %v5280 = vpop.permute.xlu0 %5279
      %5281 = vrot.lane.b32.xlu0 %v5150, 32
      %v5282 = vpop.permute.xlu0 %5281
      %5283 = vrot.lane.b32.xlu0 %v5162, 32
      %v5284 = vpop.permute.xlu0 %5283
      %5285 = vrot.lane.b32.xlu0 %v5174, 32
      %v5286 = vpop.permute.xlu0 %5285
      %5287 = vrot.lane.b32.xlu0 %v5186, 32
      %v5288 = vpop.permute.xlu0 %5287
      %5289 = vrot.lane.b32.xlu0 %v5198, 32
      %v5290 = vpop.permute.xlu0 %5289
      %5291 = vrot.lane.b32.xlu0 %v5210, 32
      %v5292 = vpop.permute.xlu0 %5291
      %5293 = vrot.lane.b32.xlu0 %v5222, 32
      %v5294 = vpop.permute.xlu0 %5293
      %5295 = vrot.lane.b32.xlu0 %v5234, 32
      %v5296 = vpop.permute.xlu0 %5295
      %5297 = vrot.lane.b32.xlu0 %v5246, 32
      %v5298 = vpop.permute.xlu0 %5297
      %5299 = vrot.lane.b32.xlu0 %v5258, 32
      %v5300 = vpop.permute.xlu0 %5299
      %5301 = vrot.lane.b32.xlu0 %v5270, 32
      %v5302 = vpop.permute.xlu0 %5301
      %v5319 = vunpack.c.l.b16 %v4359
      %v5320 = vunpack.c.l.b16 %v4360
      %v5321 = vunpack.c.l.b16 %v4361
      %v5322 = vunpack.c.l.b16 %v4362
      %v5323 = vunpack.c.l.b16 %v4363
      %v5324 = vunpack.c.l.b16 %v4364
      %v5325 = vunpack.c.l.b16 %v4365
      %v5326 = vunpack.c.l.b16 %v4366
      %v5327 = vunpack.c.l.b16 %v4367
      %v5328 = vunpack.c.l.b16 %v4368
      %v5329 = vunpack.c.l.b16 %v4369
      %v5330 = vunpack.c.l.b16 %v4370
      %v5331 = vunpack.c.l.b16 %v4371
      %v5332 = vunpack.c.l.b16 %v4372
      %v5333 = vunpack.c.l.b16 %v4373
      %v5334 = vunpack.c.l.b16 %v4374
      %v5335 = vpack.c.b16 %v4952, %v5319
      %v5336 = vpack.c.b16 %v4954, %v5320
      %v5337 = vpack.c.b16 %v4956, %v5321
      %v5338 = vpack.c.b16 %v4958, %v5322
      %v5339 = vpack.c.b16 %v4960, %v5323
      %v5340 = vpack.c.b16 %v4962, %v5324
      %v5341 = vpack.c.b16 %v4964, %v5325
      %v5342 = vpack.c.b16 %v4966, %v5326
      %v5343 = vpack.c.b16 %v4968, %v5327
      %v5344 = vpack.c.b16 %v4970, %v5328
      %v5345 = vpack.c.b16 %v4972, %v5329
      %v5346 = vpack.c.b16 %v4974, %v5330
      %v5347 = vpack.c.b16 %v4976, %v5331
      %v5348 = vpack.c.b16 %v4978, %v5332
      %v5349 = vpack.c.b16 %v4980, %v5333
      %v5350 = vpack.c.b16 %v4982, %v5334
      %v5351 = vrot.slane %v5335, 1
      %v5352 = vrot.slane %v5063, 1
      %v5353 = vsel %vm1586, %v5351, %v5352
      %v5354 = vrot.slane %v5336, 1
      %v5355 = vrot.slane %v5064, 1
      %v5356 = vsel %vm1586, %v5354, %v5355
      %v5357 = vrot.slane %v5337, 1
      %v5358 = vrot.slane %v5065, 1
      %v5359 = vsel %vm1586, %v5357, %v5358
      %v5360 = vrot.slane %v5338, 1
      %v5361 = vrot.slane %v5066, 1
      %v5362 = vsel %vm1586, %v5360, %v5361
      %v5363 = vrot.slane %v5339, 1
      %v5364 = vrot.slane %v5067, 1
      %v5365 = vsel %vm1586, %v5363, %v5364
      %v5366 = vrot.slane %v5340, 1
      %v5367 = vrot.slane %v5068, 1
      %v5368 = vsel %vm1586, %v5366, %v5367
      %v5369 = vrot.slane %v5341, 1
      %v5370 = vrot.slane %v5069, 1
      %v5371 = vsel %vm1586, %v5369, %v5370
      %v5372 = vrot.slane %v5342, 1
      %v5373 = vrot.slane %v5070, 1
      %v5374 = vsel %vm1586, %v5372, %v5373
      %v5375 = vrot.slane %v5343, 1
      %v5376 = vrot.slane %v5071, 1
      %v5377 = vsel %vm1586, %v5375, %v5376
      %v5378 = vrot.slane %v5344, 1
      %v5379 = vrot.slane %v5072, 1
      %v5380 = vsel %vm1586, %v5378, %v5379
      %v5381 = vrot.slane %v5345, 1
      %v5382 = vrot.slane %v5073, 1
      %v5383 = vsel %vm1586, %v5381, %v5382
      %v5384 = vrot.slane %v5346, 1
      %v5385 = vrot.slane %v5074, 1
      %v5386 = vsel %vm1586, %v5384, %v5385
      %v5387 = vrot.slane %v5347, 1
      %v5388 = vrot.slane %v5075, 1
      %v5389 = vsel %vm1586, %v5387, %v5388
      %v5390 = vrot.slane %v5348, 1
      %v5391 = vrot.slane %v5076, 1
      %v5392 = vsel %vm1586, %v5390, %v5391
      %v5393 = vrot.slane %v5349, 1
      %v5394 = vrot.slane %v5077, 1
      %v5395 = vsel %vm1586, %v5393, %v5394
      %v5396 = vrot.slane %v5350, 1
      %v5397 = vrot.slane %v5078, 1
      %v5398 = vsel %vm1586, %v5396, %v5397
      %5399 = vrot.lane.b32.xlu0 %v5353, 40
      %v5400 = vpop.permute.xlu0 %5399
      %5401 = vrot.lane.b32.xlu0 %v5356, 40
      %v5402 = vpop.permute.xlu0 %5401
      %5403 = vrot.lane.b32.xlu0 %v5359, 40
      %v5404 = vpop.permute.xlu0 %5403
      %5405 = vrot.lane.b32.xlu0 %v5362, 40
      %v5406 = vpop.permute.xlu0 %5405
      %5407 = vrot.lane.b32.xlu0 %v5365, 40
      %v5408 = vpop.permute.xlu0 %5407
      %5409 = vrot.lane.b32.xlu0 %v5368, 40
      %v5410 = vpop.permute.xlu0 %5409
      %5411 = vrot.lane.b32.xlu0 %v5371, 40
      %v5412 = vpop.permute.xlu0 %5411
      %5413 = vrot.lane.b32.xlu0 %v5374, 40
      %v5414 = vpop.permute.xlu0 %5413
      %5415 = vrot.lane.b32.xlu0 %v5377, 40
      %v5416 = vpop.permute.xlu0 %5415
      %5417 = vrot.lane.b32.xlu0 %v5380, 40
      %v5418 = vpop.permute.xlu0 %5417
      %5419 = vrot.lane.b32.xlu0 %v5383, 40
      %v5420 = vpop.permute.xlu0 %5419
      %5421 = vrot.lane.b32.xlu0 %v5386, 40
      %v5422 = vpop.permute.xlu0 %5421
      %5423 = vrot.lane.b32.xlu0 %v5389, 40
      %v5424 = vpop.permute.xlu0 %5423
      %5425 = vrot.lane.b32.xlu0 %v5392, 40
      %v5426 = vpop.permute.xlu0 %5425
      %5427 = vrot.lane.b32.xlu0 %v5395, 40
      %v5428 = vpop.permute.xlu0 %5427
      %5429 = vrot.lane.b32.xlu0 %v5398, 40
      %v5430 = vpop.permute.xlu0 %5429
      %v5463 = vunpack.c.l.b16 %v4375
      %v5464 = vunpack.c.l.b16 %v4376
      %v5465 = vunpack.c.l.b16 %v4377
      %v5466 = vunpack.c.l.b16 %v4378
      %v5467 = vunpack.c.l.b16 %v4379
      %v5468 = vunpack.c.l.b16 %v4380
      %v5469 = vunpack.c.l.b16 %v4381
      %v5470 = vunpack.c.l.b16 %v4382
      %v5471 = vunpack.c.l.b16 %v4383
      %v5472 = vunpack.c.l.b16 %v4384
      %v5473 = vunpack.c.l.b16 %v4385
      %v5474 = vunpack.c.l.b16 %v4386
      %v5475 = vunpack.c.l.b16 %v4387
      %v5476 = vunpack.c.l.b16 %v4388
      %v5477 = vunpack.c.l.b16 %v4389
      %v5478 = vunpack.c.l.b16 %v4390
      %v5479 = vunpack.c.l.b16 %v4391
      %v5480 = vunpack.c.l.b16 %v4392
      %v5481 = vunpack.c.l.b16 %v4393
      %v5482 = vunpack.c.l.b16 %v4394
      %v5483 = vunpack.c.l.b16 %v4395
      %v5484 = vunpack.c.l.b16 %v4396
      %v5485 = vunpack.c.l.b16 %v4397
      %v5486 = vunpack.c.l.b16 %v4398
      %v5487 = vunpack.c.l.b16 %v4399
      %v5488 = vunpack.c.l.b16 %v4400
      %v5489 = vunpack.c.l.b16 %v4401
      %v5490 = vunpack.c.l.b16 %v4402
      %v5491 = vunpack.c.l.b16 %v4403
      %v5492 = vunpack.c.l.b16 %v4404
      %v5493 = vunpack.c.l.b16 %v4405
      %v5494 = vunpack.c.l.b16 %v4406
      %v5495 = vpack.c.b16 %v5464, %v5463
      %v5496 = vpack.c.b16 %v5466, %v5465
      %v5497 = vpack.c.b16 %v5468, %v5467
      %v5498 = vpack.c.b16 %v5470, %v5469
      %v5499 = vpack.c.b16 %v5472, %v5471
      %v5500 = vpack.c.b16 %v5474, %v5473
      %v5501 = vpack.c.b16 %v5476, %v5475
      %v5502 = vpack.c.b16 %v5478, %v5477
      %v5503 = vpack.c.b16 %v5480, %v5479
      %v5504 = vpack.c.b16 %v5482, %v5481
      %v5505 = vpack.c.b16 %v5484, %v5483
      %v5506 = vpack.c.b16 %v5486, %v5485
      %v5507 = vpack.c.b16 %v5488, %v5487
      %v5508 = vpack.c.b16 %v5490, %v5489
      %v5509 = vpack.c.b16 %v5492, %v5491
      %v5510 = vpack.c.b16 %v5494, %v5493
      %5511 = vrot.lane.b32.xlu0 %v5495, 48
      %v5512 = vpop.permute.xlu0 %5511
      %5513 = vrot.lane.b32.xlu0 %v5496, 48
      %v5514 = vpop.permute.xlu0 %5513
      %5515 = vrot.lane.b32.xlu0 %v5497, 48
      %v5516 = vpop.permute.xlu0 %5515
      %5517 = vrot.lane.b32.xlu0 %v5498, 48
      %v5518 = vpop.permute.xlu0 %5517
      %5519 = vrot.lane.b32.xlu0 %v5499, 48
      %v5520 = vpop.permute.xlu0 %5519
      %5521 = vrot.lane.b32.xlu0 %v5500, 48
      %v5522 = vpop.permute.xlu0 %5521
      %5523 = vrot.lane.b32.xlu0 %v5501, 48
      %v5524 = vpop.permute.xlu0 %5523
      %5525 = vrot.lane.b32.xlu0 %v5502, 48
      %v5526 = vpop.permute.xlu0 %5525
      %5527 = vrot.lane.b32.xlu0 %v5503, 48
      %v5528 = vpop.permute.xlu0 %5527
      %5529 = vrot.lane.b32.xlu0 %v5504, 48
      %v5530 = vpop.permute.xlu0 %5529
      %5531 = vrot.lane.b32.xlu0 %v5505, 48
      %v5532 = vpop.permute.xlu0 %5531
      %5533 = vrot.lane.b32.xlu0 %v5506, 48
      %v5534 = vpop.permute.xlu0 %5533
      %5535 = vrot.lane.b32.xlu0 %v5507, 48
      %v5536 = vpop.permute.xlu0 %5535
      %5537 = vrot.lane.b32.xlu0 %v5508, 48
      %v5538 = vpop.permute.xlu0 %5537
      %5539 = vrot.lane.b32.xlu0 %v5509, 48
      %v5540 = vpop.permute.xlu0 %5539
      %5541 = vrot.lane.b32.xlu0 %v5510, 48
      %v5542 = vpop.permute.xlu0 %5541
      %v5559 = vunpack.c.l.b16 %v4407
      %v5560 = vunpack.c.l.b16 %v4408
      %v5561 = vunpack.c.l.b16 %v4409
      %v5562 = vunpack.c.l.b16 %v4410
      %v5563 = vunpack.c.l.b16 %v4411
      %v5564 = vunpack.c.l.b16 %v4412
      %v5565 = vunpack.c.l.b16 %v4413
      %v5566 = vunpack.c.l.b16 %v4414
      %v5567 = vunpack.c.l.b16 %v4415
      %v5568 = vunpack.c.l.b16 %v4416
      %v5569 = vunpack.c.l.b16 %v4417
      %v5570 = vunpack.c.l.b16 %v4418
      %v5571 = vunpack.c.l.b16 %v4419
      %v5572 = vunpack.c.l.b16 %v4420
      %v5573 = vunpack.c.l.b16 %v4421
      %v5574 = vunpack.c.l.b16 %v4422
      %v5575 = vpack.c.b16 %v5559, %v5559
      %v5576 = vpack.c.b16 %v5560, %v5560
      %v5577 = vpack.c.b16 %v5561, %v5561
      %v5578 = vpack.c.b16 %v5562, %v5562
      %v5579 = vpack.c.b16 %v5563, %v5563
      %v5580 = vpack.c.b16 %v5564, %v5564
      %v5581 = vpack.c.b16 %v5565, %v5565
      %v5582 = vpack.c.b16 %v5566, %v5566
      %v5583 = vpack.c.b16 %v5567, %v5567
      %v5584 = vpack.c.b16 %v5568, %v5568
      %v5585 = vpack.c.b16 %v5569, %v5569
      %v5586 = vpack.c.b16 %v5570, %v5570
      %v5587 = vpack.c.b16 %v5571, %v5571
      %v5588 = vpack.c.b16 %v5572, %v5572
      %v5589 = vpack.c.b16 %v5573, %v5573
      %v5590 = vpack.c.b16 %v5574, %v5574
      %v5592 = vshrl.u32 %v5495, 16
      %v5594 = vshll.u32 %v5495, 16
      %v5596 = vrot.slane %v5594, 1
      %v5597 = vor.u32 %v5592, %v5596
      %v5599 = vshll.u32 %v5575, 16
      %v5601 = vrot.slane %v5599, 1
      %v5602 = vsel %vm1313, %v5597, %v5601
      %v5604 = vshrl.u32 %v5496, 16
      %v5606 = vshll.u32 %v5496, 16
      %v5608 = vrot.slane %v5606, 1
      %v5609 = vor.u32 %v5604, %v5608
      %v5611 = vshll.u32 %v5576, 16
      %v5613 = vrot.slane %v5611, 1
      %v5614 = vsel %vm1313, %v5609, %v5613
      %v5616 = vshrl.u32 %v5497, 16
      %v5618 = vshll.u32 %v5497, 16
      %v5620 = vrot.slane %v5618, 1
      %v5621 = vor.u32 %v5616, %v5620
      %v5623 = vshll.u32 %v5577, 16
      %v5625 = vrot.slane %v5623, 1
      %v5626 = vsel %vm1313, %v5621, %v5625
      %v5628 = vshrl.u32 %v5498, 16
      %v5630 = vshll.u32 %v5498, 16
      %v5632 = vrot.slane %v5630, 1
      %v5633 = vor.u32 %v5628, %v5632
      %v5635 = vshll.u32 %v5578, 16
      %v5637 = vrot.slane %v5635, 1
      %v5638 = vsel %vm1313, %v5633, %v5637
      %v5640 = vshrl.u32 %v5499, 16
      %v5642 = vshll.u32 %v5499, 16
      %v5644 = vrot.slane %v5642, 1
      %v5645 = vor.u32 %v5640, %v5644
      %v5647 = vshll.u32 %v5579, 16
      %v5649 = vrot.slane %v5647, 1
      %v5650 = vsel %vm1313, %v5645, %v5649
      %v5652 = vshrl.u32 %v5500, 16
      %v5654 = vshll.u32 %v5500, 16
      %v5656 = vrot.slane %v5654, 1
      %v5657 = vor.u32 %v5652, %v5656
      %v5659 = vshll.u32 %v5580, 16
      %v5661 = vrot.slane %v5659, 1
      %v5662 = vsel %vm1313, %v5657, %v5661
      %v5664 = vshrl.u32 %v5501, 16
      %v5666 = vshll.u32 %v5501, 16
      %v5668 = vrot.slane %v5666, 1
      %v5669 = vor.u32 %v5664, %v5668
      %v5671 = vshll.u32 %v5581, 16
      %v5673 = vrot.slane %v5671, 1
      %v5674 = vsel %vm1313, %v5669, %v5673
      %v5676 = vshrl.u32 %v5502, 16
      %v5678 = vshll.u32 %v5502, 16
      %v5680 = vrot.slane %v5678, 1
      %v5681 = vor.u32 %v5676, %v5680
      %v5683 = vshll.u32 %v5582, 16
      %v5685 = vrot.slane %v5683, 1
      %v5686 = vsel %vm1313, %v5681, %v5685
      %v5688 = vshrl.u32 %v5503, 16
      %v5690 = vshll.u32 %v5503, 16
      %v5692 = vrot.slane %v5690, 1
      %v5693 = vor.u32 %v5688, %v5692
      %v5695 = vshll.u32 %v5583, 16
      %v5697 = vrot.slane %v5695, 1
      %v5698 = vsel %vm1313, %v5693, %v5697
      %v5700 = vshrl.u32 %v5504, 16
      %v5702 = vshll.u32 %v5504, 16
      %v5704 = vrot.slane %v5702, 1
      %v5705 = vor.u32 %v5700, %v5704
      %v5707 = vshll.u32 %v5584, 16
      %v5709 = vrot.slane %v5707, 1
      %v5710 = vsel %vm1313, %v5705, %v5709
      %v5712 = vshrl.u32 %v5505, 16
      %v5714 = vshll.u32 %v5505, 16
      %v5716 = vrot.slane %v5714, 1
      %v5717 = vor.u32 %v5712, %v5716
      %v5719 = vshll.u32 %v5585, 16
      %v5721 = vrot.slane %v5719, 1
      %v5722 = vsel %vm1313, %v5717, %v5721
      %v5724 = vshrl.u32 %v5506, 16
      %v5726 = vshll.u32 %v5506, 16
      %v5728 = vrot.slane %v5726, 1
      %v5729 = vor.u32 %v5724, %v5728
      %v5731 = vshll.u32 %v5586, 16
      %v5733 = vrot.slane %v5731, 1
      %v5734 = vsel %vm1313, %v5729, %v5733
      %v5736 = vshrl.u32 %v5507, 16
      %v5738 = vshll.u32 %v5507, 16
      %v5740 = vrot.slane %v5738, 1
      %v5741 = vor.u32 %v5736, %v5740
      %v5743 = vshll.u32 %v5587, 16
      %v5745 = vrot.slane %v5743, 1
      %v5746 = vsel %vm1313, %v5741, %v5745
      %v5748 = vshrl.u32 %v5508, 16
      %v5750 = vshll.u32 %v5508, 16
      %v5752 = vrot.slane %v5750, 1
      %v5753 = vor.u32 %v5748, %v5752
      %v5755 = vshll.u32 %v5588, 16
      %v5757 = vrot.slane %v5755, 1
      %v5758 = vsel %vm1313, %v5753, %v5757
      %v5760 = vshrl.u32 %v5509, 16
      %v5762 = vshll.u32 %v5509, 16
      %v5764 = vrot.slane %v5762, 1
      %v5765 = vor.u32 %v5760, %v5764
      %v5767 = vshll.u32 %v5589, 16
      %v5769 = vrot.slane %v5767, 1
      %v5770 = vsel %vm1313, %v5765, %v5769
      %v5772 = vshrl.u32 %v5510, 16
      %v5774 = vshll.u32 %v5510, 16
      %v5776 = vrot.slane %v5774, 1
      %v5777 = vor.u32 %v5772, %v5776
      %v5779 = vshll.u32 %v5590, 16
      %v5781 = vrot.slane %v5779, 1
      %v5782 = vsel %vm1313, %v5777, %v5781
      %5783 = vrot.lane.b32.xlu0 %v5602, 56
      %v5784 = vpop.permute.xlu0 %5783
      %5785 = vrot.lane.b32.xlu0 %v5614, 56
      %v5786 = vpop.permute.xlu0 %5785
      %5787 = vrot.lane.b32.xlu0 %v5626, 56
      %v5788 = vpop.permute.xlu0 %5787
      %5789 = vrot.lane.b32.xlu0 %v5638, 56
      %v5790 = vpop.permute.xlu0 %5789
      %5791 = vrot.lane.b32.xlu0 %v5650, 56
      %v5792 = vpop.permute.xlu0 %5791
      %5793 = vrot.lane.b32.xlu0 %v5662, 56
      %v5794 = vpop.permute.xlu0 %5793
      %5795 = vrot.lane.b32.xlu0 %v5674, 56
      %v5796 = vpop.permute.xlu0 %5795
      %5797 = vrot.lane.b32.xlu0 %v5686, 56
      %v5798 = vpop.permute.xlu0 %5797
      %5799 = vrot.lane.b32.xlu0 %v5698, 56
      %v5800 = vpop.permute.xlu0 %5799
      %5801 = vrot.lane.b32.xlu0 %v5710, 56
      %v5802 = vpop.permute.xlu0 %5801
      %5803 = vrot.lane.b32.xlu0 %v5722, 56
      %v5804 = vpop.permute.xlu0 %5803
      %5805 = vrot.lane.b32.xlu0 %v5734, 56
      %v5806 = vpop.permute.xlu0 %5805
      %5807 = vrot.lane.b32.xlu0 %v5746, 56
      %v5808 = vpop.permute.xlu0 %5807
      %5809 = vrot.lane.b32.xlu0 %v5758, 56
      %v5810 = vpop.permute.xlu0 %5809
      %5811 = vrot.lane.b32.xlu0 %v5770, 56
      %v5812 = vpop.permute.xlu0 %5811
      %5813 = vrot.lane.b32.xlu0 %v5782, 56
      %v5814 = vpop.permute.xlu0 %5813
      %v5831 = vunpack.c.l.b16 %v4423
      %v5832 = vunpack.c.l.b16 %v4424
      %v5833 = vunpack.c.l.b16 %v4425
      %v5834 = vunpack.c.l.b16 %v4426
      %v5835 = vunpack.c.l.b16 %v4427
      %v5836 = vunpack.c.l.b16 %v4428
      %v5837 = vunpack.c.l.b16 %v4429
      %v5838 = vunpack.c.l.b16 %v4430
      %v5839 = vunpack.c.l.b16 %v4431
      %v5840 = vunpack.c.l.b16 %v4432
      %v5841 = vunpack.c.l.b16 %v4433
      %v5842 = vunpack.c.l.b16 %v4434
      %v5843 = vunpack.c.l.b16 %v4435
      %v5844 = vunpack.c.l.b16 %v4436
      %v5845 = vunpack.c.l.b16 %v4437
      %v5846 = vunpack.c.l.b16 %v4438
      %v5847 = vpack.c.b16 %v5464, %v5831
      %v5848 = vpack.c.b16 %v5466, %v5832
      %v5849 = vpack.c.b16 %v5468, %v5833
      %v5850 = vpack.c.b16 %v5470, %v5834
      %v5851 = vpack.c.b16 %v5472, %v5835
      %v5852 = vpack.c.b16 %v5474, %v5836
      %v5853 = vpack.c.b16 %v5476, %v5837
      %v5854 = vpack.c.b16 %v5478, %v5838
      %v5855 = vpack.c.b16 %v5480, %v5839
      %v5856 = vpack.c.b16 %v5482, %v5840
      %v5857 = vpack.c.b16 %v5484, %v5841
      %v5858 = vpack.c.b16 %v5486, %v5842
      %v5859 = vpack.c.b16 %v5488, %v5843
      %v5860 = vpack.c.b16 %v5490, %v5844
      %v5861 = vpack.c.b16 %v5492, %v5845
      %v5862 = vpack.c.b16 %v5494, %v5846
      %v5863 = vrot.slane %v5847, 1
      %v5864 = vrot.slane %v5575, 1
      %v5865 = vsel %vm1586, %v5863, %v5864
      %v5866 = vrot.slane %v5848, 1
      %v5867 = vrot.slane %v5576, 1
      %v5868 = vsel %vm1586, %v5866, %v5867
      %v5869 = vrot.slane %v5849, 1
      %v5870 = vrot.slane %v5577, 1
      %v5871 = vsel %vm1586, %v5869, %v5870
      %v5872 = vrot.slane %v5850, 1
      %v5873 = vrot.slane %v5578, 1
      %v5874 = vsel %vm1586, %v5872, %v5873
      %v5875 = vrot.slane %v5851, 1
      %v5876 = vrot.slane %v5579, 1
      %v5877 = vsel %vm1586, %v5875, %v5876
      %v5878 = vrot.slane %v5852, 1
      %v5879 = vrot.slane %v5580, 1
      %v5880 = vsel %vm1586, %v5878, %v5879
      %v5881 = vrot.slane %v5853, 1
      %v5882 = vrot.slane %v5581, 1
      %v5883 = vsel %vm1586, %v5881, %v5882
      %v5884 = vrot.slane %v5854, 1
      %v5885 = vrot.slane %v5582, 1
      %v5886 = vsel %vm1586, %v5884, %v5885
      %v5887 = vrot.slane %v5855, 1
      %v5888 = vrot.slane %v5583, 1
      %v5889 = vsel %vm1586, %v5887, %v5888
      %v5890 = vrot.slane %v5856, 1
      %v5891 = vrot.slane %v5584, 1
      %v5892 = vsel %vm1586, %v5890, %v5891
      %v5893 = vrot.slane %v5857, 1
      %v5894 = vrot.slane %v5585, 1
      %v5895 = vsel %vm1586, %v5893, %v5894
      %v5896 = vrot.slane %v5858, 1
      %v5897 = vrot.slane %v5586, 1
      %v5898 = vsel %vm1586, %v5896, %v5897
      %v5899 = vrot.slane %v5859, 1
      %v5900 = vrot.slane %v5587, 1
      %v5901 = vsel %vm1586, %v5899, %v5900
      %v5902 = vrot.slane %v5860, 1
      %v5903 = vrot.slane %v5588, 1
      %v5904 = vsel %vm1586, %v5902, %v5903
      %v5905 = vrot.slane %v5861, 1
      %v5906 = vrot.slane %v5589, 1
      %v5907 = vsel %vm1586, %v5905, %v5906
      %v5908 = vrot.slane %v5862, 1
      %v5909 = vrot.slane %v5590, 1
      %v5910 = vsel %vm1586, %v5908, %v5909
      %5911 = vrot.lane.b32.xlu0 %v5865, 64
      %v5912 = vpop.permute.xlu0 %5911
      %5913 = vrot.lane.b32.xlu0 %v5868, 64
      %v5914 = vpop.permute.xlu0 %5913
      %5915 = vrot.lane.b32.xlu0 %v5871, 64
      %v5916 = vpop.permute.xlu0 %5915
      %5917 = vrot.lane.b32.xlu0 %v5874, 64
      %v5918 = vpop.permute.xlu0 %5917
      %5919 = vrot.lane.b32.xlu0 %v5877, 64
      %v5920 = vpop.permute.xlu0 %5919
      %5921 = vrot.lane.b32.xlu0 %v5880, 64
      %v5922 = vpop.permute.xlu0 %5921
      %5923 = vrot.lane.b32.xlu0 %v5883, 64
      %v5924 = vpop.permute.xlu0 %5923
      %5925 = vrot.lane.b32.xlu0 %v5886, 64
      %v5926 = vpop.permute.xlu0 %5925
      %5927 = vrot.lane.b32.xlu0 %v5889, 64
      %v5928 = vpop.permute.xlu0 %5927
      %5929 = vrot.lane.b32.xlu0 %v5892, 64
      %v5930 = vpop.permute.xlu0 %5929
      %5931 = vrot.lane.b32.xlu0 %v5895, 64
      %v5932 = vpop.permute.xlu0 %5931
      %5933 = vrot.lane.b32.xlu0 %v5898, 64
      %v5934 = vpop.permute.xlu0 %5933
      %5935 = vrot.lane.b32.xlu0 %v5901, 64
      %v5936 = vpop.permute.xlu0 %5935
      %5937 = vrot.lane.b32.xlu0 %v5904, 64
      %v5938 = vpop.permute.xlu0 %5937
      %5939 = vrot.lane.b32.xlu0 %v5907, 64
      %v5940 = vpop.permute.xlu0 %5939
      %5941 = vrot.lane.b32.xlu0 %v5910, 64
      %v5942 = vpop.permute.xlu0 %5941
      %v5944 = vsel %vm2724, %v4503, %v4760
      %v5946 = vsel %vm2724, %v4504, %v4762
      %v5948 = vsel %vm2724, %v4505, %v4764
      %v5950 = vsel %vm2724, %v4506, %v4766
      %v5952 = vsel %vm2724, %v4507, %v4768
      %v5954 = vsel %vm2724, %v4508, %v4770
      %v5956 = vsel %vm2724, %v4509, %v4772
      %v5958 = vsel %vm2724, %v4510, %v4774
      %v5960 = vsel %vm2724, %v4511, %v4776
      %v5962 = vsel %vm2724, %v4512, %v4778
      %v5964 = vsel %vm2724, %v4513, %v4780
      %v5966 = vsel %vm2724, %v4514, %v4782
      %v5968 = vsel %vm2724, %v4515, %v4784
      %v5970 = vsel %vm2724, %v4516, %v4786
      %v5972 = vsel %vm2724, %v4517, %v4788
      %v5974 = vsel %vm2724, %v4518, %v4790
      %v5976 = vsel %vm2790, %v5944, %v4888
      %v5978 = vsel %vm2790, %v5946, %v4890
      %v5980 = vsel %vm2790, %v5948, %v4892
      %v5982 = vsel %vm2790, %v5950, %v4894
      %v5984 = vsel %vm2790, %v5952, %v4896
      %v5986 = vsel %vm2790, %v5954, %v4898
      %v5988 = vsel %vm2790, %v5956, %v4900
      %v5990 = vsel %vm2790, %v5958, %v4902
      %v5992 = vsel %vm2790, %v5960, %v4904
      %v5994 = vsel %vm2790, %v5962, %v4906
      %v5996 = vsel %vm2790, %v5964, %v4908
      %v5998 = vsel %vm2790, %v5966, %v4910
      %v6000 = vsel %vm2790, %v5968, %v4912
      %v6002 = vsel %vm2790, %v5970, %v4914
      %v6004 = vsel %vm2790, %v5972, %v4916
      %v6006 = vsel %vm2790, %v5974, %v4918
      %v6008 = vsel %vm2856, %v5976, %v5000
      %v6010 = vsel %vm2856, %v5978, %v5002
      %v6012 = vsel %vm2856, %v5980, %v5004
      %v6014 = vsel %vm2856, %v5982, %v5006
      %v6016 = vsel %vm2856, %v5984, %v5008
      %v6018 = vsel %vm2856, %v5986, %v5010
      %v6020 = vsel %vm2856, %v5988, %v5012
      %v6022 = vsel %vm2856, %v5990, %v5014
      %v6024 = vsel %vm2856, %v5992, %v5016
      %v6026 = vsel %vm2856, %v5994, %v5018
      %v6028 = vsel %vm2856, %v5996, %v5020
      %v6030 = vsel %vm2856, %v5998, %v5022
      %v6032 = vsel %vm2856, %v6000, %v5024
      %v6034 = vsel %vm2856, %v6002, %v5026
      %v6036 = vsel %vm2856, %v6004, %v5028
      %v6038 = vsel %vm2856, %v6006, %v5030
      %v6040 = vsel %vm2922, %v6008, %v5272
      %v6042 = vsel %vm2922, %v6010, %v5274
      %v6044 = vsel %vm2922, %v6012, %v5276
      %v6046 = vsel %vm2922, %v6014, %v5278
      %v6048 = vsel %vm2922, %v6016, %v5280
      %v6050 = vsel %vm2922, %v6018, %v5282
      %v6052 = vsel %vm2922, %v6020, %v5284
      %v6054 = vsel %vm2922, %v6022, %v5286
      %v6056 = vsel %vm2922, %v6024, %v5288
      %v6058 = vsel %vm2922, %v6026, %v5290
      %v6060 = vsel %vm2922, %v6028, %v5292
      %v6062 = vsel %vm2922, %v6030, %v5294
      %v6064 = vsel %vm2922, %v6032, %v5296
      %v6066 = vsel %vm2922, %v6034, %v5298
      %v6068 = vsel %vm2922, %v6036, %v5300
      %v6070 = vsel %vm2922, %v6038, %v5302
      %vm6071 = vcmask 326656
      %v6073 = vsel %vm6071, %v6040, %v5400
      %v6075 = vsel %vm6071, %v6042, %v5402
      %v6077 = vsel %vm6071, %v6044, %v5404
      %v6079 = vsel %vm6071, %v6046, %v5406
      %v6081 = vsel %vm6071, %v6048, %v5408
      %v6083 = vsel %vm6071, %v6050, %v5410
      %v6085 = vsel %vm6071, %v6052, %v5412
      %v6087 = vsel %vm6071, %v6054, %v5414
      %v6089 = vsel %vm6071, %v6056, %v5416
      %v6091 = vsel %vm6071, %v6058, %v5418
      %v6093 = vsel %vm6071, %v6060, %v5420
      %v6095 = vsel %vm6071, %v6062, %v5422
      %v6097 = vsel %vm6071, %v6064, %v5424
      %v6099 = vsel %vm6071, %v6066, %v5426
      %v6101 = vsel %vm6071, %v6068, %v5428
      %v6103 = vsel %vm6071, %v6070, %v5430
      %vm6104 = vcmask 392192
      %v6106 = vsel %vm6104, %v6073, %v5512
      %v6108 = vsel %vm6104, %v6075, %v5514
      %v6110 = vsel %vm6104, %v6077, %v5516
      %v6112 = vsel %vm6104, %v6079, %v5518
      %v6114 = vsel %vm6104, %v6081, %v5520
      %v6116 = vsel %vm6104, %v6083, %v5522
      %v6118 = vsel %vm6104, %v6085, %v5524
      %v6120 = vsel %vm6104, %v6087, %v5526
      %v6122 = vsel %vm6104, %v6089, %v5528
      %v6124 = vsel %vm6104, %v6091, %v5530
      %v6126 = vsel %vm6104, %v6093, %v5532
      %v6128 = vsel %vm6104, %v6095, %v5534
      %v6130 = vsel %vm6104, %v6097, %v5536
      %v6132 = vsel %vm6104, %v6099, %v5538
      %v6134 = vsel %vm6104, %v6101, %v5540
      %v6136 = vsel %vm6104, %v6103, %v5542
      %vm6137 = vcmask 457728
      %v6139 = vsel %vm6137, %v6106, %v5784
      %v6141 = vsel %vm6137, %v6108, %v5786
      %v6143 = vsel %vm6137, %v6110, %v5788
      %v6145 = vsel %vm6137, %v6112, %v5790
      %v6147 = vsel %vm6137, %v6114, %v5792
      %v6149 = vsel %vm6137, %v6116, %v5794
      %v6151 = vsel %vm6137, %v6118, %v5796
      %v6153 = vsel %vm6137, %v6120, %v5798
      %v6155 = vsel %vm6137, %v6122, %v5800
      %v6157 = vsel %vm6137, %v6124, %v5802
      %v6159 = vsel %vm6137, %v6126, %v5804
      %v6161 = vsel %vm6137, %v6128, %v5806
      %v6163 = vsel %vm6137, %v6130, %v5808
      %v6165 = vsel %vm6137, %v6132, %v5810
      %v6167 = vsel %vm6137, %v6134, %v5812
      %v6169 = vsel %vm6137, %v6136, %v5814
      %vm6170 = vcmask 523264
      %v6172 = vsel %vm6170, %v6139, %v5912
      %v6174 = vsel %vm6170, %v6141, %v5914
      %v6176 = vsel %vm6170, %v6143, %v5916
      %v6178 = vsel %vm6170, %v6145, %v5918
      %v6180 = vsel %vm6170, %v6147, %v5920
      %v6182 = vsel %vm6170, %v6149, %v5922
      %v6184 = vsel %vm6170, %v6151, %v5924
      %v6186 = vsel %vm6170, %v6153, %v5926
      %v6188 = vsel %vm6170, %v6155, %v5928
      %v6190 = vsel %vm6170, %v6157, %v5930
      %v6192 = vsel %vm6170, %v6159, %v5932
      %v6194 = vsel %vm6170, %v6161, %v5934
      %v6196 = vsel %vm6170, %v6163, %v5936
      %v6198 = vsel %vm6170, %v6165, %v5938
      %v6200 = vsel %vm6170, %v6167, %v5940
      %v6202 = vsel %vm6170, %v6169, %v5942
      %v6203 = vld [vmem:[%s2] sm:$0xf]
      %v6204 = vld [vmem:[%s2 + $0x4] sm:$0xf]
      %v6205 = vld [vmem:[%s2 + $0x8] sm:$0xf]
      %v6206 = vld [vmem:[%s2 + $0xc] sm:$0xf]
      %v6207 = vld [vmem:[%s2 + $0x10] sm:$0xf]
      %v6208 = vld [vmem:[%s2 + $0x14] sm:$0xf]
      %v6209 = vld [vmem:[%s2 + $0x18] sm:$0xf]
      %v6210 = vld [vmem:[%s2 + $0x1c] sm:$0xf]
      %v6211 = vld [vmem:[%s2 + $0x20] sm:$0xf]
      %v6221 = vunpack.c.l.b16 %v6203
      %v6222 = vunpack.c.l.b16 %v6204
      %v6223 = vunpack.c.l.b16 %v6205
      %v6224 = vunpack.c.l.b16 %v6206
      %v6225 = vunpack.c.l.b16 %v6207
      %v6226 = vunpack.c.l.b16 %v6208
      %v6227 = vunpack.c.l.b16 %v6209
      %v6228 = vunpack.c.l.b16 %v6210
      %v6229 = vunpack.c.l.b16 %v6211
      %v6230 = vpack.c.b16 %v6222, %v6221
      %v6231 = vpack.c.b16 %v6224, %v6223
      %v6232 = vpack.c.b16 %v6226, %v6225
      %v6233 = vpack.c.b16 %v6228, %v6227
      %v6234 = vpack.c.b16 %v6229, %v6229
      %vm6239 = vcmask 588800
      %v6240 = vsel %vm6239, %v6172, 0
      %v6242 = vsel %vm6239, %v6174, 0
      %v6244 = vsel %vm6239, %v6176, 0
      %v6246 = vsel %vm6239, %v6178, 0
      %v6248 = vsel %vm6239, %v6180, 0
      %v6250 = vsel %vm6239, %v6182, 0
      %v6252 = vsel %vm6239, %v6184, 0
      %v6254 = vsel %vm6239, %v6186, 0
      %v6256 = vsel %vm6239, %v6188, 0
      %v6258 = vsel %vm6239, %v6190, 0
      %v6260 = vsel %vm6239, %v6192, 0
      %v6262 = vsel %vm6239, %v6194, 0
      %v6264 = vsel %vm6239, %v6196, 0
      %v6266 = vsel %vm6239, %v6198, 0
      %v6268 = vsel %vm6239, %v6200, 0
      %v6270 = vsel %vm6239, %v6202, 0
      %vm6272 = vcmask 1043456
      %v6274 = vsel %vm6272, %v6234, 0
      %6276 = vmatpush.bf16.msra.mxu0 0
      %6277 = vmatpush.bf16.msra.mxu0 0
      %6278 = vmatpush.bf16.msra.mxu0 0
      %6279 = vmatpush.bf16.msra.mxu0 %v6274
      %6280 = vmatpush.bf16.msra.mxu0 %v6233
      %6281 = vmatpush.bf16.msra.mxu0 %v6232
      %6282 = vmatpush.bf16.msra.mxu0 %v6231
      %6283 = vmatpush.bf16.msra.mxu0 %v6230
      %6284 = vmatmul.bf16.gmra.mxu0 %v6240
      %v6285 = vpop.f32.mrf.mxu0
      %v6286 = vadd.f32 0.0, %v6285
      %v6287 = vpop.f32.mrf.mxu0
      %v6288 = vadd.f32 0.0, %v6287
      %6289 = vmatmul.bf16.gmra.mxu0 %v6242
      %v6290 = vpop.f32.mrf.mxu0
      %v6291 = vadd.f32 0.0, %v6290
      %v6292 = vpop.f32.mrf.mxu0
      %v6293 = vadd.f32 0.0, %v6292
      %6294 = vmatmul.bf16.gmra.mxu0 %v6244
      %v6295 = vpop.f32.mrf.mxu0
      %v6296 = vadd.f32 0.0, %v6295
      %v6297 = vpop.f32.mrf.mxu0
      %v6298 = vadd.f32 0.0, %v6297
      %6299 = vmatmul.bf16.gmra.mxu0 %v6246
      %v6300 = vpop.f32.mrf.mxu0
      %v6301 = vadd.f32 0.0, %v6300
      %v6302 = vpop.f32.mrf.mxu0
      %v6303 = vadd.f32 0.0, %v6302
      %6304 = vmatmul.bf16.gmra.mxu0 %v6248
      %v6305 = vpop.f32.mrf.mxu0
      %v6306 = vadd.f32 0.0, %v6305
      %v6307 = vpop.f32.mrf.mxu0
      %v6308 = vadd.f32 0.0, %v6307
      %6309 = vmatmul.bf16.gmra.mxu0 %v6250
      %v6310 = vpop.f32.mrf.mxu0
      %v6311 = vadd.f32 0.0, %v6310
      %v6312 = vpop.f32.mrf.mxu0
      %v6313 = vadd.f32 0.0, %v6312
      %6314 = vmatmul.bf16.gmra.mxu0 %v6252
      %v6315 = vpop.f32.mrf.mxu0
      %v6316 = vadd.f32 0.0, %v6315
      %v6317 = vpop.f32.mrf.mxu0
      %v6318 = vadd.f32 0.0, %v6317
      %6319 = vmatmul.bf16.gmra.mxu0 %v6254
      %v6320 = vpop.f32.mrf.mxu0
      %v6321 = vadd.f32 0.0, %v6320
      %v6322 = vpop.f32.mrf.mxu0
      %v6323 = vadd.f32 0.0, %v6322
      %6324 = vmatmul.bf16.gmra.mxu0 %v6256
      %v6325 = vpop.f32.mrf.mxu0
      %v6326 = vadd.f32 0.0, %v6325
      %v6327 = vpop.f32.mrf.mxu0
      %v6328 = vadd.f32 0.0, %v6327
      %6329 = vmatmul.bf16.gmra.mxu0 %v6258
      %v6330 = vpop.f32.mrf.mxu0
      %v6331 = vadd.f32 0.0, %v6330
      %v6332 = vpop.f32.mrf.mxu0
      %v6333 = vadd.f32 0.0, %v6332
      %6334 = vmatmul.bf16.gmra.mxu0 %v6260
      %v6335 = vpop.f32.mrf.mxu0
      %v6336 = vadd.f32 0.0, %v6335
      %v6337 = vpop.f32.mrf.mxu0
      %v6338 = vadd.f32 0.0, %v6337
      %6339 = vmatmul.bf16.gmra.mxu0 %v6262
      %v6340 = vpop.f32.mrf.mxu0
      %v6341 = vadd.f32 0.0, %v6340
      %v6342 = vpop.f32.mrf.mxu0
      %v6343 = vadd.f32 0.0, %v6342
      %6344 = vmatmul.bf16.gmra.mxu0 %v6264
      %v6345 = vpop.f32.mrf.mxu0
      %v6346 = vadd.f32 0.0, %v6345
      %v6347 = vpop.f32.mrf.mxu0
      %v6348 = vadd.f32 0.0, %v6347
      %6349 = vmatmul.bf16.gmra.mxu0 %v6266
      %v6350 = vpop.f32.mrf.mxu0
      %v6351 = vadd.f32 0.0, %v6350
      %v6352 = vpop.f32.mrf.mxu0
      %v6353 = vadd.f32 0.0, %v6352
      %6354 = vmatmul.bf16.gmra.mxu0 %v6268
      %v6355 = vpop.f32.mrf.mxu0
      %v6356 = vadd.f32 0.0, %v6355
      %v6357 = vpop.f32.mrf.mxu0
      %v6358 = vadd.f32 0.0, %v6357
      %6359 = vmatmul.bf16.gmra.mxu0 %v6270
      %v6360 = vpop.f32.mrf.mxu0
      %v6361 = vadd.f32 0.0, %v6360
      %v6362 = vpop.f32.mrf.mxu0
      %v6363 = vadd.f32 0.0, %v6362
      %6364 = vdwg.mxu0
      %6365 = vst.msk [vmem:[#allocation3] sm:$0xff] %vm2724, %v6286
      %6366 = vst.msk [vmem:[#allocation3 + $0x8] sm:$0xff] %vm2724, %v6288
      %6367 = vst.msk [vmem:[#allocation3 + $0x10] sm:$0xff] %vm2724, %v6291
      %6368 = vst.msk [vmem:[#allocation3 + $0x18] sm:$0xff] %vm2724, %v6293
      %6369 = vst.msk [vmem:[#allocation3 + $0x20] sm:$0xff] %vm2724, %v6296
      %6370 = vst.msk [vmem:[#allocation3 + $0x28] sm:$0xff] %vm2724, %v6298
      %6371 = vst.msk [vmem:[#allocation3 + $0x30] sm:$0xff] %vm2724, %v6301
      %6372 = vst.msk [vmem:[#allocation3 + $0x38] sm:$0xff] %vm2724, %v6303
      %6373 = vst.msk [vmem:[#allocation3 + $0x40] sm:$0xff] %vm2724, %v6306
      %6374 = vst.msk [vmem:[#allocation3 + $0x48] sm:$0xff] %vm2724, %v6308
      %6375 = vst.msk [vmem:[#allocation3 + $0x50] sm:$0xff] %vm2724, %v6311
      %6376 = vst.msk [vmem:[#allocation3 + $0x58] sm:$0xff] %vm2724, %v6313
      %6377 = vst.msk [vmem:[#allocation3 + $0x60] sm:$0xff] %vm2724, %v6316
      %6378 = vst.msk [vmem:[#allocation3 + $0x68] sm:$0xff] %vm2724, %v6318
      %6379 = vst.msk [vmem:[#allocation3 + $0x70] sm:$0xff] %vm2724, %v6321
      %6380 = vst.msk [vmem:[#allocation3 + $0x78] sm:$0xff] %vm2724, %v6323
      %6381 = vst.msk [vmem:[#allocation3 + $0x80] sm:$0xff] %vm2724, %v6326
      %6382 = vst.msk [vmem:[#allocation3 + $0x88] sm:$0xff] %vm2724, %v6328
      %6383 = vst.msk [vmem:[#allocation3 + $0x90] sm:$0xff] %vm2724, %v6331
      %6384 = vst.msk [vmem:[#allocation3 + $0x98] sm:$0xff] %vm2724, %v6333
      %6385 = vst.msk [vmem:[#allocation3 + $0xa0] sm:$0xff] %vm2724, %v6336
      %6386 = vst.msk [vmem:[#allocation3 + $0xa8] sm:$0xff] %vm2724, %v6338
      %6387 = vst.msk [vmem:[#allocation3 + $0xb0] sm:$0xff] %vm2724, %v6341
      %6388 = vst.msk [vmem:[#allocation3 + $0xb8] sm:$0xff] %vm2724, %v6343
      %6389 = vst.msk [vmem:[#allocation3 + $0xc0] sm:$0xff] %vm2724, %v6346
      %6390 = vst.msk [vmem:[#allocation3 + $0xc8] sm:$0xff] %vm2724, %v6348
      %6391 = vst.msk [vmem:[#allocation3 + $0xd0] sm:$0xff] %vm2724, %v6351
      %6392 = vst.msk [vmem:[#allocation3 + $0xd8] sm:$0xff] %vm2724, %v6353
      %6393 = vst.msk [vmem:[#allocation3 + $0xe0] sm:$0xff] %vm2724, %v6356
      %6394 = vst.msk [vmem:[#allocation3 + $0xe8] sm:$0xff] %vm2724, %v6358
      %6395 = vst.msk [vmem:[#allocation3 + $0xf0] sm:$0xff] %vm2724, %v6361
      %6396 = vst.msk [vmem:[#allocation3 + $0xf8] sm:$0xff] %vm2724, %v6363
      %v6397 = vld [vmem:[#allocation5] sm:$0x1]
      %v6398 = vsel %vm2724, %v6286, 0.0
      %v6399 = vsel %vm2724, %v6288, 0.0
      %v6400 = vadd.f32 %v6398, %v6399
      %v6401 = vsel %vm2724, %v6291, 0.0
      %v6402 = vadd.f32 %v6400, %v6401
      %v6403 = vsel %vm2724, %v6293, 0.0
      %v6404 = vadd.f32 %v6402, %v6403
      %v6405 = vsel %vm2724, %v6296, 0.0
      %v6406 = vadd.f32 %v6404, %v6405
      %v6407 = vsel %vm2724, %v6298, 0.0
      %v6408 = vadd.f32 %v6406, %v6407
      %v6409 = vsel %vm2724, %v6301, 0.0
      %v6410 = vadd.f32 %v6408, %v6409
      %v6411 = vsel %vm2724, %v6303, 0.0
      %v6412 = vadd.f32 %v6410, %v6411
      %v6413 = vsel %vm2724, %v6306, 0.0
      %v6414 = vadd.f32 %v6412, %v6413
      %v6415 = vsel %vm2724, %v6308, 0.0
      %v6416 = vadd.f32 %v6414, %v6415
      %v6417 = vsel %vm2724, %v6311, 0.0
      %v6418 = vadd.f32 %v6416, %v6417
      %v6419 = vsel %vm2724, %v6313, 0.0
      %v6420 = vadd.f32 %v6418, %v6419
      %v6421 = vsel %vm2724, %v6316, 0.0
      %v6422 = vadd.f32 %v6420, %v6421
      %v6423 = vsel %vm2724, %v6318, 0.0
      %v6424 = vadd.f32 %v6422, %v6423
      %v6425 = vsel %vm2724, %v6321, 0.0
      %v6426 = vadd.f32 %v6424, %v6425
      %v6427 = vsel %vm2724, %v6323, 0.0
      %v6428 = vadd.f32 %v6426, %v6427
      %v6429 = vsel %vm2724, %v6326, 0.0
      %v6430 = vadd.f32 %v6428, %v6429
      %v6431 = vsel %vm2724, %v6328, 0.0
      %v6432 = vadd.f32 %v6430, %v6431
      %v6433 = vsel %vm2724, %v6331, 0.0
      %v6434 = vadd.f32 %v6432, %v6433
      %v6435 = vsel %vm2724, %v6333, 0.0
      %v6436 = vadd.f32 %v6434, %v6435
      %v6437 = vsel %vm2724, %v6336, 0.0
      %v6438 = vadd.f32 %v6436, %v6437
      %v6439 = vsel %vm2724, %v6338, 0.0
      %v6440 = vadd.f32 %v6438, %v6439
      %v6441 = vsel %vm2724, %v6341, 0.0
      %v6442 = vadd.f32 %v6440, %v6441
      %v6443 = vsel %vm2724, %v6343, 0.0
      %v6444 = vadd.f32 %v6442, %v6443
      %v6445 = vsel %vm2724, %v6346, 0.0
      %v6446 = vadd.f32 %v6444, %v6445
      %v6447 = vsel %vm2724, %v6348, 0.0
      %v6448 = vadd.f32 %v6446, %v6447
      %v6449 = vsel %vm2724, %v6351, 0.0
      %v6450 = vadd.f32 %v6448, %v6449
      %v6451 = vsel %vm2724, %v6353, 0.0
      %v6452 = vadd.f32 %v6450, %v6451
      %v6453 = vsel %vm2724, %v6356, 0.0
      %v6454 = vadd.f32 %v6452, %v6453
      %v6455 = vsel %vm2724, %v6358, 0.0
      %v6456 = vadd.f32 %v6454, %v6455
      %v6457 = vsel %vm2724, %v6361, 0.0
      %v6458 = vadd.f32 %v6456, %v6457
      %v6459 = vsel %vm2724, %v6363, 0.0
      %v6460 = vadd.f32 %v6458, %v6459
      %v6461 = vrot.slane %v6460, 4
      %v6462 = vadd.f32 %v6460, %v6461
      %v6463 = vrot.slane %v6462, 2
      %v6464 = vadd.f32 %v6462, %v6463
      %v6465 = vrot.slane %v6464, 1
      %v6466 = vadd.f32 %v6464, %v6465
      %v6467 = vadd.f32 %v6397, %v6466
      %6468 = vst.msk [vmem:[#allocation5] sm:$0x1] %vm990, %v6467
      %v6469 = vld [vmem:[#allocation6] sm:$0x1]
      %v6470 = vmul.f32 %v6286, %v6286
      %v6471 = vmul.f32 %v6288, %v6288
      %v6472 = vmul.f32 %v6291, %v6291
      %v6473 = vmul.f32 %v6293, %v6293
      %v6474 = vmul.f32 %v6296, %v6296
      %v6475 = vmul.f32 %v6298, %v6298
      %v6476 = vmul.f32 %v6301, %v6301
      %v6477 = vmul.f32 %v6303, %v6303
      %v6478 = vmul.f32 %v6306, %v6306
      %v6479 = vmul.f32 %v6308, %v6308
      %v6480 = vmul.f32 %v6311, %v6311
      %v6481 = vmul.f32 %v6313, %v6313
      %v6482 = vmul.f32 %v6316, %v6316
      %v6483 = vmul.f32 %v6318, %v6318
      %v6484 = vmul.f32 %v6321, %v6321
      %v6485 = vmul.f32 %v6323, %v6323
      %v6486 = vmul.f32 %v6326, %v6326
      %v6487 = vmul.f32 %v6328, %v6328
      %v6488 = vmul.f32 %v6331, %v6331
      %v6489 = vmul.f32 %v6333, %v6333
      %v6490 = vmul.f32 %v6336, %v6336
      %v6491 = vmul.f32 %v6338, %v6338
      %v6492 = vmul.f32 %v6341, %v6341
      %v6493 = vmul.f32 %v6343, %v6343
      %v6494 = vmul.f32 %v6346, %v6346
      %v6495 = vmul.f32 %v6348, %v6348
      %v6496 = vmul.f32 %v6351, %v6351
      %v6497 = vmul.f32 %v6353, %v6353
      %v6498 = vmul.f32 %v6356, %v6356
      %v6499 = vmul.f32 %v6358, %v6358
      %v6500 = vmul.f32 %v6361, %v6361
      %v6501 = vmul.f32 %v6363, %v6363
      %v6502 = vsel %vm2724, %v6470, 0.0
      %v6503 = vsel %vm2724, %v6471, 0.0
      %v6504 = vadd.f32 %v6502, %v6503
      %v6505 = vsel %vm2724, %v6472, 0.0
      %v6506 = vadd.f32 %v6504, %v6505
      %v6507 = vsel %vm2724, %v6473, 0.0
      %v6508 = vadd.f32 %v6506, %v6507
      %v6509 = vsel %vm2724, %v6474, 0.0
      %v6510 = vadd.f32 %v6508, %v6509
      %v6511 = vsel %vm2724, %v6475, 0.0
      %v6512 = vadd.f32 %v6510, %v6511
      %v6513 = vsel %vm2724, %v6476, 0.0
      %v6514 = vadd.f32 %v6512, %v6513
      %v6515 = vsel %vm2724, %v6477, 0.0
      %v6516 = vadd.f32 %v6514, %v6515
      %v6517 = vsel %vm2724, %v6478, 0.0
      %v6518 = vadd.f32 %v6516, %v6517
      %v6519 = vsel %vm2724, %v6479, 0.0
      %v6520 = vadd.f32 %v6518, %v6519
      %v6521 = vsel %vm2724, %v6480, 0.0
      %v6522 = vadd.f32 %v6520, %v6521
      %v6523 = vsel %vm2724, %v6481, 0.0
      %v6524 = vadd.f32 %v6522, %v6523
      %v6525 = vsel %vm2724, %v6482, 0.0
      %v6526 = vadd.f32 %v6524, %v6525
      %v6527 = vsel %vm2724, %v6483, 0.0
      %v6528 = vadd.f32 %v6526, %v6527
      %v6529 = vsel %vm2724, %v6484, 0.0
      %v6530 = vadd.f32 %v6528, %v6529
      %v6531 = vsel %vm2724, %v6485, 0.0
      %v6532 = vadd.f32 %v6530, %v6531
      %v6533 = vsel %vm2724, %v6486, 0.0
      %v6534 = vadd.f32 %v6532, %v6533
      %v6535 = vsel %vm2724, %v6487, 0.0
      %v6536 = vadd.f32 %v6534, %v6535
      %v6537 = vsel %vm2724, %v6488, 0.0
      %v6538 = vadd.f32 %v6536, %v6537
      %v6539 = vsel %vm2724, %v6489, 0.0
      %v6540 = vadd.f32 %v6538, %v6539
      %v6541 = vsel %vm2724, %v6490, 0.0
      %v6542 = vadd.f32 %v6540, %v6541
      %v6543 = vsel %vm2724, %v6491, 0.0
      %v6544 = vadd.f32 %v6542, %v6543
      %v6545 = vsel %vm2724, %v6492, 0.0
      %v6546 = vadd.f32 %v6544, %v6545
      %v6547 = vsel %vm2724, %v6493, 0.0
      %v6548 = vadd.f32 %v6546, %v6547
      %v6549 = vsel %vm2724, %v6494, 0.0
      %v6550 = vadd.f32 %v6548, %v6549
      %v6551 = vsel %vm2724, %v6495, 0.0
      %v6552 = vadd.f32 %v6550, %v6551
      %v6553 = vsel %vm2724, %v6496, 0.0
      %v6554 = vadd.f32 %v6552, %v6553
      %v6555 = vsel %vm2724, %v6497, 0.0
      %v6556 = vadd.f32 %v6554, %v6555
      %v6557 = vsel %vm2724, %v6498, 0.0
      %v6558 = vadd.f32 %v6556, %v6557
      %v6559 = vsel %vm2724, %v6499, 0.0
      %v6560 = vadd.f32 %v6558, %v6559
      %v6561 = vsel %vm2724, %v6500, 0.0
      %v6562 = vadd.f32 %v6560, %v6561
      %v6563 = vsel %vm2724, %v6501, 0.0
      %v6564 = vadd.f32 %v6562, %v6563
      %v6565 = vrot.slane %v6564, 4
      %v6566 = vadd.f32 %v6564, %v6565
      %v6567 = vrot.slane %v6566, 2
      %v6568 = vadd.f32 %v6566, %v6567
      %v6569 = vrot.slane %v6568, 1
      %v6570 = vadd.f32 %v6568, %v6569
      %v6571 = vadd.f32 %v6469, %v6570
      %6572 = vst.msk [vmem:[#allocation6] sm:$0x1] %vm990, %v6571
      %v6573 = vld [vmem:[#allocation5] sm:$0x1]
      %v6574 = vmul.f32 %v6573, 0.00390625
      %v6575 = vld [vmem:[#allocation6] sm:$0x1]
      %v6576 = vmul.f32 %v6575, 0.00390625
      %v6577 = vmul.f32 %v6574, %v6574
      %v6578 = vsub.f32 %v6576, %v6577
      %v6579 = vadd.f32 %v6578, 1e-05
      %v6580 = vrsqrt.pop %v6579
      %v6581 = vmul.f32 %v6580, %v6579
      %v6582 = vmul.f32 %v6581, %v6580
      %v6583 = vmul.f32 0.5, %v6582
      %v6584 = vsub.f32 1.5, %v6583
      %v6585 = vmul.f32 %v6580, %v6584
      %vm6586 = vweird.f32 %v6579
      %vm6587 = vweird.f32 %v6580
      %vm6588 = vmor %vm6586, %vm6587
      %v6589 = vsel %vm6588, %v6580, %v6585
      %v6590 = vld [vmem:[#allocation3] sm:$0xff]
      %v6591 = vld [vmem:[#allocation3 + $0x8] sm:$0xff]
      %v6592 = vld [vmem:[#allocation3 + $0x10] sm:$0xff]
      %v6593 = vld [vmem:[#allocation3 + $0x18] sm:$0xff]
      %v6594 = vld [vmem:[#allocation3 + $0x20] sm:$0xff]
      %v6595 = vld [vmem:[#allocation3 + $0x28] sm:$0xff]
      %v6596 = vld [vmem:[#allocation3 + $0x30] sm:$0xff]
      %v6597 = vld [vmem:[#allocation3 + $0x38] sm:$0xff]
      %v6598 = vld [vmem:[#allocation3 + $0x40] sm:$0xff]
      %v6599 = vld [vmem:[#allocation3 + $0x48] sm:$0xff]
      %v6600 = vld [vmem:[#allocation3 + $0x50] sm:$0xff]
      %v6601 = vld [vmem:[#allocation3 + $0x58] sm:$0xff]
      %v6602 = vld [vmem:[#allocation3 + $0x60] sm:$0xff]
      %v6603 = vld [vmem:[#allocation3 + $0x68] sm:$0xff]
      %v6604 = vld [vmem:[#allocation3 + $0x70] sm:$0xff]
      %v6605 = vld [vmem:[#allocation3 + $0x78] sm:$0xff]
      %v6606 = vld [vmem:[#allocation3 + $0x80] sm:$0xff]
      %v6607 = vld [vmem:[#allocation3 + $0x88] sm:$0xff]
      %v6608 = vld [vmem:[#allocation3 + $0x90] sm:$0xff]
      %v6609 = vld [vmem:[#allocation3 + $0x98] sm:$0xff]
      %v6610 = vld [vmem:[#allocation3 + $0xa0] sm:$0xff]
      %v6611 = vld [vmem:[#allocation3 + $0xa8] sm:$0xff]
      %v6612 = vld [vmem:[#allocation3 + $0xb0] sm:$0xff]
      %v6613 = vld [vmem:[#allocation3 + $0xb8] sm:$0xff]
      %v6614 = vld [vmem:[#allocation3 + $0xc0] sm:$0xff]
      %v6615 = vld [vmem:[#allocation3 + $0xc8] sm:$0xff]
      %v6616 = vld [vmem:[#allocation3 + $0xd0] sm:$0xff]
      %v6617 = vld [vmem:[#allocation3 + $0xd8] sm:$0xff]
      %v6618 = vld [vmem:[#allocation3 + $0xe0] sm:$0xff]
      %v6619 = vld [vmem:[#allocation3 + $0xe8] sm:$0xff]
      %v6620 = vld [vmem:[#allocation3 + $0xf0] sm:$0xff]
      %v6621 = vld [vmem:[#allocation3 + $0xf8] sm:$0xff]
      %v6623 = vperm.slane %v6574, 0
      %v6625 = vsub.f32 %v6590, %v6623
      %v6626 = vsub.f32 %v6591, %v6623
      %v6627 = vsub.f32 %v6592, %v6623
      %v6628 = vsub.f32 %v6593, %v6623
      %v6629 = vsub.f32 %v6594, %v6623
      %v6630 = vsub.f32 %v6595, %v6623
      %v6631 = vsub.f32 %v6596, %v6623
      %v6632 = vsub.f32 %v6597, %v6623
      %v6633 = vsub.f32 %v6598, %v6623
      %v6634 = vsub.f32 %v6599, %v6623
      %v6635 = vsub.f32 %v6600, %v6623
      %v6636 = vsub.f32 %v6601, %v6623
      %v6637 = vsub.f32 %v6602, %v6623
      %v6638 = vsub.f32 %v6603, %v6623
      %v6639 = vsub.f32 %v6604, %v6623
      %v6640 = vsub.f32 %v6605, %v6623
      %v6641 = vsub.f32 %v6606, %v6623
      %v6642 = vsub.f32 %v6607, %v6623
      %v6643 = vsub.f32 %v6608, %v6623
      %v6644 = vsub.f32 %v6609, %v6623
      %v6645 = vsub.f32 %v6610, %v6623
      %v6646 = vsub.f32 %v6611, %v6623
      %v6647 = vsub.f32 %v6612, %v6623
      %v6648 = vsub.f32 %v6613, %v6623
      %v6649 = vsub.f32 %v6614, %v6623
      %v6650 = vsub.f32 %v6615, %v6623
      %v6651 = vsub.f32 %v6616, %v6623
      %v6652 = vsub.f32 %v6617, %v6623
      %v6653 = vsub.f32 %v6618, %v6623
      %v6654 = vsub.f32 %v6619, %v6623
      %v6655 = vsub.f32 %v6620, %v6623
      %v6656 = vsub.f32 %v6621, %v6623
      %v6658 = vperm.slane %v6589, 0
      %v6660 = vmul.f32 %v6625, %v6658
      %v6661 = vmul.f32 %v6626, %v6658
      %v6662 = vmul.f32 %v6627, %v6658
      %v6663 = vmul.f32 %v6628, %v6658
      %v6664 = vmul.f32 %v6629, %v6658
      %v6665 = vmul.f32 %v6630, %v6658
      %v6666 = vmul.f32 %v6631, %v6658
      %v6667 = vmul.f32 %v6632, %v6658
      %v6668 = vmul.f32 %v6633, %v6658
      %v6669 = vmul.f32 %v6634, %v6658
      %v6670 = vmul.f32 %v6635, %v6658
      %v6671 = vmul.f32 %v6636, %v6658
      %v6672 = vmul.f32 %v6637, %v6658
      %v6673 = vmul.f32 %v6638, %v6658
      %v6674 = vmul.f32 %v6639, %v6658
      %v6675 = vmul.f32 %v6640, %v6658
      %v6676 = vmul.f32 %v6641, %v6658
      %v6677 = vmul.f32 %v6642, %v6658
      %v6678 = vmul.f32 %v6643, %v6658
      %v6679 = vmul.f32 %v6644, %v6658
      %v6680 = vmul.f32 %v6645, %v6658
      %v6681 = vmul.f32 %v6646, %v6658
      %v6682 = vmul.f32 %v6647, %v6658
      %v6683 = vmul.f32 %v6648, %v6658
      %v6684 = vmul.f32 %v6649, %v6658
      %v6685 = vmul.f32 %v6650, %v6658
      %v6686 = vmul.f32 %v6651, %v6658
      %v6687 = vmul.f32 %v6652, %v6658
      %v6688 = vmul.f32 %v6653, %v6658
      %v6689 = vmul.f32 %v6654, %v6658
      %v6690 = vmul.f32 %v6655, %v6658
      %v6691 = vmul.f32 %v6656, %v6658
      %vm6692 = vcmp.gt.f32.partialorder %v6660, 0.0
      %vm6693 = vcmp.gt.f32.partialorder %v6661, 0.0
      %vm6694 = vcmp.gt.f32.partialorder %v6662, 0.0
      %vm6695 = vcmp.gt.f32.partialorder %v6663, 0.0
      %vm6696 = vcmp.gt.f32.partialorder %v6664, 0.0
      %vm6697 = vcmp.gt.f32.partialorder %v6665, 0.0
      %vm6698 = vcmp.gt.f32.partialorder %v6666, 0.0
      %vm6699 = vcmp.gt.f32.partialorder %v6667, 0.0
      %vm6700 = vcmp.gt.f32.partialorder %v6668, 0.0
      %vm6701 = vcmp.gt.f32.partialorder %v6669, 0.0
      %vm6702 = vcmp.gt.f32.partialorder %v6670, 0.0
      %vm6703 = vcmp.gt.f32.partialorder %v6671, 0.0
      %vm6704 = vcmp.gt.f32.partialorder %v6672, 0.0
      %vm6705 = vcmp.gt.f32.partialorder %v6673, 0.0
      %vm6706 = vcmp.gt.f32.partialorder %v6674, 0.0
      %vm6707 = vcmp.gt.f32.partialorder %v6675, 0.0
      %vm6708 = vcmp.gt.f32.partialorder %v6676, 0.0
      %vm6709 = vcmp.gt.f32.partialorder %v6677, 0.0
      %vm6710 = vcmp.gt.f32.partialorder %v6678, 0.0
      %vm6711 = vcmp.gt.f32.partialorder %v6679, 0.0
      %vm6712 = vcmp.gt.f32.partialorder %v6680, 0.0
      %vm6713 = vcmp.gt.f32.partialorder %v6681, 0.0
      %vm6714 = vcmp.gt.f32.partialorder %v6682, 0.0
      %vm6715 = vcmp.gt.f32.partialorder %v6683, 0.0
      %vm6716 = vcmp.gt.f32.partialorder %v6684, 0.0
      %vm6717 = vcmp.gt.f32.partialorder %v6685, 0.0
      %vm6718 = vcmp.gt.f32.partialorder %v6686, 0.0
      %vm6719 = vcmp.gt.f32.partialorder %v6687, 0.0
      %vm6720 = vcmp.gt.f32.partialorder %v6688, 0.0
      %vm6721 = vcmp.gt.f32.partialorder %v6689, 0.0
      %vm6722 = vcmp.gt.f32.partialorder %v6690, 0.0
      %vm6723 = vcmp.gt.f32.partialorder %v6691, 0.0
      %v6724 = vmul.f32 %v6660, 0.25
      %v6725 = vmul.f32 %v6661, 0.25
      %v6726 = vmul.f32 %v6662, 0.25
      %v6727 = vmul.f32 %v6663, 0.25
      %v6728 = vmul.f32 %v6664, 0.25
      %v6729 = vmul.f32 %v6665, 0.25
      %v6730 = vmul.f32 %v6666, 0.25
      %v6731 = vmul.f32 %v6667, 0.25
      %v6732 = vmul.f32 %v6668, 0.25
      %v6733 = vmul.f32 %v6669, 0.25
      %v6734 = vmul.f32 %v6670, 0.25
      %v6735 = vmul.f32 %v6671, 0.25
      %v6736 = vmul.f32 %v6672, 0.25
      %v6737 = vmul.f32 %v6673, 0.25
      %v6738 = vmul.f32 %v6674, 0.25
      %v6739 = vmul.f32 %v6675, 0.25
      %v6740 = vmul.f32 %v6676, 0.25
      %v6741 = vmul.f32 %v6677, 0.25
      %v6742 = vmul.f32 %v6678, 0.25
      %v6743 = vmul.f32 %v6679, 0.25
      %v6744 = vmul.f32 %v6680, 0.25
      %v6745 = vmul.f32 %v6681, 0.25
      %v6746 = vmul.f32 %v6682, 0.25
      %v6747 = vmul.f32 %v6683, 0.25
      %v6748 = vmul.f32 %v6684, 0.25
      %v6749 = vmul.f32 %v6685, 0.25
      %v6750 = vmul.f32 %v6686, 0.25
      %v6751 = vmul.f32 %v6687, 0.25
      %v6752 = vmul.f32 %v6688, 0.25
      %v6753 = vmul.f32 %v6689, 0.25
      %v6754 = vmul.f32 %v6690, 0.25
      %v6755 = vmul.f32 %v6691, 0.25
      %v6756 = vsel %vm6692, %v6660, %v6724
      %v6757 = vsel %vm6693, %v6661, %v6725
      %v6758 = vsel %vm6694, %v6662, %v6726
      %v6759 = vsel %vm6695, %v6663, %v6727
      %v6760 = vsel %vm6696, %v6664, %v6728
      %v6761 = vsel %vm6697, %v6665, %v6729
      %v6762 = vsel %vm6698, %v6666, %v6730
      %v6763 = vsel %vm6699, %v6667, %v6731
      %v6764 = vsel %vm6700, %v6668, %v6732
      %v6765 = vsel %vm6701, %v6669, %v6733
      %v6766 = vsel %vm6702, %v6670, %v6734
      %v6767 = vsel %vm6703, %v6671, %v6735
      %v6768 = vsel %vm6704, %v6672, %v6736
      %v6769 = vsel %vm6705, %v6673, %v6737
      %v6770 = vsel %vm6706, %v6674, %v6738
      %v6771 = vsel %vm6707, %v6675, %v6739
      %v6772 = vsel %vm6708, %v6676, %v6740
      %v6773 = vsel %vm6709, %v6677, %v6741
      %v6774 = vsel %vm6710, %v6678, %v6742
      %v6775 = vsel %vm6711, %v6679, %v6743
      %v6776 = vsel %vm6712, %v6680, %v6744
      %v6777 = vsel %vm6713, %v6681, %v6745
      %v6778 = vsel %vm6714, %v6682, %v6746
      %v6779 = vsel %vm6715, %v6683, %v6747
      %v6780 = vsel %vm6716, %v6684, %v6748
      %v6781 = vsel %vm6717, %v6685, %v6749
      %v6782 = vsel %vm6718, %v6686, %v6750
      %v6783 = vsel %vm6719, %v6687, %v6751
      %v6784 = vsel %vm6720, %v6688, %v6752
      %v6785 = vsel %vm6721, %v6689, %v6753
      %v6786 = vsel %vm6722, %v6690, %v6754
      %v6787 = vsel %vm6723, %v6691, %v6755
      %v6788 = vpack.c.bf16 %v6756, %v6756
      %v6789 = vpack.c.bf16 %v6757, %v6757
      %v6790 = vpack.c.bf16 %v6758, %v6758
      %v6791 = vpack.c.bf16 %v6759, %v6759
      %v6792 = vpack.c.bf16 %v6760, %v6760
      %v6793 = vpack.c.bf16 %v6761, %v6761
      %v6794 = vpack.c.bf16 %v6762, %v6762
      %v6795 = vpack.c.bf16 %v6763, %v6763
      %v6796 = vpack.c.bf16 %v6764, %v6764
      %v6797 = vpack.c.bf16 %v6765, %v6765
      %v6798 = vpack.c.bf16 %v6766, %v6766
      %v6799 = vpack.c.bf16 %v6767, %v6767
      %v6800 = vpack.c.bf16 %v6768, %v6768
      %v6801 = vpack.c.bf16 %v6769, %v6769
      %v6802 = vpack.c.bf16 %v6770, %v6770
      %v6803 = vpack.c.bf16 %v6771, %v6771
      %v6804 = vpack.c.bf16 %v6772, %v6772
      %v6805 = vpack.c.bf16 %v6773, %v6773
      %v6806 = vpack.c.bf16 %v6774, %v6774
      %v6807 = vpack.c.bf16 %v6775, %v6775
      %v6808 = vpack.c.bf16 %v6776, %v6776
      %v6809 = vpack.c.bf16 %v6777, %v6777
      %v6810 = vpack.c.bf16 %v6778, %v6778
      %v6811 = vpack.c.bf16 %v6779, %v6779
      %v6812 = vpack.c.bf16 %v6780, %v6780
      %v6813 = vpack.c.bf16 %v6781, %v6781
      %v6814 = vpack.c.bf16 %v6782, %v6782
      %v6815 = vpack.c.bf16 %v6783, %v6783
      %v6816 = vpack.c.bf16 %v6784, %v6784
      %v6817 = vpack.c.bf16 %v6785, %v6785
      %v6818 = vpack.c.bf16 %v6786, %v6786
      %v6819 = vpack.c.bf16 %v6787, %v6787
      %v6821 = vshrl.u32 %v6788, 16
      %v6823 = vrot.slane %v6821, 7
      %v6824 = vshll.u32 %v6788, 16
      %v6826 = vor.u32 %v6823, %v6824
      %v6827 = vrot.slane %v6823, 4
      %v6829 = vshrl.u32 %v6789, 16
      %v6831 = vrot.slane %v6829, 7
      %v6832 = vshll.u32 %v6789, 16
      %v6834 = vor.u32 %v6831, %v6832
      %v6835 = vsel %vm233, %v6827, %v6834
      %v6836 = vrot.slane %v6831, 4
      %v6840 = vld [vmem:[%s554] sm:$0xf]
      %v6841 = vsel %vm678, %v6826, %v6840
      %6842 = vst [vmem:[%s554] sm:$0xf] %v6841
      %6843 = vst.msk [vmem:[%s554 + $0x4] sm:$0xf] %vm682, %v6835
      %v6844 = vld [vmem:[%s554 + $0x8] sm:$0x1]
      %v6845 = vsel %vm685, %v6836, %v6844
      %6846 = vst [vmem:[%s554 + $0x8] sm:$0x1] %v6845
      %v6848 = vshrl.u32 %v6790, 16
      %v6850 = vrot.slane %v6848, 7
      %v6851 = vshll.u32 %v6790, 16
      %v6853 = vor.u32 %v6850, %v6851
      %v6854 = vrot.slane %v6850, 4
      %v6856 = vshrl.u32 %v6791, 16
      %v6858 = vrot.slane %v6856, 7
      %v6859 = vshll.u32 %v6791, 16
      %v6861 = vor.u32 %v6858, %v6859
      %v6862 = vsel %vm233, %v6854, %v6861
      %v6863 = vrot.slane %v6858, 4
      %v6867 = vld [vmem:[%s673] sm:$0xf]
      %v6868 = vsel %vm678, %v6853, %v6867
      %6869 = vst [vmem:[%s673] sm:$0xf] %v6868
      %6870 = vst.msk [vmem:[%s673 + $0x4] sm:$0xf] %vm682, %v6862
      %v6871 = vld [vmem:[%s673 + $0x8] sm:$0x1]
      %v6872 = vsel %vm685, %v6863, %v6871
      %6873 = vst [vmem:[%s673 + $0x8] sm:$0x1] %v6872
      %v6875 = vshrl.u32 %v6792, 16
      %v6877 = vrot.slane %v6875, 7
      %v6878 = vshll.u32 %v6792, 16
      %v6880 = vor.u32 %v6877, %v6878
      %v6881 = vrot.slane %v6877, 4
      %v6883 = vshrl.u32 %v6793, 16
      %v6885 = vrot.slane %v6883, 7
      %v6886 = vshll.u32 %v6793, 16
      %v6888 = vor.u32 %v6885, %v6886
      %v6889 = vsel %vm233, %v6881, %v6888
      %v6890 = vrot.slane %v6885, 4
      %v6894 = vld [vmem:[%s3566] sm:$0xf]
      %v6895 = vsel %vm678, %v6880, %v6894
      %6896 = vst [vmem:[%s3566] sm:$0xf] %v6895
      %6897 = vst.msk [vmem:[%s3566 + $0x4] sm:$0xf] %vm682, %v6889
      %v6898 = vld [vmem:[%s3566 + $0x8] sm:$0x1]
      %v6899 = vsel %vm685, %v6890, %v6898
      %6900 = vst [vmem:[%s3566 + $0x8] sm:$0x1] %v6899
      %v6902 = vshrl.u32 %v6794, 16
      %v6904 = vrot.slane %v6902, 7
      %v6905 = vshll.u32 %v6794, 16
      %v6907 = vor.u32 %v6904, %v6905
      %v6908 = vrot.slane %v6904, 4
      %v6910 = vshrl.u32 %v6795, 16
      %v6912 = vrot.slane %v6910, 7
      %v6913 = vshll.u32 %v6795, 16
      %v6915 = vor.u32 %v6912, %v6913
      %v6916 = vsel %vm233, %v6908, %v6915
      %v6917 = vrot.slane %v6912, 4
      %v6921 = vld [vmem:[%s3594] sm:$0xf]
      %v6922 = vsel %vm678, %v6907, %v6921
      %6923 = vst [vmem:[%s3594] sm:$0xf] %v6922
      %6924 = vst.msk [vmem:[%s3594 + $0x4] sm:$0xf] %vm682, %v6916
      %v6925 = vld [vmem:[%s3594 + $0x8] sm:$0x1]
      %v6926 = vsel %vm685, %v6917, %v6925
      %6927 = vst [vmem:[%s3594 + $0x8] sm:$0x1] %v6926
      %v6929 = vshrl.u32 %v6796, 16
      %v6931 = vrot.slane %v6929, 7
      %v6932 = vshll.u32 %v6796, 16
      %v6934 = vor.u32 %v6931, %v6932
      %v6935 = vrot.slane %v6931, 4
      %v6937 = vshrl.u32 %v6797, 16
      %v6939 = vrot.slane %v6937, 7
      %v6940 = vshll.u32 %v6797, 16
      %v6942 = vor.u32 %v6939, %v6940
      %v6943 = vsel %vm233, %v6935, %v6942
      %v6944 = vrot.slane %v6939, 4
      %v6948 = vld [vmem:[%s3622] sm:$0xf]
      %v6949 = vsel %vm678, %v6934, %v6948
      %6950 = vst [vmem:[%s3622] sm:$0xf] %v6949
      %6951 = vst.msk [vmem:[%s3622 + $0x4] sm:$0xf] %vm682, %v6943
      %v6952 = vld [vmem:[%s3622 + $0x8] sm:$0x1]
      %v6953 = vsel %vm685, %v6944, %v6952
      %6954 = vst [vmem:[%s3622 + $0x8] sm:$0x1] %v6953
      %v6956 = vshrl.u32 %v6798, 16
      %v6958 = vrot.slane %v6956, 7
      %v6959 = vshll.u32 %v6798, 16
      %v6961 = vor.u32 %v6958, %v6959
      %v6962 = vrot.slane %v6958, 4
      %v6964 = vshrl.u32 %v6799, 16
      %v6966 = vrot.slane %v6964, 7
      %v6967 = vshll.u32 %v6799, 16
      %v6969 = vor.u32 %v6966, %v6967
      %v6970 = vsel %vm233, %v6962, %v6969
      %v6971 = vrot.slane %v6966, 4
      %v6975 = vld [vmem:[%s3650] sm:$0xf]
      %v6976 = vsel %vm678, %v6961, %v6975
      %6977 = vst [vmem:[%s3650] sm:$0xf] %v6976
      %6978 = vst.msk [vmem:[%s3650 + $0x4] sm:$0xf] %vm682, %v6970
      %v6979 = vld [vmem:[%s3650 + $0x8] sm:$0x1]
      %v6980 = vsel %vm685, %v6971, %v6979
      %6981 = vst [vmem:[%s3650 + $0x8] sm:$0x1] %v6980
      %v6983 = vshrl.u32 %v6800, 16
      %v6985 = vrot.slane %v6983, 7
      %v6986 = vshll.u32 %v6800, 16
      %v6988 = vor.u32 %v6985, %v6986
      %v6989 = vrot.slane %v6985, 4
      %v6991 = vshrl.u32 %v6801, 16
      %v6993 = vrot.slane %v6991, 7
      %v6994 = vshll.u32 %v6801, 16
      %v6996 = vor.u32 %v6993, %v6994
      %v6997 = vsel %vm233, %v6989, %v6996
      %v6998 = vrot.slane %v6993, 4
      %v7002 = vld [vmem:[%s3678] sm:$0xf]
      %v7003 = vsel %vm678, %v6988, %v7002
      %7004 = vst [vmem:[%s3678] sm:$0xf] %v7003
      %7005 = vst.msk [vmem:[%s3678 + $0x4] sm:$0xf] %vm682, %v6997
      %v7006 = vld [vmem:[%s3678 + $0x8] sm:$0x1]
      %v7007 = vsel %vm685, %v6998, %v7006
      %7008 = vst [vmem:[%s3678 + $0x8] sm:$0x1] %v7007
      %v7010 = vshrl.u32 %v6802, 16
      %v7012 = vrot.slane %v7010, 7
      %v7013 = vshll.u32 %v6802, 16
      %v7015 = vor.u32 %v7012, %v7013
      %v7016 = vrot.slane %v7012, 4
      %v7018 = vshrl.u32 %v6803, 16
      %v7020 = vrot.slane %v7018, 7
      %v7021 = vshll.u32 %v6803, 16
      %v7023 = vor.u32 %v7020, %v7021
      %v7024 = vsel %vm233, %v7016, %v7023
      %v7025 = vrot.slane %v7020, 4
      %v7029 = vld [vmem:[%s3706] sm:$0xf]
      %v7030 = vsel %vm678, %v7015, %v7029
      %7031 = vst [vmem:[%s3706] sm:$0xf] %v7030
      %7032 = vst.msk [vmem:[%s3706 + $0x4] sm:$0xf] %vm682, %v7024
      %v7033 = vld [vmem:[%s3706 + $0x8] sm:$0x1]
      %v7034 = vsel %vm685, %v7025, %v7033
      %7035 = vst [vmem:[%s3706 + $0x8] sm:$0x1] %v7034
      %v7037 = vshrl.u32 %v6804, 16
      %v7039 = vrot.slane %v7037, 7
      %v7040 = vshll.u32 %v6804, 16
      %v7042 = vor.u32 %v7039, %v7040
      %v7043 = vrot.slane %v7039, 4
      %v7045 = vshrl.u32 %v6805, 16
      %v7047 = vrot.slane %v7045, 7
      %v7048 = vshll.u32 %v6805, 16
      %v7050 = vor.u32 %v7047, %v7048
      %v7051 = vsel %vm233, %v7043, %v7050
      %v7052 = vrot.slane %v7047, 4
      %v7056 = vld [vmem:[%s3734] sm:$0xf]
      %v7057 = vsel %vm678, %v7042, %v7056
      %7058 = vst [vmem:[%s3734] sm:$0xf] %v7057
      %7059 = vst.msk [vmem:[%s3734 + $0x4] sm:$0xf] %vm682, %v7051
      %v7060 = vld [vmem:[%s3734 + $0x8] sm:$0x1]
      %v7061 = vsel %vm685, %v7052, %v7060
      %7062 = vst [vmem:[%s3734 + $0x8] sm:$0x1] %v7061
      %v7064 = vshrl.u32 %v6806, 16
      %v7066 = vrot.slane %v7064, 7
      %v7067 = vshll.u32 %v6806, 16
      %v7069 = vor.u32 %v7066, %v7067
      %v7070 = vrot.slane %v7066, 4
      %v7072 = vshrl.u32 %v6807, 16
      %v7074 = vrot.slane %v7072, 7
      %v7075 = vshll.u32 %v6807, 16
      %v7077 = vor.u32 %v7074, %v7075
      %v7078 = vsel %vm233, %v7070, %v7077
      %v7079 = vrot.slane %v7074, 4
      %v7083 = vld [vmem:[%s3762] sm:$0xf]
      %v7084 = vsel %vm678, %v7069, %v7083
      %7085 = vst [vmem:[%s3762] sm:$0xf] %v7084
      %7086 = vst.msk [vmem:[%s3762 + $0x4] sm:$0xf] %vm682, %v7078
      %v7087 = vld [vmem:[%s3762 + $0x8] sm:$0x1]
      %v7088 = vsel %vm685, %v7079, %v7087
      %7089 = vst [vmem:[%s3762 + $0x8] sm:$0x1] %v7088
      %v7091 = vshrl.u32 %v6808, 16
      %v7093 = vrot.slane %v7091, 7
      %v7094 = vshll.u32 %v6808, 16
      %v7096 = vor.u32 %v7093, %v7094
      %v7097 = vrot.slane %v7093, 4
      %v7099 = vshrl.u32 %v6809, 16
      %v7101 = vrot.slane %v7099, 7
      %v7102 = vshll.u32 %v6809, 16
      %v7104 = vor.u32 %v7101, %v7102
      %v7105 = vsel %vm233, %v7097, %v7104
      %v7106 = vrot.slane %v7101, 4
      %v7110 = vld [vmem:[%s3790] sm:$0xf]
      %v7111 = vsel %vm678, %v7096, %v7110
      %7112 = vst [vmem:[%s3790] sm:$0xf] %v7111
      %7113 = vst.msk [vmem:[%s3790 + $0x4] sm:$0xf] %vm682, %v7105
      %v7114 = vld [vmem:[%s3790 + $0x8] sm:$0x1]
      %v7115 = vsel %vm685, %v7106, %v7114
      %7116 = vst [vmem:[%s3790 + $0x8] sm:$0x1] %v7115
      %v7118 = vshrl.u32 %v6810, 16
      %v7120 = vrot.slane %v7118, 7
      %v7121 = vshll.u32 %v6810, 16
      %v7123 = vor.u32 %v7120, %v7121
      %v7124 = vrot.slane %v7120, 4
      %v7126 = vshrl.u32 %v6811, 16
      %v7128 = vrot.slane %v7126, 7
      %v7129 = vshll.u32 %v6811, 16
      %v7131 = vor.u32 %v7128, %v7129
      %v7132 = vsel %vm233, %v7124, %v7131
      %v7133 = vrot.slane %v7128, 4
      %v7137 = vld [vmem:[%s3818] sm:$0xf]
      %v7138 = vsel %vm678, %v7123, %v7137
      %7139 = vst [vmem:[%s3818] sm:$0xf] %v7138
      %7140 = vst.msk [vmem:[%s3818 + $0x4] sm:$0xf] %vm682, %v7132
      %v7141 = vld [vmem:[%s3818 + $0x8] sm:$0x1]
      %v7142 = vsel %vm685, %v7133, %v7141
      %7143 = vst [vmem:[%s3818 + $0x8] sm:$0x1] %v7142
      %v7145 = vshrl.u32 %v6812, 16
      %v7147 = vrot.slane %v7145, 7
      %v7148 = vshll.u32 %v6812, 16
      %v7150 = vor.u32 %v7147, %v7148
      %v7151 = vrot.slane %v7147, 4
      %v7153 = vshrl.u32 %v6813, 16
      %v7155 = vrot.slane %v7153, 7
      %v7156 = vshll.u32 %v6813, 16
      %v7158 = vor.u32 %v7155, %v7156
      %v7159 = vsel %vm233, %v7151, %v7158
      %v7160 = vrot.slane %v7155, 4
      %v7164 = vld [vmem:[%s3846] sm:$0xf]
      %v7165 = vsel %vm678, %v7150, %v7164
      %7166 = vst [vmem:[%s3846] sm:$0xf] %v7165
      %7167 = vst.msk [vmem:[%s3846 + $0x4] sm:$0xf] %vm682, %v7159
      %v7168 = vld [vmem:[%s3846 + $0x8] sm:$0x1]
      %v7169 = vsel %vm685, %v7160, %v7168
      %7170 = vst [vmem:[%s3846 + $0x8] sm:$0x1] %v7169
      %v7172 = vshrl.u32 %v6814, 16
      %v7174 = vrot.slane %v7172, 7
      %v7175 = vshll.u32 %v6814, 16
      %v7177 = vor.u32 %v7174, %v7175
      %v7178 = vrot.slane %v7174, 4
      %v7180 = vshrl.u32 %v6815, 16
      %v7182 = vrot.slane %v7180, 7
      %v7183 = vshll.u32 %v6815, 16
      %v7185 = vor.u32 %v7182, %v7183
      %v7186 = vsel %vm233, %v7178, %v7185
      %v7187 = vrot.slane %v7182, 4
      %v7191 = vld [vmem:[%s3874] sm:$0xf]
      %v7192 = vsel %vm678, %v7177, %v7191
      %7193 = vst [vmem:[%s3874] sm:$0xf] %v7192
      %7194 = vst.msk [vmem:[%s3874 + $0x4] sm:$0xf] %vm682, %v7186
      %v7195 = vld [vmem:[%s3874 + $0x8] sm:$0x1]
      %v7196 = vsel %vm685, %v7187, %v7195
      %7197 = vst [vmem:[%s3874 + $0x8] sm:$0x1] %v7196
      %v7199 = vshrl.u32 %v6816, 16
      %v7201 = vrot.slane %v7199, 7
      %v7202 = vshll.u32 %v6816, 16
      %v7204 = vor.u32 %v7201, %v7202
      %v7205 = vrot.slane %v7201, 4
      %v7207 = vshrl.u32 %v6817, 16
      %v7209 = vrot.slane %v7207, 7
      %v7210 = vshll.u32 %v6817, 16
      %v7212 = vor.u32 %v7209, %v7210
      %v7213 = vsel %vm233, %v7205, %v7212
      %v7214 = vrot.slane %v7209, 4
      %v7218 = vld [vmem:[%s689] sm:$0xf]
      %v7219 = vsel %vm678, %v7204, %v7218
      %7220 = vst [vmem:[%s689] sm:$0xf] %v7219
      %7221 = vst.msk [vmem:[%s689 + $0x4] sm:$0xf] %vm682, %v7213
      %v7222 = vld [vmem:[%s689 + $0x8] sm:$0x1]
      %v7223 = vsel %vm685, %v7214, %v7222
      %7224 = vst [vmem:[%s689 + $0x8] sm:$0x1] %v7223
      %v7226 = vshrl.u32 %v6818, 16
      %v7228 = vrot.slane %v7226, 7
      %v7229 = vshll.u32 %v6818, 16
      %v7231 = vor.u32 %v7228, %v7229
      %v7232 = vrot.slane %v7228, 4
      %v7234 = vshrl.u32 %v6819, 16
      %v7236 = vrot.slane %v7234, 7
      %v7237 = vshll.u32 %v6819, 16
      %v7239 = vor.u32 %v7236, %v7237
      %v7240 = vsel %vm233, %v7232, %v7239
      %v7241 = vrot.slane %v7236, 4
      %v7245 = vld [vmem:[%s3929] sm:$0xf]
      %v7246 = vsel %vm678, %v7231, %v7245
      %7247 = vst [vmem:[%s3929] sm:$0xf] %v7246
      %7248 = vst.msk [vmem:[%s3929 + $0x4] sm:$0xf] %vm682, %v7240
      %v7249 = vld [vmem:[%s3929 + $0x8] sm:$0x1]
      %v7250 = vsel %vm685, %v7241, %v7249
      %7251 = vst [vmem:[%s3929 + $0x8] sm:$0x1] %v7250
      %v7252 = vld [vmem:[%s673] sm:$0xf]
      %v7253 = vld [vmem:[%s673 + $0x4] sm:$0xf]
      %v7254 = vld [vmem:[%s673 + $0x8] sm:$0x1]
      %v7255 = vld [vmem:[#allocation2] sm:$0xf]
      %v7256 = vsel %vm678, %v7252, %v7255
      %7257 = vst [vmem:[#allocation2] sm:$0xf] %v7256
      %7258 = vst.msk [vmem:[#allocation2 + $0x4] sm:$0xf] %vm682, %v7253
      %v7259 = vld [vmem:[#allocation2 + $0x8] sm:$0x1]
      %v7260 = vsel %vm685, %v7254, %v7259
      %7261 = vst [vmem:[#allocation2 + $0x8] sm:$0x1] %v7260
      %v7262 = vld [vmem:[%s689] sm:$0xf]
      %v7263 = vld [vmem:[%s689 + $0x4] sm:$0xf]
      %v7264 = vld [vmem:[%s689 + $0x8] sm:$0x1]
      %v7265 = vld [vmem:[%s693] sm:$0xf]
      %v7266 = vsel %vm678, %v7262, %v7265
      %7267 = vst [vmem:[%s693] sm:$0xf] %v7266
      %7268 = vst.msk [vmem:[%s693 + $0x4] sm:$0xf] %vm682, %v7263
      %v7269 = vld [vmem:[%s693 + $0x8] sm:$0x1]
      %v7270 = vsel %vm685, %v7264, %v7269
      %7271 = vst [vmem:[%s693 + $0x8] sm:$0x1] %v7270
      %v7272 = vld [vmem:[#allocation2] sm:$0x2]
      %v7273 = vld [vmem:[#allocation2 + $0xc] sm:$0x2]
      %v7274 = vld [vmem:[#allocation2 + $0x18] sm:$0x2]
      %v7275 = vld [vmem:[#allocation2 + $0x24] sm:$0x2]
      %v7276 = vld [vmem:[#allocation2 + $0x30] sm:$0x2]
      %v7277 = vld [vmem:[#allocation2 + $0x3c] sm:$0x2]
      %v7278 = vld [vmem:[#allocation2 + $0x48] sm:$0x2]
      %v7279 = vld [vmem:[#allocation2 + $0x54] sm:$0x2]
      %v7280 = vld [vmem:[#allocation2 + $0x60] sm:$0x2]
      %v7281 = vld [vmem:[#allocation2 + $0x6c] sm:$0x2]
      %v7282 = vld [vmem:[#allocation2 + $0x78] sm:$0x2]
      %v7283 = vld [vmem:[#allocation2 + $0x84] sm:$0x2]
      %v7284 = vld [vmem:[#allocation2 + $0x90] sm:$0x2]
      %v7285 = vld [vmem:[#allocation2 + $0x9c] sm:$0x2]
      %v7286 = vld [vmem:[#allocation2 + $0xa8] sm:$0x2]
      %v7287 = vld [vmem:[#allocation2 + $0xb4] sm:$0x2]
      %v7288 = vld [vmem:[#allocation2 + $0xc0] sm:$0x2]
      %v7289 = vld [vmem:[#allocation2 + $0xcc] sm:$0x2]
      %v7308 = vrot.slane %v7272, 5
      %v7309 = vrot.slane %v7308, 4
      %v7310 = vrot.slane %v7273, 5
      %v7311 = vrot.slane %v7310, 4
      %v7312 = vrot.slane %v7274, 5
      %v7313 = vrot.slane %v7312, 4
      %v7314 = vrot.slane %v7275, 5
      %v7315 = vrot.slane %v7314, 4
      %v7316 = vrot.slane %v7276, 5
      %v7317 = vrot.slane %v7316, 4
      %v7318 = vrot.slane %v7277, 5
      %v7319 = vrot.slane %v7318, 4
      %v7320 = vrot.slane %v7278, 5
      %v7321 = vrot.slane %v7320, 4
      %v7322 = vrot.slane %v7279, 5
      %v7323 = vrot.slane %v7322, 4
      %v7324 = vrot.slane %v7280, 5
      %v7325 = vrot.slane %v7324, 4
      %v7326 = vrot.slane %v7281, 5
      %v7327 = vrot.slane %v7326, 4
      %v7328 = vrot.slane %v7282, 5
      %v7329 = vrot.slane %v7328, 4
      %v7330 = vrot.slane %v7283, 5
      %v7331 = vrot.slane %v7330, 4
      %v7332 = vrot.slane %v7284, 5
      %v7333 = vrot.slane %v7332, 4
      %v7334 = vrot.slane %v7285, 5
      %v7335 = vrot.slane %v7334, 4
      %v7336 = vrot.slane %v7286, 5
      %v7337 = vrot.slane %v7336, 4
      %v7338 = vrot.slane %v7287, 5
      %v7339 = vrot.slane %v7338, 4
      %v7340 = vrot.slane %v7288, 5
      %v7341 = vrot.slane %v7340, 4
      %v7342 = vrot.slane %v7289, 5
      %v7343 = vrot.slane %v7342, 4
      %v7362 = vld [vmem:[#allocation2] sm:$0x1]
      %v7363 = vsel %vm685, %v7309, %v7362
      %7364 = vst [vmem:[#allocation2] sm:$0x1] %v7363
      %v7365 = vld [vmem:[#allocation2 + $0xc] sm:$0x1]
      %v7366 = vsel %vm685, %v7311, %v7365
      %7367 = vst [vmem:[#allocation2 + $0xc] sm:$0x1] %v7366
      %v7368 = vld [vmem:[#allocation2 + $0x18] sm:$0x1]
      %v7369 = vsel %vm685, %v7313, %v7368
      %7370 = vst [vmem:[#allocation2 + $0x18] sm:$0x1] %v7369
      %v7371 = vld [vmem:[#allocation2 + $0x24] sm:$0x1]
      %v7372 = vsel %vm685, %v7315, %v7371
      %7373 = vst [vmem:[#allocation2 + $0x24] sm:$0x1] %v7372
      %v7374 = vld [vmem:[#allocation2 + $0x30] sm:$0x1]
      %v7375 = vsel %vm685, %v7317, %v7374
      %7376 = vst [vmem:[#allocation2 + $0x30] sm:$0x1] %v7375
      %v7377 = vld [vmem:[#allocation2 + $0x3c] sm:$0x1]
      %v7378 = vsel %vm685, %v7319, %v7377
      %7379 = vst [vmem:[#allocation2 + $0x3c] sm:$0x1] %v7378
      %v7380 = vld [vmem:[#allocation2 + $0x48] sm:$0x1]
      %v7381 = vsel %vm685, %v7321, %v7380
      %7382 = vst [vmem:[#allocation2 + $0x48] sm:$0x1] %v7381
      %v7383 = vld [vmem:[#allocation2 + $0x54] sm:$0x1]
      %v7384 = vsel %vm685, %v7323, %v7383
      %7385 = vst [vmem:[#allocation2 + $0x54] sm:$0x1] %v7384
      %v7386 = vld [vmem:[#allocation2 + $0x60] sm:$0x1]
      %v7387 = vsel %vm685, %v7325, %v7386
      %7388 = vst [vmem:[#allocation2 + $0x60] sm:$0x1] %v7387
      %v7389 = vld [vmem:[#allocation2 + $0x6c] sm:$0x1]
      %v7390 = vsel %vm685, %v7327, %v7389
      %7391 = vst [vmem:[#allocation2 + $0x6c] sm:$0x1] %v7390
      %v7392 = vld [vmem:[#allocation2 + $0x78] sm:$0x1]
      %v7393 = vsel %vm685, %v7329, %v7392
      %7394 = vst [vmem:[#allocation2 + $0x78] sm:$0x1] %v7393
      %v7395 = vld [vmem:[#allocation2 + $0x84] sm:$0x1]
      %v7396 = vsel %vm685, %v7331, %v7395
      %7397 = vst [vmem:[#allocation2 + $0x84] sm:$0x1] %v7396
      %v7398 = vld [vmem:[#allocation2 + $0x90] sm:$0x1]
      %v7399 = vsel %vm685, %v7333, %v7398
      %7400 = vst [vmem:[#allocation2 + $0x90] sm:$0x1] %v7399
      %v7401 = vld [vmem:[#allocation2 + $0x9c] sm:$0x1]
      %v7402 = vsel %vm685, %v7335, %v7401
      %7403 = vst [vmem:[#allocation2 + $0x9c] sm:$0x1] %v7402
      %v7404 = vld [vmem:[#allocation2 + $0xa8] sm:$0x1]
      %v7405 = vsel %vm685, %v7337, %v7404
      %7406 = vst [vmem:[#allocation2 + $0xa8] sm:$0x1] %v7405
      %v7407 = vld [vmem:[#allocation2 + $0xb4] sm:$0x1]
      %v7408 = vsel %vm685, %v7339, %v7407
      %7409 = vst [vmem:[#allocation2 + $0xb4] sm:$0x1] %v7408
      %v7410 = vld [vmem:[#allocation2 + $0xc0] sm:$0x1]
      %v7411 = vsel %vm685, %v7341, %v7410
      %7412 = vst [vmem:[#allocation2 + $0xc0] sm:$0x1] %v7411
      %v7413 = vld [vmem:[#allocation2 + $0xcc] sm:$0x1]
      %v7414 = vsel %vm685, %v7343, %v7413
      %7415 = vst [vmem:[#allocation2 + $0xcc] sm:$0x1] %v7414
      %v7416 = vld [vmem:[#allocation2 + $0x4] sm:$0x8]
      %v7417 = vld [vmem:[#allocation2 + $0x10] sm:$0x8]
      %v7418 = vld [vmem:[#allocation2 + $0x1c] sm:$0x8]
      %v7419 = vld [vmem:[#allocation2 + $0x28] sm:$0x8]
      %v7420 = vld [vmem:[#allocation2 + $0x34] sm:$0x8]
      %v7421 = vld [vmem:[#allocation2 + $0x40] sm:$0x8]
      %v7422 = vld [vmem:[#allocation2 + $0x4c] sm:$0x8]
      %v7423 = vld [vmem:[#allocation2 + $0x58] sm:$0x8]
      %v7424 = vld [vmem:[#allocation2 + $0x64] sm:$0x8]
      %v7425 = vld [vmem:[#allocation2 + $0x70] sm:$0x8]
      %v7426 = vld [vmem:[#allocation2 + $0x7c] sm:$0x8]
      %v7427 = vld [vmem:[#allocation2 + $0x88] sm:$0x8]
      %v7428 = vld [vmem:[#allocation2 + $0x94] sm:$0x8]
      %v7429 = vld [vmem:[#allocation2 + $0xa0] sm:$0x8]
      %v7430 = vld [vmem:[#allocation2 + $0xac] sm:$0x8]
      %v7431 = vld [vmem:[#allocation2 + $0xb8] sm:$0x8]
      %v7432 = vld [vmem:[#allocation2 + $0xc4] sm:$0x8]
      %v7433 = vld [vmem:[#allocation2 + $0xd0] sm:$0x8]
      %v7452 = vrot.slane %v7416, 7
      %v7453 = vrot.slane %v7452, 4
      %v7454 = vrot.slane %v7417, 7
      %v7455 = vrot.slane %v7454, 4
      %v7456 = vrot.slane %v7418, 7
      %v7457 = vrot.slane %v7456, 4
      %v7458 = vrot.slane %v7419, 7
      %v7459 = vrot.slane %v7458, 4
      %v7460 = vrot.slane %v7420, 7
      %v7461 = vrot.slane %v7460, 4
      %v7462 = vrot.slane %v7421, 7
      %v7463 = vrot.slane %v7462, 4
      %v7464 = vrot.slane %v7422, 7
      %v7465 = vrot.slane %v7464, 4
      %v7466 = vrot.slane %v7423, 7
      %v7467 = vrot.slane %v7466, 4
      %v7468 = vrot.slane %v7424, 7
      %v7469 = vrot.slane %v7468, 4
      %v7470 = vrot.slane %v7425, 7
      %v7471 = vrot.slane %v7470, 4
      %v7472 = vrot.slane %v7426, 7
      %v7473 = vrot.slane %v7472, 4
      %v7474 = vrot.slane %v7427, 7
      %v7475 = vrot.slane %v7474, 4
      %v7476 = vrot.slane %v7428, 7
      %v7477 = vrot.slane %v7476, 4
      %v7478 = vrot.slane %v7429, 7
      %v7479 = vrot.slane %v7478, 4
      %v7480 = vrot.slane %v7430, 7
      %v7481 = vrot.slane %v7480, 4
      %v7482 = vrot.slane %v7431, 7
      %v7483 = vrot.slane %v7482, 4
      %v7484 = vrot.slane %v7432, 7
      %v7485 = vrot.slane %v7484, 4
      %v7486 = vrot.slane %v7433, 7
      %v7487 = vrot.slane %v7486, 4
      %v7506 = vld [vmem:[#allocation2 + $0x8] sm:$0x1]
      %v7507 = vsel %vm935, %v7453, %v7506
      %7508 = vst [vmem:[#allocation2 + $0x8] sm:$0x1] %v7507
      %v7509 = vld [vmem:[#allocation2 + $0x14] sm:$0x1]
      %v7510 = vsel %vm935, %v7455, %v7509
      %7511 = vst [vmem:[#allocation2 + $0x14] sm:$0x1] %v7510
      %v7512 = vld [vmem:[#allocation2 + $0x20] sm:$0x1]
      %v7513 = vsel %vm935, %v7457, %v7512
      %7514 = vst [vmem:[#allocation2 + $0x20] sm:$0x1] %v7513
      %v7515 = vld [vmem:[#allocation2 + $0x2c] sm:$0x1]
      %v7516 = vsel %vm935, %v7459, %v7515
      %7517 = vst [vmem:[#allocation2 + $0x2c] sm:$0x1] %v7516
      %v7518 = vld [vmem:[#allocation2 + $0x38] sm:$0x1]
      %v7519 = vsel %vm935, %v7461, %v7518
      %7520 = vst [vmem:[#allocation2 + $0x38] sm:$0x1] %v7519
      %v7521 = vld [vmem:[#allocation2 + $0x44] sm:$0x1]
      %v7522 = vsel %vm935, %v7463, %v7521
      %7523 = vst [vmem:[#allocation2 + $0x44] sm:$0x1] %v7522
      %v7524 = vld [vmem:[#allocation2 + $0x50] sm:$0x1]
      %v7525 = vsel %vm935, %v7465, %v7524
      %7526 = vst [vmem:[#allocation2 + $0x50] sm:$0x1] %v7525
      %v7527 = vld [vmem:[#allocation2 + $0x5c] sm:$0x1]
      %v7528 = vsel %vm935, %v7467, %v7527
      %7529 = vst [vmem:[#allocation2 + $0x5c] sm:$0x1] %v7528
      %v7530 = vld [vmem:[#allocation2 + $0x68] sm:$0x1]
      %v7531 = vsel %vm935, %v7469, %v7530
      %7532 = vst [vmem:[#allocation2 + $0x68] sm:$0x1] %v7531
      %v7533 = vld [vmem:[#allocation2 + $0x74] sm:$0x1]
      %v7534 = vsel %vm935, %v7471, %v7533
      %7535 = vst [vmem:[#allocation2 + $0x74] sm:$0x1] %v7534
      %v7536 = vld [vmem:[#allocation2 + $0x80] sm:$0x1]
      %v7537 = vsel %vm935, %v7473, %v7536
      %7538 = vst [vmem:[#allocation2 + $0x80] sm:$0x1] %v7537
      %v7539 = vld [vmem:[#allocation2 + $0x8c] sm:$0x1]
      %v7540 = vsel %vm935, %v7475, %v7539
      %7541 = vst [vmem:[#allocation2 + $0x8c] sm:$0x1] %v7540
      %v7542 = vld [vmem:[#allocation2 + $0x98] sm:$0x1]
      %v7543 = vsel %vm935, %v7477, %v7542
      %7544 = vst [vmem:[#allocation2 + $0x98] sm:$0x1] %v7543
      %v7545 = vld [vmem:[#allocation2 + $0xa4] sm:$0x1]
      %v7546 = vsel %vm935, %v7479, %v7545
      %7547 = vst [vmem:[#allocation2 + $0xa4] sm:$0x1] %v7546
      %v7548 = vld [vmem:[#allocation2 + $0xb0] sm:$0x1]
      %v7549 = vsel %vm935, %v7481, %v7548
      %7550 = vst [vmem:[#allocation2 + $0xb0] sm:$0x1] %v7549
      %v7551 = vld [vmem:[#allocation2 + $0xbc] sm:$0x1]
      %v7552 = vsel %vm935, %v7483, %v7551
      %7553 = vst [vmem:[#allocation2 + $0xbc] sm:$0x1] %v7552
      %v7554 = vld [vmem:[#allocation2 + $0xc8] sm:$0x1]
      %v7555 = vsel %vm935, %v7485, %v7554
      %7556 = vst [vmem:[#allocation2 + $0xc8] sm:$0x1] %v7555
      %v7557 = vld [vmem:[#allocation2 + $0xd4] sm:$0x1]
      %v7558 = vsel %vm935, %v7487, %v7557
      %7559 = vst [vmem:[#allocation2 + $0xd4] sm:$0x1] %v7558
      %7560 = vst.msk [vmem:[#allocation5] sm:$0x1] %vm990, 0.0
      %7561 = vst.msk [vmem:[#allocation6] sm:$0x1] %vm990, 0.0
      %v7562 = vld [vmem:[#allocation2] sm:$0xf]
      %v7563 = vld [vmem:[#allocation2 + $0x4] sm:$0xf]
      %v7564 = vld [vmem:[#allocation2 + $0xc] sm:$0xf]
      %v7565 = vld [vmem:[#allocation2 + $0x10] sm:$0xf]
      %v7566 = vld [vmem:[#allocation2 + $0x18] sm:$0xf]
      %v7567 = vld [vmem:[#allocation2 + $0x1c] sm:$0xf]
      %v7568 = vld [vmem:[#allocation2 + $0x24] sm:$0xf]
      %v7569 = vld [vmem:[#allocation2 + $0x28] sm:$0xf]
      %v7570 = vld [vmem:[#allocation2 + $0x30] sm:$0xf]
      %v7571 = vld [vmem:[#allocation2 + $0x34] sm:$0xf]
      %v7572 = vld [vmem:[#allocation2 + $0x3c] sm:$0xf]
      %v7573 = vld [vmem:[#allocation2 + $0x40] sm:$0xf]
      %v7574 = vld [vmem:[#allocation2 + $0x48] sm:$0xf]
      %v7575 = vld [vmem:[#allocation2 + $0x4c] sm:$0xf]
      %v7576 = vld [vmem:[#allocation2 + $0x54] sm:$0xf]
      %v7577 = vld [vmem:[#allocation2 + $0x58] sm:$0xf]
      %v7578 = vld [vmem:[#allocation2 + $0x60] sm:$0xf]
      %v7579 = vld [vmem:[#allocation2 + $0x64] sm:$0xf]
      %v7580 = vld [vmem:[#allocation2 + $0x6c] sm:$0xf]
      %v7581 = vld [vmem:[#allocation2 + $0x70] sm:$0xf]
      %v7582 = vld [vmem:[#allocation2 + $0x78] sm:$0xf]
      %v7583 = vld [vmem:[#allocation2 + $0x7c] sm:$0xf]
      %v7584 = vld [vmem:[#allocation2 + $0x84] sm:$0xf]
      %v7585 = vld [vmem:[#allocation2 + $0x88] sm:$0xf]
      %v7586 = vld [vmem:[#allocation2 + $0x90] sm:$0xf]
      %v7587 = vld [vmem:[#allocation2 + $0x94] sm:$0xf]
      %v7588 = vld [vmem:[#allocation2 + $0x9c] sm:$0xf]
      %v7589 = vld [vmem:[#allocation2 + $0xa0] sm:$0xf]
      %v7590 = vld [vmem:[#allocation2 + $0xa8] sm:$0xf]
      %v7591 = vld [vmem:[#allocation2 + $0xac] sm:$0xf]
      %v7592 = vld [vmem:[#allocation2 + $0xb4] sm:$0xf]
      %v7593 = vld [vmem:[#allocation2 + $0xb8] sm:$0xf]
      %v7594 = vld [vmem:[#allocation2 + $0x8] sm:$0x1]
      %v7595 = vld [vmem:[#allocation2 + $0x14] sm:$0x1]
      %v7596 = vld [vmem:[#allocation2 + $0x20] sm:$0x1]
      %v7597 = vld [vmem:[#allocation2 + $0x2c] sm:$0x1]
      %v7598 = vld [vmem:[#allocation2 + $0x38] sm:$0x1]
      %v7599 = vld [vmem:[#allocation2 + $0x44] sm:$0x1]
      %v7600 = vld [vmem:[#allocation2 + $0x50] sm:$0x1]
      %v7601 = vld [vmem:[#allocation2 + $0x5c] sm:$0x1]
      %v7602 = vld [vmem:[#allocation2 + $0x68] sm:$0x1]
      %v7603 = vld [vmem:[#allocation2 + $0x74] sm:$0x1]
      %v7604 = vld [vmem:[#allocation2 + $0x80] sm:$0x1]
      %v7605 = vld [vmem:[#allocation2 + $0x8c] sm:$0x1]
      %v7606 = vld [vmem:[#allocation2 + $0x98] sm:$0x1]
      %v7607 = vld [vmem:[#allocation2 + $0xa4] sm:$0x1]
      %v7608 = vld [vmem:[#allocation2 + $0xb0] sm:$0x1]
      %v7609 = vld [vmem:[#allocation2 + $0xbc] sm:$0x1]
      %v7610 = vld [vmem:[#allocation2] sm:$0xe]
      %v7611 = vld [vmem:[#allocation2 + $0xc] sm:$0xe]
      %v7612 = vld [vmem:[#allocation2 + $0x18] sm:$0xe]
      %v7613 = vld [vmem:[#allocation2 + $0x24] sm:$0xe]
      %v7614 = vld [vmem:[#allocation2 + $0x30] sm:$0xe]
      %v7615 = vld [vmem:[#allocation2 + $0x3c] sm:$0xe]
      %v7616 = vld [vmem:[#allocation2 + $0x48] sm:$0xe]
      %v7617 = vld [vmem:[#allocation2 + $0x54] sm:$0xe]
      %v7618 = vld [vmem:[#allocation2 + $0x60] sm:$0xe]
      %v7619 = vld [vmem:[#allocation2 + $0x6c] sm:$0xe]
      %v7620 = vld [vmem:[#allocation2 + $0x78] sm:$0xe]
      %v7621 = vld [vmem:[#allocation2 + $0x84] sm:$0xe]
      %v7622 = vld [vmem:[#allocation2 + $0x90] sm:$0xe]
      %v7623 = vld [vmem:[#allocation2 + $0x9c] sm:$0xe]
      %v7624 = vld [vmem:[#allocation2 + $0xa8] sm:$0xe]
      %v7625 = vld [vmem:[#allocation2 + $0xb4] sm:$0xe]
      %v7626 = vld [vmem:[%s554] sm:$0xf]
      %v7627 = vld [vmem:[%s554 + $0x4] sm:$0xf]
      %v7628 = vld [vmem:[%s554 + $0xc] sm:$0xf]
      %v7629 = vld [vmem:[%s554 + $0x10] sm:$0xf]
      %v7630 = vld [vmem:[%s554 + $0x18] sm:$0xf]
      %v7631 = vld [vmem:[%s554 + $0x1c] sm:$0xf]
      %v7632 = vld [vmem:[%s554 + $0x24] sm:$0xf]
      %v7633 = vld [vmem:[%s554 + $0x28] sm:$0xf]
      %v7634 = vld [vmem:[%s554 + $0x30] sm:$0xf]
      %v7635 = vld [vmem:[%s554 + $0x34] sm:$0xf]
      %v7636 = vld [vmem:[%s554 + $0x3c] sm:$0xf]
      %v7637 = vld [vmem:[%s554 + $0x40] sm:$0xf]
      %v7638 = vld [vmem:[%s554 + $0x48] sm:$0xf]
      %v7639 = vld [vmem:[%s554 + $0x4c] sm:$0xf]
      %v7640 = vld [vmem:[%s554 + $0x54] sm:$0xf]
      %v7641 = vld [vmem:[%s554 + $0x58] sm:$0xf]
      %v7642 = vld [vmem:[%s554 + $0x60] sm:$0xf]
      %v7643 = vld [vmem:[%s554 + $0x64] sm:$0xf]
      %v7644 = vld [vmem:[%s554 + $0x6c] sm:$0xf]
      %v7645 = vld [vmem:[%s554 + $0x70] sm:$0xf]
      %v7646 = vld [vmem:[%s554 + $0x78] sm:$0xf]
      %v7647 = vld [vmem:[%s554 + $0x7c] sm:$0xf]
      %v7648 = vld [vmem:[%s554 + $0x84] sm:$0xf]
      %v7649 = vld [vmem:[%s554 + $0x88] sm:$0xf]
      %v7650 = vld [vmem:[%s554 + $0x90] sm:$0xf]
      %v7651 = vld [vmem:[%s554 + $0x94] sm:$0xf]
      %v7652 = vld [vmem:[%s554 + $0x9c] sm:$0xf]
      %v7653 = vld [vmem:[%s554 + $0xa0] sm:$0xf]
      %v7654 = vld [vmem:[%s554 + $0xa8] sm:$0xf]
      %v7655 = vld [vmem:[%s554 + $0xac] sm:$0xf]
      %v7656 = vld [vmem:[%s554 + $0xb4] sm:$0xf]
      %v7657 = vld [vmem:[%s554 + $0xb8] sm:$0xf]
      %v7658 = vld [vmem:[%s554 + $0x8] sm:$0x1]
      %v7659 = vld [vmem:[%s554 + $0x14] sm:$0x1]
      %v7660 = vld [vmem:[%s554 + $0x20] sm:$0x1]
      %v7661 = vld [vmem:[%s554 + $0x2c] sm:$0x1]
      %v7662 = vld [vmem:[%s554 + $0x38] sm:$0x1]
      %v7663 = vld [vmem:[%s554 + $0x44] sm:$0x1]
      %v7664 = vld [vmem:[%s554 + $0x50] sm:$0x1]
      %v7665 = vld [vmem:[%s554 + $0x5c] sm:$0x1]
      %v7666 = vld [vmem:[%s554 + $0x68] sm:$0x1]
      %v7667 = vld [vmem:[%s554 + $0x74] sm:$0x1]
      %v7668 = vld [vmem:[%s554 + $0x80] sm:$0x1]
      %v7669 = vld [vmem:[%s554 + $0x8c] sm:$0x1]
      %v7670 = vld [vmem:[%s554 + $0x98] sm:$0x1]
      %v7671 = vld [vmem:[%s554 + $0xa4] sm:$0x1]
      %v7672 = vld [vmem:[%s554 + $0xb0] sm:$0x1]
      %v7673 = vld [vmem:[%s554 + $0xbc] sm:$0x1]
      %v7674 = vld [vmem:[%s554] sm:$0xe]
      %v7675 = vld [vmem:[%s554 + $0xc] sm:$0xe]
      %v7676 = vld [vmem:[%s554 + $0x18] sm:$0xe]
      %v7677 = vld [vmem:[%s554 + $0x24] sm:$0xe]
      %v7678 = vld [vmem:[%s554 + $0x30] sm:$0xe]
      %v7679 = vld [vmem:[%s554 + $0x3c] sm:$0xe]
      %v7680 = vld [vmem:[%s554 + $0x48] sm:$0xe]
      %v7681 = vld [vmem:[%s554 + $0x54] sm:$0xe]
      %v7682 = vld [vmem:[%s554 + $0x60] sm:$0xe]
      %v7683 = vld [vmem:[%s554 + $0x6c] sm:$0xe]
      %v7684 = vld [vmem:[%s554 + $0x78] sm:$0xe]
      %v7685 = vld [vmem:[%s554 + $0x84] sm:$0xe]
      %v7686 = vld [vmem:[%s554 + $0x90] sm:$0xe]
      %v7687 = vld [vmem:[%s554 + $0x9c] sm:$0xe]
      %v7688 = vld [vmem:[%s554 + $0xa8] sm:$0xe]
      %v7689 = vld [vmem:[%s554 + $0xb4] sm:$0xe]
      %v7690 = vld [vmem:[%s673] sm:$0xf]
      %v7691 = vld [vmem:[%s673 + $0x4] sm:$0xf]
      %v7692 = vld [vmem:[%s673 + $0xc] sm:$0xf]
      %v7693 = vld [vmem:[%s673 + $0x10] sm:$0xf]
      %v7694 = vld [vmem:[%s673 + $0x18] sm:$0xf]
      %v7695 = vld [vmem:[%s673 + $0x1c] sm:$0xf]
      %v7696 = vld [vmem:[%s673 + $0x24] sm:$0xf]
      %v7697 = vld [vmem:[%s673 + $0x28] sm:$0xf]
      %v7698 = vld [vmem:[%s673 + $0x30] sm:$0xf]
      %v7699 = vld [vmem:[%s673 + $0x34] sm:$0xf]
      %v7700 = vld [vmem:[%s673 + $0x3c] sm:$0xf]
      %v7701 = vld [vmem:[%s673 + $0x40] sm:$0xf]
      %v7702 = vld [vmem:[%s673 + $0x48] sm:$0xf]
      %v7703 = vld [vmem:[%s673 + $0x4c] sm:$0xf]
      %v7704 = vld [vmem:[%s673 + $0x54] sm:$0xf]
      %v7705 = vld [vmem:[%s673 + $0x58] sm:$0xf]
      %v7706 = vld [vmem:[%s673 + $0x60] sm:$0xf]
      %v7707 = vld [vmem:[%s673 + $0x64] sm:$0xf]
      %v7708 = vld [vmem:[%s673 + $0x6c] sm:$0xf]
      %v7709 = vld [vmem:[%s673 + $0x70] sm:$0xf]
      %v7710 = vld [vmem:[%s673 + $0x78] sm:$0xf]
      %v7711 = vld [vmem:[%s673 + $0x7c] sm:$0xf]
      %v7712 = vld [vmem:[%s673 + $0x84] sm:$0xf]
      %v7713 = vld [vmem:[%s673 + $0x88] sm:$0xf]
      %v7714 = vld [vmem:[%s673 + $0x90] sm:$0xf]
      %v7715 = vld [vmem:[%s673 + $0x94] sm:$0xf]
      %v7716 = vld [vmem:[%s673 + $0x9c] sm:$0xf]
      %v7717 = vld [vmem:[%s673 + $0xa0] sm:$0xf]
      %v7718 = vld [vmem:[%s673 + $0xa8] sm:$0xf]
      %v7719 = vld [vmem:[%s673 + $0xac] sm:$0xf]
      %v7720 = vld [vmem:[%s673 + $0xb4] sm:$0xf]
      %v7721 = vld [vmem:[%s673 + $0xb8] sm:$0xf]
      %v7722 = vld [vmem:[%s673 + $0x8] sm:$0x1]
      %v7723 = vld [vmem:[%s673 + $0x14] sm:$0x1]
      %v7724 = vld [vmem:[%s673 + $0x20] sm:$0x1]
      %v7725 = vld [vmem:[%s673 + $0x2c] sm:$0x1]
      %v7726 = vld [vmem:[%s673 + $0x38] sm:$0x1]
      %v7727 = vld [vmem:[%s673 + $0x44] sm:$0x1]
      %v7728 = vld [vmem:[%s673 + $0x50] sm:$0x1]
      %v7729 = vld [vmem:[%s673 + $0x5c] sm:$0x1]
      %v7730 = vld [vmem:[%s673 + $0x68] sm:$0x1]
      %v7731 = vld [vmem:[%s673 + $0x74] sm:$0x1]
      %v7732 = vld [vmem:[%s673 + $0x80] sm:$0x1]
      %v7733 = vld [vmem:[%s673 + $0x8c] sm:$0x1]
      %v7734 = vld [vmem:[%s673 + $0x98] sm:$0x1]
      %v7735 = vld [vmem:[%s673 + $0xa4] sm:$0x1]
      %v7736 = vld [vmem:[%s673 + $0xb0] sm:$0x1]
      %v7737 = vld [vmem:[%s673 + $0xbc] sm:$0x1]
      %v7738 = vld [vmem:[%s673] sm:$0xe]
      %v7739 = vld [vmem:[%s673 + $0xc] sm:$0xe]
      %v7740 = vld [vmem:[%s673 + $0x18] sm:$0xe]
      %v7741 = vld [vmem:[%s673 + $0x24] sm:$0xe]
      %v7742 = vld [vmem:[%s673 + $0x30] sm:$0xe]
      %v7743 = vld [vmem:[%s673 + $0x3c] sm:$0xe]
      %v7744 = vld [vmem:[%s673 + $0x48] sm:$0xe]
      %v7745 = vld [vmem:[%s673 + $0x54] sm:$0xe]
      %v7746 = vld [vmem:[%s673 + $0x60] sm:$0xe]
      %v7747 = vld [vmem:[%s673 + $0x6c] sm:$0xe]
      %v7748 = vld [vmem:[%s673 + $0x78] sm:$0xe]
      %v7749 = vld [vmem:[%s673 + $0x84] sm:$0xe]
      %v7750 = vld [vmem:[%s673 + $0x90] sm:$0xe]
      %v7751 = vld [vmem:[%s673 + $0x9c] sm:$0xe]
      %v7752 = vld [vmem:[%s673 + $0xa8] sm:$0xe]
      %v7753 = vld [vmem:[%s673 + $0xb4] sm:$0xe]
      %v7786 = vunpack.c.l.b16 %v7562
      %v7787 = vunpack.c.l.b16 %v7563
      %v7788 = vunpack.c.l.b16 %v7564
      %v7789 = vunpack.c.l.b16 %v7565
      %v7790 = vunpack.c.l.b16 %v7566
      %v7791 = vunpack.c.l.b16 %v7567
      %v7792 = vunpack.c.l.b16 %v7568
      %v7793 = vunpack.c.l.b16 %v7569
      %v7794 = vunpack.c.l.b16 %v7570
      %v7795 = vunpack.c.l.b16 %v7571
      %v7796 = vunpack.c.l.b16 %v7572
      %v7797 = vunpack.c.l.b16 %v7573
      %v7798 = vunpack.c.l.b16 %v7574
      %v7799 = vunpack.c.l.b16 %v7575
      %v7800 = vunpack.c.l.b16 %v7576
      %v7801 = vunpack.c.l.b16 %v7577
      %v7802 = vunpack.c.l.b16 %v7578
      %v7803 = vunpack.c.l.b16 %v7579
      %v7804 = vunpack.c.l.b16 %v7580
      %v7805 = vunpack.c.l.b16 %v7581
      %v7806 = vunpack.c.l.b16 %v7582
      %v7807 = vunpack.c.l.b16 %v7583
      %v7808 = vunpack.c.l.b16 %v7584
      %v7809 = vunpack.c.l.b16 %v7585
      %v7810 = vunpack.c.l.b16 %v7586
      %v7811 = vunpack.c.l.b16 %v7587
      %v7812 = vunpack.c.l.b16 %v7588
      %v7813 = vunpack.c.l.b16 %v7589
      %v7814 = vunpack.c.l.b16 %v7590
      %v7815 = vunpack.c.l.b16 %v7591
      %v7816 = vunpack.c.l.b16 %v7592
      %v7817 = vunpack.c.l.b16 %v7593
      %v7818 = vpack.c.b16 %v7787, %v7786
      %v7819 = vpack.c.b16 %v7789, %v7788
      %v7820 = vpack.c.b16 %v7791, %v7790
      %v7821 = vpack.c.b16 %v7793, %v7792
      %v7822 = vpack.c.b16 %v7795, %v7794
      %v7823 = vpack.c.b16 %v7797, %v7796
      %v7824 = vpack.c.b16 %v7799, %v7798
      %v7825 = vpack.c.b16 %v7801, %v7800
      %v7826 = vpack.c.b16 %v7803, %v7802
      %v7827 = vpack.c.b16 %v7805, %v7804
      %v7828 = vpack.c.b16 %v7807, %v7806
      %v7829 = vpack.c.b16 %v7809, %v7808
      %v7830 = vpack.c.b16 %v7811, %v7810
      %v7831 = vpack.c.b16 %v7813, %v7812
      %v7832 = vpack.c.b16 %v7815, %v7814
      %v7833 = vpack.c.b16 %v7817, %v7816
      %v7850 = vunpack.c.l.b16 %v7594
      %v7851 = vunpack.c.l.b16 %v7595
      %v7852 = vunpack.c.l.b16 %v7596
      %v7853 = vunpack.c.l.b16 %v7597
      %v7854 = vunpack.c.l.b16 %v7598
      %v7855 = vunpack.c.l.b16 %v7599
      %v7856 = vunpack.c.l.b16 %v7600
      %v7857 = vunpack.c.l.b16 %v7601
      %v7858 = vunpack.c.l.b16 %v7602
      %v7859 = vunpack.c.l.b16 %v7603
      %v7860 = vunpack.c.l.b16 %v7604
      %v7861 = vunpack.c.l.b16 %v7605
      %v7862 = vunpack.c.l.b16 %v7606
      %v7863 = vunpack.c.l.b16 %v7607
      %v7864 = vunpack.c.l.b16 %v7608
      %v7865 = vunpack.c.l.b16 %v7609
      %v7866 = vpack.c.b16 %v7850, %v7850
      %v7867 = vpack.c.b16 %v7851, %v7851
      %v7868 = vpack.c.b16 %v7852, %v7852
      %v7869 = vpack.c.b16 %v7853, %v7853
      %v7870 = vpack.c.b16 %v7854, %v7854
      %v7871 = vpack.c.b16 %v7855, %v7855
      %v7872 = vpack.c.b16 %v7856, %v7856
      %v7873 = vpack.c.b16 %v7857, %v7857
      %v7874 = vpack.c.b16 %v7858, %v7858
      %v7875 = vpack.c.b16 %v7859, %v7859
      %v7876 = vpack.c.b16 %v7860, %v7860
      %v7877 = vpack.c.b16 %v7861, %v7861
      %v7878 = vpack.c.b16 %v7862, %v7862
      %v7879 = vpack.c.b16 %v7863, %v7863
      %v7880 = vpack.c.b16 %v7864, %v7864
      %v7881 = vpack.c.b16 %v7865, %v7865
      %v7883 = vshrl.u32 %v7818, 16
      %v7885 = vshll.u32 %v7818, 16
      %v7887 = vrot.slane %v7885, 1
      %v7888 = vor.u32 %v7883, %v7887
      %v7890 = vshll.u32 %v7866, 16
      %v7892 = vrot.slane %v7890, 1
      %v7893 = vsel %vm1313, %v7888, %v7892
      %v7895 = vshrl.u32 %v7819, 16
      %v7897 = vshll.u32 %v7819, 16
      %v7899 = vrot.slane %v7897, 1
      %v7900 = vor.u32 %v7895, %v7899
      %v7902 = vshll.u32 %v7867, 16
      %v7904 = vrot.slane %v7902, 1
      %v7905 = vsel %vm1313, %v7900, %v7904
      %v7907 = vshrl.u32 %v7820, 16
      %v7909 = vshll.u32 %v7820, 16
      %v7911 = vrot.slane %v7909, 1
      %v7912 = vor.u32 %v7907, %v7911
      %v7914 = vshll.u32 %v7868, 16
      %v7916 = vrot.slane %v7914, 1
      %v7917 = vsel %vm1313, %v7912, %v7916
      %v7919 = vshrl.u32 %v7821, 16
      %v7921 = vshll.u32 %v7821, 16
      %v7923 = vrot.slane %v7921, 1
      %v7924 = vor.u32 %v7919, %v7923
      %v7926 = vshll.u32 %v7869, 16
      %v7928 = vrot.slane %v7926, 1
      %v7929 = vsel %vm1313, %v7924, %v7928
      %v7931 = vshrl.u32 %v7822, 16
      %v7933 = vshll.u32 %v7822, 16
      %v7935 = vrot.slane %v7933, 1
      %v7936 = vor.u32 %v7931, %v7935
      %v7938 = vshll.u32 %v7870, 16
      %v7940 = vrot.slane %v7938, 1
      %v7941 = vsel %vm1313, %v7936, %v7940
      %v7943 = vshrl.u32 %v7823, 16
      %v7945 = vshll.u32 %v7823, 16
      %v7947 = vrot.slane %v7945, 1
      %v7948 = vor.u32 %v7943, %v7947
      %v7950 = vshll.u32 %v7871, 16
      %v7952 = vrot.slane %v7950, 1
      %v7953 = vsel %vm1313, %v7948, %v7952
      %v7955 = vshrl.u32 %v7824, 16
      %v7957 = vshll.u32 %v7824, 16
      %v7959 = vrot.slane %v7957, 1
      %v7960 = vor.u32 %v7955, %v7959
      %v7962 = vshll.u32 %v7872, 16
      %v7964 = vrot.slane %v7962, 1
      %v7965 = vsel %vm1313, %v7960, %v7964
      %v7967 = vshrl.u32 %v7825, 16
      %v7969 = vshll.u32 %v7825, 16
      %v7971 = vrot.slane %v7969, 1
      %v7972 = vor.u32 %v7967, %v7971
      %v7974 = vshll.u32 %v7873, 16
      %v7976 = vrot.slane %v7974, 1
      %v7977 = vsel %vm1313, %v7972, %v7976
      %v7979 = vshrl.u32 %v7826, 16
      %v7981 = vshll.u32 %v7826, 16
      %v7983 = vrot.slane %v7981, 1
      %v7984 = vor.u32 %v7979, %v7983
      %v7986 = vshll.u32 %v7874, 16
      %v7988 = vrot.slane %v7986, 1
      %v7989 = vsel %vm1313, %v7984, %v7988
      %v7991 = vshrl.u32 %v7827, 16
      %v7993 = vshll.u32 %v7827, 16
      %v7995 = vrot.slane %v7993, 1
      %v7996 = vor.u32 %v7991, %v7995
      %v7998 = vshll.u32 %v7875, 16
      %v8000 = vrot.slane %v7998, 1
      %v8001 = vsel %vm1313, %v7996, %v8000
      %v8003 = vshrl.u32 %v7828, 16
      %v8005 = vshll.u32 %v7828, 16
      %v8007 = vrot.slane %v8005, 1
      %v8008 = vor.u32 %v8003, %v8007
      %v8010 = vshll.u32 %v7876, 16
      %v8012 = vrot.slane %v8010, 1
      %v8013 = vsel %vm1313, %v8008, %v8012
      %v8015 = vshrl.u32 %v7829, 16
      %v8017 = vshll.u32 %v7829, 16
      %v8019 = vrot.slane %v8017, 1
      %v8020 = vor.u32 %v8015, %v8019
      %v8022 = vshll.u32 %v7877, 16
      %v8024 = vrot.slane %v8022, 1
      %v8025 = vsel %vm1313, %v8020, %v8024
      %v8027 = vshrl.u32 %v7830, 16
      %v8029 = vshll.u32 %v7830, 16
      %v8031 = vrot.slane %v8029, 1
      %v8032 = vor.u32 %v8027, %v8031
      %v8034 = vshll.u32 %v7878, 16
      %v8036 = vrot.slane %v8034, 1
      %v8037 = vsel %vm1313, %v8032, %v8036
      %v8039 = vshrl.u32 %v7831, 16
      %v8041 = vshll.u32 %v7831, 16
      %v8043 = vrot.slane %v8041, 1
      %v8044 = vor.u32 %v8039, %v8043
      %v8046 = vshll.u32 %v7879, 16
      %v8048 = vrot.slane %v8046, 1
      %v8049 = vsel %vm1313, %v8044, %v8048
      %v8051 = vshrl.u32 %v7832, 16
      %v8053 = vshll.u32 %v7832, 16
      %v8055 = vrot.slane %v8053, 1
      %v8056 = vor.u32 %v8051, %v8055
      %v8058 = vshll.u32 %v7880, 16
      %v8060 = vrot.slane %v8058, 1
      %v8061 = vsel %vm1313, %v8056, %v8060
      %v8063 = vshrl.u32 %v7833, 16
      %v8065 = vshll.u32 %v7833, 16
      %v8067 = vrot.slane %v8065, 1
      %v8068 = vor.u32 %v8063, %v8067
      %v8070 = vshll.u32 %v7881, 16
      %v8072 = vrot.slane %v8070, 1
      %v8073 = vsel %vm1313, %v8068, %v8072
      %8074 = vrot.lane.b32.xlu0 %v7893, 8
      %v8075 = vpop.permute.xlu0 %8074
      %8076 = vrot.lane.b32.xlu0 %v7905, 8
      %v8077 = vpop.permute.xlu0 %8076
      %8078 = vrot.lane.b32.xlu0 %v7917, 8
      %v8079 = vpop.permute.xlu0 %8078
      %8080 = vrot.lane.b32.xlu0 %v7929, 8
      %v8081 = vpop.permute.xlu0 %8080
      %8082 = vrot.lane.b32.xlu0 %v7941, 8
      %v8083 = vpop.permute.xlu0 %8082
      %8084 = vrot.lane.b32.xlu0 %v7953, 8
      %v8085 = vpop.permute.xlu0 %8084
      %8086 = vrot.lane.b32.xlu0 %v7965, 8
      %v8087 = vpop.permute.xlu0 %8086
      %8088 = vrot.lane.b32.xlu0 %v7977, 8
      %v8089 = vpop.permute.xlu0 %8088
      %8090 = vrot.lane.b32.xlu0 %v7989, 8
      %v8091 = vpop.permute.xlu0 %8090
      %8092 = vrot.lane.b32.xlu0 %v8001, 8
      %v8093 = vpop.permute.xlu0 %8092
      %8094 = vrot.lane.b32.xlu0 %v8013, 8
      %v8095 = vpop.permute.xlu0 %8094
      %8096 = vrot.lane.b32.xlu0 %v8025, 8
      %v8097 = vpop.permute.xlu0 %8096
      %8098 = vrot.lane.b32.xlu0 %v8037, 8
      %v8099 = vpop.permute.xlu0 %8098
      %8100 = vrot.lane.b32.xlu0 %v8049, 8
      %v8101 = vpop.permute.xlu0 %8100
      %8102 = vrot.lane.b32.xlu0 %v8061, 8
      %v8103 = vpop.permute.xlu0 %8102
      %8104 = vrot.lane.b32.xlu0 %v8073, 8
      %v8105 = vpop.permute.xlu0 %8104
      %v8122 = vunpack.c.l.b16 %v7610
      %v8123 = vunpack.c.l.b16 %v7611
      %v8124 = vunpack.c.l.b16 %v7612
      %v8125 = vunpack.c.l.b16 %v7613
      %v8126 = vunpack.c.l.b16 %v7614
      %v8127 = vunpack.c.l.b16 %v7615
      %v8128 = vunpack.c.l.b16 %v7616
      %v8129 = vunpack.c.l.b16 %v7617
      %v8130 = vunpack.c.l.b16 %v7618
      %v8131 = vunpack.c.l.b16 %v7619
      %v8132 = vunpack.c.l.b16 %v7620
      %v8133 = vunpack.c.l.b16 %v7621
      %v8134 = vunpack.c.l.b16 %v7622
      %v8135 = vunpack.c.l.b16 %v7623
      %v8136 = vunpack.c.l.b16 %v7624
      %v8137 = vunpack.c.l.b16 %v7625
      %v8138 = vpack.c.b16 %v7787, %v8122
      %v8139 = vpack.c.b16 %v7789, %v8123
      %v8140 = vpack.c.b16 %v7791, %v8124
      %v8141 = vpack.c.b16 %v7793, %v8125
      %v8142 = vpack.c.b16 %v7795, %v8126
      %v8143 = vpack.c.b16 %v7797, %v8127
      %v8144 = vpack.c.b16 %v7799, %v8128
      %v8145 = vpack.c.b16 %v7801, %v8129
      %v8146 = vpack.c.b16 %v7803, %v8130
      %v8147 = vpack.c.b16 %v7805, %v8131
      %v8148 = vpack.c.b16 %v7807, %v8132
      %v8149 = vpack.c.b16 %v7809, %v8133
      %v8150 = vpack.c.b16 %v7811, %v8134
      %v8151 = vpack.c.b16 %v7813, %v8135
      %v8152 = vpack.c.b16 %v7815, %v8136
      %v8153 = vpack.c.b16 %v7817, %v8137
      %v8154 = vrot.slane %v8138, 1
      %v8155 = vrot.slane %v7866, 1
      %v8156 = vsel %vm1586, %v8154, %v8155
      %v8157 = vrot.slane %v8139, 1
      %v8158 = vrot.slane %v7867, 1
      %v8159 = vsel %vm1586, %v8157, %v8158
      %v8160 = vrot.slane %v8140, 1
      %v8161 = vrot.slane %v7868, 1
      %v8162 = vsel %vm1586, %v8160, %v8161
      %v8163 = vrot.slane %v8141, 1
      %v8164 = vrot.slane %v7869, 1
      %v8165 = vsel %vm1586, %v8163, %v8164
      %v8166 = vrot.slane %v8142, 1
      %v8167 = vrot.slane %v7870, 1
      %v8168 = vsel %vm1586, %v8166, %v8167
      %v8169 = vrot.slane %v8143, 1
      %v8170 = vrot.slane %v7871, 1
      %v8171 = vsel %vm1586, %v8169, %v8170
      %v8172 = vrot.slane %v8144, 1
      %v8173 = vrot.slane %v7872, 1
      %v8174 = vsel %vm1586, %v8172, %v8173
      %v8175 = vrot.slane %v8145, 1
      %v8176 = vrot.slane %v7873, 1
      %v8177 = vsel %vm1586, %v8175, %v8176
      %v8178 = vrot.slane %v8146, 1
      %v8179 = vrot.slane %v7874, 1
      %v8180 = vsel %vm1586, %v8178, %v8179
      %v8181 = vrot.slane %v8147, 1
      %v8182 = vrot.slane %v7875, 1
      %v8183 = vsel %vm1586, %v8181, %v8182
      %v8184 = vrot.slane %v8148, 1
      %v8185 = vrot.slane %v7876, 1
      %v8186 = vsel %vm1586, %v8184, %v8185
      %v8187 = vrot.slane %v8149, 1
      %v8188 = vrot.slane %v7877, 1
      %v8189 = vsel %vm1586, %v8187, %v8188
      %v8190 = vrot.slane %v8150, 1
      %v8191 = vrot.slane %v7878, 1
      %v8192 = vsel %vm1586, %v8190, %v8191
      %v8193 = vrot.slane %v8151, 1
      %v8194 = vrot.slane %v7879, 1
      %v8195 = vsel %vm1586, %v8193, %v8194
      %v8196 = vrot.slane %v8152, 1
      %v8197 = vrot.slane %v7880, 1
      %v8198 = vsel %vm1586, %v8196, %v8197
      %v8199 = vrot.slane %v8153, 1
      %v8200 = vrot.slane %v7881, 1
      %v8201 = vsel %vm1586, %v8199, %v8200
      %8202 = vrot.lane.b32.xlu0 %v8156, 16
      %v8203 = vpop.permute.xlu0 %8202
      %8204 = vrot.lane.b32.xlu0 %v8159, 16
      %v8205 = vpop.permute.xlu0 %8204
      %8206 = vrot.lane.b32.xlu0 %v8162, 16
      %v8207 = vpop.permute.xlu0 %8206
      %8208 = vrot.lane.b32.xlu0 %v8165, 16
      %v8209 = vpop.permute.xlu0 %8208
      %8210 = vrot.lane.b32.xlu0 %v8168, 16
      %v8211 = vpop.permute.xlu0 %8210
      %8212 = vrot.lane.b32.xlu0 %v8171, 16
      %v8213 = vpop.permute.xlu0 %8212
      %8214 = vrot.lane.b32.xlu0 %v8174, 16
      %v8215 = vpop.permute.xlu0 %8214
      %8216 = vrot.lane.b32.xlu0 %v8177, 16
      %v8217 = vpop.permute.xlu0 %8216
      %8218 = vrot.lane.b32.xlu0 %v8180, 16
      %v8219 = vpop.permute.xlu0 %8218
      %8220 = vrot.lane.b32.xlu0 %v8183, 16
      %v8221 = vpop.permute.xlu0 %8220
      %8222 = vrot.lane.b32.xlu0 %v8186, 16
      %v8223 = vpop.permute.xlu0 %8222
      %8224 = vrot.lane.b32.xlu0 %v8189, 16
      %v8225 = vpop.permute.xlu0 %8224
      %8226 = vrot.lane.b32.xlu0 %v8192, 16
      %v8227 = vpop.permute.xlu0 %8226
      %8228 = vrot.lane.b32.xlu0 %v8195, 16
      %v8229 = vpop.permute.xlu0 %8228
      %8230 = vrot.lane.b32.xlu0 %v8198, 16
      %v8231 = vpop.permute.xlu0 %8230
      %8232 = vrot.lane.b32.xlu0 %v8201, 16
      %v8233 = vpop.permute.xlu0 %8232
      %v8266 = vunpack.c.l.b16 %v7626
      %v8267 = vunpack.c.l.b16 %v7627
      %v8268 = vunpack.c.l.b16 %v7628
      %v8269 = vunpack.c.l.b16 %v7629
      %v8270 = vunpack.c.l.b16 %v7630
      %v8271 = vunpack.c.l.b16 %v7631
      %v8272 = vunpack.c.l.b16 %v7632
      %v8273 = vunpack.c.l.b16 %v7633
      %v8274 = vunpack.c.l.b16 %v7634
      %v8275 = vunpack.c.l.b16 %v7635
      %v8276 = vunpack.c.l.b16 %v7636
      %v8277 = vunpack.c.l.b16 %v7637
      %v8278 = vunpack.c.l.b16 %v7638
      %v8279 = vunpack.c.l.b16 %v7639
      %v8280 = vunpack.c.l.b16 %v7640
      %v8281 = vunpack.c.l.b16 %v7641
      %v8282 = vunpack.c.l.b16 %v7642
      %v8283 = vunpack.c.l.b16 %v7643
      %v8284 = vunpack.c.l.b16 %v7644
      %v8285 = vunpack.c.l.b16 %v7645
      %v8286 = vunpack.c.l.b16 %v7646
      %v8287 = vunpack.c.l.b16 %v7647
      %v8288 = vunpack.c.l.b16 %v7648
      %v8289 = vunpack.c.l.b16 %v7649
      %v8290 = vunpack.c.l.b16 %v7650
      %v8291 = vunpack.c.l.b16 %v7651
      %v8292 = vunpack.c.l.b16 %v7652
      %v8293 = vunpack.c.l.b16 %v7653
      %v8294 = vunpack.c.l.b16 %v7654
      %v8295 = vunpack.c.l.b16 %v7655
      %v8296 = vunpack.c.l.b16 %v7656
      %v8297 = vunpack.c.l.b16 %v7657
      %v8298 = vpack.c.b16 %v8267, %v8266
      %v8299 = vpack.c.b16 %v8269, %v8268
      %v8300 = vpack.c.b16 %v8271, %v8270
      %v8301 = vpack.c.b16 %v8273, %v8272
      %v8302 = vpack.c.b16 %v8275, %v8274
      %v8303 = vpack.c.b16 %v8277, %v8276
      %v8304 = vpack.c.b16 %v8279, %v8278
      %v8305 = vpack.c.b16 %v8281, %v8280
      %v8306 = vpack.c.b16 %v8283, %v8282
      %v8307 = vpack.c.b16 %v8285, %v8284
      %v8308 = vpack.c.b16 %v8287, %v8286
      %v8309 = vpack.c.b16 %v8289, %v8288
      %v8310 = vpack.c.b16 %v8291, %v8290
      %v8311 = vpack.c.b16 %v8293, %v8292
      %v8312 = vpack.c.b16 %v8295, %v8294
      %v8313 = vpack.c.b16 %v8297, %v8296
      %8314 = vrot.lane.b32.xlu0 %v8298, 24
      %v8315 = vpop.permute.xlu0 %8314
      %8316 = vrot.lane.b32.xlu0 %v8299, 24
      %v8317 = vpop.permute.xlu0 %8316
      %8318 = vrot.lane.b32.xlu0 %v8300, 24
      %v8319 = vpop.permute.xlu0 %8318
      %8320 = vrot.lane.b32.xlu0 %v8301, 24
      %v8321 = vpop.permute.xlu0 %8320
      %8322 = vrot.lane.b32.xlu0 %v8302, 24
      %v8323 = vpop.permute.xlu0 %8322
      %8324 = vrot.lane.b32.xlu0 %v8303, 24
      %v8325 = vpop.permute.xlu0 %8324
      %8326 = vrot.lane.b32.xlu0 %v8304, 24
      %v8327 = vpop.permute.xlu0 %8326
      %8328 = vrot.lane.b32.xlu0 %v8305, 24
      %v8329 = vpop.permute.xlu0 %8328
      %8330 = vrot.lane.b32.xlu0 %v8306, 24
      %v8331 = vpop.permute.xlu0 %8330
      %8332 = vrot.lane.b32.xlu0 %v8307, 24
      %v8333 = vpop.permute.xlu0 %8332
      %8334 = vrot.lane.b32.xlu0 %v8308, 24
      %v8335 = vpop.permute.xlu0 %8334
      %8336 = vrot.lane.b32.xlu0 %v8309, 24
      %v8337 = vpop.permute.xlu0 %8336
      %8338 = vrot.lane.b32.xlu0 %v8310, 24
      %v8339 = vpop.permute.xlu0 %8338
      %8340 = vrot.lane.b32.xlu0 %v8311, 24
      %v8341 = vpop.permute.xlu0 %8340
      %8342 = vrot.lane.b32.xlu0 %v8312, 24
      %v8343 = vpop.permute.xlu0 %8342
      %8344 = vrot.lane.b32.xlu0 %v8313, 24
      %v8345 = vpop.permute.xlu0 %8344
      %v8362 = vunpack.c.l.b16 %v7658
      %v8363 = vunpack.c.l.b16 %v7659
      %v8364 = vunpack.c.l.b16 %v7660
      %v8365 = vunpack.c.l.b16 %v7661
      %v8366 = vunpack.c.l.b16 %v7662
      %v8367 = vunpack.c.l.b16 %v7663
      %v8368 = vunpack.c.l.b16 %v7664
      %v8369 = vunpack.c.l.b16 %v7665
      %v8370 = vunpack.c.l.b16 %v7666
      %v8371 = vunpack.c.l.b16 %v7667
      %v8372 = vunpack.c.l.b16 %v7668
      %v8373 = vunpack.c.l.b16 %v7669
      %v8374 = vunpack.c.l.b16 %v7670
      %v8375 = vunpack.c.l.b16 %v7671
      %v8376 = vunpack.c.l.b16 %v7672
      %v8377 = vunpack.c.l.b16 %v7673
      %v8378 = vpack.c.b16 %v8362, %v8362
      %v8379 = vpack.c.b16 %v8363, %v8363
      %v8380 = vpack.c.b16 %v8364, %v8364
      %v8381 = vpack.c.b16 %v8365, %v8365
      %v8382 = vpack.c.b16 %v8366, %v8366
      %v8383 = vpack.c.b16 %v8367, %v8367
      %v8384 = vpack.c.b16 %v8368, %v8368
      %v8385 = vpack.c.b16 %v8369, %v8369
      %v8386 = vpack.c.b16 %v8370, %v8370
      %v8387 = vpack.c.b16 %v8371, %v8371
      %v8388 = vpack.c.b16 %v8372, %v8372
      %v8389 = vpack.c.b16 %v8373, %v8373
      %v8390 = vpack.c.b16 %v8374, %v8374
      %v8391 = vpack.c.b16 %v8375, %v8375
      %v8392 = vpack.c.b16 %v8376, %v8376
      %v8393 = vpack.c.b16 %v8377, %v8377
      %v8395 = vshrl.u32 %v8298, 16
      %v8397 = vshll.u32 %v8298, 16
      %v8399 = vrot.slane %v8397, 1
      %v8400 = vor.u32 %v8395, %v8399
      %v8402 = vshll.u32 %v8378, 16
      %v8404 = vrot.slane %v8402, 1
      %v8405 = vsel %vm1313, %v8400, %v8404
      %v8407 = vshrl.u32 %v8299, 16
      %v8409 = vshll.u32 %v8299, 16
      %v8411 = vrot.slane %v8409, 1
      %v8412 = vor.u32 %v8407, %v8411
      %v8414 = vshll.u32 %v8379, 16
      %v8416 = vrot.slane %v8414, 1
      %v8417 = vsel %vm1313, %v8412, %v8416
      %v8419 = vshrl.u32 %v8300, 16
      %v8421 = vshll.u32 %v8300, 16
      %v8423 = vrot.slane %v8421, 1
      %v8424 = vor.u32 %v8419, %v8423
      %v8426 = vshll.u32 %v8380, 16
      %v8428 = vrot.slane %v8426, 1
      %v8429 = vsel %vm1313, %v8424, %v8428
      %v8431 = vshrl.u32 %v8301, 16
      %v8433 = vshll.u32 %v8301, 16
      %v8435 = vrot.slane %v8433, 1
      %v8436 = vor.u32 %v8431, %v8435
      %v8438 = vshll.u32 %v8381, 16
      %v8440 = vrot.slane %v8438, 1
      %v8441 = vsel %vm1313, %v8436, %v8440
      %v8443 = vshrl.u32 %v8302, 16
      %v8445 = vshll.u32 %v8302, 16
      %v8447 = vrot.slane %v8445, 1
      %v8448 = vor.u32 %v8443, %v8447
      %v8450 = vshll.u32 %v8382, 16
      %v8452 = vrot.slane %v8450, 1
      %v8453 = vsel %vm1313, %v8448, %v8452
      %v8455 = vshrl.u32 %v8303, 16
      %v8457 = vshll.u32 %v8303, 16
      %v8459 = vrot.slane %v8457, 1
      %v8460 = vor.u32 %v8455, %v8459
      %v8462 = vshll.u32 %v8383, 16
      %v8464 = vrot.slane %v8462, 1
      %v8465 = vsel %vm1313, %v8460, %v8464
      %v8467 = vshrl.u32 %v8304, 16
      %v8469 = vshll.u32 %v8304, 16
      %v8471 = vrot.slane %v8469, 1
      %v8472 = vor.u32 %v8467, %v8471
      %v8474 = vshll.u32 %v8384, 16
      %v8476 = vrot.slane %v8474, 1
      %v8477 = vsel %vm1313, %v8472, %v8476
      %v8479 = vshrl.u32 %v8305, 16
      %v8481 = vshll.u32 %v8305, 16
      %v8483 = vrot.slane %v8481, 1
      %v8484 = vor.u32 %v8479, %v8483
      %v8486 = vshll.u32 %v8385, 16
      %v8488 = vrot.slane %v8486, 1
      %v8489 = vsel %vm1313, %v8484, %v8488
      %v8491 = vshrl.u32 %v8306, 16
      %v8493 = vshll.u32 %v8306, 16
      %v8495 = vrot.slane %v8493, 1
      %v8496 = vor.u32 %v8491, %v8495
      %v8498 = vshll.u32 %v8386, 16
      %v8500 = vrot.slane %v8498, 1
      %v8501 = vsel %vm1313, %v8496, %v8500
      %v8503 = vshrl.u32 %v8307, 16
      %v8505 = vshll.u32 %v8307, 16
      %v8507 = vrot.slane %v8505, 1
      %v8508 = vor.u32 %v8503, %v8507
      %v8510 = vshll.u32 %v8387, 16
      %v8512 = vrot.slane %v8510, 1
      %v8513 = vsel %vm1313, %v8508, %v8512
      %v8515 = vshrl.u32 %v8308, 16
      %v8517 = vshll.u32 %v8308, 16
      %v8519 = vrot.slane %v8517, 1
      %v8520 = vor.u32 %v8515, %v8519
      %v8522 = vshll.u32 %v8388, 16
      %v8524 = vrot.slane %v8522, 1
      %v8525 = vsel %vm1313, %v8520, %v8524
      %v8527 = vshrl.u32 %v8309, 16
      %v8529 = vshll.u32 %v8309, 16
      %v8531 = vrot.slane %v8529, 1
      %v8532 = vor.u32 %v8527, %v8531
      %v8534 = vshll.u32 %v8389, 16
      %v8536 = vrot.slane %v8534, 1
      %v8537 = vsel %vm1313, %v8532, %v8536
      %v8539 = vshrl.u32 %v8310, 16
      %v8541 = vshll.u32 %v8310, 16
      %v8543 = vrot.slane %v8541, 1
      %v8544 = vor.u32 %v8539, %v8543
      %v8546 = vshll.u32 %v8390, 16
      %v8548 = vrot.slane %v8546, 1
      %v8549 = vsel %vm1313, %v8544, %v8548
      %v8551 = vshrl.u32 %v8311, 16
      %v8553 = vshll.u32 %v8311, 16
      %v8555 = vrot.slane %v8553, 1
      %v8556 = vor.u32 %v8551, %v8555
      %v8558 = vshll.u32 %v8391, 16
      %v8560 = vrot.slane %v8558, 1
      %v8561 = vsel %vm1313, %v8556, %v8560
      %v8563 = vshrl.u32 %v8312, 16
      %v8565 = vshll.u32 %v8312, 16
      %v8567 = vrot.slane %v8565, 1
      %v8568 = vor.u32 %v8563, %v8567
      %v8570 = vshll.u32 %v8392, 16
      %v8572 = vrot.slane %v8570, 1
      %v8573 = vsel %vm1313, %v8568, %v8572
      %v8575 = vshrl.u32 %v8313, 16
      %v8577 = vshll.u32 %v8313, 16
      %v8579 = vrot.slane %v8577, 1
      %v8580 = vor.u32 %v8575, %v8579
      %v8582 = vshll.u32 %v8393, 16
      %v8584 = vrot.slane %v8582, 1
      %v8585 = vsel %vm1313, %v8580, %v8584
      %8586 = vrot.lane.b32.xlu0 %v8405, 32
      %v8587 = vpop.permute.xlu0 %8586
      %8588 = vrot.lane.b32.xlu0 %v8417, 32
      %v8589 = vpop.permute.xlu0 %8588
      %8590 = vrot.lane.b32.xlu0 %v8429, 32
      %v8591 = vpop.permute.xlu0 %8590
      %8592 = vrot.lane.b32.xlu0 %v8441, 32
      %v8593 = vpop.permute.xlu0 %8592
      %8594 = vrot.lane.b32.xlu0 %v8453, 32
      %v8595 = vpop.permute.xlu0 %8594
      %8596 = vrot.lane.b32.xlu0 %v8465, 32
      %v8597 = vpop.permute.xlu0 %8596
      %8598 = vrot.lane.b32.xlu0 %v8477, 32
      %v8599 = vpop.permute.xlu0 %8598
      %8600 = vrot.lane.b32.xlu0 %v8489, 32
      %v8601 = vpop.permute.xlu0 %8600
      %8602 = vrot.lane.b32.xlu0 %v8501, 32
      %v8603 = vpop.permute.xlu0 %8602
      %8604 = vrot.lane.b32.xlu0 %v8513, 32
      %v8605 = vpop.permute.xlu0 %8604
      %8606 = vrot.lane.b32.xlu0 %v8525, 32
      %v8607 = vpop.permute.xlu0 %8606
      %8608 = vrot.lane.b32.xlu0 %v8537, 32
      %v8609 = vpop.permute.xlu0 %8608
      %8610 = vrot.lane.b32.xlu0 %v8549, 32
      %v8611 = vpop.permute.xlu0 %8610
      %8612 = vrot.lane.b32.xlu0 %v8561, 32
      %v8613 = vpop.permute.xlu0 %8612
      %8614 = vrot.lane.b32.xlu0 %v8573, 32
      %v8615 = vpop.permute.xlu0 %8614
      %8616 = vrot.lane.b32.xlu0 %v8585, 32
      %v8617 = vpop.permute.xlu0 %8616
      %v8634 = vunpack.c.l.b16 %v7674
      %v8635 = vunpack.c.l.b16 %v7675
      %v8636 = vunpack.c.l.b16 %v7676
      %v8637 = vunpack.c.l.b16 %v7677
      %v8638 = vunpack.c.l.b16 %v7678
      %v8639 = vunpack.c.l.b16 %v7679
      %v8640 = vunpack.c.l.b16 %v7680
      %v8641 = vunpack.c.l.b16 %v7681
      %v8642 = vunpack.c.l.b16 %v7682
      %v8643 = vunpack.c.l.b16 %v7683
      %v8644 = vunpack.c.l.b16 %v7684
      %v8645 = vunpack.c.l.b16 %v7685
      %v8646 = vunpack.c.l.b16 %v7686
      %v8647 = vunpack.c.l.b16 %v7687
      %v8648 = vunpack.c.l.b16 %v7688
      %v8649 = vunpack.c.l.b16 %v7689
      %v8650 = vpack.c.b16 %v8267, %v8634
      %v8651 = vpack.c.b16 %v8269, %v8635
      %v8652 = vpack.c.b16 %v8271, %v8636
      %v8653 = vpack.c.b16 %v8273, %v8637
      %v8654 = vpack.c.b16 %v8275, %v8638
      %v8655 = vpack.c.b16 %v8277, %v8639
      %v8656 = vpack.c.b16 %v8279, %v8640
      %v8657 = vpack.c.b16 %v8281, %v8641
      %v8658 = vpack.c.b16 %v8283, %v8642
      %v8659 = vpack.c.b16 %v8285, %v8643
      %v8660 = vpack.c.b16 %v8287, %v8644
      %v8661 = vpack.c.b16 %v8289, %v8645
      %v8662 = vpack.c.b16 %v8291, %v8646
      %v8663 = vpack.c.b16 %v8293, %v8647
      %v8664 = vpack.c.b16 %v8295, %v8648
      %v8665 = vpack.c.b16 %v8297, %v8649
      %v8666 = vrot.slane %v8650, 1
      %v8667 = vrot.slane %v8378, 1
      %v8668 = vsel %vm1586, %v8666, %v8667
      %v8669 = vrot.slane %v8651, 1
      %v8670 = vrot.slane %v8379, 1
      %v8671 = vsel %vm1586, %v8669, %v8670
      %v8672 = vrot.slane %v8652, 1
      %v8673 = vrot.slane %v8380, 1
      %v8674 = vsel %vm1586, %v8672, %v8673
      %v8675 = vrot.slane %v8653, 1
      %v8676 = vrot.slane %v8381, 1
      %v8677 = vsel %vm1586, %v8675, %v8676
      %v8678 = vrot.slane %v8654, 1
      %v8679 = vrot.slane %v8382, 1
      %v8680 = vsel %vm1586, %v8678, %v8679
      %v8681 = vrot.slane %v8655, 1
      %v8682 = vrot.slane %v8383, 1
      %v8683 = vsel %vm1586, %v8681, %v8682
      %v8684 = vrot.slane %v8656, 1
      %v8685 = vrot.slane %v8384, 1
      %v8686 = vsel %vm1586, %v8684, %v8685
      %v8687 = vrot.slane %v8657, 1
      %v8688 = vrot.slane %v8385, 1
      %v8689 = vsel %vm1586, %v8687, %v8688
      %v8690 = vrot.slane %v8658, 1
      %v8691 = vrot.slane %v8386, 1
      %v8692 = vsel %vm1586, %v8690, %v8691
      %v8693 = vrot.slane %v8659, 1
      %v8694 = vrot.slane %v8387, 1
      %v8695 = vsel %vm1586, %v8693, %v8694
      %v8696 = vrot.slane %v8660, 1
      %v8697 = vrot.slane %v8388, 1
      %v8698 = vsel %vm1586, %v8696, %v8697
      %v8699 = vrot.slane %v8661, 1
      %v8700 = vrot.slane %v8389, 1
      %v8701 = vsel %vm1586, %v8699, %v8700
      %v8702 = vrot.slane %v8662, 1
      %v8703 = vrot.slane %v8390, 1
      %v8704 = vsel %vm1586, %v8702, %v8703
      %v8705 = vrot.slane %v8663, 1
      %v8706 = vrot.slane %v8391, 1
      %v8707 = vsel %vm1586, %v8705, %v8706
      %v8708 = vrot.slane %v8664, 1
      %v8709 = vrot.slane %v8392, 1
      %v8710 = vsel %vm1586, %v8708, %v8709
      %v8711 = vrot.slane %v8665, 1
      %v8712 = vrot.slane %v8393, 1
      %v8713 = vsel %vm1586, %v8711, %v8712
      %8714 = vrot.lane.b32.xlu0 %v8668, 40
      %v8715 = vpop.permute.xlu0 %8714
      %8716 = vrot.lane.b32.xlu0 %v8671, 40
      %v8717 = vpop.permute.xlu0 %8716
      %8718 = vrot.lane.b32.xlu0 %v8674, 40
      %v8719 = vpop.permute.xlu0 %8718
      %8720 = vrot.lane.b32.xlu0 %v8677, 40
      %v8721 = vpop.permute.xlu0 %8720
      %8722 = vrot.lane.b32.xlu0 %v8680, 40
      %v8723 = vpop.permute.xlu0 %8722
      %8724 = vrot.lane.b32.xlu0 %v8683, 40
      %v8725 = vpop.permute.xlu0 %8724
      %8726 = vrot.lane.b32.xlu0 %v8686, 40
      %v8727 = vpop.permute.xlu0 %8726
      %8728 = vrot.lane.b32.xlu0 %v8689, 40
      %v8729 = vpop.permute.xlu0 %8728
      %8730 = vrot.lane.b32.xlu0 %v8692, 40
      %v8731 = vpop.permute.xlu0 %8730
      %8732 = vrot.lane.b32.xlu0 %v8695, 40
      %v8733 = vpop.permute.xlu0 %8732
      %8734 = vrot.lane.b32.xlu0 %v8698, 40
      %v8735 = vpop.permute.xlu0 %8734
      %8736 = vrot.lane.b32.xlu0 %v8701, 40
      %v8737 = vpop.permute.xlu0 %8736
      %8738 = vrot.lane.b32.xlu0 %v8704, 40
      %v8739 = vpop.permute.xlu0 %8738
      %8740 = vrot.lane.b32.xlu0 %v8707, 40
      %v8741 = vpop.permute.xlu0 %8740
      %8742 = vrot.lane.b32.xlu0 %v8710, 40
      %v8743 = vpop.permute.xlu0 %8742
      %8744 = vrot.lane.b32.xlu0 %v8713, 40
      %v8745 = vpop.permute.xlu0 %8744
      %v8778 = vunpack.c.l.b16 %v7690
      %v8779 = vunpack.c.l.b16 %v7691
      %v8780 = vunpack.c.l.b16 %v7692
      %v8781 = vunpack.c.l.b16 %v7693
      %v8782 = vunpack.c.l.b16 %v7694
      %v8783 = vunpack.c.l.b16 %v7695
      %v8784 = vunpack.c.l.b16 %v7696
      %v8785 = vunpack.c.l.b16 %v7697
      %v8786 = vunpack.c.l.b16 %v7698
      %v8787 = vunpack.c.l.b16 %v7699
      %v8788 = vunpack.c.l.b16 %v7700
      %v8789 = vunpack.c.l.b16 %v7701
      %v8790 = vunpack.c.l.b16 %v7702
      %v8791 = vunpack.c.l.b16 %v7703
      %v8792 = vunpack.c.l.b16 %v7704
      %v8793 = vunpack.c.l.b16 %v7705
      %v8794 = vunpack.c.l.b16 %v7706
      %v8795 = vunpack.c.l.b16 %v7707
      %v8796 = vunpack.c.l.b16 %v7708
      %v8797 = vunpack.c.l.b16 %v7709
      %v8798 = vunpack.c.l.b16 %v7710
      %v8799 = vunpack.c.l.b16 %v7711
      %v8800 = vunpack.c.l.b16 %v7712
      %v8801 = vunpack.c.l.b16 %v7713
      %v8802 = vunpack.c.l.b16 %v7714
      %v8803 = vunpack.c.l.b16 %v7715
      %v8804 = vunpack.c.l.b16 %v7716
      %v8805 = vunpack.c.l.b16 %v7717
      %v8806 = vunpack.c.l.b16 %v7718
      %v8807 = vunpack.c.l.b16 %v7719
      %v8808 = vunpack.c.l.b16 %v7720
      %v8809 = vunpack.c.l.b16 %v7721
      %v8810 = vpack.c.b16 %v8779, %v8778
      %v8811 = vpack.c.b16 %v8781, %v8780
      %v8812 = vpack.c.b16 %v8783, %v8782
      %v8813 = vpack.c.b16 %v8785, %v8784
      %v8814 = vpack.c.b16 %v8787, %v8786
      %v8815 = vpack.c.b16 %v8789, %v8788
      %v8816 = vpack.c.b16 %v8791, %v8790
      %v8817 = vpack.c.b16 %v8793, %v8792
      %v8818 = vpack.c.b16 %v8795, %v8794
      %v8819 = vpack.c.b16 %v8797, %v8796
      %v8820 = vpack.c.b16 %v8799, %v8798
      %v8821 = vpack.c.b16 %v8801, %v8800
      %v8822 = vpack.c.b16 %v8803, %v8802
      %v8823 = vpack.c.b16 %v8805, %v8804
      %v8824 = vpack.c.b16 %v8807, %v8806
      %v8825 = vpack.c.b16 %v8809, %v8808
      %8826 = vrot.lane.b32.xlu0 %v8810, 48
      %v8827 = vpop.permute.xlu0 %8826
      %8828 = vrot.lane.b32.xlu0 %v8811, 48
      %v8829 = vpop.permute.xlu0 %8828
      %8830 = vrot.lane.b32.xlu0 %v8812, 48
      %v8831 = vpop.permute.xlu0 %8830
      %8832 = vrot.lane.b32.xlu0 %v8813, 48
      %v8833 = vpop.permute.xlu0 %8832
      %8834 = vrot.lane.b32.xlu0 %v8814, 48
      %v8835 = vpop.permute.xlu0 %8834
      %8836 = vrot.lane.b32.xlu0 %v8815, 48
      %v8837 = vpop.permute.xlu0 %8836
      %8838 = vrot.lane.b32.xlu0 %v8816, 48
      %v8839 = vpop.permute.xlu0 %8838
      %8840 = vrot.lane.b32.xlu0 %v8817, 48
      %v8841 = vpop.permute.xlu0 %8840
      %8842 = vrot.lane.b32.xlu0 %v8818, 48
      %v8843 = vpop.permute.xlu0 %8842
      %8844 = vrot.lane.b32.xlu0 %v8819, 48
      %v8845 = vpop.permute.xlu0 %8844
      %8846 = vrot.lane.b32.xlu0 %v8820, 48
      %v8847 = vpop.permute.xlu0 %8846
      %8848 = vrot.lane.b32.xlu0 %v8821, 48
      %v8849 = vpop.permute.xlu0 %8848
      %8850 = vrot.lane.b32.xlu0 %v8822, 48
      %v8851 = vpop.permute.xlu0 %8850
      %8852 = vrot.lane.b32.xlu0 %v8823, 48
      %v8853 = vpop.permute.xlu0 %8852
      %8854 = vrot.lane.b32.xlu0 %v8824, 48
      %v8855 = vpop.permute.xlu0 %8854
      %8856 = vrot.lane.b32.xlu0 %v8825, 48
      %v8857 = vpop.permute.xlu0 %8856
      %v8874 = vunpack.c.l.b16 %v7722
      %v8875 = vunpack.c.l.b16 %v7723
      %v8876 = vunpack.c.l.b16 %v7724
      %v8877 = vunpack.c.l.b16 %v7725
      %v8878 = vunpack.c.l.b16 %v7726
      %v8879 = vunpack.c.l.b16 %v7727
      %v8880 = vunpack.c.l.b16 %v7728
      %v8881 = vunpack.c.l.b16 %v7729
      %v8882 = vunpack.c.l.b16 %v7730
      %v8883 = vunpack.c.l.b16 %v7731
      %v8884 = vunpack.c.l.b16 %v7732
      %v8885 = vunpack.c.l.b16 %v7733
      %v8886 = vunpack.c.l.b16 %v7734
      %v8887 = vunpack.c.l.b16 %v7735
      %v8888 = vunpack.c.l.b16 %v7736
      %v8889 = vunpack.c.l.b16 %v7737
      %v8890 = vpack.c.b16 %v8874, %v8874
      %v8891 = vpack.c.b16 %v8875, %v8875
      %v8892 = vpack.c.b16 %v8876, %v8876
      %v8893 = vpack.c.b16 %v8877, %v8877
      %v8894 = vpack.c.b16 %v8878, %v8878
      %v8895 = vpack.c.b16 %v8879, %v8879
      %v8896 = vpack.c.b16 %v8880, %v8880
      %v8897 = vpack.c.b16 %v8881, %v8881
      %v8898 = vpack.c.b16 %v8882, %v8882
      %v8899 = vpack.c.b16 %v8883, %v8883
      %v8900 = vpack.c.b16 %v8884, %v8884
      %v8901 = vpack.c.b16 %v8885, %v8885
      %v8902 = vpack.c.b16 %v8886, %v8886
      %v8903 = vpack.c.b16 %v8887, %v8887
      %v8904 = vpack.c.b16 %v8888, %v8888
      %v8905 = vpack.c.b16 %v8889, %v8889
      %v8907 = vshrl.u32 %v8810, 16
      %v8909 = vshll.u32 %v8810, 16
      %v8911 = vrot.slane %v8909, 1
      %v8912 = vor.u32 %v8907, %v8911
      %v8914 = vshll.u32 %v8890, 16
      %v8916 = vrot.slane %v8914, 1
      %v8917 = vsel %vm1313, %v8912, %v8916
      %v8919 = vshrl.u32 %v8811, 16
      %v8921 = vshll.u32 %v8811, 16
      %v8923 = vrot.slane %v8921, 1
      %v8924 = vor.u32 %v8919, %v8923
      %v8926 = vshll.u32 %v8891, 16
      %v8928 = vrot.slane %v8926, 1
      %v8929 = vsel %vm1313, %v8924, %v8928
      %v8931 = vshrl.u32 %v8812, 16
      %v8933 = vshll.u32 %v8812, 16
      %v8935 = vrot.slane %v8933, 1
      %v8936 = vor.u32 %v8931, %v8935
      %v8938 = vshll.u32 %v8892, 16
      %v8940 = vrot.slane %v8938, 1
      %v8941 = vsel %vm1313, %v8936, %v8940
      %v8943 = vshrl.u32 %v8813, 16
      %v8945 = vshll.u32 %v8813, 16
      %v8947 = vrot.slane %v8945, 1
      %v8948 = vor.u32 %v8943, %v8947
      %v8950 = vshll.u32 %v8893, 16
      %v8952 = vrot.slane %v8950, 1
      %v8953 = vsel %vm1313, %v8948, %v8952
      %v8955 = vshrl.u32 %v8814, 16
      %v8957 = vshll.u32 %v8814, 16
      %v8959 = vrot.slane %v8957, 1
      %v8960 = vor.u32 %v8955, %v8959
      %v8962 = vshll.u32 %v8894, 16
      %v8964 = vrot.slane %v8962, 1
      %v8965 = vsel %vm1313, %v8960, %v8964
      %v8967 = vshrl.u32 %v8815, 16
      %v8969 = vshll.u32 %v8815, 16
      %v8971 = vrot.slane %v8969, 1
      %v8972 = vor.u32 %v8967, %v8971
      %v8974 = vshll.u32 %v8895, 16
      %v8976 = vrot.slane %v8974, 1
      %v8977 = vsel %vm1313, %v8972, %v8976
      %v8979 = vshrl.u32 %v8816, 16
      %v8981 = vshll.u32 %v8816, 16
      %v8983 = vrot.slane %v8981, 1
      %v8984 = vor.u32 %v8979, %v8983
      %v8986 = vshll.u32 %v8896, 16
      %v8988 = vrot.slane %v8986, 1
      %v8989 = vsel %vm1313, %v8984, %v8988
      %v8991 = vshrl.u32 %v8817, 16
      %v8993 = vshll.u32 %v8817, 16
      %v8995 = vrot.slane %v8993, 1
      %v8996 = vor.u32 %v8991, %v8995
      %v8998 = vshll.u32 %v8897, 16
      %v9000 = vrot.slane %v8998, 1
      %v9001 = vsel %vm1313, %v8996, %v9000
      %v9003 = vshrl.u32 %v8818, 16
      %v9005 = vshll.u32 %v8818, 16
      %v9007 = vrot.slane %v9005, 1
      %v9008 = vor.u32 %v9003, %v9007
      %v9010 = vshll.u32 %v8898, 16
      %v9012 = vrot.slane %v9010, 1
      %v9013 = vsel %vm1313, %v9008, %v9012
      %v9015 = vshrl.u32 %v8819, 16
      %v9017 = vshll.u32 %v8819, 16
      %v9019 = vrot.slane %v9017, 1
      %v9020 = vor.u32 %v9015, %v9019
      %v9022 = vshll.u32 %v8899, 16
      %v9024 = vrot.slane %v9022, 1
      %v9025 = vsel %vm1313, %v9020, %v9024
      %v9027 = vshrl.u32 %v8820, 16
      %v9029 = vshll.u32 %v8820, 16
      %v9031 = vrot.slane %v9029, 1
      %v9032 = vor.u32 %v9027, %v9031
      %v9034 = vshll.u32 %v8900, 16
      %v9036 = vrot.slane %v9034, 1
      %v9037 = vsel %vm1313, %v9032, %v9036
      %v9039 = vshrl.u32 %v8821, 16
      %v9041 = vshll.u32 %v8821, 16
      %v9043 = vrot.slane %v9041, 1
      %v9044 = vor.u32 %v9039, %v9043
      %v9046 = vshll.u32 %v8901, 16
      %v9048 = vrot.slane %v9046, 1
      %v9049 = vsel %vm1313, %v9044, %v9048
      %v9051 = vshrl.u32 %v8822, 16
      %v9053 = vshll.u32 %v8822, 16
      %v9055 = vrot.slane %v9053, 1
      %v9056 = vor.u32 %v9051, %v9055
      %v9058 = vshll.u32 %v8902, 16
      %v9060 = vrot.slane %v9058, 1
      %v9061 = vsel %vm1313, %v9056, %v9060
      %v9063 = vshrl.u32 %v8823, 16
      %v9065 = vshll.u32 %v8823, 16
      %v9067 = vrot.slane %v9065, 1
      %v9068 = vor.u32 %v9063, %v9067
      %v9070 = vshll.u32 %v8903, 16
      %v9072 = vrot.slane %v9070, 1
      %v9073 = vsel %vm1313, %v9068, %v9072
      %v9075 = vshrl.u32 %v8824, 16
      %v9077 = vshll.u32 %v8824, 16
      %v9079 = vrot.slane %v9077, 1
      %v9080 = vor.u32 %v9075, %v9079
      %v9082 = vshll.u32 %v8904, 16
      %v9084 = vrot.slane %v9082, 1
      %v9085 = vsel %vm1313, %v9080, %v9084
      %v9087 = vshrl.u32 %v8825, 16
      %v9089 = vshll.u32 %v8825, 16
      %v9091 = vrot.slane %v9089, 1
      %v9092 = vor.u32 %v9087, %v9091
      %v9094 = vshll.u32 %v8905, 16
      %v9096 = vrot.slane %v9094, 1
      %v9097 = vsel %vm1313, %v9092, %v9096
      %9098 = vrot.lane.b32.xlu0 %v8917, 56
      %v9099 = vpop.permute.xlu0 %9098
      %9100 = vrot.lane.b32.xlu0 %v8929, 56
      %v9101 = vpop.permute.xlu0 %9100
      %9102 = vrot.lane.b32.xlu0 %v8941, 56
      %v9103 = vpop.permute.xlu0 %9102
      %9104 = vrot.lane.b32.xlu0 %v8953, 56
      %v9105 = vpop.permute.xlu0 %9104
      %9106 = vrot.lane.b32.xlu0 %v8965, 56
      %v9107 = vpop.permute.xlu0 %9106
      %9108 = vrot.lane.b32.xlu0 %v8977, 56
      %v9109 = vpop.permute.xlu0 %9108
      %9110 = vrot.lane.b32.xlu0 %v8989, 56
      %v9111 = vpop.permute.xlu0 %9110
      %9112 = vrot.lane.b32.xlu0 %v9001, 56
      %v9113 = vpop.permute.xlu0 %9112
      %9114 = vrot.lane.b32.xlu0 %v9013, 56
      %v9115 = vpop.permute.xlu0 %9114
      %9116 = vrot.lane.b32.xlu0 %v9025, 56
      %v9117 = vpop.permute.xlu0 %9116
      %9118 = vrot.lane.b32.xlu0 %v9037, 56
      %v9119 = vpop.permute.xlu0 %9118
      %9120 = vrot.lane.b32.xlu0 %v9049, 56
      %v9121 = vpop.permute.xlu0 %9120
      %9122 = vrot.lane.b32.xlu0 %v9061, 56
      %v9123 = vpop.permute.xlu0 %9122
      %9124 = vrot.lane.b32.xlu0 %v9073, 56
      %v9125 = vpop.permute.xlu0 %9124
      %9126 = vrot.lane.b32.xlu0 %v9085, 56
      %v9127 = vpop.permute.xlu0 %9126
      %9128 = vrot.lane.b32.xlu0 %v9097, 56
      %v9129 = vpop.permute.xlu0 %9128
      %v9146 = vunpack.c.l.b16 %v7738
      %v9147 = vunpack.c.l.b16 %v7739
      %v9148 = vunpack.c.l.b16 %v7740
      %v9149 = vunpack.c.l.b16 %v7741
      %v9150 = vunpack.c.l.b16 %v7742
      %v9151 = vunpack.c.l.b16 %v7743
      %v9152 = vunpack.c.l.b16 %v7744
      %v9153 = vunpack.c.l.b16 %v7745
      %v9154 = vunpack.c.l.b16 %v7746
      %v9155 = vunpack.c.l.b16 %v7747
      %v9156 = vunpack.c.l.b16 %v7748
      %v9157 = vunpack.c.l.b16 %v7749
      %v9158 = vunpack.c.l.b16 %v7750
      %v9159 = vunpack.c.l.b16 %v7751
      %v9160 = vunpack.c.l.b16 %v7752
      %v9161 = vunpack.c.l.b16 %v7753
      %v9162 = vpack.c.b16 %v8779, %v9146
      %v9163 = vpack.c.b16 %v8781, %v9147
      %v9164 = vpack.c.b16 %v8783, %v9148
      %v9165 = vpack.c.b16 %v8785, %v9149
      %v9166 = vpack.c.b16 %v8787, %v9150
      %v9167 = vpack.c.b16 %v8789, %v9151
      %v9168 = vpack.c.b16 %v8791, %v9152
      %v9169 = vpack.c.b16 %v8793, %v9153
      %v9170 = vpack.c.b16 %v8795, %v9154
      %v9171 = vpack.c.b16 %v8797, %v9155
      %v9172 = vpack.c.b16 %v8799, %v9156
      %v9173 = vpack.c.b16 %v8801, %v9157
      %v9174 = vpack.c.b16 %v8803, %v9158
      %v9175 = vpack.c.b16 %v8805, %v9159
      %v9176 = vpack.c.b16 %v8807, %v9160
      %v9177 = vpack.c.b16 %v8809, %v9161
      %v9178 = vrot.slane %v9162, 1
      %v9179 = vrot.slane %v8890, 1
      %v9180 = vsel %vm1586, %v9178, %v9179
      %v9181 = vrot.slane %v9163, 1
      %v9182 = vrot.slane %v8891, 1
      %v9183 = vsel %vm1586, %v9181, %v9182
      %v9184 = vrot.slane %v9164, 1
      %v9185 = vrot.slane %v8892, 1
      %v9186 = vsel %vm1586, %v9184, %v9185
      %v9187 = vrot.slane %v9165, 1
      %v9188 = vrot.slane %v8893, 1
      %v9189 = vsel %vm1586, %v9187, %v9188
      %v9190 = vrot.slane %v9166, 1
      %v9191 = vrot.slane %v8894, 1
      %v9192 = vsel %vm1586, %v9190, %v9191
      %v9193 = vrot.slane %v9167, 1
      %v9194 = vrot.slane %v8895, 1
      %v9195 = vsel %vm1586, %v9193, %v9194
      %v9196 = vrot.slane %v9168, 1
      %v9197 = vrot.slane %v8896, 1
      %v9198 = vsel %vm1586, %v9196, %v9197
      %v9199 = vrot.slane %v9169, 1
      %v9200 = vrot.slane %v8897, 1
      %v9201 = vsel %vm1586, %v9199, %v9200
      %v9202 = vrot.slane %v9170, 1
      %v9203 = vrot.slane %v8898, 1
      %v9204 = vsel %vm1586, %v9202, %v9203
      %v9205 = vrot.slane %v9171, 1
      %v9206 = vrot.slane %v8899, 1
      %v9207 = vsel %vm1586, %v9205, %v9206
      %v9208 = vrot.slane %v9172, 1
      %v9209 = vrot.slane %v8900, 1
      %v9210 = vsel %vm1586, %v9208, %v9209
      %v9211 = vrot.slane %v9173, 1
      %v9212 = vrot.slane %v8901, 1
      %v9213 = vsel %vm1586, %v9211, %v9212
      %v9214 = vrot.slane %v9174, 1
      %v9215 = vrot.slane %v8902, 1
      %v9216 = vsel %vm1586, %v9214, %v9215
      %v9217 = vrot.slane %v9175, 1
      %v9218 = vrot.slane %v8903, 1
      %v9219 = vsel %vm1586, %v9217, %v9218
      %v9220 = vrot.slane %v9176, 1
      %v9221 = vrot.slane %v8904, 1
      %v9222 = vsel %vm1586, %v9220, %v9221
      %v9223 = vrot.slane %v9177, 1
      %v9224 = vrot.slane %v8905, 1
      %v9225 = vsel %vm1586, %v9223, %v9224
      %9226 = vrot.lane.b32.xlu0 %v9180, 64
      %v9227 = vpop.permute.xlu0 %9226
      %9228 = vrot.lane.b32.xlu0 %v9183, 64
      %v9229 = vpop.permute.xlu0 %9228
      %9230 = vrot.lane.b32.xlu0 %v9186, 64
      %v9231 = vpop.permute.xlu0 %9230
      %9232 = vrot.lane.b32.xlu0 %v9189, 64
      %v9233 = vpop.permute.xlu0 %9232
      %9234 = vrot.lane.b32.xlu0 %v9192, 64
      %v9235 = vpop.permute.xlu0 %9234
      %9236 = vrot.lane.b32.xlu0 %v9195, 64
      %v9237 = vpop.permute.xlu0 %9236
      %9238 = vrot.lane.b32.xlu0 %v9198, 64
      %v9239 = vpop.permute.xlu0 %9238
      %9240 = vrot.lane.b32.xlu0 %v9201, 64
      %v9241 = vpop.permute.xlu0 %9240
      %9242 = vrot.lane.b32.xlu0 %v9204, 64
      %v9243 = vpop.permute.xlu0 %9242
      %9244 = vrot.lane.b32.xlu0 %v9207, 64
      %v9245 = vpop.permute.xlu0 %9244
      %9246 = vrot.lane.b32.xlu0 %v9210, 64
      %v9247 = vpop.permute.xlu0 %9246
      %9248 = vrot.lane.b32.xlu0 %v9213, 64
      %v9249 = vpop.permute.xlu0 %9248
      %9250 = vrot.lane.b32.xlu0 %v9216, 64
      %v9251 = vpop.permute.xlu0 %9250
      %9252 = vrot.lane.b32.xlu0 %v9219, 64
      %v9253 = vpop.permute.xlu0 %9252
      %9254 = vrot.lane.b32.xlu0 %v9222, 64
      %v9255 = vpop.permute.xlu0 %9254
      %9256 = vrot.lane.b32.xlu0 %v9225, 64
      %v9257 = vpop.permute.xlu0 %9256
      %v9259 = vsel %vm2724, %v7818, %v8075
      %v9261 = vsel %vm2724, %v7819, %v8077
      %v9263 = vsel %vm2724, %v7820, %v8079
      %v9265 = vsel %vm2724, %v7821, %v8081
      %v9267 = vsel %vm2724, %v7822, %v8083
      %v9269 = vsel %vm2724, %v7823, %v8085
      %v9271 = vsel %vm2724, %v7824, %v8087
      %v9273 = vsel %vm2724, %v7825, %v8089
      %v9275 = vsel %vm2724, %v7826, %v8091
      %v9277 = vsel %vm2724, %v7827, %v8093
      %v9279 = vsel %vm2724, %v7828, %v8095
      %v9281 = vsel %vm2724, %v7829, %v8097
      %v9283 = vsel %vm2724, %v7830, %v8099
      %v9285 = vsel %vm2724, %v7831, %v8101
      %v9287 = vsel %vm2724, %v7832, %v8103
      %v9289 = vsel %vm2724, %v7833, %v8105
      %v9291 = vsel %vm2790, %v9259, %v8203
      %v9293 = vsel %vm2790, %v9261, %v8205
      %v9295 = vsel %vm2790, %v9263, %v8207
      %v9297 = vsel %vm2790, %v9265, %v8209
      %v9299 = vsel %vm2790, %v9267, %v8211
      %v9301 = vsel %vm2790, %v9269, %v8213
      %v9303 = vsel %vm2790, %v9271, %v8215
      %v9305 = vsel %vm2790, %v9273, %v8217
      %v9307 = vsel %vm2790, %v9275, %v8219
      %v9309 = vsel %vm2790, %v9277, %v8221
      %v9311 = vsel %vm2790, %v9279, %v8223
      %v9313 = vsel %vm2790, %v9281, %v8225
      %v9315 = vsel %vm2790, %v9283, %v8227
      %v9317 = vsel %vm2790, %v9285, %v8229
      %v9319 = vsel %vm2790, %v9287, %v8231
      %v9321 = vsel %vm2790, %v9289, %v8233
      %v9323 = vsel %vm2856, %v9291, %v8315
      %v9325 = vsel %vm2856, %v9293, %v8317
      %v9327 = vsel %vm2856, %v9295, %v8319
      %v9329 = vsel %vm2856, %v9297, %v8321
      %v9331 = vsel %vm2856, %v9299, %v8323
      %v9333 = vsel %vm2856, %v9301, %v8325
      %v9335 = vsel %vm2856, %v9303, %v8327
      %v9337 = vsel %vm2856, %v9305, %v8329
      %v9339 = vsel %vm2856, %v9307, %v8331
      %v9341 = vsel %vm2856, %v9309, %v8333
      %v9343 = vsel %vm2856, %v9311, %v8335
      %v9345 = vsel %vm2856, %v9313, %v8337
      %v9347 = vsel %vm2856, %v9315, %v8339
      %v9349 = vsel %vm2856, %v9317, %v8341
      %v9351 = vsel %vm2856, %v9319, %v8343
      %v9353 = vsel %vm2856, %v9321, %v8345
      %v9355 = vsel %vm2922, %v9323, %v8587
      %v9357 = vsel %vm2922, %v9325, %v8589
      %v9359 = vsel %vm2922, %v9327, %v8591
      %v9361 = vsel %vm2922, %v9329, %v8593
      %v9363 = vsel %vm2922, %v9331, %v8595
      %v9365 = vsel %vm2922, %v9333, %v8597
      %v9367 = vsel %vm2922, %v9335, %v8599
      %v9369 = vsel %vm2922, %v9337, %v8601
      %v9371 = vsel %vm2922, %v9339, %v8603
      %v9373 = vsel %vm2922, %v9341, %v8605
      %v9375 = vsel %vm2922, %v9343, %v8607
      %v9377 = vsel %vm2922, %v9345, %v8609
      %v9379 = vsel %vm2922, %v9347, %v8611
      %v9381 = vsel %vm2922, %v9349, %v8613
      %v9383 = vsel %vm2922, %v9351, %v8615
      %v9385 = vsel %vm2922, %v9353, %v8617
      %v9387 = vsel %vm6071, %v9355, %v8715
      %v9389 = vsel %vm6071, %v9357, %v8717
      %v9391 = vsel %vm6071, %v9359, %v8719
      %v9393 = vsel %vm6071, %v9361, %v8721
      %v9395 = vsel %vm6071, %v9363, %v8723
      %v9397 = vsel %vm6071, %v9365, %v8725
      %v9399 = vsel %vm6071, %v9367, %v8727
      %v9401 = vsel %vm6071, %v9369, %v8729
      %v9403 = vsel %vm6071, %v9371, %v8731
      %v9405 = vsel %vm6071, %v9373, %v8733
      %v9407 = vsel %vm6071, %v9375, %v8735
      %v9409 = vsel %vm6071, %v9377, %v8737
      %v9411 = vsel %vm6071, %v9379, %v8739
      %v9413 = vsel %vm6071, %v9381, %v8741
      %v9415 = vsel %vm6071, %v9383, %v8743
      %v9417 = vsel %vm6071, %v9385, %v8745
      %v9419 = vsel %vm6104, %v9387, %v8827
      %v9421 = vsel %vm6104, %v9389, %v8829
      %v9423 = vsel %vm6104, %v9391, %v8831
      %v9425 = vsel %vm6104, %v9393, %v8833
      %v9427 = vsel %vm6104, %v9395, %v8835
      %v9429 = vsel %vm6104, %v9397, %v8837
      %v9431 = vsel %vm6104, %v9399, %v8839
      %v9433 = vsel %vm6104, %v9401, %v8841
      %v9435 = vsel %vm6104, %v9403, %v8843
      %v9437 = vsel %vm6104, %v9405, %v8845
      %v9439 = vsel %vm6104, %v9407, %v8847
      %v9441 = vsel %vm6104, %v9409, %v8849
      %v9443 = vsel %vm6104, %v9411, %v8851
      %v9445 = vsel %vm6104, %v9413, %v8853
      %v9447 = vsel %vm6104, %v9415, %v8855
      %v9449 = vsel %vm6104, %v9417, %v8857
      %v9451 = vsel %vm6137, %v9419, %v9099
      %v9453 = vsel %vm6137, %v9421, %v9101
      %v9455 = vsel %vm6137, %v9423, %v9103
      %v9457 = vsel %vm6137, %v9425, %v9105
      %v9459 = vsel %vm6137, %v9427, %v9107
      %v9461 = vsel %vm6137, %v9429, %v9109
      %v9463 = vsel %vm6137, %v9431, %v9111
      %v9465 = vsel %vm6137, %v9433, %v9113
      %v9467 = vsel %vm6137, %v9435, %v9115
      %v9469 = vsel %vm6137, %v9437, %v9117
      %v9471 = vsel %vm6137, %v9439, %v9119
      %v9473 = vsel %vm6137, %v9441, %v9121
      %v9475 = vsel %vm6137, %v9443, %v9123
      %v9477 = vsel %vm6137, %v9445, %v9125
      %v9479 = vsel %vm6137, %v9447, %v9127
      %v9481 = vsel %vm6137, %v9449, %v9129
      %v9483 = vsel %vm6170, %v9451, %v9227
      %v9485 = vsel %vm6170, %v9453, %v9229
      %v9487 = vsel %vm6170, %v9455, %v9231
      %v9489 = vsel %vm6170, %v9457, %v9233
      %v9491 = vsel %vm6170, %v9459, %v9235
      %v9493 = vsel %vm6170, %v9461, %v9237
      %v9495 = vsel %vm6170, %v9463, %v9239
      %v9497 = vsel %vm6170, %v9465, %v9241
      %v9499 = vsel %vm6170, %v9467, %v9243
      %v9501 = vsel %vm6170, %v9469, %v9245
      %v9503 = vsel %vm6170, %v9471, %v9247
      %v9505 = vsel %vm6170, %v9473, %v9249
      %v9507 = vsel %vm6170, %v9475, %v9251
      %v9509 = vsel %vm6170, %v9477, %v9253
      %v9511 = vsel %vm6170, %v9479, %v9255
      %v9513 = vsel %vm6170, %v9481, %v9257
      %v9514 = vld [vmem:[%s3] sm:$0xf]
      %v9515 = vld [vmem:[%s3 + $0x4] sm:$0xf]
      %v9516 = vld [vmem:[%s3 + $0x8] sm:$0xf]
      %v9517 = vld [vmem:[%s3 + $0xc] sm:$0xf]
      %v9518 = vld [vmem:[%s3 + $0x10] sm:$0xf]
      %v9519 = vld [vmem:[%s3 + $0x14] sm:$0xf]
      %v9520 = vld [vmem:[%s3 + $0x18] sm:$0xf]
      %v9521 = vld [vmem:[%s3 + $0x1c] sm:$0xf]
      %v9522 = vld [vmem:[%s3 + $0x20] sm:$0xf]
      %v9532 = vunpack.c.l.b16 %v9514
      %v9533 = vunpack.c.l.b16 %v9515
      %v9534 = vunpack.c.l.b16 %v9516
      %v9535 = vunpack.c.l.b16 %v9517
      %v9536 = vunpack.c.l.b16 %v9518
      %v9537 = vunpack.c.l.b16 %v9519
      %v9538 = vunpack.c.l.b16 %v9520
      %v9539 = vunpack.c.l.b16 %v9521
      %v9540 = vunpack.c.l.b16 %v9522
      %v9541 = vpack.c.b16 %v9533, %v9532
      %v9542 = vpack.c.b16 %v9535, %v9534
      %v9543 = vpack.c.b16 %v9537, %v9536
      %v9544 = vpack.c.b16 %v9539, %v9538
      %v9545 = vpack.c.b16 %v9540, %v9540
      %v9550 = vsel %vm6239, %v9483, 0
      %v9552 = vsel %vm6239, %v9485, 0
      %v9554 = vsel %vm6239, %v9487, 0
      %v9556 = vsel %vm6239, %v9489, 0
      %v9558 = vsel %vm6239, %v9491, 0
      %v9560 = vsel %vm6239, %v9493, 0
      %v9562 = vsel %vm6239, %v9495, 0
      %v9564 = vsel %vm6239, %v9497, 0
      %v9566 = vsel %vm6239, %v9499, 0
      %v9568 = vsel %vm6239, %v9501, 0
      %v9570 = vsel %vm6239, %v9503, 0
      %v9572 = vsel %vm6239, %v9505, 0
      %v9574 = vsel %vm6239, %v9507, 0
      %v9576 = vsel %vm6239, %v9509, 0
      %v9578 = vsel %vm6239, %v9511, 0
      %v9580 = vsel %vm6239, %v9513, 0
      %v9583 = vsel %vm6272, %v9545, 0
      %9585 = vmatpush.bf16.msra.mxu0 0
      %9586 = vmatpush.bf16.msra.mxu0 0
      %9587 = vmatpush.bf16.msra.mxu0 0
      %9588 = vmatpush.bf16.msra.mxu0 %v9583
      %9589 = vmatpush.bf16.msra.mxu0 %v9544
      %9590 = vmatpush.bf16.msra.mxu0 %v9543
      %9591 = vmatpush.bf16.msra.mxu0 %v9542
      %9592 = vmatpush.bf16.msra.mxu0 %v9541
      %9593 = vmatmul.bf16.gmra.mxu0 %v9550
      %v9594 = vpop.f32.mrf.mxu0
      %v9595 = vadd.f32 0.0, %v9594
      %v9596 = vpop.f32.mrf.mxu0
      %v9597 = vadd.f32 0.0, %v9596
      %9598 = vmatmul.bf16.gmra.mxu0 %v9552
      %v9599 = vpop.f32.mrf.mxu0
      %v9600 = vadd.f32 0.0, %v9599
      %v9601 = vpop.f32.mrf.mxu0
      %v9602 = vadd.f32 0.0, %v9601
      %9603 = vmatmul.bf16.gmra.mxu0 %v9554
      %v9604 = vpop.f32.mrf.mxu0
      %v9605 = vadd.f32 0.0, %v9604
      %v9606 = vpop.f32.mrf.mxu0
      %v9607 = vadd.f32 0.0, %v9606
      %9608 = vmatmul.bf16.gmra.mxu0 %v9556
      %v9609 = vpop.f32.mrf.mxu0
      %v9610 = vadd.f32 0.0, %v9609
      %v9611 = vpop.f32.mrf.mxu0
      %v9612 = vadd.f32 0.0, %v9611
      %9613 = vmatmul.bf16.gmra.mxu0 %v9558
      %v9614 = vpop.f32.mrf.mxu0
      %v9615 = vadd.f32 0.0, %v9614
      %v9616 = vpop.f32.mrf.mxu0
      %v9617 = vadd.f32 0.0, %v9616
      %9618 = vmatmul.bf16.gmra.mxu0 %v9560
      %v9619 = vpop.f32.mrf.mxu0
      %v9620 = vadd.f32 0.0, %v9619
      %v9621 = vpop.f32.mrf.mxu0
      %v9622 = vadd.f32 0.0, %v9621
      %9623 = vmatmul.bf16.gmra.mxu0 %v9562
      %v9624 = vpop.f32.mrf.mxu0
      %v9625 = vadd.f32 0.0, %v9624
      %v9626 = vpop.f32.mrf.mxu0
      %v9627 = vadd.f32 0.0, %v9626
      %9628 = vmatmul.bf16.gmra.mxu0 %v9564
      %v9629 = vpop.f32.mrf.mxu0
      %v9630 = vadd.f32 0.0, %v9629
      %v9631 = vpop.f32.mrf.mxu0
      %v9632 = vadd.f32 0.0, %v9631
      %9633 = vmatmul.bf16.gmra.mxu0 %v9566
      %v9634 = vpop.f32.mrf.mxu0
      %v9635 = vadd.f32 0.0, %v9634
      %v9636 = vpop.f32.mrf.mxu0
      %v9637 = vadd.f32 0.0, %v9636
      %9638 = vmatmul.bf16.gmra.mxu0 %v9568
      %v9639 = vpop.f32.mrf.mxu0
      %v9640 = vadd.f32 0.0, %v9639
      %v9641 = vpop.f32.mrf.mxu0
      %v9642 = vadd.f32 0.0, %v9641
      %9643 = vmatmul.bf16.gmra.mxu0 %v9570
      %v9644 = vpop.f32.mrf.mxu0
      %v9645 = vadd.f32 0.0, %v9644
      %v9646 = vpop.f32.mrf.mxu0
      %v9647 = vadd.f32 0.0, %v9646
      %9648 = vmatmul.bf16.gmra.mxu0 %v9572
      %v9649 = vpop.f32.mrf.mxu0
      %v9650 = vadd.f32 0.0, %v9649
      %v9651 = vpop.f32.mrf.mxu0
      %v9652 = vadd.f32 0.0, %v9651
      %9653 = vmatmul.bf16.gmra.mxu0 %v9574
      %v9654 = vpop.f32.mrf.mxu0
      %v9655 = vadd.f32 0.0, %v9654
      %v9656 = vpop.f32.mrf.mxu0
      %v9657 = vadd.f32 0.0, %v9656
      %9658 = vmatmul.bf16.gmra.mxu0 %v9576
      %v9659 = vpop.f32.mrf.mxu0
      %v9660 = vadd.f32 0.0, %v9659
      %v9661 = vpop.f32.mrf.mxu0
      %v9662 = vadd.f32 0.0, %v9661
      %9663 = vmatmul.bf16.gmra.mxu0 %v9578
      %v9664 = vpop.f32.mrf.mxu0
      %v9665 = vadd.f32 0.0, %v9664
      %v9666 = vpop.f32.mrf.mxu0
      %v9667 = vadd.f32 0.0, %v9666
      %9668 = vmatmul.bf16.gmra.mxu0 %v9580
      %v9669 = vpop.f32.mrf.mxu0
      %v9670 = vadd.f32 0.0, %v9669
      %v9671 = vpop.f32.mrf.mxu0
      %v9672 = vadd.f32 0.0, %v9671
      %9673 = vdwg.mxu0
      %9674 = vst.msk [vmem:[#allocation3] sm:$0xff] %vm2724, %v9595
      %9675 = vst.msk [vmem:[#allocation3 + $0x8] sm:$0xff] %vm2724, %v9597
      %9676 = vst.msk [vmem:[#allocation3 + $0x10] sm:$0xff] %vm2724, %v9600
      %9677 = vst.msk [vmem:[#allocation3 + $0x18] sm:$0xff] %vm2724, %v9602
      %9678 = vst.msk [vmem:[#allocation3 + $0x20] sm:$0xff] %vm2724, %v9605
      %9679 = vst.msk [vmem:[#allocation3 + $0x28] sm:$0xff] %vm2724, %v9607
      %9680 = vst.msk [vmem:[#allocation3 + $0x30] sm:$0xff] %vm2724, %v9610
      %9681 = vst.msk [vmem:[#allocation3 + $0x38] sm:$0xff] %vm2724, %v9612
      %9682 = vst.msk [vmem:[#allocation3 + $0x40] sm:$0xff] %vm2724, %v9615
      %9683 = vst.msk [vmem:[#allocation3 + $0x48] sm:$0xff] %vm2724, %v9617
      %9684 = vst.msk [vmem:[#allocation3 + $0x50] sm:$0xff] %vm2724, %v9620
      %9685 = vst.msk [vmem:[#allocation3 + $0x58] sm:$0xff] %vm2724, %v9622
      %9686 = vst.msk [vmem:[#allocation3 + $0x60] sm:$0xff] %vm2724, %v9625
      %9687 = vst.msk [vmem:[#allocation3 + $0x68] sm:$0xff] %vm2724, %v9627
      %9688 = vst.msk [vmem:[#allocation3 + $0x70] sm:$0xff] %vm2724, %v9630
      %9689 = vst.msk [vmem:[#allocation3 + $0x78] sm:$0xff] %vm2724, %v9632
      %9690 = vst.msk [vmem:[#allocation3 + $0x80] sm:$0xff] %vm2724, %v9635
      %9691 = vst.msk [vmem:[#allocation3 + $0x88] sm:$0xff] %vm2724, %v9637
      %9692 = vst.msk [vmem:[#allocation3 + $0x90] sm:$0xff] %vm2724, %v9640
      %9693 = vst.msk [vmem:[#allocation3 + $0x98] sm:$0xff] %vm2724, %v9642
      %9694 = vst.msk [vmem:[#allocation3 + $0xa0] sm:$0xff] %vm2724, %v9645
      %9695 = vst.msk [vmem:[#allocation3 + $0xa8] sm:$0xff] %vm2724, %v9647
      %9696 = vst.msk [vmem:[#allocation3 + $0xb0] sm:$0xff] %vm2724, %v9650
      %9697 = vst.msk [vmem:[#allocation3 + $0xb8] sm:$0xff] %vm2724, %v9652
      %9698 = vst.msk [vmem:[#allocation3 + $0xc0] sm:$0xff] %vm2724, %v9655
      %9699 = vst.msk [vmem:[#allocation3 + $0xc8] sm:$0xff] %vm2724, %v9657
      %9700 = vst.msk [vmem:[#allocation3 + $0xd0] sm:$0xff] %vm2724, %v9660
      %9701 = vst.msk [vmem:[#allocation3 + $0xd8] sm:$0xff] %vm2724, %v9662
      %9702 = vst.msk [vmem:[#allocation3 + $0xe0] sm:$0xff] %vm2724, %v9665
      %9703 = vst.msk [vmem:[#allocation3 + $0xe8] sm:$0xff] %vm2724, %v9667
      %9704 = vst.msk [vmem:[#allocation3 + $0xf0] sm:$0xff] %vm2724, %v9670
      %9705 = vst.msk [vmem:[#allocation3 + $0xf8] sm:$0xff] %vm2724, %v9672
      %v9706 = vld [vmem:[#allocation5] sm:$0x1]
      %v9707 = vsel %vm2724, %v9595, 0.0
      %v9708 = vsel %vm2724, %v9597, 0.0
      %v9709 = vadd.f32 %v9707, %v9708
      %v9710 = vsel %vm2724, %v9600, 0.0
      %v9711 = vadd.f32 %v9709, %v9710
      %v9712 = vsel %vm2724, %v9602, 0.0
      %v9713 = vadd.f32 %v9711, %v9712
      %v9714 = vsel %vm2724, %v9605, 0.0
      %v9715 = vadd.f32 %v9713, %v9714
      %v9716 = vsel %vm2724, %v9607, 0.0
      %v9717 = vadd.f32 %v9715, %v9716
      %v9718 = vsel %vm2724, %v9610, 0.0
      %v9719 = vadd.f32 %v9717, %v9718
      %v9720 = vsel %vm2724, %v9612, 0.0
      %v9721 = vadd.f32 %v9719, %v9720
      %v9722 = vsel %vm2724, %v9615, 0.0
      %v9723 = vadd.f32 %v9721, %v9722
      %v9724 = vsel %vm2724, %v9617, 0.0
      %v9725 = vadd.f32 %v9723, %v9724
      %v9726 = vsel %vm2724, %v9620, 0.0
      %v9727 = vadd.f32 %v9725, %v9726
      %v9728 = vsel %vm2724, %v9622, 0.0
      %v9729 = vadd.f32 %v9727, %v9728
      %v9730 = vsel %vm2724, %v9625, 0.0
      %v9731 = vadd.f32 %v9729, %v9730
      %v9732 = vsel %vm2724, %v9627, 0.0
      %v9733 = vadd.f32 %v9731, %v9732
      %v9734 = vsel %vm2724, %v9630, 0.0
      %v9735 = vadd.f32 %v9733, %v9734
      %v9736 = vsel %vm2724, %v9632, 0.0
      %v9737 = vadd.f32 %v9735, %v9736
      %v9738 = vsel %vm2724, %v9635, 0.0
      %v9739 = vadd.f32 %v9737, %v9738
      %v9740 = vsel %vm2724, %v9637, 0.0
      %v9741 = vadd.f32 %v9739, %v9740
      %v9742 = vsel %vm2724, %v9640, 0.0
      %v9743 = vadd.f32 %v9741, %v9742
      %v9744 = vsel %vm2724, %v9642, 0.0
      %v9745 = vadd.f32 %v9743, %v9744
      %v9746 = vsel %vm2724, %v9645, 0.0
      %v9747 = vadd.f32 %v9745, %v9746
      %v9748 = vsel %vm2724, %v9647, 0.0
      %v9749 = vadd.f32 %v9747, %v9748
      %v9750 = vsel %vm2724, %v9650, 0.0
      %v9751 = vadd.f32 %v9749, %v9750
      %v9752 = vsel %vm2724, %v9652, 0.0
      %v9753 = vadd.f32 %v9751, %v9752
      %v9754 = vsel %vm2724, %v9655, 0.0
      %v9755 = vadd.f32 %v9753, %v9754
      %v9756 = vsel %vm2724, %v9657, 0.0
      %v9757 = vadd.f32 %v9755, %v9756
      %v9758 = vsel %vm2724, %v9660, 0.0
      %v9759 = vadd.f32 %v9757, %v9758
      %v9760 = vsel %vm2724, %v9662, 0.0
      %v9761 = vadd.f32 %v9759, %v9760
      %v9762 = vsel %vm2724, %v9665, 0.0
      %v9763 = vadd.f32 %v9761, %v9762
      %v9764 = vsel %vm2724, %v9667, 0.0
      %v9765 = vadd.f32 %v9763, %v9764
      %v9766 = vsel %vm2724, %v9670, 0.0
      %v9767 = vadd.f32 %v9765, %v9766
      %v9768 = vsel %vm2724, %v9672, 0.0
      %v9769 = vadd.f32 %v9767, %v9768
      %v9770 = vrot.slane %v9769, 4
      %v9771 = vadd.f32 %v9769, %v9770
      %v9772 = vrot.slane %v9771, 2
      %v9773 = vadd.f32 %v9771, %v9772
      %v9774 = vrot.slane %v9773, 1
      %v9775 = vadd.f32 %v9773, %v9774
      %v9776 = vadd.f32 %v9706, %v9775
      %9777 = vst.msk [vmem:[#allocation5] sm:$0x1] %vm990, %v9776
      %v9778 = vld [vmem:[#allocation6] sm:$0x1]
      %v9779 = vmul.f32 %v9595, %v9595
      %v9780 = vmul.f32 %v9597, %v9597
      %v9781 = vmul.f32 %v9600, %v9600
      %v9782 = vmul.f32 %v9602, %v9602
      %v9783 = vmul.f32 %v9605, %v9605
      %v9784 = vmul.f32 %v9607, %v9607
      %v9785 = vmul.f32 %v9610, %v9610
      %v9786 = vmul.f32 %v9612, %v9612
      %v9787 = vmul.f32 %v9615, %v9615
      %v9788 = vmul.f32 %v9617, %v9617
      %v9789 = vmul.f32 %v9620, %v9620
      %v9790 = vmul.f32 %v9622, %v9622
      %v9791 = vmul.f32 %v9625, %v9625
      %v9792 = vmul.f32 %v9627, %v9627
      %v9793 = vmul.f32 %v9630, %v9630
      %v9794 = vmul.f32 %v9632, %v9632
      %v9795 = vmul.f32 %v9635, %v9635
      %v9796 = vmul.f32 %v9637, %v9637
      %v9797 = vmul.f32 %v9640, %v9640
      %v9798 = vmul.f32 %v9642, %v9642
      %v9799 = vmul.f32 %v9645, %v9645
      %v9800 = vmul.f32 %v9647, %v9647
      %v9801 = vmul.f32 %v9650, %v9650
      %v9802 = vmul.f32 %v9652, %v9652
      %v9803 = vmul.f32 %v9655, %v9655
      %v9804 = vmul.f32 %v9657, %v9657
      %v9805 = vmul.f32 %v9660, %v9660
      %v9806 = vmul.f32 %v9662, %v9662
      %v9807 = vmul.f32 %v9665, %v9665
      %v9808 = vmul.f32 %v9667, %v9667
      %v9809 = vmul.f32 %v9670, %v9670
      %v9810 = vmul.f32 %v9672, %v9672
      %v9811 = vsel %vm2724, %v9779, 0.0
      %v9812 = vsel %vm2724, %v9780, 0.0
      %v9813 = vadd.f32 %v9811, %v9812
      %v9814 = vsel %vm2724, %v9781, 0.0
      %v9815 = vadd.f32 %v9813, %v9814
      %v9816 = vsel %vm2724, %v9782, 0.0
      %v9817 = vadd.f32 %v9815, %v9816
      %v9818 = vsel %vm2724, %v9783, 0.0
      %v9819 = vadd.f32 %v9817, %v9818
      %v9820 = vsel %vm2724, %v9784, 0.0
      %v9821 = vadd.f32 %v9819, %v9820
      %v9822 = vsel %vm2724, %v9785, 0.0
      %v9823 = vadd.f32 %v9821, %v9822
      %v9824 = vsel %vm2724, %v9786, 0.0
      %v9825 = vadd.f32 %v9823, %v9824
      %v9826 = vsel %vm2724, %v9787, 0.0
      %v9827 = vadd.f32 %v9825, %v9826
      %v9828 = vsel %vm2724, %v9788, 0.0
      %v9829 = vadd.f32 %v9827, %v9828
      %v9830 = vsel %vm2724, %v9789, 0.0
      %v9831 = vadd.f32 %v9829, %v9830
      %v9832 = vsel %vm2724, %v9790, 0.0
      %v9833 = vadd.f32 %v9831, %v9832
      %v9834 = vsel %vm2724, %v9791, 0.0
      %v9835 = vadd.f32 %v9833, %v9834
      %v9836 = vsel %vm2724, %v9792, 0.0
      %v9837 = vadd.f32 %v9835, %v9836
      %v9838 = vsel %vm2724, %v9793, 0.0
      %v9839 = vadd.f32 %v9837, %v9838
      %v9840 = vsel %vm2724, %v9794, 0.0
      %v9841 = vadd.f32 %v9839, %v9840
      %v9842 = vsel %vm2724, %v9795, 0.0
      %v9843 = vadd.f32 %v9841, %v9842
      %v9844 = vsel %vm2724, %v9796, 0.0
      %v9845 = vadd.f32 %v9843, %v9844
      %v9846 = vsel %vm2724, %v9797, 0.0
      %v9847 = vadd.f32 %v9845, %v9846
      %v9848 = vsel %vm2724, %v9798, 0.0
      %v9849 = vadd.f32 %v9847, %v9848
      %v9850 = vsel %vm2724, %v9799, 0.0
      %v9851 = vadd.f32 %v9849, %v9850
      %v9852 = vsel %vm2724, %v9800, 0.0
      %v9853 = vadd.f32 %v9851, %v9852
      %v9854 = vsel %vm2724, %v9801, 0.0
      %v9855 = vadd.f32 %v9853, %v9854
      %v9856 = vsel %vm2724, %v9802, 0.0
      %v9857 = vadd.f32 %v9855, %v9856
      %v9858 = vsel %vm2724, %v9803, 0.0
      %v9859 = vadd.f32 %v9857, %v9858
      %v9860 = vsel %vm2724, %v9804, 0.0
      %v9861 = vadd.f32 %v9859, %v9860
      %v9862 = vsel %vm2724, %v9805, 0.0
      %v9863 = vadd.f32 %v9861, %v9862
      %v9864 = vsel %vm2724, %v9806, 0.0
      %v9865 = vadd.f32 %v9863, %v9864
      %v9866 = vsel %vm2724, %v9807, 0.0
      %v9867 = vadd.f32 %v9865, %v9866
      %v9868 = vsel %vm2724, %v9808, 0.0
      %v9869 = vadd.f32 %v9867, %v9868
      %v9870 = vsel %vm2724, %v9809, 0.0
      %v9871 = vadd.f32 %v9869, %v9870
      %v9872 = vsel %vm2724, %v9810, 0.0
      %v9873 = vadd.f32 %v9871, %v9872
      %v9874 = vrot.slane %v9873, 4
      %v9875 = vadd.f32 %v9873, %v9874
      %v9876 = vrot.slane %v9875, 2
      %v9877 = vadd.f32 %v9875, %v9876
      %v9878 = vrot.slane %v9877, 1
      %v9879 = vadd.f32 %v9877, %v9878
      %v9880 = vadd.f32 %v9778, %v9879
      %9881 = vst.msk [vmem:[#allocation6] sm:$0x1] %vm990, %v9880
      %v9882 = vld [vmem:[#allocation5] sm:$0x1]
      %v9883 = vmul.f32 %v9882, 0.00390625
      %v9884 = vld [vmem:[#allocation6] sm:$0x1]
      %v9885 = vmul.f32 %v9884, 0.00390625
      %v9886 = vmul.f32 %v9883, %v9883
      %v9887 = vsub.f32 %v9885, %v9886
      %v9888 = vadd.f32 %v9887, 1e-05
      %v9889 = vrsqrt.pop %v9888
      %v9890 = vmul.f32 %v9889, %v9888
      %v9891 = vmul.f32 %v9890, %v9889
      %v9892 = vmul.f32 0.5, %v9891
      %v9893 = vsub.f32 1.5, %v9892
      %v9894 = vmul.f32 %v9889, %v9893
      %vm9895 = vweird.f32 %v9888
      %vm9896 = vweird.f32 %v9889
      %vm9897 = vmor %vm9895, %vm9896
      %v9898 = vsel %vm9897, %v9889, %v9894
      %v9899 = vld [vmem:[#allocation3] sm:$0xff]
      %v9900 = vld [vmem:[#allocation3 + $0x8] sm:$0xff]
      %v9901 = vld [vmem:[#allocation3 + $0x10] sm:$0xff]
      %v9902 = vld [vmem:[#allocation3 + $0x18] sm:$0xff]
      %v9903 = vld [vmem:[#allocation3 + $0x20] sm:$0xff]
      %v9904 = vld [vmem:[#allocation3 + $0x28] sm:$0xff]
      %v9905 = vld [vmem:[#allocation3 + $0x30] sm:$0xff]
      %v9906 = vld [vmem:[#allocation3 + $0x38] sm:$0xff]
      %v9907 = vld [vmem:[#allocation3 + $0x40] sm:$0xff]
      %v9908 = vld [vmem:[#allocation3 + $0x48] sm:$0xff]
      %v9909 = vld [vmem:[#allocation3 + $0x50] sm:$0xff]
      %v9910 = vld [vmem:[#allocation3 + $0x58] sm:$0xff]
      %v9911 = vld [vmem:[#allocation3 + $0x60] sm:$0xff]
      %v9912 = vld [vmem:[#allocation3 + $0x68] sm:$0xff]
      %v9913 = vld [vmem:[#allocation3 + $0x70] sm:$0xff]
      %v9914 = vld [vmem:[#allocation3 + $0x78] sm:$0xff]
      %v9915 = vld [vmem:[#allocation3 + $0x80] sm:$0xff]
      %v9916 = vld [vmem:[#allocation3 + $0x88] sm:$0xff]
      %v9917 = vld [vmem:[#allocation3 + $0x90] sm:$0xff]
      %v9918 = vld [vmem:[#allocation3 + $0x98] sm:$0xff]
      %v9919 = vld [vmem:[#allocation3 + $0xa0] sm:$0xff]
      %v9920 = vld [vmem:[#allocation3 + $0xa8] sm:$0xff]
      %v9921 = vld [vmem:[#allocation3 + $0xb0] sm:$0xff]
      %v9922 = vld [vmem:[#allocation3 + $0xb8] sm:$0xff]
      %v9923 = vld [vmem:[#allocation3 + $0xc0] sm:$0xff]
      %v9924 = vld [vmem:[#allocation3 + $0xc8] sm:$0xff]
      %v9925 = vld [vmem:[#allocation3 + $0xd0] sm:$0xff]
      %v9926 = vld [vmem:[#allocation3 + $0xd8] sm:$0xff]
      %v9927 = vld [vmem:[#allocation3 + $0xe0] sm:$0xff]
      %v9928 = vld [vmem:[#allocation3 + $0xe8] sm:$0xff]
      %v9929 = vld [vmem:[#allocation3 + $0xf0] sm:$0xff]
      %v9930 = vld [vmem:[#allocation3 + $0xf8] sm:$0xff]
      %v9932 = vperm.slane %v9883, 0
      %v9934 = vsub.f32 %v9899, %v9932
      %v9935 = vsub.f32 %v9900, %v9932
      %v9936 = vsub.f32 %v9901, %v9932
      %v9937 = vsub.f32 %v9902, %v9932
      %v9938 = vsub.f32 %v9903, %v9932
      %v9939 = vsub.f32 %v9904, %v9932
      %v9940 = vsub.f32 %v9905, %v9932
      %v9941 = vsub.f32 %v9906, %v9932
      %v9942 = vsub.f32 %v9907, %v9932
      %v9943 = vsub.f32 %v9908, %v9932
      %v9944 = vsub.f32 %v9909, %v9932
      %v9945 = vsub.f32 %v9910, %v9932
      %v9946 = vsub.f32 %v9911, %v9932
      %v9947 = vsub.f32 %v9912, %v9932
      %v9948 = vsub.f32 %v9913, %v9932
      %v9949 = vsub.f32 %v9914, %v9932
      %v9950 = vsub.f32 %v9915, %v9932
      %v9951 = vsub.f32 %v9916, %v9932
      %v9952 = vsub.f32 %v9917, %v9932
      %v9953 = vsub.f32 %v9918, %v9932
      %v9954 = vsub.f32 %v9919, %v9932
      %v9955 = vsub.f32 %v9920, %v9932
      %v9956 = vsub.f32 %v9921, %v9932
      %v9957 = vsub.f32 %v9922, %v9932
      %v9958 = vsub.f32 %v9923, %v9932
      %v9959 = vsub.f32 %v9924, %v9932
      %v9960 = vsub.f32 %v9925, %v9932
      %v9961 = vsub.f32 %v9926, %v9932
      %v9962 = vsub.f32 %v9927, %v9932
      %v9963 = vsub.f32 %v9928, %v9932
      %v9964 = vsub.f32 %v9929, %v9932
      %v9965 = vsub.f32 %v9930, %v9932
      %v9967 = vperm.slane %v9898, 0
      %v9969 = vmul.f32 %v9934, %v9967
      %v9970 = vmul.f32 %v9935, %v9967
      %v9971 = vmul.f32 %v9936, %v9967
      %v9972 = vmul.f32 %v9937, %v9967
      %v9973 = vmul.f32 %v9938, %v9967
      %v9974 = vmul.f32 %v9939, %v9967
      %v9975 = vmul.f32 %v9940, %v9967
      %v9976 = vmul.f32 %v9941, %v9967
      %v9977 = vmul.f32 %v9942, %v9967
      %v9978 = vmul.f32 %v9943, %v9967
      %v9979 = vmul.f32 %v9944, %v9967
      %v9980 = vmul.f32 %v9945, %v9967
      %v9981 = vmul.f32 %v9946, %v9967
      %v9982 = vmul.f32 %v9947, %v9967
      %v9983 = vmul.f32 %v9948, %v9967
      %v9984 = vmul.f32 %v9949, %v9967
      %v9985 = vmul.f32 %v9950, %v9967
      %v9986 = vmul.f32 %v9951, %v9967
      %v9987 = vmul.f32 %v9952, %v9967
      %v9988 = vmul.f32 %v9953, %v9967
      %v9989 = vmul.f32 %v9954, %v9967
      %v9990 = vmul.f32 %v9955, %v9967
      %v9991 = vmul.f32 %v9956, %v9967
      %v9992 = vmul.f32 %v9957, %v9967
      %v9993 = vmul.f32 %v9958, %v9967
      %v9994 = vmul.f32 %v9959, %v9967
      %v9995 = vmul.f32 %v9960, %v9967
      %v9996 = vmul.f32 %v9961, %v9967
      %v9997 = vmul.f32 %v9962, %v9967
      %v9998 = vmul.f32 %v9963, %v9967
      %v9999 = vmul.f32 %v9964, %v9967
      %v10000 = vmul.f32 %v9965, %v9967
      %v10001 = vld [vmem:[#allocation4] sm:$0xf]
      %v10002 = vld [vmem:[#allocation4 + $0x4] sm:$0xf]
      %v10003 = vld [vmem:[#allocation4 + $0x8] sm:$0xf]
      %v10004 = vld [vmem:[#allocation4 + $0xc] sm:$0xf]
      %v10005 = vld [vmem:[#allocation4 + $0x10] sm:$0xf]
      %v10006 = vld [vmem:[#allocation4 + $0x14] sm:$0xf]
      %v10007 = vld [vmem:[#allocation4 + $0x18] sm:$0xf]
      %v10008 = vld [vmem:[#allocation4 + $0x1c] sm:$0xf]
      %v10009 = vld [vmem:[#allocation4 + $0x20] sm:$0xf]
      %v10010 = vld [vmem:[#allocation4 + $0x24] sm:$0xf]
      %v10011 = vld [vmem:[#allocation4 + $0x28] sm:$0xf]
      %v10012 = vld [vmem:[#allocation4 + $0x2c] sm:$0xf]
      %v10013 = vld [vmem:[#allocation4 + $0x30] sm:$0xf]
      %v10014 = vld [vmem:[#allocation4 + $0x34] sm:$0xf]
      %v10015 = vld [vmem:[#allocation4 + $0x38] sm:$0xf]
      %v10016 = vld [vmem:[#allocation4 + $0x3c] sm:$0xf]
      %v10017 = vld [vmem:[#allocation4 + $0x40] sm:$0xf]
      %v10018 = vld [vmem:[#allocation4 + $0x44] sm:$0xf]
      %v10019 = vld [vmem:[#allocation4 + $0x48] sm:$0xf]
      %v10020 = vld [vmem:[#allocation4 + $0x4c] sm:$0xf]
      %v10021 = vld [vmem:[#allocation4 + $0x50] sm:$0xf]
      %v10022 = vld [vmem:[#allocation4 + $0x54] sm:$0xf]
      %v10023 = vld [vmem:[#allocation4 + $0x58] sm:$0xf]
      %v10024 = vld [vmem:[#allocation4 + $0x5c] sm:$0xf]
      %v10025 = vld [vmem:[#allocation4 + $0x60] sm:$0xf]
      %v10026 = vld [vmem:[#allocation4 + $0x64] sm:$0xf]
      %v10027 = vld [vmem:[#allocation4 + $0x68] sm:$0xf]
      %v10028 = vld [vmem:[#allocation4 + $0x6c] sm:$0xf]
      %v10029 = vld [vmem:[#allocation4 + $0x70] sm:$0xf]
      %v10030 = vld [vmem:[#allocation4 + $0x74] sm:$0xf]
      %v10031 = vld [vmem:[#allocation4 + $0x78] sm:$0xf]
      %v10032 = vld [vmem:[#allocation4 + $0x7c] sm:$0xf]
      %v10033 = vunpack.c.l.bf16 %v10001
      %v10034 = vunpack.c.l.bf16 %v10002
      %v10035 = vunpack.c.l.bf16 %v10003
      %v10036 = vunpack.c.l.bf16 %v10004
      %v10037 = vunpack.c.l.bf16 %v10005
      %v10038 = vunpack.c.l.bf16 %v10006
      %v10039 = vunpack.c.l.bf16 %v10007
      %v10040 = vunpack.c.l.bf16 %v10008
      %v10041 = vunpack.c.l.bf16 %v10009
      %v10042 = vunpack.c.l.bf16 %v10010
      %v10043 = vunpack.c.l.bf16 %v10011
      %v10044 = vunpack.c.l.bf16 %v10012
      %v10045 = vunpack.c.l.bf16 %v10013
      %v10046 = vunpack.c.l.bf16 %v10014
      %v10047 = vunpack.c.l.bf16 %v10015
      %v10048 = vunpack.c.l.bf16 %v10016
      %v10049 = vunpack.c.l.bf16 %v10017
      %v10050 = vunpack.c.l.bf16 %v10018
      %v10051 = vunpack.c.l.bf16 %v10019
      %v10052 = vunpack.c.l.bf16 %v10020
      %v10053 = vunpack.c.l.bf16 %v10021
      %v10054 = vunpack.c.l.bf16 %v10022
      %v10055 = vunpack.c.l.bf16 %v10023
      %v10056 = vunpack.c.l.bf16 %v10024
      %v10057 = vunpack.c.l.bf16 %v10025
      %v10058 = vunpack.c.l.bf16 %v10026
      %v10059 = vunpack.c.l.bf16 %v10027
      %v10060 = vunpack.c.l.bf16 %v10028
      %v10061 = vunpack.c.l.bf16 %v10029
      %v10062 = vunpack.c.l.bf16 %v10030
      %v10063 = vunpack.c.l.bf16 %v10031
      %v10064 = vunpack.c.l.bf16 %v10032
      %v10065 = vadd.f32 %v9969, %v10033
      %v10066 = vadd.f32 %v9970, %v10034
      %v10067 = vadd.f32 %v9971, %v10035
      %v10068 = vadd.f32 %v9972, %v10036
      %v10069 = vadd.f32 %v9973, %v10037
      %v10070 = vadd.f32 %v9974, %v10038
      %v10071 = vadd.f32 %v9975, %v10039
      %v10072 = vadd.f32 %v9976, %v10040
      %v10073 = vadd.f32 %v9977, %v10041
      %v10074 = vadd.f32 %v9978, %v10042
      %v10075 = vadd.f32 %v9979, %v10043
      %v10076 = vadd.f32 %v9980, %v10044
      %v10077 = vadd.f32 %v9981, %v10045
      %v10078 = vadd.f32 %v9982, %v10046
      %v10079 = vadd.f32 %v9983, %v10047
      %v10080 = vadd.f32 %v9984, %v10048
      %v10081 = vadd.f32 %v9985, %v10049
      %v10082 = vadd.f32 %v9986, %v10050
      %v10083 = vadd.f32 %v9987, %v10051
      %v10084 = vadd.f32 %v9988, %v10052
      %v10085 = vadd.f32 %v9989, %v10053
      %v10086 = vadd.f32 %v9990, %v10054
      %v10087 = vadd.f32 %v9991, %v10055
      %v10088 = vadd.f32 %v9992, %v10056
      %v10089 = vadd.f32 %v9993, %v10057
      %v10090 = vadd.f32 %v9994, %v10058
      %v10091 = vadd.f32 %v9995, %v10059
      %v10092 = vadd.f32 %v9996, %v10060
      %v10093 = vadd.f32 %v9997, %v10061
      %v10094 = vadd.f32 %v9998, %v10062
      %v10095 = vadd.f32 %v9999, %v10063
      %v10096 = vadd.f32 %v10000, %v10064
      %vm10097 = vcmp.gt.f32.partialorder %v10065, 0.0
      %vm10098 = vcmp.gt.f32.partialorder %v10066, 0.0
      %vm10099 = vcmp.gt.f32.partialorder %v10067, 0.0
      %vm10100 = vcmp.gt.f32.partialorder %v10068, 0.0
      %vm10101 = vcmp.gt.f32.partialorder %v10069, 0.0
      %vm10102 = vcmp.gt.f32.partialorder %v10070, 0.0
      %vm10103 = vcmp.gt.f32.partialorder %v10071, 0.0
      %vm10104 = vcmp.gt.f32.partialorder %v10072, 0.0
      %vm10105 = vcmp.gt.f32.partialorder %v10073, 0.0
      %vm10106 = vcmp.gt.f32.partialorder %v10074, 0.0
      %vm10107 = vcmp.gt.f32.partialorder %v10075, 0.0
      %vm10108 = vcmp.gt.f32.partialorder %v10076, 0.0
      %vm10109 = vcmp.gt.f32.partialorder %v10077, 0.0
      %vm10110 = vcmp.gt.f32.partialorder %v10078, 0.0
      %vm10111 = vcmp.gt.f32.partialorder %v10079, 0.0
      %vm10112 = vcmp.gt.f32.partialorder %v10080, 0.0
      %vm10113 = vcmp.gt.f32.partialorder %v10081, 0.0
      %vm10114 = vcmp.gt.f32.partialorder %v10082, 0.0
      %vm10115 = vcmp.gt.f32.partialorder %v10083, 0.0
      %vm10116 = vcmp.gt.f32.partialorder %v10084, 0.0
      %vm10117 = vcmp.gt.f32.partialorder %v10085, 0.0
      %vm10118 = vcmp.gt.f32.partialorder %v10086, 0.0
      %vm10119 = vcmp.gt.f32.partialorder %v10087, 0.0
      %vm10120 = vcmp.gt.f32.partialorder %v10088, 0.0
      %vm10121 = vcmp.gt.f32.partialorder %v10089, 0.0
      %vm10122 = vcmp.gt.f32.partialorder %v10090, 0.0
      %vm10123 = vcmp.gt.f32.partialorder %v10091, 0.0
      %vm10124 = vcmp.gt.f32.partialorder %v10092, 0.0
      %vm10125 = vcmp.gt.f32.partialorder %v10093, 0.0
      %vm10126 = vcmp.gt.f32.partialorder %v10094, 0.0
      %vm10127 = vcmp.gt.f32.partialorder %v10095, 0.0
      %vm10128 = vcmp.gt.f32.partialorder %v10096, 0.0
      %v10129 = vmul.f32 %v10065, 0.25
      %v10130 = vmul.f32 %v10066, 0.25
      %v10131 = vmul.f32 %v10067, 0.25
      %v10132 = vmul.f32 %v10068, 0.25
      %v10133 = vmul.f32 %v10069, 0.25
      %v10134 = vmul.f32 %v10070, 0.25
      %v10135 = vmul.f32 %v10071, 0.25
      %v10136 = vmul.f32 %v10072, 0.25
      %v10137 = vmul.f32 %v10073, 0.25
      %v10138 = vmul.f32 %v10074, 0.25
      %v10139 = vmul.f32 %v10075, 0.25
      %v10140 = vmul.f32 %v10076, 0.25
      %v10141 = vmul.f32 %v10077, 0.25
      %v10142 = vmul.f32 %v10078, 0.25
      %v10143 = vmul.f32 %v10079, 0.25
      %v10144 = vmul.f32 %v10080, 0.25
      %v10145 = vmul.f32 %v10081, 0.25
      %v10146 = vmul.f32 %v10082, 0.25
      %v10147 = vmul.f32 %v10083, 0.25
      %v10148 = vmul.f32 %v10084, 0.25
      %v10149 = vmul.f32 %v10085, 0.25
      %v10150 = vmul.f32 %v10086, 0.25
      %v10151 = vmul.f32 %v10087, 0.25
      %v10152 = vmul.f32 %v10088, 0.25
      %v10153 = vmul.f32 %v10089, 0.25
      %v10154 = vmul.f32 %v10090, 0.25
      %v10155 = vmul.f32 %v10091, 0.25
      %v10156 = vmul.f32 %v10092, 0.25
      %v10157 = vmul.f32 %v10093, 0.25
      %v10158 = vmul.f32 %v10094, 0.25
      %v10159 = vmul.f32 %v10095, 0.25
      %v10160 = vmul.f32 %v10096, 0.25
      %v10161 = vsel %vm10097, %v10065, %v10129
      %v10162 = vsel %vm10098, %v10066, %v10130
      %v10163 = vsel %vm10099, %v10067, %v10131
      %v10164 = vsel %vm10100, %v10068, %v10132
      %v10165 = vsel %vm10101, %v10069, %v10133
      %v10166 = vsel %vm10102, %v10070, %v10134
      %v10167 = vsel %vm10103, %v10071, %v10135
      %v10168 = vsel %vm10104, %v10072, %v10136
      %v10169 = vsel %vm10105, %v10073, %v10137
      %v10170 = vsel %vm10106, %v10074, %v10138
      %v10171 = vsel %vm10107, %v10075, %v10139
      %v10172 = vsel %vm10108, %v10076, %v10140
      %v10173 = vsel %vm10109, %v10077, %v10141
      %v10174 = vsel %vm10110, %v10078, %v10142
      %v10175 = vsel %vm10111, %v10079, %v10143
      %v10176 = vsel %vm10112, %v10080, %v10144
      %v10177 = vsel %vm10113, %v10081, %v10145
      %v10178 = vsel %vm10114, %v10082, %v10146
      %v10179 = vsel %vm10115, %v10083, %v10147
      %v10180 = vsel %vm10116, %v10084, %v10148
      %v10181 = vsel %vm10117, %v10085, %v10149
      %v10182 = vsel %vm10118, %v10086, %v10150
      %v10183 = vsel %vm10119, %v10087, %v10151
      %v10184 = vsel %vm10120, %v10088, %v10152
      %v10185 = vsel %vm10121, %v10089, %v10153
      %v10186 = vsel %vm10122, %v10090, %v10154
      %v10187 = vsel %vm10123, %v10091, %v10155
      %v10188 = vsel %vm10124, %v10092, %v10156
      %v10189 = vsel %vm10125, %v10093, %v10157
      %v10190 = vsel %vm10126, %v10094, %v10158
      %v10191 = vsel %vm10127, %v10095, %v10159
      %v10192 = vsel %vm10128, %v10096, %v10160
      %v10193 = vpack.c.bf16 %v10161, %v10161
      %v10194 = vpack.c.bf16 %v10162, %v10162
      %v10195 = vpack.c.bf16 %v10163, %v10163
      %v10196 = vpack.c.bf16 %v10164, %v10164
      %v10197 = vpack.c.bf16 %v10165, %v10165
      %v10198 = vpack.c.bf16 %v10166, %v10166
      %v10199 = vpack.c.bf16 %v10167, %v10167
      %v10200 = vpack.c.bf16 %v10168, %v10168
      %v10201 = vpack.c.bf16 %v10169, %v10169
      %v10202 = vpack.c.bf16 %v10170, %v10170
      %v10203 = vpack.c.bf16 %v10171, %v10171
      %v10204 = vpack.c.bf16 %v10172, %v10172
      %v10205 = vpack.c.bf16 %v10173, %v10173
      %v10206 = vpack.c.bf16 %v10174, %v10174
      %v10207 = vpack.c.bf16 %v10175, %v10175
      %v10208 = vpack.c.bf16 %v10176, %v10176
      %v10209 = vpack.c.bf16 %v10177, %v10177
      %v10210 = vpack.c.bf16 %v10178, %v10178
      %v10211 = vpack.c.bf16 %v10179, %v10179
      %v10212 = vpack.c.bf16 %v10180, %v10180
      %v10213 = vpack.c.bf16 %v10181, %v10181
      %v10214 = vpack.c.bf16 %v10182, %v10182
      %v10215 = vpack.c.bf16 %v10183, %v10183
      %v10216 = vpack.c.bf16 %v10184, %v10184
      %v10217 = vpack.c.bf16 %v10185, %v10185
      %v10218 = vpack.c.bf16 %v10186, %v10186
      %v10219 = vpack.c.bf16 %v10187, %v10187
      %v10220 = vpack.c.bf16 %v10188, %v10188
      %v10221 = vpack.c.bf16 %v10189, %v10189
      %v10222 = vpack.c.bf16 %v10190, %v10190
      %v10223 = vpack.c.bf16 %v10191, %v10191
      %v10224 = vpack.c.bf16 %v10192, %v10192
      %10225 = vst.msk [vmem:[%s197] sm:$0xf] %vm682, %v10193
      %10226 = vst.msk [vmem:[%s197 + $0x4] sm:$0xf] %vm682, %v10194
      %10227 = vst.msk [vmem:[%s197 + $0x8] sm:$0xf] %vm682, %v10195
      %10228 = vst.msk [vmem:[%s197 + $0xc] sm:$0xf] %vm682, %v10196
      %10229 = vst.msk [vmem:[%s197 + $0x10] sm:$0xf] %vm682, %v10197
      %10230 = vst.msk [vmem:[%s197 + $0x14] sm:$0xf] %vm682, %v10198
      %10231 = vst.msk [vmem:[%s197 + $0x18] sm:$0xf] %vm682, %v10199
      %10232 = vst.msk [vmem:[%s197 + $0x1c] sm:$0xf] %vm682, %v10200
      %10233 = vst.msk [vmem:[%s197 + $0x20] sm:$0xf] %vm682, %v10201
      %10234 = vst.msk [vmem:[%s197 + $0x24] sm:$0xf] %vm682, %v10202
      %10235 = vst.msk [vmem:[%s197 + $0x28] sm:$0xf] %vm682, %v10203
      %10236 = vst.msk [vmem:[%s197 + $0x2c] sm:$0xf] %vm682, %v10204
      %10237 = vst.msk [vmem:[%s197 + $0x30] sm:$0xf] %vm682, %v10205
      %10238 = vst.msk [vmem:[%s197 + $0x34] sm:$0xf] %vm682, %v10206
      %10239 = vst.msk [vmem:[%s197 + $0x38] sm:$0xf] %vm682, %v10207
      %10240 = vst.msk [vmem:[%s197 + $0x3c] sm:$0xf] %vm682, %v10208
      %10241 = vst.msk [vmem:[%s197 + $0x40] sm:$0xf] %vm682, %v10209
      %10242 = vst.msk [vmem:[%s197 + $0x44] sm:$0xf] %vm682, %v10210
      %10243 = vst.msk [vmem:[%s197 + $0x48] sm:$0xf] %vm682, %v10211
      %10244 = vst.msk [vmem:[%s197 + $0x4c] sm:$0xf] %vm682, %v10212
      %10245 = vst.msk [vmem:[%s197 + $0x50] sm:$0xf] %vm682, %v10213
      %10246 = vst.msk [vmem:[%s197 + $0x54] sm:$0xf] %vm682, %v10214
      %10247 = vst.msk [vmem:[%s197 + $0x58] sm:$0xf] %vm682, %v10215
      %10248 = vst.msk [vmem:[%s197 + $0x5c] sm:$0xf] %vm682, %v10216
      %10249 = vst.msk [vmem:[%s197 + $0x60] sm:$0xf] %vm682, %v10217
      %10250 = vst.msk [vmem:[%s197 + $0x64] sm:$0xf] %vm682, %v10218
      %10251 = vst.msk [vmem:[%s197 + $0x68] sm:$0xf] %vm682, %v10219
      %10252 = vst.msk [vmem:[%s197 + $0x6c] sm:$0xf] %vm682, %v10220
      %10253 = vst.msk [vmem:[%s197 + $0x70] sm:$0xf] %vm682, %v10221
      %10254 = vst.msk [vmem:[%s197 + $0x74] sm:$0xf] %vm682, %v10222
      %10255 = vst.msk [vmem:[%s197 + $0x78] sm:$0xf] %vm682, %v10223
      %10256 = vst.msk [vmem:[%s197 + $0x7c] sm:$0xf] %vm682, %v10224
      %p10257 = scmp.lt.s32.totalorder %s15, 1
      %s10258 = scalar_select %p10257, %s15, 1
      %s10259 = smul.addr %s10258, 32
      %s10260 = smul.addr %s10259, 4
      %s10261 = scalar_lea.vmem %s4, %s10260
      // Predicated region
      $region37: #{tpu_custom_call.1} parent=35 // pred_check
        %p10262 = pneg %p122
      $region38: #{tpu_custom_call.1} parent=35 // pred_check_branch
        %10264 = sbr.rel (%p10262) target = $region40
      $region39: #{tpu_custom_call.1} parent=35 // pred_region
        _
      $region40: #{tpu_custom_call.1} parent=35 // pred_fallthru
        _
    $region36: #{tpu_custom_call.1} parent=5 // pred_fallthru
      _
    %p10265 = scmp.le.s32.totalorder 2, %s10
    // Predicated region
    $region41: #{tpu_custom_call.1} parent=5 // pred_check
      %p10266 = pneg %p10265
    $region42: #{tpu_custom_call.1} parent=5 // pred_check_branch
      %10268 = sbr.rel (%p10266) target = $region44
    $region43: #{tpu_custom_call.1} parent=5 // pred_region
      %s10269 = ssub.s32 %s10, 2
      // Predicated region
      $region45: #{tpu_custom_call.1} parent=43 // pred_check
        %p10270 = pneg %p128
      $region46: #{tpu_custom_call.1} parent=43 // pred_check_branch
        %10272 = sbr.rel (%p10270) target = $region48
      $region47: #{tpu_custom_call.1} parent=43 // pred_region
        %p10273 = scmp.lt.s32.totalorder %s16, 1
        %s10274 = scalar_select %p10273, %s16, 1
        %s10275 = smul.addr %s10274, 32
        %s10276 = smul.addr %s10275, 4
        %s10277 = scalar_lea.vmem %s4, %s10276
      $region48: #{tpu_custom_call.1} parent=43 // pred_fallthru
        _
    $region44: #{tpu_custom_call.1} parent=5 // pred_fallthru
      _
  $region6: #{tpu_custom_call.1} parent=0 // loop_footer
    %s14 = sadd.s32 1, %s10
  $region7: #{tpu_custom_call.1} parent=0 // loop_footer_branch
    %9 = sbr.rel target = $region3
  $region8: #{tpu_custom_call.1} parent=0 // loop_exit
    _

</llo_original>
